<compile_context>
chip_gen: v6e
topology: v6e:2x2x1
jax: 0.10.0
libtpu: 0.0.40
codegen_flags: <defaults>
</compile_context>

<pallas_src>
import functools
import math

import jax
import jax.numpy as jnp
from jax import lax
from jax.experimental import pallas as pl
from jax.experimental.pallas import tpu as pltpu


def _layernorm(v, gamma, beta, eps=1e-5):
    mu = jnp.mean(v, axis=-1, keepdims=True)
    var = jnp.mean((v - mu) ** 2, axis=-1, keepdims=True)
    return (v - mu) * lax.rsqrt(var + eps) * gamma + beta


def transformer_block_kernel(
    x_ref,            # (Bt, N, C)
    g1_ref, b1_ref,   # (1, C)      layernorm1 gamma/beta (f32)
    wqkv_ref,         # (C, 3C)     MXU dtype (bf16 by default)
    wproj_ref,        # (C, C)
    bproj_ref,        # (1, C)      f32
    g2_ref, b2_ref,   # (1, C)
    w1_ref,           # (C, Hf)
    bb1_ref,          # (1, Hf)     f32
    w2_ref,           # (Hf, C)
    bb2_ref,          # (1, C)      f32
    o_ref,            # (Bt, N, C)
    *, num_heads, gelu_approx,
):
    Bt, N, C = x_ref.shape
    hd = C // num_heads
    scale = hd ** (-0.5)
    mxu_dt = wqkv_ref.dtype          # dtype fed to the MXU

    # Fused batch slab: all dense GEMMs see M = Bt*N rows.
    x = x_ref[...].reshape(Bt * N, C).astype(jnp.float32)    # (M, C)

    # ---------------- Multi-head self-attention on LayerNorm(x) -------------
    h = _layernorm(x, g1_ref[...], b1_ref[...])
    qkv = jnp.dot(h.astype(mxu_dt), wqkv_ref[...],
                  preferred_element_type=jnp.float32)         # (M, 3C) f32

    # Fold 1/sqrt(hd) into q once (O(M*C)) instead of into the (N,N) scores.
    q = (qkv[:, 0 * C:1 * C] * scale).reshape(Bt, N, C).astype(mxu_dt)
    k = qkv[:, 1 * C:2 * C].reshape(Bt, N, C).astype(mxu_dt)
    v = qkv[:, 2 * C:3 * C].reshape(Bt, N, C).astype(mxu_dt)

    # Per-head attention, batched over the batch tile.  Softmax normalization
    # is applied AFTER p@v (O(N*hd) instead of O(N*N) VPU work per head) and
    # head outputs are assembled with a single lane-dense concatenate (no
    # VMEM scratch, no masked sub-lane stores).
    head_outs = []
    for hi in range(num_heads):
        sl = slice(hi * hd, (hi + 1) * hd)
        s = jnp.einsum("bqd,bkd->bqk", q[:, :, sl], k[:, :, sl],
                       preferred_element_type=jnp.float32)    # (Bt, N, N)
        s = s - jnp.max(s, axis=-1, keepdims=True)
        p = jnp.exp(s)                                        # un-normalized
        l = jnp.sum(p, axis=-1, keepdims=True)                # (Bt, N, 1)
        ho = jnp.einsum("bqk,bkd->bqd", p.astype(mxu_dt), v[:, :, sl],
                        preferred_element_type=jnp.float32)   # (Bt, N, hd)
        head_outs.append(ho * pl.reciprocal(l, approx=True))
    attn = jnp.concatenate(head_outs, axis=-1).reshape(Bt * N, C)

    proj = jnp.dot(attn.astype(mxu_dt), wproj_ref[...],
                   preferred_element_type=jnp.float32) + bproj_ref[...]
    x1 = x + proj                                             # residual 1

    # ---------------- MLP on LayerNorm(x1) ----------------------------------
    h2 = _layernorm(x1, g2_ref[...], b2_ref[...])
    f1 = jnp.dot(h2.astype(mxu_dt), w1_ref[...],
                 preferred_element_type=jnp.float32) + bb1_ref[...]
    if gelu_approx:
        # tanh GELU (routes most work to the EUP slot) -- opt-in, mainly v5e.
        f1 = jax.nn.gelu(f1, approximate=True)
    else:
        # exact (erf-based) GELU, matching torch.nn.GELU default
        f1 = 0.5 * f1 * (1.0 + lax.erf(f1 * (2.0 ** -0.5)))
    f2 = jnp.dot(f1.astype(mxu_dt), w2_ref[...],
                 preferred_element_type=jnp.float32) + bb2_ref[...]

    o_ref[...] = (x1 + f2).reshape(Bt, N, C).astype(o_ref.dtype)   # residual 2


# --------------------------- wrapper / tiling -------------------------------
def _nbytes(shape, dtype):
    return math.prod(shape) * jnp.dtype(dtype).itemsize


def _vmem_budget_bytes():
    """Per-chip VMEM budget with headroom for Mosaic internals / DMA descs."""
    cap = 64 * 1024 * 1024          # conservative (v7x-sized) fallback
    try:
        info = pltpu.get_tpu_info()
        c = getattr(info, "vmem_capacity_bytes", None)
        if c:
            cap = int(c)
    except Exception:
        pass
    return min(int(cap * 0.82), cap - (8 << 20))


def _per_step_vmem_bytes(block_b, N, C, Hf, num_heads, weight_bytes,
                         mxu_itemsize, weight_bufs):
    """Rough per-grid-step VMEM estimate (buffers + major intermediates)."""
    f32 = 4
    M = block_b * N
    io = 2 * 2 * M * C * f32                          # x/out tiles, double-buf
    inter = (M * 3 * C * (f32 + mxu_itemsize)         # qkv f32 + q/k/v casts
             + 2 * block_b * N * N * f32              # live scores + exp(p)
             + 4 * M * C * f32                        # head outs/attn/x1/h2
             + M * Hf * (f32 + mxu_itemsize)          # fc1 act (+ MXU cast)
             + M * C * f32)                           # fc2 out
    return io + inter + weight_bufs * weight_bytes


def _select_block_b(B, N, C, Hf, num_heads, weight_bytes, mxu_itemsize,
                    budget, target_rows=512):
    divisors = [d for d in range(1, B + 1) if B % d == 0]
    fitting = [d for d in divisors
               if _per_step_vmem_bytes(d, N, C, Hf, num_heads, weight_bytes,
                                       mxu_itemsize, weight_bufs=2) <= budget]
    if not fitting:
        raise ValueError(
            f"TransformerBlock tile does not fit the VMEM budget "
            f"({budget} bytes) even at block_b=1; reduce N/C/Hf or use a "
            f"flash-style blocked attention kernel.")
    reach = [d for d in fitting if d * N >= target_rows]
    # Smallest tile that reaches the MXU row target (keeps >1 grid step when
    # possible for megacore/pipelining); otherwise the biggest tile that fits.
    return min(reach) if reach else max(fitting)


def transformer_block(x, params, *, num_heads, block_b=None,
                      mxu_dtype=jnp.bfloat16, out_dtype=None,
                      gelu_approx=False):
    B, N, C = x.shape
    Hf = params["w1"].shape[1]
    assert C % num_heads == 0, "embed_dim must be divisible by num_heads"
    assert N % 8 == 0, "sequence length must be sublane (8) aligned"

    f32 = jnp.float32
    out_dtype = x.dtype if out_dtype is None else out_dtype

    ordered = [
        params["ln1_g"].astype(f32), params["ln1_b"].astype(f32),
        params["wqkv"].astype(mxu_dtype),
        params["wproj"].astype(mxu_dtype), params["bproj"].astype(f32),
        params["ln2_g"].astype(f32), params["ln2_b"].astype(f32),
        params["w1"].astype(mxu_dtype), params["b1"].astype(f32),
        params["w2"].astype(mxu_dtype), params["b2"].astype(f32),
    ]

    weight_bytes = sum(_nbytes(p.shape, p.dtype) for p in ordered)
    mxu_itemsize = jnp.dtype(mxu_dtype).itemsize
    budget = _vmem_budget_bytes()

    if block_b is None:
        block_b = _select_block_b(B, N, C, Hf, num_heads, weight_bytes,
                                  mxu_itemsize, budget)
    else:
        assert B % block_b == 0, "batch must be divisible by block_b"
        need = _per_step_vmem_bytes(block_b, N, C, Hf, num_heads,
                                    weight_bytes, mxu_itemsize, 2)
        if need > budget:
            raise ValueError(f"block_b={block_b} needs ~{need} bytes of VMEM, "
                             f"budget is {budget} bytes.")

    kernel = functools.partial(transformer_block_kernel,
                               num_heads=num_heads, gelu_approx=gelu_approx)

    # Advisory cost estimate so XLA schedules/overlaps neighbors sensibly.
    M = B * N
    hd = C // num_heads
    flops = (2 * M * C * (3 * C)                    # qkv
             + 2 * B * num_heads * N * N * hd * 2   # scores + p@v
             + 2 * M * C * C                        # proj
             + 2 * M * C * Hf * 2)                  # fc1 + fc2
    transcendentals = B * num_heads * N * N + M * Hf + 4 * M
    bytes_accessed = 2 * _nbytes(x.shape, x.dtype) + weight_bytes
    cost = pl.CostEstimate(flops=int(flops),
                           transcendentals=int(transcendentals),
                           bytes_accessed=int(bytes_accessed))

    x_spec = pl.BlockSpec((block_b, N, C), lambda b: (b, 0, 0))
    o_spec = pl.BlockSpec((block_b, N, C), lambda b: (b, 0, 0))

    def _weight_spec(p, single_buffer):
        nd = p.ndim
        idx = lambda b, _nd=nd: (0,) * _nd
        if single_buffer:
            # Grid-invariant weights: one VMEM buffer (Pallas DMAs them once).
            return pl.BlockSpec(p.shape, idx, pipeline_mode=pl.Buffered(1))
        return pl.BlockSpec(p.shape, idx)

    def _call(single_buffer_weights):
        grid_spec = pltpu.PrefetchScalarGridSpec(
            num_scalar_prefetch=0,
            grid=(B // block_b,),
            in_specs=[x_spec] + [_weight_spec(p, single_buffer_weights)
                                 for p in ordered],
            out_specs=o_spec,
        )
        return pl.pallas_call(
            kernel,
            out_shape=jax.ShapeDtypeStruct((B, N, C), out_dtype),
            grid_spec=grid_spec,
            compiler_params=pltpu.CompilerParams(
                dimension_semantics=("parallel",),
                vmem_limit_bytes=int(budget)),
            cost_estimate=cost,
        )(x, *ordered)

    try:
        return _call(True)
    except Exception:
        # TODO(synk): remove fallback once pipeline_mode=pl.Buffered(1) is
        # universally supported; double-buffered weights cost 2x VMEM.
        return _call(False)


# ----------------------- pure-JAX reference (for checking) -----------------
def reference_block(x, params, *, num_heads):
    B, N, C = x.shape
    hd = C // num_heads
    scale = hd ** (-0.5)

    def ln(v, g, b):
        mu = jnp.mean(v, -1, keepdims=True)
        var = jnp.mean((v - mu) ** 2, -1, keepdims=True)
        return (v - mu) / jnp.sqrt(var + 1e-5) * g + b

    h = ln(x, params["ln1_g"], params["ln1_b"])
    qkv = h @ params["wqkv"]                                 # (B, N, 3C)
    qkv = qkv.reshape(B, N, 3, num_heads, hd).transpose(2, 0, 3, 1, 4)
    q, k, v = qkv[0], qkv[1], qkv[2]                          # (B, H, N, hd)
    s = jnp.einsum("bhnd,bhmd->bhnm", q, k) * scale
    p = jax.nn.softmax(s, axis=-1)
    ao = jnp.einsum("bhnm,bhmd->bhnd", p, v).transpose(0, 2, 1, 3).reshape(B, N, C)
    x1 = x + ao @ params["wproj"] + params["bproj"]

    h2 = ln(x1, params["ln2_g"], params["ln2_b"])
    f1 = h2 @ params["w1"] + params["b1"]
    f1 = 0.5 * f1 * (1.0 + lax.erf(f1 / jnp.sqrt(2.0)))
    f2 = f1 @ params["w2"] + params["b2"]
    return x1 + f2


if __name__ == "__main__":
    B, N, C = 4, 16, 128           # small demo shape; C lane-dense
    num_heads = 4
    forward_expansion = 4
    Hf = forward_expansion * C

    key = jax.random.PRNGKey(0)
    ks = jax.random.split(key, 8)

    x = jax.random.normal(ks[0], (B, N, C), dtype=jnp.float32)

    params = {
        "ln1_g": jnp.ones((1, C), jnp.float32),
        "ln1_b": jnp.zeros((1, C), jnp.float32),
        "wqkv":  jax.random.normal(ks[1], (C, 3 * C), jnp.float32) * (1.0 / math.sqrt(C)),
        "wproj": jax.random.normal(ks[2], (C, C), jnp.float32) * (1.0 / math.sqrt(C)),
        "bproj": jax.random.normal(ks[3], (1, C), jnp.float32) * 0.01,
        "ln2_g": jnp.ones((1, C), jnp.float32),
        "ln2_b": jnp.zeros((1, C), jnp.float32),
        "w1":    jax.random.normal(ks[4], (C, Hf), jnp.float32) * (1.0 / math.sqrt(C)),
        "b1":    jax.random.normal(ks[5], (1, Hf), jnp.float32) * 0.01,
        "w2":    jax.random.normal(ks[6], (Hf, C), jnp.float32) * (1.0 / math.sqrt(Hf)),
        "b2":    jax.random.normal(ks[7], (1, C), jnp.float32) * 0.01,
    }

    out = transformer_block(x, params, num_heads=num_heads)
    out = jax.block_until_ready(out)

    ref = reference_block(x, params, num_heads=num_heads)
    assert out.shape == (B, N, C)
    # bf16 MXU inputs (f32 accumulation) -> loosened tolerance vs f32 reference
    assert jnp.allclose(out, ref, atol=5e-2, rtol=5e-2), "mismatch vs JAX reference"

    print("KERNEL_OK")
</pallas_src>

<mosaic_0001>
module attributes {stable_mosaic.version = 11 : i64} {
  func.func @transformer_block_kernel(%arg0: i32, %arg1: memref<4x16x128xf32, #tpu.memory_space<vmem>>, %arg2: memref<1x128xf32, #tpu.memory_space<vmem>>, %arg3: memref<1x128xf32, #tpu.memory_space<vmem>>, %arg4: memref<128x384xbf16, #tpu.memory_space<vmem>>, %arg5: memref<128x128xbf16, #tpu.memory_space<vmem>>, %arg6: memref<1x128xf32, #tpu.memory_space<vmem>>, %arg7: memref<1x128xf32, #tpu.memory_space<vmem>>, %arg8: memref<1x128xf32, #tpu.memory_space<vmem>>, %arg9: memref<128x512xbf16, #tpu.memory_space<vmem>>, %arg10: memref<1x512xf32, #tpu.memory_space<vmem>>, %arg11: memref<512x128xbf16, #tpu.memory_space<vmem>>, %arg12: memref<1x128xf32, #tpu.memory_space<vmem>>, %arg13: memref<4x16x128xf32, #tpu.memory_space<vmem>>) attributes {dimension_semantics = [#tpu.dimension_semantics<parallel>], iteration_bounds = array<i64: 1>, scalar_prefetch = 0 : i64, scratch_operands = 0 : i64, tpu.core_type = #tpu.core_type<tc>, window_params = [{transform_indices = @transform_0, window_bounds = array<i64: 4, 16, 128>}, {pipeline_mode = #tpu.pipeline_mode<synchronous>, transform_indices = @transform_1, window_bounds = array<i64: 1, 128>}, {pipeline_mode = #tpu.pipeline_mode<synchronous>, transform_indices = @transform_2, window_bounds = array<i64: 1, 128>}, {pipeline_mode = #tpu.pipeline_mode<synchronous>, transform_indices = @transform_3, window_bounds = array<i64: 128, 384>}, {pipeline_mode = #tpu.pipeline_mode<synchronous>, transform_indices = @transform_4, window_bounds = array<i64: 128, 128>}, {pipeline_mode = #tpu.pipeline_mode<synchronous>, transform_indices = @transform_5, window_bounds = array<i64: 1, 128>}, {pipeline_mode = #tpu.pipeline_mode<synchronous>, transform_indices = @transform_6, window_bounds = array<i64: 1, 128>}, {pipeline_mode = #tpu.pipeline_mode<synchronous>, transform_indices = @transform_7, window_bounds = array<i64: 1, 128>}, {pipeline_mode = #tpu.pipeline_mode<synchronous>, transform_indices = @transform_8, window_bounds = array<i64: 128, 512>}, {pipeline_mode = #tpu.pipeline_mode<synchronous>, transform_indices = @transform_9, window_bounds = array<i64: 1, 512>}, {pipeline_mode = #tpu.pipeline_mode<synchronous>, transform_indices = @transform_10, window_bounds = array<i64: 512, 128>}, {pipeline_mode = #tpu.pipeline_mode<synchronous>, transform_indices = @transform_11, window_bounds = array<i64: 1, 128>}, {transform_indices = @transform_12, window_bounds = array<i64: 4, 16, 128>}]} {
    %c0 = arith.constant 0 : index
    %c0_0 = arith.constant 0 : index
    %c0_1 = arith.constant 0 : index
    %0 = vector.load %arg1[%c0, %c0_0, %c0_1] : memref<4x16x128xf32, #tpu.memory_space<vmem>>, vector<4x16x128xf32>
    %1 = vector.shape_cast %0 : vector<4x16x128xf32> to vector<64x128xf32>
    %c0_2 = arith.constant 0 : index
    %c0_3 = arith.constant 0 : index
    %2 = vector.load %arg2[%c0_2, %c0_3] : memref<1x128xf32, #tpu.memory_space<vmem>>, vector<1x128xf32>
    %c0_4 = arith.constant 0 : index
    %c0_5 = arith.constant 0 : index
    %3 = vector.load %arg3[%c0_4, %c0_5] : memref<1x128xf32, #tpu.memory_space<vmem>>, vector<1x128xf32>
    %cst = arith.constant dense<0.000000e+00> : vector<64xf32>
    %4 = vector.multi_reduction <add>, %1, %cst [1] : vector<64x128xf32> to vector<64xf32>
    %5 = vector.shape_cast %4 : vector<64xf32> to vector<64x1xf32>
    %cst_6 = arith.constant 1.280000e+02 : f32
    %6 = vector.broadcast %cst_6 : f32 to vector<64x1xf32>
    %7 = arith.divf %5, %6 : vector<64x1xf32>
    %8 = vector.broadcast %7 : vector<64x1xf32> to vector<64x128xf32>
    %9 = arith.subf %1, %8 : vector<64x128xf32>
    %10 = arith.mulf %9, %9 : vector<64x128xf32>
    %cst_7 = arith.constant dense<0.000000e+00> : vector<64xf32>
    %11 = vector.multi_reduction <add>, %10, %cst_7 [1] : vector<64x128xf32> to vector<64xf32>
    %12 = vector.shape_cast %11 : vector<64xf32> to vector<64x1xf32>
    %cst_8 = arith.constant 1.280000e+02 : f32
    %13 = vector.broadcast %cst_8 : f32 to vector<64x1xf32>
    %14 = arith.divf %12, %13 : vector<64x1xf32>
    %15 = vector.broadcast %7 : vector<64x1xf32> to vector<64x128xf32>
    %16 = arith.subf %1, %15 : vector<64x128xf32>
    %cst_9 = arith.constant 9.99999974E-6 : f32
    %17 = vector.broadcast %cst_9 : f32 to vector<64x1xf32>
    %18 = arith.addf %14, %17 : vector<64x1xf32>
    %19 = math.rsqrt %18 : vector<64x1xf32>
    %20 = vector.broadcast %19 : vector<64x1xf32> to vector<64x128xf32>
    %21 = arith.mulf %16, %20 : vector<64x128xf32>
    %22 = vector.broadcast %2 : vector<1x128xf32> to vector<64x128xf32>
    %23 = arith.mulf %21, %22 : vector<64x128xf32>
    %24 = vector.broadcast %3 : vector<1x128xf32> to vector<64x128xf32>
    %25 = arith.addf %23, %24 : vector<64x128xf32>
    %26 = arith.truncf %25 : vector<64x128xf32> to vector<64x128xbf16>
    %c0_10 = arith.constant 0 : index
    %c0_11 = arith.constant 0 : index
    %27 = vector.load %arg4[%c0_10, %c0_11] : memref<128x384xbf16, #tpu.memory_space<vmem>>, vector<128x384xbf16>
    %cst_12 = arith.constant dense<0.000000e+00> : vector<64x384xf32>
    %28 = tpu.matmul %26, %27, %cst_12 {dimension_numbers = #tpu.dot_dimension_numbers<[1], [0], [0], [1], [0, 0, 1, 1], [], []>} : vector<64x128xbf16>, vector<128x384xbf16>, vector<64x384xf32> -> vector<64x384xf32>
    %29 = vector.extract_strided_slice %28 {offsets = [0, 0], sizes = [64, 128], strides = [1, 1]} : vector<64x384xf32> to vector<64x128xf32>
    %cst_13 = arith.constant 0.176776692 : f32
    %30 = vector.broadcast %cst_13 : f32 to vector<64x128xf32>
    %31 = arith.mulf %29, %30 : vector<64x128xf32>
    %32 = vector.shape_cast %31 : vector<64x128xf32> to vector<4x16x128xf32>
    %33 = arith.truncf %32 : vector<4x16x128xf32> to vector<4x16x128xbf16>
    %34 = vector.extract_strided_slice %28 {offsets = [0, 128], sizes = [64, 128], strides = [1, 1]} : vector<64x384xf32> to vector<64x128xf32>
    %35 = vector.shape_cast %34 : vector<64x128xf32> to vector<4x16x128xf32>
    %36 = arith.truncf %35 : vector<4x16x128xf32> to vector<4x16x128xbf16>
    %37 = vector.extract_strided_slice %28 {offsets = [0, 256], sizes = [64, 128], strides = [1, 1]} : vector<64x384xf32> to vector<64x128xf32>
    %38 = vector.shape_cast %37 : vector<64x128xf32> to vector<4x16x128xf32>
    %39 = arith.truncf %38 : vector<4x16x128xf32> to vector<4x16x128xbf16>
    %40 = vector.extract_strided_slice %33 {offsets = [0, 0, 0], sizes = [4, 16, 32], strides = [1, 1, 1]} : vector<4x16x128xbf16> to vector<4x16x32xbf16>
    %41 = vector.extract_strided_slice %36 {offsets = [0, 0, 0], sizes = [4, 16, 32], strides = [1, 1, 1]} : vector<4x16x128xbf16> to vector<4x16x32xbf16>
    "tpu.trace_start"() <{level = 10 : i32, message = "bqd,bkd->bqk"}> : () -> ()
    %cst_14 = arith.constant dense<0.000000e+00> : vector<4x16x16xf32>
    %42 = tpu.matmul %40, %41, %cst_14 {dimension_numbers = #tpu.dot_dimension_numbers<[2], [2], [1], [1], [0, 0, 0, 1, 1, 1], [0], [0]>} : vector<4x16x32xbf16>, vector<4x16x32xbf16>, vector<4x16x16xf32> -> vector<4x16x16xf32>
    "tpu.trace_stop"() : () -> ()
    %cst_15 = arith.constant dense<0xFF800000> : vector<4x16xf32>
    %43 = vector.multi_reduction <maximumf>, %42, %cst_15 [2] : vector<4x16x16xf32> to vector<4x16xf32>
    %44 = vector.shape_cast %43 : vector<4x16xf32> to vector<4x16x1xf32>
    %45 = vector.broadcast %44 : vector<4x16x1xf32> to vector<4x16x16xf32>
    %46 = arith.subf %42, %45 : vector<4x16x16xf32>
    %47 = math.exp %46 : vector<4x16x16xf32>
    %cst_16 = arith.constant dense<0.000000e+00> : vector<4x16xf32>
    %48 = vector.multi_reduction <add>, %47, %cst_16 [2] : vector<4x16x16xf32> to vector<4x16xf32>
    %49 = vector.shape_cast %48 : vector<4x16xf32> to vector<4x16x1xf32>
    %50 = arith.truncf %47 : vector<4x16x16xf32> to vector<4x16x16xbf16>
    %51 = vector.extract_strided_slice %39 {offsets = [0, 0, 0], sizes = [4, 16, 32], strides = [1, 1, 1]} : vector<4x16x128xbf16> to vector<4x16x32xbf16>
    "tpu.trace_start"() <{level = 10 : i32, message = "bqk,bkd->bqd"}> : () -> ()
    %cst_17 = arith.constant dense<0.000000e+00> : vector<4x16x32xf32>
    %52 = tpu.matmul %50, %51, %cst_17 {dimension_numbers = #tpu.dot_dimension_numbers<[2], [1], [1], [2], [0, 0, 0, 1, 1, 2], [0], [0]>} : vector<4x16x16xbf16>, vector<4x16x32xbf16>, vector<4x16x32xf32> -> vector<4x16x32xf32>
    "tpu.trace_stop"() : () -> ()
    %53 = tpu.reciprocal %49 {approx = true} : vector<4x16x1xf32> -> vector<4x16x1xf32>
    %54 = vector.broadcast %53 : vector<4x16x1xf32> to vector<4x16x32xf32>
    %55 = arith.mulf %52, %54 : vector<4x16x32xf32>
    %56 = vector.extract_strided_slice %33 {offsets = [0, 0, 32], sizes = [4, 16, 32], strides = [1, 1, 1]} : vector<4x16x128xbf16> to vector<4x16x32xbf16>
    %57 = vector.extract_strided_slice %36 {offsets = [0, 0, 32], sizes = [4, 16, 32], strides = [1, 1, 1]} : vector<4x16x128xbf16> to vector<4x16x32xbf16>
    "tpu.trace_start"() <{level = 10 : i32, message = "bqd,bkd->bqk"}> : () -> ()
    %cst_18 = arith.constant dense<0.000000e+00> : vector<4x16x16xf32>
    %58 = tpu.matmul %56, %57, %cst_18 {dimension_numbers = #tpu.dot_dimension_numbers<[2], [2], [1], [1], [0, 0, 0, 1, 1, 1], [0], [0]>} : vector<4x16x32xbf16>, vector<4x16x32xbf16>, vector<4x16x16xf32> -> vector<4x16x16xf32>
    "tpu.trace_stop"() : () -> ()
    %cst_19 = arith.constant dense<0xFF800000> : vector<4x16xf32>
    %59 = vector.multi_reduction <maximumf>, %58, %cst_19 [2] : vector<4x16x16xf32> to vector<4x16xf32>
    %60 = vector.shape_cast %59 : vector<4x16xf32> to vector<4x16x1xf32>
    %61 = vector.broadcast %60 : vector<4x16x1xf32> to vector<4x16x16xf32>
    %62 = arith.subf %58, %61 : vector<4x16x16xf32>
    %63 = math.exp %62 : vector<4x16x16xf32>
    %cst_20 = arith.constant dense<0.000000e+00> : vector<4x16xf32>
    %64 = vector.multi_reduction <add>, %63, %cst_20 [2] : vector<4x16x16xf32> to vector<4x16xf32>
    %65 = vector.shape_cast %64 : vector<4x16xf32> to vector<4x16x1xf32>
    %66 = arith.truncf %63 : vector<4x16x16xf32> to vector<4x16x16xbf16>
    %67 = vector.extract_strided_slice %39 {offsets = [0, 0, 32], sizes = [4, 16, 32], strides = [1, 1, 1]} : vector<4x16x128xbf16> to vector<4x16x32xbf16>
    "tpu.trace_start"() <{level = 10 : i32, message = "bqk,bkd->bqd"}> : () -> ()
    %cst_21 = arith.constant dense<0.000000e+00> : vector<4x16x32xf32>
    %68 = tpu.matmul %66, %67, %cst_21 {dimension_numbers = #tpu.dot_dimension_numbers<[2], [1], [1], [2], [0, 0, 0, 1, 1, 2], [0], [0]>} : vector<4x16x16xbf16>, vector<4x16x32xbf16>, vector<4x16x32xf32> -> vector<4x16x32xf32>
    "tpu.trace_stop"() : () -> ()
    %69 = tpu.reciprocal %65 {approx = true} : vector<4x16x1xf32> -> vector<4x16x1xf32>
    %70 = vector.broadcast %69 : vector<4x16x1xf32> to vector<4x16x32xf32>
    %71 = arith.mulf %68, %70 : vector<4x16x32xf32>
    %72 = vector.extract_strided_slice %33 {offsets = [0, 0, 64], sizes = [4, 16, 32], strides = [1, 1, 1]} : vector<4x16x128xbf16> to vector<4x16x32xbf16>
    %73 = vector.extract_strided_slice %36 {offsets = [0, 0, 64], sizes = [4, 16, 32], strides = [1, 1, 1]} : vector<4x16x128xbf16> to vector<4x16x32xbf16>
    "tpu.trace_start"() <{level = 10 : i32, message = "bqd,bkd->bqk"}> : () -> ()
    %cst_22 = arith.constant dense<0.000000e+00> : vector<4x16x16xf32>
    %74 = tpu.matmul %72, %73, %cst_22 {dimension_numbers = #tpu.dot_dimension_numbers<[2], [2], [1], [1], [0, 0, 0, 1, 1, 1], [0], [0]>} : vector<4x16x32xbf16>, vector<4x16x32xbf16>, vector<4x16x16xf32> -> vector<4x16x16xf32>
    "tpu.trace_stop"() : () -> ()
    %cst_23 = arith.constant dense<0xFF800000> : vector<4x16xf32>
    %75 = vector.multi_reduction <maximumf>, %74, %cst_23 [2] : vector<4x16x16xf32> to vector<4x16xf32>
    %76 = vector.shape_cast %75 : vector<4x16xf32> to vector<4x16x1xf32>
    %77 = vector.broadcast %76 : vector<4x16x1xf32> to vector<4x16x16xf32>
    %78 = arith.subf %74, %77 : vector<4x16x16xf32>
    %79 = math.exp %78 : vector<4x16x16xf32>
    %cst_24 = arith.constant dense<0.000000e+00> : vector<4x16xf32>
    %80 = vector.multi_reduction <add>, %79, %cst_24 [2] : vector<4x16x16xf32> to vector<4x16xf32>
    %81 = vector.shape_cast %80 : vector<4x16xf32> to vector<4x16x1xf32>
    %82 = arith.truncf %79 : vector<4x16x16xf32> to vector<4x16x16xbf16>
    %83 = vector.extract_strided_slice %39 {offsets = [0, 0, 64], sizes = [4, 16, 32], strides = [1, 1, 1]} : vector<4x16x128xbf16> to vector<4x16x32xbf16>
    "tpu.trace_start"() <{level = 10 : i32, message = "bqk,bkd->bqd"}> : () -> ()
    %cst_25 = arith.constant dense<0.000000e+00> : vector<4x16x32xf32>
    %84 = tpu.matmul %82, %83, %cst_25 {dimension_numbers = #tpu.dot_dimension_numbers<[2], [1], [1], [2], [0, 0, 0, 1, 1, 2], [0], [0]>} : vector<4x16x16xbf16>, vector<4x16x32xbf16>, vector<4x16x32xf32> -> vector<4x16x32xf32>
    "tpu.trace_stop"() : () -> ()
    %85 = tpu.reciprocal %81 {approx = true} : vector<4x16x1xf32> -> vector<4x16x1xf32>
    %86 = vector.broadcast %85 : vector<4x16x1xf32> to vector<4x16x32xf32>
    %87 = arith.mulf %84, %86 : vector<4x16x32xf32>
    %88 = vector.extract_strided_slice %33 {offsets = [0, 0, 96], sizes = [4, 16, 32], strides = [1, 1, 1]} : vector<4x16x128xbf16> to vector<4x16x32xbf16>
    %89 = vector.extract_strided_slice %36 {offsets = [0, 0, 96], sizes = [4, 16, 32], strides = [1, 1, 1]} : vector<4x16x128xbf16> to vector<4x16x32xbf16>
    "tpu.trace_start"() <{level = 10 : i32, message = "bqd,bkd->bqk"}> : () -> ()
    %cst_26 = arith.constant dense<0.000000e+00> : vector<4x16x16xf32>
    %90 = tpu.matmul %88, %89, %cst_26 {dimension_numbers = #tpu.dot_dimension_numbers<[2], [2], [1], [1], [0, 0, 0, 1, 1, 1], [0], [0]>} : vector<4x16x32xbf16>, vector<4x16x32xbf16>, vector<4x16x16xf32> -> vector<4x16x16xf32>
    "tpu.trace_stop"() : () -> ()
    %cst_27 = arith.constant dense<0xFF800000> : vector<4x16xf32>
    %91 = vector.multi_reduction <maximumf>, %90, %cst_27 [2] : vector<4x16x16xf32> to vector<4x16xf32>
    %92 = vector.shape_cast %91 : vector<4x16xf32> to vector<4x16x1xf32>
    %93 = vector.broadcast %92 : vector<4x16x1xf32> to vector<4x16x16xf32>
    %94 = arith.subf %90, %93 : vector<4x16x16xf32>
    %95 = math.exp %94 : vector<4x16x16xf32>
    %cst_28 = arith.constant dense<0.000000e+00> : vector<4x16xf32>
    %96 = vector.multi_reduction <add>, %95, %cst_28 [2] : vector<4x16x16xf32> to vector<4x16xf32>
    %97 = vector.shape_cast %96 : vector<4x16xf32> to vector<4x16x1xf32>
    %98 = arith.truncf %95 : vector<4x16x16xf32> to vector<4x16x16xbf16>
    %99 = vector.extract_strided_slice %39 {offsets = [0, 0, 96], sizes = [4, 16, 32], strides = [1, 1, 1]} : vector<4x16x128xbf16> to vector<4x16x32xbf16>
    "tpu.trace_start"() <{level = 10 : i32, message = "bqk,bkd->bqd"}> : () -> ()
    %cst_29 = arith.constant dense<0.000000e+00> : vector<4x16x32xf32>
    %100 = tpu.matmul %98, %99, %cst_29 {dimension_numbers = #tpu.dot_dimension_numbers<[2], [1], [1], [2], [0, 0, 0, 1, 1, 2], [0], [0]>} : vector<4x16x16xbf16>, vector<4x16x32xbf16>, vector<4x16x32xf32> -> vector<4x16x32xf32>
    "tpu.trace_stop"() : () -> ()
    %101 = tpu.reciprocal %97 {approx = true} : vector<4x16x1xf32> -> vector<4x16x1xf32>
    %102 = vector.broadcast %101 : vector<4x16x1xf32> to vector<4x16x32xf32>
    %103 = arith.mulf %100, %102 : vector<4x16x32xf32>
    %104 = tpu.concatenate %55, %71, %87, %103 in 2 : vector<4x16x32xf32>, vector<4x16x32xf32>, vector<4x16x32xf32>, vector<4x16x32xf32> -> vector<4x16x128xf32>
    %105 = vector.shape_cast %104 : vector<4x16x128xf32> to vector<64x128xf32>
    %106 = arith.truncf %105 : vector<64x128xf32> to vector<64x128xbf16>
    %c0_30 = arith.constant 0 : index
    %c0_31 = arith.constant 0 : index
    %107 = vector.load %arg5[%c0_30, %c0_31] : memref<128x128xbf16, #tpu.memory_space<vmem>>, vector<128x128xbf16>
    %cst_32 = arith.constant dense<0.000000e+00> : vector<64x128xf32>
    %108 = tpu.matmul %106, %107, %cst_32 {dimension_numbers = #tpu.dot_dimension_numbers<[1], [0], [0], [1], [0, 0, 1, 1], [], []>} : vector<64x128xbf16>, vector<128x128xbf16>, vector<64x128xf32> -> vector<64x128xf32>
    %c0_33 = arith.constant 0 : index
    %c0_34 = arith.constant 0 : index
    %109 = vector.load %arg6[%c0_33, %c0_34] : memref<1x128xf32, #tpu.memory_space<vmem>>, vector<1x128xf32>
    %110 = vector.broadcast %109 : vector<1x128xf32> to vector<64x128xf32>
    %111 = arith.addf %108, %110 : vector<64x128xf32>
    %112 = arith.addf %1, %111 : vector<64x128xf32>
    %c0_35 = arith.constant 0 : index
    %c0_36 = arith.constant 0 : index
    %113 = vector.load %arg7[%c0_35, %c0_36] : memref<1x128xf32, #tpu.memory_space<vmem>>, vector<1x128xf32>
    %c0_37 = arith.constant 0 : index
    %c0_38 = arith.constant 0 : index
    %114 = vector.load %arg8[%c0_37, %c0_38] : memref<1x128xf32, #tpu.memory_space<vmem>>, vector<1x128xf32>
    %cst_39 = arith.constant dense<0.000000e+00> : vector<64xf32>
    %115 = vector.multi_reduction <add>, %112, %cst_39 [1] : vector<64x128xf32> to vector<64xf32>
    %116 = vector.shape_cast %115 : vector<64xf32> to vector<64x1xf32>
    %cst_40 = arith.constant 1.280000e+02 : f32
    %117 = vector.broadcast %cst_40 : f32 to vector<64x1xf32>
    %118 = arith.divf %116, %117 : vector<64x1xf32>
    %119 = vector.broadcast %118 : vector<64x1xf32> to vector<64x128xf32>
    %120 = arith.subf %112, %119 : vector<64x128xf32>
    %121 = arith.mulf %120, %120 : vector<64x128xf32>
    %cst_41 = arith.constant dense<0.000000e+00> : vector<64xf32>
    %122 = vector.multi_reduction <add>, %121, %cst_41 [1] : vector<64x128xf32> to vector<64xf32>
    %123 = vector.shape_cast %122 : vector<64xf32> to vector<64x1xf32>
    %cst_42 = arith.constant 1.280000e+02 : f32
    %124 = vector.broadcast %cst_42 : f32 to vector<64x1xf32>
    %125 = arith.divf %123, %124 : vector<64x1xf32>
    %126 = vector.broadcast %118 : vector<64x1xf32> to vector<64x128xf32>
    %127 = arith.subf %112, %126 : vector<64x128xf32>
    %cst_43 = arith.constant 9.99999974E-6 : f32
    %128 = vector.broadcast %cst_43 : f32 to vector<64x1xf32>
    %129 = arith.addf %125, %128 : vector<64x1xf32>
    %130 = math.rsqrt %129 : vector<64x1xf32>
    %131 = vector.broadcast %130 : vector<64x1xf32> to vector<64x128xf32>
    %132 = arith.mulf %127, %131 : vector<64x128xf32>
    %133 = vector.broadcast %113 : vector<1x128xf32> to vector<64x128xf32>
    %134 = arith.mulf %132, %133 : vector<64x128xf32>
    %135 = vector.broadcast %114 : vector<1x128xf32> to vector<64x128xf32>
    %136 = arith.addf %134, %135 : vector<64x128xf32>
    %137 = arith.truncf %136 : vector<64x128xf32> to vector<64x128xbf16>
    %c0_44 = arith.constant 0 : index
    %c0_45 = arith.constant 0 : index
    %138 = vector.load %arg9[%c0_44, %c0_45] : memref<128x512xbf16, #tpu.memory_space<vmem>>, vector<128x512xbf16>
    %cst_46 = arith.constant dense<0.000000e+00> : vector<64x512xf32>
    %139 = tpu.matmul %137, %138, %cst_46 {dimension_numbers = #tpu.dot_dimension_numbers<[1], [0], [0], [1], [0, 0, 1, 1], [], []>} : vector<64x128xbf16>, vector<128x512xbf16>, vector<64x512xf32> -> vector<64x512xf32>
    %c0_47 = arith.constant 0 : index
    %c0_48 = arith.constant 0 : index
    %140 = vector.load %arg10[%c0_47, %c0_48] : memref<1x512xf32, #tpu.memory_space<vmem>>, vector<1x512xf32>
    %141 = vector.broadcast %140 : vector<1x512xf32> to vector<64x512xf32>
    %142 = arith.addf %139, %141 : vector<64x512xf32>
    %cst_49 = arith.constant 5.000000e-01 : f32
    %143 = vector.broadcast %cst_49 : f32 to vector<64x512xf32>
    %144 = arith.mulf %143, %142 : vector<64x512xf32>
    %cst_50 = arith.constant 0.707106769 : f32
    %145 = vector.broadcast %cst_50 : f32 to vector<64x512xf32>
    %146 = arith.mulf %142, %145 : vector<64x512xf32>
    %147 = math.erf %146 : vector<64x512xf32>
    %cst_51 = arith.constant 1.000000e+00 : f32
    %148 = vector.broadcast %cst_51 : f32 to vector<64x512xf32>
    %149 = arith.addf %148, %147 : vector<64x512xf32>
    %150 = arith.mulf %144, %149 : vector<64x512xf32>
    %151 = arith.truncf %150 : vector<64x512xf32> to vector<64x512xbf16>
    %c0_52 = arith.constant 0 : index
    %c0_53 = arith.constant 0 : index
    %152 = vector.load %arg11[%c0_52, %c0_53] : memref<512x128xbf16, #tpu.memory_space<vmem>>, vector<512x128xbf16>
    %cst_54 = arith.constant dense<0.000000e+00> : vector<64x128xf32>
    %153 = tpu.matmul %151, %152, %cst_54 {dimension_numbers = #tpu.dot_dimension_numbers<[1], [0], [0], [1], [0, 0, 1, 1], [], []>} : vector<64x512xbf16>, vector<512x128xbf16>, vector<64x128xf32> -> vector<64x128xf32>
    %c0_55 = arith.constant 0 : index
    %c0_56 = arith.constant 0 : index
    %154 = vector.load %arg12[%c0_55, %c0_56] : memref<1x128xf32, #tpu.memory_space<vmem>>, vector<1x128xf32>
    %155 = vector.broadcast %154 : vector<1x128xf32> to vector<64x128xf32>
    %156 = arith.addf %153, %155 : vector<64x128xf32>
    %157 = arith.addf %112, %156 : vector<64x128xf32>
    %158 = vector.shape_cast %157 : vector<64x128xf32> to vector<4x16x128xf32>
    %c0_57 = arith.constant 0 : index
    %c0_58 = arith.constant 0 : index
    %c0_59 = arith.constant 0 : index
    %159 = vector.load %arg13[%c0_57, %c0_58, %c0_59] : memref<4x16x128xf32, #tpu.memory_space<vmem>>, vector<4x16x128xf32>
    tpu.vector_store %arg13[%c0_57, %c0_58, %c0_59], %158 {strides = array<i32>} : memref<4x16x128xf32, #tpu.memory_space<vmem>>, vector<4x16x128xf32>,
    return
  }
  func.func @transform_0(%arg0: i32) -> (i32, i32, i32) {
    %c0_i32 = arith.constant 0 : i32
    %c0_i32_0 = arith.constant 0 : i32
    %c0_i32_1 = arith.constant 0 : i32
    return %arg0, %c0_i32, %c0_i32_0 : i32, i32, i32
  }
  func.func @transform_1(%arg0: i32) -> (i32, i32) {
    %c0_i32 = arith.constant 0 : i32
    %c0_i32_0 = arith.constant 0 : i32
    %c0_i32_1 = arith.constant 0 : i32
    return %c0_i32, %c0_i32_0 : i32, i32
  }
  func.func @transform_2(%arg0: i32) -> (i32, i32) {
    %c0_i32 = arith.constant 0 : i32
    %c0_i32_0 = arith.constant 0 : i32
    %c0_i32_1 = arith.constant 0 : i32
    return %c0_i32, %c0_i32_0 : i32, i32
  }
  func.func @transform_3(%arg0: i32) -> (i32, i32) {
    %c0_i32 = arith.constant 0 : i32
    %c0_i32_0 = arith.constant 0 : i32
    %c0_i32_1 = arith.constant 0 : i32
    return %c0_i32, %c0_i32_0 : i32, i32
  }
  func.func @transform_4(%arg0: i32) -> (i32, i32) {
    %c0_i32 = arith.constant 0 : i32
    %c0_i32_0 = arith.constant 0 : i32
    %c0_i32_1 = arith.constant 0 : i32
    return %c0_i32, %c0_i32_0 : i32, i32
  }
  func.func @transform_5(%arg0: i32) -> (i32, i32) {
    %c0_i32 = arith.constant 0 : i32
    %c0_i32_0 = arith.constant 0 : i32
    %c0_i32_1 = arith.constant 0 : i32
    return %c0_i32, %c0_i32_0 : i32, i32
  }
  func.func @transform_6(%arg0: i32) -> (i32, i32) {
    %c0_i32 = arith.constant 0 : i32
    %c0_i32_0 = arith.constant 0 : i32
    %c0_i32_1 = arith.constant 0 : i32
    return %c0_i32, %c0_i32_0 : i32, i32
  }
  func.func @transform_7(%arg0: i32) -> (i32, i32) {
    %c0_i32 = arith.constant 0 : i32
    %c0_i32_0 = arith.constant 0 : i32
    %c0_i32_1 = arith.constant 0 : i32
    return %c0_i32, %c0_i32_0 : i32, i32
  }
  func.func @transform_8(%arg0: i32) -> (i32, i32) {
    %c0_i32 = arith.constant 0 : i32
    %c0_i32_0 = arith.constant 0 : i32
    %c0_i32_1 = arith.constant 0 : i32
    return %c0_i32, %c0_i32_0 : i32, i32
  }
  func.func @transform_9(%arg0: i32) -> (i32, i32) {
    %c0_i32 = arith.constant 0 : i32
    %c0_i32_0 = arith.constant 0 : i32
    %c0_i32_1 = arith.constant 0 : i32
    return %c0_i32, %c0_i32_0 : i32, i32
  }
  func.func @transform_10(%arg0: i32) -> (i32, i32) {
    %c0_i32 = arith.constant 0 : i32
    %c0_i32_0 = arith.constant 0 : i32
    %c0_i32_1 = arith.constant 0 : i32
    return %c0_i32, %c0_i32_0 : i32, i32
  }
  func.func @transform_11(%arg0: i32) -> (i32, i32) {
    %c0_i32 = arith.constant 0 : i32
    %c0_i32_0 = arith.constant 0 : i32
    %c0_i32_1 = arith.constant 0 : i32
    return %c0_i32, %c0_i32_0 : i32, i32
  }
  func.func @transform_12(%arg0: i32) -> (i32, i32, i32) {
    %c0_i32 = arith.constant 0 : i32
    %c0_i32_0 = arith.constant 0 : i32
    %c0_i32_1 = arith.constant 0 : i32
    return %arg0, %c0_i32, %c0_i32_0 : i32, i32, i32
  }
}

module attributes {stable_mosaic.version = 11 : i64} {
  func.func @transformer_block_kernel(%arg0: i32, %arg1: memref<4x16x128xf32, #tpu.memory_space<vmem>>, %arg2: memref<1x128xf32, #tpu.memory_space<vmem>>, %arg3: memref<1x128xf32, #tpu.memory_space<vmem>>, %arg4: memref<128x384xbf16, #tpu.memory_space<vmem>>, %arg5: memref<128x128xbf16, #tpu.memory_space<vmem>>, %arg6: memref<1x128xf32, #tpu.memory_space<vmem>>, %arg7: memref<1x128xf32, #tpu.memory_space<vmem>>, %arg8: memref<1x128xf32, #tpu.memory_space<vmem>>, %arg9: memref<128x512xbf16, #tpu.memory_space<vmem>>, %arg10: memref<1x512xf32, #tpu.memory_space<vmem>>, %arg11: memref<512x128xbf16, #tpu.memory_space<vmem>>, %arg12: memref<1x128xf32, #tpu.memory_space<vmem>>, %arg13: memref<4x16x128xf32, #tpu.memory_space<vmem>>) attributes {dimension_semantics = [#tpu.dimension_semantics<parallel>], iteration_bounds = array<i64: 1>, scalar_prefetch = 0 : i64, scratch_operands = 0 : i64, tpu.core_type = #tpu.core_type<tc>, window_params = [{transform_indices = @transform_0, window_bounds = array<i64: 4, 16, 128>}, {pipeline_mode = #tpu.pipeline_mode<synchronous>, transform_indices = @transform_1, window_bounds = array<i64: 1, 128>}, {pipeline_mode = #tpu.pipeline_mode<synchronous>, transform_indices = @transform_2, window_bounds = array<i64: 1, 128>}, {pipeline_mode = #tpu.pipeline_mode<synchronous>, transform_indices = @transform_3, window_bounds = array<i64: 128, 384>}, {pipeline_mode = #tpu.pipeline_mode<synchronous>, transform_indices = @transform_4, window_bounds = array<i64: 128, 128>}, {pipeline_mode = #tpu.pipeline_mode<synchronous>, transform_indices = @transform_5, window_bounds = array<i64: 1, 128>}, {pipeline_mode = #tpu.pipeline_mode<synchronous>, transform_indices = @transform_6, window_bounds = array<i64: 1, 128>}, {pipeline_mode = #tpu.pipeline_mode<synchronous>, transform_indices = @transform_7, window_bounds = array<i64: 1, 128>}, {pipeline_mode = #tpu.pipeline_mode<synchronous>, transform_indices = @transform_8, window_bounds = array<i64: 128, 512>}, {pipeline_mode = #tpu.pipeline_mode<synchronous>, transform_indices = @transform_9, window_bounds = array<i64: 1, 512>}, {pipeline_mode = #tpu.pipeline_mode<synchronous>, transform_indices = @transform_10, window_bounds = array<i64: 512, 128>}, {pipeline_mode = #tpu.pipeline_mode<synchronous>, transform_indices = @transform_11, window_bounds = array<i64: 1, 128>}, {transform_indices = @transform_12, window_bounds = array<i64: 4, 16, 128>}]} {
    %c0 = arith.constant 0 : index
    %c0_0 = arith.constant 0 : index
    %c0_1 = arith.constant 0 : index
    %0 = vector.load %arg1[%c0, %c0_0, %c0_1] : memref<4x16x128xf32, #tpu.memory_space<vmem>>, vector<4x16x128xf32>
    %1 = vector.shape_cast %0 : vector<4x16x128xf32> to vector<64x128xf32>
    %c0_2 = arith.constant 0 : index
    %c0_3 = arith.constant 0 : index
    %2 = vector.load %arg2[%c0_2, %c0_3] : memref<1x128xf32, #tpu.memory_space<vmem>>, vector<1x128xf32>
    %c0_4 = arith.constant 0 : index
    %c0_5 = arith.constant 0 : index
    %3 = vector.load %arg3[%c0_4, %c0_5] : memref<1x128xf32, #tpu.memory_space<vmem>>, vector<1x128xf32>
    %cst = arith.constant dense<0.000000e+00> : vector<64xf32>
    %4 = vector.multi_reduction <add>, %1, %cst [1] : vector<64x128xf32> to vector<64xf32>
    %5 = vector.shape_cast %4 : vector<64xf32> to vector<64x1xf32>
    %cst_6 = arith.constant 1.280000e+02 : f32
    %6 = vector.broadcast %cst_6 : f32 to vector<64x1xf32>
    %7 = arith.divf %5, %6 : vector<64x1xf32>
    %8 = vector.broadcast %7 : vector<64x1xf32> to vector<64x128xf32>
    %9 = arith.subf %1, %8 : vector<64x128xf32>
    %10 = arith.mulf %9, %9 : vector<64x128xf32>
    %cst_7 = arith.constant dense<0.000000e+00> : vector<64xf32>
    %11 = vector.multi_reduction <add>, %10, %cst_7 [1] : vector<64x128xf32> to vector<64xf32>
    %12 = vector.shape_cast %11 : vector<64xf32> to vector<64x1xf32>
    %cst_8 = arith.constant 1.280000e+02 : f32
    %13 = vector.broadcast %cst_8 : f32 to vector<64x1xf32>
    %14 = arith.divf %12, %13 : vector<64x1xf32>
    %15 = vector.broadcast %7 : vector<64x1xf32> to vector<64x128xf32>
    %16 = arith.subf %1, %15 : vector<64x128xf32>
    %cst_9 = arith.constant 9.99999974E-6 : f32
    %17 = vector.broadcast %cst_9 : f32 to vector<64x1xf32>
    %18 = arith.addf %14, %17 : vector<64x1xf32>
    %19 = math.rsqrt %18 : vector<64x1xf32>
    %20 = vector.broadcast %19 : vector<64x1xf32> to vector<64x128xf32>
    %21 = arith.mulf %16, %20 : vector<64x128xf32>
    %22 = vector.broadcast %2 : vector<1x128xf32> to vector<64x128xf32>
    %23 = arith.mulf %21, %22 : vector<64x128xf32>
    %24 = vector.broadcast %3 : vector<1x128xf32> to vector<64x128xf32>
    %25 = arith.addf %23, %24 : vector<64x128xf32>
    %26 = arith.truncf %25 : vector<64x128xf32> to vector<64x128xbf16>
    %c0_10 = arith.constant 0 : index
    %c0_11 = arith.constant 0 : index
    %27 = vector.load %arg4[%c0_10, %c0_11] : memref<128x384xbf16, #tpu.memory_space<vmem>>, vector<128x384xbf16>
    %cst_12 = arith.constant dense<0.000000e+00> : vector<64x384xf32>
    %28 = tpu.matmul %26, %27, %cst_12 {dimension_numbers = #tpu.dot_dimension_numbers<[1], [0], [0], [1], [0, 0, 1, 1], [], []>} : vector<64x128xbf16>, vector<128x384xbf16>, vector<64x384xf32> -> vector<64x384xf32>
    %29 = vector.extract_strided_slice %28 {offsets = [0, 0], sizes = [64, 128], strides = [1, 1]} : vector<64x384xf32> to vector<64x128xf32>
    %cst_13 = arith.constant 0.176776692 : f32
    %30 = vector.broadcast %cst_13 : f32 to vector<64x128xf32>
    %31 = arith.mulf %29, %30 : vector<64x128xf32>
    %32 = vector.shape_cast %31 : vector<64x128xf32> to vector<4x16x128xf32>
    %33 = arith.truncf %32 : vector<4x16x128xf32> to vector<4x16x128xbf16>
    %34 = vector.extract_strided_slice %28 {offsets = [0, 128], sizes = [64, 128], strides = [1, 1]} : vector<64x384xf32> to vector<64x128xf32>
    %35 = vector.shape_cast %34 : vector<64x128xf32> to vector<4x16x128xf32>
    %36 = arith.truncf %35 : vector<4x16x128xf32> to vector<4x16x128xbf16>
    %37 = vector.extract_strided_slice %28 {offsets = [0, 256], sizes = [64, 128], strides = [1, 1]} : vector<64x384xf32> to vector<64x128xf32>
    %38 = vector.shape_cast %37 : vector<64x128xf32> to vector<4x16x128xf32>
    %39 = arith.truncf %38 : vector<4x16x128xf32> to vector<4x16x128xbf16>
    %40 = vector.extract_strided_slice %33 {offsets = [0, 0, 0], sizes = [4, 16, 32], strides = [1, 1, 1]} : vector<4x16x128xbf16> to vector<4x16x32xbf16>
    %41 = vector.extract_strided_slice %36 {offsets = [0, 0, 0], sizes = [4, 16, 32], strides = [1, 1, 1]} : vector<4x16x128xbf16> to vector<4x16x32xbf16>
    "tpu.trace_start"() <{level = 10 : i32, message = "bqd,bkd->bqk"}> : () -> ()
    %cst_14 = arith.constant dense<0.000000e+00> : vector<4x16x16xf32>
    %42 = tpu.matmul %40, %41, %cst_14 {dimension_numbers = #tpu.dot_dimension_numbers<[2], [2], [1], [1], [0, 0, 0, 1, 1, 1], [0], [0]>} : vector<4x16x32xbf16>, vector<4x16x32xbf16>, vector<4x16x16xf32> -> vector<4x16x16xf32>
    "tpu.trace_stop"() : () -> ()
    %cst_15 = arith.constant dense<0xFF800000> : vector<4x16xf32>
    %43 = vector.multi_reduction <maximumf>, %42, %cst_15 [2] : vector<4x16x16xf32> to vector<4x16xf32>
    %44 = vector.shape_cast %43 : vector<4x16xf32> to vector<4x16x1xf32>
    %45 = vector.broadcast %44 : vector<4x16x1xf32> to vector<4x16x16xf32>
    %46 = arith.subf %42, %45 : vector<4x16x16xf32>
    %47 = math.exp %46 : vector<4x16x16xf32>
    %cst_16 = arith.constant dense<0.000000e+00> : vector<4x16xf32>
    %48 = vector.multi_reduction <add>, %47, %cst_16 [2] : vector<4x16x16xf32> to vector<4x16xf32>
    %49 = vector.shape_cast %48 : vector<4x16xf32> to vector<4x16x1xf32>
    %50 = arith.truncf %47 : vector<4x16x16xf32> to vector<4x16x16xbf16>
    %51 = vector.extract_strided_slice %39 {offsets = [0, 0, 0], sizes = [4, 16, 32], strides = [1, 1, 1]} : vector<4x16x128xbf16> to vector<4x16x32xbf16>
    "tpu.trace_start"() <{level = 10 : i32, message = "bqk,bkd->bqd"}> : () -> ()
    %cst_17 = arith.constant dense<0.000000e+00> : vector<4x16x32xf32>
    %52 = tpu.matmul %50, %51, %cst_17 {dimension_numbers = #tpu.dot_dimension_numbers<[2], [1], [1], [2], [0, 0, 0, 1, 1, 2], [0], [0]>} : vector<4x16x16xbf16>, vector<4x16x32xbf16>, vector<4x16x32xf32> -> vector<4x16x32xf32>
    "tpu.trace_stop"() : () -> ()
    %53 = tpu.reciprocal %49 {approx = true} : vector<4x16x1xf32> -> vector<4x16x1xf32>
    %54 = vector.broadcast %53 : vector<4x16x1xf32> to vector<4x16x32xf32>
    %55 = arith.mulf %52, %54 : vector<4x16x32xf32>
    %56 = vector.extract_strided_slice %33 {offsets = [0, 0, 32], sizes = [4, 16, 32], strides = [1, 1, 1]} : vector<4x16x128xbf16> to vector<4x16x32xbf16>
    %57 = vector.extract_strided_slice %36 {offsets = [0, 0, 32], sizes = [4, 16, 32], strides = [1, 1, 1]} : vector<4x16x128xbf16> to vector<4x16x32xbf16>
    "tpu.trace_start"() <{level = 10 : i32, message = "bqd,bkd->bqk"}> : () -> ()
    %cst_18 = arith.constant dense<0.000000e+00> : vector<4x16x16xf32>
    %58 = tpu.matmul %56, %57, %cst_18 {dimension_numbers = #tpu.dot_dimension_numbers<[2], [2], [1], [1], [0, 0, 0, 1, 1, 1], [0], [0]>} : vector<4x16x32xbf16>, vector<4x16x32xbf16>, vector<4x16x16xf32> -> vector<4x16x16xf32>
    "tpu.trace_stop"() : () -> ()
    %cst_19 = arith.constant dense<0xFF800000> : vector<4x16xf32>
    %59 = vector.multi_reduction <maximumf>, %58, %cst_19 [2] : vector<4x16x16xf32> to vector<4x16xf32>
    %60 = vector.shape_cast %59 : vector<4x16xf32> to vector<4x16x1xf32>
    %61 = vector.broadcast %60 : vector<4x16x1xf32> to vector<4x16x16xf32>
    %62 = arith.subf %58, %61 : vector<4x16x16xf32>
    %63 = math.exp %62 : vector<4x16x16xf32>
    %cst_20 = arith.constant dense<0.000000e+00> : vector<4x16xf32>
    %64 = vector.multi_reduction <add>, %63, %cst_20 [2] : vector<4x16x16xf32> to vector<4x16xf32>
    %65 = vector.shape_cast %64 : vector<4x16xf32> to vector<4x16x1xf32>
    %66 = arith.truncf %63 : vector<4x16x16xf32> to vector<4x16x16xbf16>
    %67 = vector.extract_strided_slice %39 {offsets = [0, 0, 32], sizes = [4, 16, 32], strides = [1, 1, 1]} : vector<4x16x128xbf16> to vector<4x16x32xbf16>
    "tpu.trace_start"() <{level = 10 : i32, message = "bqk,bkd->bqd"}> : () -> ()
    %cst_21 = arith.constant dense<0.000000e+00> : vector<4x16x32xf32>
    %68 = tpu.matmul %66, %67, %cst_21 {dimension_numbers = #tpu.dot_dimension_numbers<[2], [1], [1], [2], [0, 0, 0, 1, 1, 2], [0], [0]>} : vector<4x16x16xbf16>, vector<4x16x32xbf16>, vector<4x16x32xf32> -> vector<4x16x32xf32>
    "tpu.trace_stop"() : () -> ()
    %69 = tpu.reciprocal %65 {approx = true} : vector<4x16x1xf32> -> vector<4x16x1xf32>
    %70 = vector.broadcast %69 : vector<4x16x1xf32> to vector<4x16x32xf32>
    %71 = arith.mulf %68, %70 : vector<4x16x32xf32>
    %72 = vector.extract_strided_slice %33 {offsets = [0, 0, 64], sizes = [4, 16, 32], strides = [1, 1, 1]} : vector<4x16x128xbf16> to vector<4x16x32xbf16>
    %73 = vector.extract_strided_slice %36 {offsets = [0, 0, 64], sizes = [4, 16, 32], strides = [1, 1, 1]} : vector<4x16x128xbf16> to vector<4x16x32xbf16>
    "tpu.trace_start"() <{level = 10 : i32, message = "bqd,bkd->bqk"}> : () -> ()
    %cst_22 = arith.constant dense<0.000000e+00> : vector<4x16x16xf32>
    %74 = tpu.matmul %72, %73, %cst_22 {dimension_numbers = #tpu.dot_dimension_numbers<[2], [2], [1], [1], [0, 0, 0, 1, 1, 1], [0], [0]>} : vector<4x16x32xbf16>, vector<4x16x32xbf16>, vector<4x16x16xf32> -> vector<4x16x16xf32>
    "tpu.trace_stop"() : () -> ()
    %cst_23 = arith.constant dense<0xFF800000> : vector<4x16xf32>
    %75 = vector.multi_reduction <maximumf>, %74, %cst_23 [2] : vector<4x16x16xf32> to vector<4x16xf32>
    %76 = vector.shape_cast %75 : vector<4x16xf32> to vector<4x16x1xf32>
    %77 = vector.broadcast %76 : vector<4x16x1xf32> to vector<4x16x16xf32>
    %78 = arith.subf %74, %77 : vector<4x16x16xf32>
    %79 = math.exp %78 : vector<4x16x16xf32>
    %cst_24 = arith.constant dense<0.000000e+00> : vector<4x16xf32>
    %80 = vector.multi_reduction <add>, %79, %cst_24 [2] : vector<4x16x16xf32> to vector<4x16xf32>
    %81 = vector.shape_cast %80 : vector<4x16xf32> to vector<4x16x1xf32>
    %82 = arith.truncf %79 : vector<4x16x16xf32> to vector<4x16x16xbf16>
    %83 = vector.extract_strided_slice %39 {offsets = [0, 0, 64], sizes = [4, 16, 32], strides = [1, 1, 1]} : vector<4x16x128xbf16> to vector<4x16x32xbf16>
    "tpu.trace_start"() <{level = 10 : i32, message = "bqk,bkd->bqd"}> : () -> ()
    %cst_25 = arith.constant dense<0.000000e+00> : vector<4x16x32xf32>
    %84 = tpu.matmul %82, %83, %cst_25 {dimension_numbers = #tpu.dot_dimension_numbers<[2], [1], [1], [2], [0, 0, 0, 1, 1, 2], [0], [0]>} : vector<4x16x16xbf16>, vector<4x16x32xbf16>, vector<4x16x32xf32> -> vector<4x16x32xf32>
    "tpu.trace_stop"() : () -> ()
    %85 = tpu.reciprocal %81 {approx = true} : vector<4x16x1xf32> -> vector<4x16x1xf32>
    %86 = vector.broadcast %85 : vector<4x16x1xf32> to vector<4x16x32xf32>
    %87 = arith.mulf %84, %86 : vector<4x16x32xf32>
    %88 = vector.extract_strided_slice %33 {offsets = [0, 0, 96], sizes = [4, 16, 32], strides = [1, 1, 1]} : vector<4x16x128xbf16> to vector<4x16x32xbf16>
    %89 = vector.extract_strided_slice %36 {offsets = [0, 0, 96], sizes = [4, 16, 32], strides = [1, 1, 1]} : vector<4x16x128xbf16> to vector<4x16x32xbf16>
    "tpu.trace_start"() <{level = 10 : i32, message = "bqd,bkd->bqk"}> : () -> ()
    %cst_26 = arith.constant dense<0.000000e+00> : vector<4x16x16xf32>
    %90 = tpu.matmul %88, %89, %cst_26 {dimension_numbers = #tpu.dot_dimension_numbers<[2], [2], [1], [1], [0, 0, 0, 1, 1, 1], [0], [0]>} : vector<4x16x32xbf16>, vector<4x16x32xbf16>, vector<4x16x16xf32> -> vector<4x16x16xf32>
    "tpu.trace_stop"() : () -> ()
    %cst_27 = arith.constant dense<0xFF800000> : vector<4x16xf32>
    %91 = vector.multi_reduction <maximumf>, %90, %cst_27 [2] : vector<4x16x16xf32> to vector<4x16xf32>
    %92 = vector.shape_cast %91 : vector<4x16xf32> to vector<4x16x1xf32>
    %93 = vector.broadcast %92 : vector<4x16x1xf32> to vector<4x16x16xf32>
    %94 = arith.subf %90, %93 : vector<4x16x16xf32>
    %95 = math.exp %94 : vector<4x16x16xf32>
    %cst_28 = arith.constant dense<0.000000e+00> : vector<4x16xf32>
    %96 = vector.multi_reduction <add>, %95, %cst_28 [2] : vector<4x16x16xf32> to vector<4x16xf32>
    %97 = vector.shape_cast %96 : vector<4x16xf32> to vector<4x16x1xf32>
    %98 = arith.truncf %95 : vector<4x16x16xf32> to vector<4x16x16xbf16>
    %99 = vector.extract_strided_slice %39 {offsets = [0, 0, 96], sizes = [4, 16, 32], strides = [1, 1, 1]} : vector<4x16x128xbf16> to vector<4x16x32xbf16>
    "tpu.trace_start"() <{level = 10 : i32, message = "bqk,bkd->bqd"}> : () -> ()
    %cst_29 = arith.constant dense<0.000000e+00> : vector<4x16x32xf32>
    %100 = tpu.matmul %98, %99, %cst_29 {dimension_numbers = #tpu.dot_dimension_numbers<[2], [1], [1], [2], [0, 0, 0, 1, 1, 2], [0], [0]>} : vector<4x16x16xbf16>, vector<4x16x32xbf16>, vector<4x16x32xf32> -> vector<4x16x32xf32>
    "tpu.trace_stop"() : () -> ()
    %101 = tpu.reciprocal %97 {approx = true} : vector<4x16x1xf32> -> vector<4x16x1xf32>
    %102 = vector.broadcast %101 : vector<4x16x1xf32> to vector<4x16x32xf32>
    %103 = arith.mulf %100, %102 : vector<4x16x32xf32>
    %104 = tpu.concatenate %55, %71, %87, %103 in 2 : vector<4x16x32xf32>, vector<4x16x32xf32>, vector<4x16x32xf32>, vector<4x16x32xf32> -> vector<4x16x128xf32>
    %105 = vector.shape_cast %104 : vector<4x16x128xf32> to vector<64x128xf32>
    %106 = arith.truncf %105 : vector<64x128xf32> to vector<64x128xbf16>
    %c0_30 = arith.constant 0 : index
    %c0_31 = arith.constant 0 : index
    %107 = vector.load %arg5[%c0_30, %c0_31] : memref<128x128xbf16, #tpu.memory_space<vmem>>, vector<128x128xbf16>
    %cst_32 = arith.constant dense<0.000000e+00> : vector<64x128xf32>
    %108 = tpu.matmul %106, %107, %cst_32 {dimension_numbers = #tpu.dot_dimension_numbers<[1], [0], [0], [1], [0, 0, 1, 1], [], []>} : vector<64x128xbf16>, vector<128x128xbf16>, vector<64x128xf32> -> vector<64x128xf32>
    %c0_33 = arith.constant 0 : index
    %c0_34 = arith.constant 0 : index
    %109 = vector.load %arg6[%c0_33, %c0_34] : memref<1x128xf32, #tpu.memory_space<vmem>>, vector<1x128xf32>
    %110 = vector.broadcast %109 : vector<1x128xf32> to vector<64x128xf32>
    %111 = arith.addf %108, %110 : vector<64x128xf32>
    %112 = arith.addf %1, %111 : vector<64x128xf32>
    %c0_35 = arith.constant 0 : index
    %c0_36 = arith.constant 0 : index
    %113 = vector.load %arg7[%c0_35, %c0_36] : memref<1x128xf32, #tpu.memory_space<vmem>>, vector<1x128xf32>
    %c0_37 = arith.constant 0 : index
    %c0_38 = arith.constant 0 : index
    %114 = vector.load %arg8[%c0_37, %c0_38] : memref<1x128xf32, #tpu.memory_space<vmem>>, vector<1x128xf32>
    %cst_39 = arith.constant dense<0.000000e+00> : vector<64xf32>
    %115 = vector.multi_reduction <add>, %112, %cst_39 [1] : vector<64x128xf32> to vector<64xf32>
    %116 = vector.shape_cast %115 : vector<64xf32> to vector<64x1xf32>
    %cst_40 = arith.constant 1.280000e+02 : f32
    %117 = vector.broadcast %cst_40 : f32 to vector<64x1xf32>
    %118 = arith.divf %116, %117 : vector<64x1xf32>
    %119 = vector.broadcast %118 : vector<64x1xf32> to vector<64x128xf32>
    %120 = arith.subf %112, %119 : vector<64x128xf32>
    %121 = arith.mulf %120, %120 : vector<64x128xf32>
    %cst_41 = arith.constant dense<0.000000e+00> : vector<64xf32>
    %122 = vector.multi_reduction <add>, %121, %cst_41 [1] : vector<64x128xf32> to vector<64xf32>
    %123 = vector.shape_cast %122 : vector<64xf32> to vector<64x1xf32>
    %cst_42 = arith.constant 1.280000e+02 : f32
    %124 = vector.broadcast %cst_42 : f32 to vector<64x1xf32>
    %125 = arith.divf %123, %124 : vector<64x1xf32>
    %126 = vector.broadcast %118 : vector<64x1xf32> to vector<64x128xf32>
    %127 = arith.subf %112, %126 : vector<64x128xf32>
    %cst_43 = arith.constant 9.99999974E-6 : f32
    %128 = vector.broadcast %cst_43 : f32 to vector<64x1xf32>
    %129 = arith.addf %125, %128 : vector<64x1xf32>
    %130 = math.rsqrt %129 : vector<64x1xf32>
    %131 = vector.broadcast %130 : vector<64x1xf32> to vector<64x128xf32>
    %132 = arith.mulf %127, %131 : vector<64x128xf32>
    %133 = vector.broadcast %113 : vector<1x128xf32> to vector<64x128xf32>
    %134 = arith.mulf %132, %133 : vector<64x128xf32>
    %135 = vector.broadcast %114 : vector<1x128xf32> to vector<64x128xf32>
    %136 = arith.addf %134, %135 : vector<64x128xf32>
    %137 = arith.truncf %136 : vector<64x128xf32> to vector<64x128xbf16>
    %c0_44 = arith.constant 0 : index
    %c0_45 = arith.constant 0 : index
    %138 = vector.load %arg9[%c0_44, %c0_45] : memref<128x512xbf16, #tpu.memory_space<vmem>>, vector<128x512xbf16>
    %cst_46 = arith.constant dense<0.000000e+00> : vector<64x512xf32>
    %139 = tpu.matmul %137, %138, %cst_46 {dimension_numbers = #tpu.dot_dimension_numbers<[1], [0], [0], [1], [0, 0, 1, 1], [], []>} : vector<64x128xbf16>, vector<128x512xbf16>, vector<64x512xf32> -> vector<64x512xf32>
    %c0_47 = arith.constant 0 : index
    %c0_48 = arith.constant 0 : index
    %140 = vector.load %arg10[%c0_47, %c0_48] : memref<1x512xf32, #tpu.memory_space<vmem>>, vector<1x512xf32>
    %141 = vector.broadcast %140 : vector<1x512xf32> to vector<64x512xf32>
    %142 = arith.addf %139, %141 : vector<64x512xf32>
    %cst_49 = arith.constant 5.000000e-01 : f32
    %143 = vector.broadcast %cst_49 : f32 to vector<64x512xf32>
    %144 = arith.mulf %143, %142 : vector<64x512xf32>
    %cst_50 = arith.constant 0.707106769 : f32
    %145 = vector.broadcast %cst_50 : f32 to vector<64x512xf32>
    %146 = arith.mulf %142, %145 : vector<64x512xf32>
    %147 = math.erf %146 : vector<64x512xf32>
    %cst_51 = arith.constant 1.000000e+00 : f32
    %148 = vector.broadcast %cst_51 : f32 to vector<64x512xf32>
    %149 = arith.addf %148, %147 : vector<64x512xf32>
    %150 = arith.mulf %144, %149 : vector<64x512xf32>
    %151 = arith.truncf %150 : vector<64x512xf32> to vector<64x512xbf16>
    %c0_52 = arith.constant 0 : index
    %c0_53 = arith.constant 0 : index
    %152 = vector.load %arg11[%c0_52, %c0_53] : memref<512x128xbf16, #tpu.memory_space<vmem>>, vector<512x128xbf16>
    %cst_54 = arith.constant dense<0.000000e+00> : vector<64x128xf32>
    %153 = tpu.matmul %151, %152, %cst_54 {dimension_numbers = #tpu.dot_dimension_numbers<[1], [0], [0], [1], [0, 0, 1, 1], [], []>} : vector<64x512xbf16>, vector<512x128xbf16>, vector<64x128xf32> -> vector<64x128xf32>
    %c0_55 = arith.constant 0 : index
    %c0_56 = arith.constant 0 : index
    %154 = vector.load %arg12[%c0_55, %c0_56] : memref<1x128xf32, #tpu.memory_space<vmem>>, vector<1x128xf32>
    %155 = vector.broadcast %154 : vector<1x128xf32> to vector<64x128xf32>
    %156 = arith.addf %153, %155 : vector<64x128xf32>
    %157 = arith.addf %112, %156 : vector<64x128xf32>
    %158 = vector.shape_cast %157 : vector<64x128xf32> to vector<4x16x128xf32>
    %c0_57 = arith.constant 0 : index
    %c0_58 = arith.constant 0 : index
    %c0_59 = arith.constant 0 : index
    %159 = vector.load %arg13[%c0_57, %c0_58, %c0_59] : memref<4x16x128xf32, #tpu.memory_space<vmem>>, vector<4x16x128xf32>
    tpu.vector_store %arg13[%c0_57, %c0_58, %c0_59], %158 {strides = array<i32>} : memref<4x16x128xf32, #tpu.memory_space<vmem>>, vector<4x16x128xf32>,
    return
  }
  func.func @transform_0(%arg0: i32) -> (i32, i32, i32) {
    %c0_i32 = arith.constant 0 : i32
    %c0_i32_0 = arith.constant 0 : i32
    %c0_i32_1 = arith.constant 0 : i32
    return %arg0, %c0_i32, %c0_i32_0 : i32, i32, i32
  }
  func.func @transform_1(%arg0: i32) -> (i32, i32) {
    %c0_i32 = arith.constant 0 : i32
    %c0_i32_0 = arith.constant 0 : i32
    %c0_i32_1 = arith.constant 0 : i32
    return %c0_i32, %c0_i32_0 : i32, i32
  }
  func.func @transform_2(%arg0: i32) -> (i32, i32) {
    %c0_i32 = arith.constant 0 : i32
    %c0_i32_0 = arith.constant 0 : i32
    %c0_i32_1 = arith.constant 0 : i32
    return %c0_i32, %c0_i32_0 : i32, i32
  }
  func.func @transform_3(%arg0: i32) -> (i32, i32) {
    %c0_i32 = arith.constant 0 : i32
    %c0_i32_0 = arith.constant 0 : i32
    %c0_i32_1 = arith.constant 0 : i32
    return %c0_i32, %c0_i32_0 : i32, i32
  }
  func.func @transform_4(%arg0: i32) -> (i32, i32) {
    %c0_i32 = arith.constant 0 : i32
    %c0_i32_0 = arith.constant 0 : i32
    %c0_i32_1 = arith.constant 0 : i32
    return %c0_i32, %c0_i32_0 : i32, i32
  }
  func.func @transform_5(%arg0: i32) -> (i32, i32) {
    %c0_i32 = arith.constant 0 : i32
    %c0_i32_0 = arith.constant 0 : i32
    %c0_i32_1 = arith.constant 0 : i32
    return %c0_i32, %c0_i32_0 : i32, i32
  }
  func.func @transform_6(%arg0: i32) -> (i32, i32) {
    %c0_i32 = arith.constant 0 : i32
    %c0_i32_0 = arith.constant 0 : i32
    %c0_i32_1 = arith.constant 0 : i32
    return %c0_i32, %c0_i32_0 : i32, i32
  }
  func.func @transform_7(%arg0: i32) -> (i32, i32) {
    %c0_i32 = arith.constant 0 : i32
    %c0_i32_0 = arith.constant 0 : i32
    %c0_i32_1 = arith.constant 0 : i32
    return %c0_i32, %c0_i32_0 : i32, i32
  }
  func.func @transform_8(%arg0: i32) -> (i32, i32) {
    %c0_i32 = arith.constant 0 : i32
    %c0_i32_0 = arith.constant 0 : i32
    %c0_i32_1 = arith.constant 0 : i32
    return %c0_i32, %c0_i32_0 : i32, i32
  }
  func.func @transform_9(%arg0: i32) -> (i32, i32) {
    %c0_i32 = arith.constant 0 : i32
    %c0_i32_0 = arith.constant 0 : i32
    %c0_i32_1 = arith.constant 0 : i32
    return %c0_i32, %c0_i32_0 : i32, i32
  }
  func.func @transform_10(%arg0: i32) -> (i32, i32) {
    %c0_i32 = arith.constant 0 : i32
    %c0_i32_0 = arith.constant 0 : i32
    %c0_i32_1 = arith.constant 0 : i32
    return %c0_i32, %c0_i32_0 : i32, i32
  }
  func.func @transform_11(%arg0: i32) -> (i32, i32) {
    %c0_i32 = arith.constant 0 : i32
    %c0_i32_0 = arith.constant 0 : i32
    %c0_i32_1 = arith.constant 0 : i32
    return %c0_i32, %c0_i32_0 : i32, i32
  }
  func.func @transform_12(%arg0: i32) -> (i32, i32, i32) {
    %c0_i32 = arith.constant 0 : i32
    %c0_i32_0 = arith.constant 0 : i32
    %c0_i32_1 = arith.constant 0 : i32
    return %arg0, %c0_i32, %c0_i32_0 : i32, i32, i32
  }
}

</mosaic_0001>

<llo_original>
// kernel: tpu_custom_call.1
$region0: #{tpu_custom_call.1}
  #allocation0 [shape = 'u32[]', space=smem, size = 0x4, offset = 0x4, fixed_abs, tag = 'smem constant byte address 0x4 - core index']
  #allocation1 [shape = 'u32[144,128]{1,0:T(1,128)}', space=vmem, size = 0x12000, scoped, tag = 'internal scratch']
  %s0 = inlined_call_operand.hbm [shape: f32[4,16,128], index: 0, kind: input, shape index: {}]
  %s1 = inlined_call_operand.vmem [shape: f32[1,128], index: 1, kind: input, shape index: {}]
  %s2 = inlined_call_operand.vmem [shape: f32[1,128], index: 2, kind: input, shape index: {}]
  %s3 = inlined_call_operand.hbm [shape: bf16[128,384], index: 3, kind: input, shape index: {}]
  %s4 = inlined_call_operand.hbm [shape: bf16[128,128], index: 4, kind: input, shape index: {}]
  %s5 = inlined_call_operand.vmem [shape: f32[1,128], index: 5, kind: input, shape index: {}]
  %s6 = inlined_call_operand.vmem [shape: f32[1,128], index: 6, kind: input, shape index: {}]
  %s7 = inlined_call_operand.vmem [shape: f32[1,128], index: 7, kind: input, shape index: {}]
  %s8 = inlined_call_operand.hbm [shape: bf16[128,512], index: 8, kind: input, shape index: {}]
  %s9 = inlined_call_operand.vmem [shape: f32[1,512], index: 9, kind: input, shape index: {}]
  %s10 = inlined_call_operand.hbm [shape: bf16[512,128], index: 10, kind: input, shape index: {}]
  %s11 = inlined_call_operand.vmem [shape: f32[1,128], index: 11, kind: input, shape index: {}]
  %s12 = inlined_call_operand.hbm [shape: f32[4,16,128], index: 12, kind: output, shape index: {}]
  %s13 = sld [smem:[#allocation0]]
  $region78: #{tpu_custom_call.1} parent=0
    _
  %s15 = ssub.s32 1, %s13
  %s16 = scalar_select 0, %s15, %s13
  $region1: #{tpu_custom_call.1} parent=0
    #allocation2 [shape = 'u8[32768]{0}', space=vmem, size = 0x8000, scoped, tag = 'input window, operand 0, single buffered']
    #allocation3 [shape = 's32[1]{0}', space=sflag, size = 0x4, scoped, tag = 'scoped memory for tpu_custom_call.1']
    #allocation4 [shape = 's32[1]{0}', space=sflag, size = 0x4, scoped, tag = 'scoped memory for tpu_custom_call.1']
    #allocation5 [shape = 'u8[98304]{0}', space=vmem, size = 0x18000, scoped, tag = 'input window, operand 3, single buffered']
    #allocation6 [shape = 's32[1]{0}', space=sflag, size = 0x4, scoped, tag = 'scoped memory for tpu_custom_call.1']
    #allocation7 [shape = 'u8[32768]{0}', space=vmem, size = 0x8000, scoped, tag = 'input window, operand 4, single buffered']
    #allocation8 [shape = 'u8[131072]{0}', space=vmem, size = 0x20000, scoped, tag = 'input window, operand 8, single buffered']
    #allocation9 [shape = 's32[1]{0}', space=sflag, size = 0x4, scoped, tag = 'scoped memory for tpu_custom_call.1']
    #allocation10 [shape = 'u8[131072]{0}', space=vmem, size = 0x20000, scoped, tag = 'input window, operand 10, single buffered']
    #allocation11 [shape = 'u8[32768]{0}', space=vmem, size = 0x8000, scoped, tag = 'output window, operand 0, single buffered']
    %17 = vsyncpa [#allocation3], 0
    %18 = vsyncpa [#allocation6], 0
    %19 = vsyncpa [#allocation9], 0
    %20 = vsyncpa [#allocation4], 0
    // Predicated region
    $region2: #{tpu_custom_call.1} parent=1 // pred_check
      _
    $region3: #{tpu_custom_call.1} parent=1 // pred_check_branch
      %22 = sbr.rel (0) target = $region5
    $region4: #{tpu_custom_call.1} parent=1 // pred_region
      %s24 = ssub.s32 1024, 1024
      %25 = vsyncadd [#allocation3], %s24
      %s26 = sshll.u32 [#allocation2], 4
      %s27 = int_to_ptr.vmem [resolvable:$true] %s26
      %32 = dma.hbm_to_vmem [thread:$0]  %s0, 1024, %s27, [#allocation3], 128, 128, 8
    $region5: #{tpu_custom_call.1} parent=1 // pred_fallthru
      _
    // Predicated region
    $region6: #{tpu_custom_call.1} parent=1 // pred_check
      _
    $region7: #{tpu_custom_call.1} parent=1 // pred_check_branch
      %34 = sbr.rel (0) target = $region9
    $region8: #{tpu_custom_call.1} parent=1 // pred_region
      _
    $region9: #{tpu_custom_call.1} parent=1 // pred_fallthru
      _
    // Predicated region
    $region10: #{tpu_custom_call.1} parent=1 // pred_check
      _
    $region11: #{tpu_custom_call.1} parent=1 // pred_check_branch
      %36 = sbr.rel (0) target = $region13
    $region12: #{tpu_custom_call.1} parent=1 // pred_region
      _
    $region13: #{tpu_custom_call.1} parent=1 // pred_fallthru
      _
    // Predicated region
    $region14: #{tpu_custom_call.1} parent=1 // pred_check
      _
    $region15: #{tpu_custom_call.1} parent=1 // pred_check_branch
      %38 = sbr.rel (0) target = $region17
    $region16: #{tpu_custom_call.1} parent=1 // pred_region
      %s40 = ssub.s32 3072, 3072
      %41 = vsyncadd [#allocation6], %s40
      %s42 = sshll.u32 [#allocation5], 4
      %s43 = int_to_ptr.vmem [resolvable:$true] %s42
      %48 = dma.hbm_to_vmem [thread:$0]  %s3, 3072, %s43, [#allocation6], 192, 192, 12
    $region17: #{tpu_custom_call.1} parent=1 // pred_fallthru
      _
    // Predicated region
    $region18: #{tpu_custom_call.1} parent=1 // pred_check
      _
    $region19: #{tpu_custom_call.1} parent=1 // pred_check_branch
      %50 = sbr.rel (0) target = $region21
    $region20: #{tpu_custom_call.1} parent=1 // pred_region
      %s52 = ssub.s32 1024, 1024
      %53 = vsyncadd [#allocation6], %s52
      %s54 = sshll.u32 [#allocation7], 4
      %s55 = int_to_ptr.vmem [resolvable:$true] %s54
      %60 = dma.hbm_to_vmem [thread:$0]  %s4, 1024, %s55, [#allocation6], 64, 64, 4
    $region21: #{tpu_custom_call.1} parent=1 // pred_fallthru
      _
    // Predicated region
    $region22: #{tpu_custom_call.1} parent=1 // pred_check
      _
    $region23: #{tpu_custom_call.1} parent=1 // pred_check_branch
      %62 = sbr.rel (0) target = $region25
    $region24: #{tpu_custom_call.1} parent=1 // pred_region
      _
    $region25: #{tpu_custom_call.1} parent=1 // pred_fallthru
      _
    // Predicated region
    $region26: #{tpu_custom_call.1} parent=1 // pred_check
      _
    $region27: #{tpu_custom_call.1} parent=1 // pred_check_branch
      %64 = sbr.rel (0) target = $region29
    $region28: #{tpu_custom_call.1} parent=1 // pred_region
      _
    $region29: #{tpu_custom_call.1} parent=1 // pred_fallthru
      _
    // Predicated region
    $region30: #{tpu_custom_call.1} parent=1 // pred_check
      _
    $region31: #{tpu_custom_call.1} parent=1 // pred_check_branch
      %66 = sbr.rel (0) target = $region33
    $region32: #{tpu_custom_call.1} parent=1 // pred_region
      _
    $region33: #{tpu_custom_call.1} parent=1 // pred_fallthru
      _
    // Predicated region
    $region34: #{tpu_custom_call.1} parent=1 // pred_check
      _
    $region35: #{tpu_custom_call.1} parent=1 // pred_check_branch
      %68 = sbr.rel (0) target = $region37
    $region36: #{tpu_custom_call.1} parent=1 // pred_region
      %s70 = ssub.s32 4096, 4096
      %71 = vsyncadd [#allocation9], %s70
      %s72 = sshll.u32 [#allocation8], 4
      %s73 = int_to_ptr.vmem [resolvable:$true] %s72
      %78 = dma.hbm_to_vmem [thread:$0]  %s8, 4096, %s73, [#allocation9], 256, 256, 16
    $region37: #{tpu_custom_call.1} parent=1 // pred_fallthru
      _
    // Predicated region
    $region38: #{tpu_custom_call.1} parent=1 // pred_check
      _
    $region39: #{tpu_custom_call.1} parent=1 // pred_check_branch
      %80 = sbr.rel (0) target = $region41
    $region40: #{tpu_custom_call.1} parent=1 // pred_region
      _
    $region41: #{tpu_custom_call.1} parent=1 // pred_fallthru
      _
    // Predicated region
    $region42: #{tpu_custom_call.1} parent=1 // pred_check
      _
    $region43: #{tpu_custom_call.1} parent=1 // pred_check_branch
      %82 = sbr.rel (0) target = $region45
    $region44: #{tpu_custom_call.1} parent=1 // pred_region
      %s84 = ssub.s32 4096, 4096
      %85 = vsyncadd [#allocation9], %s84
      %s86 = sshll.u32 [#allocation10], 4
      %s87 = int_to_ptr.vmem [resolvable:$true] %s86
      %92 = dma.hbm_to_vmem [thread:$0]  %s10, 4096, %s87, [#allocation9], 64, 64, 4
    $region45: #{tpu_custom_call.1} parent=1 // pred_fallthru
      _
    // Predicated region
    $region46: #{tpu_custom_call.1} parent=1 // pred_check
      _
    $region47: #{tpu_custom_call.1} parent=1 // pred_check_branch
      %94 = sbr.rel (0) target = $region49
    $region48: #{tpu_custom_call.1} parent=1 // pred_region
      _
    $region49: #{tpu_custom_call.1} parent=1 // pred_fallthru
      _
    // Predicated region
    $region50: #{tpu_custom_call.1} parent=1 // pred_check
      _
    $region51: #{tpu_custom_call.1} parent=1 // pred_check_branch
      %96 = sbr.rel (0) target = $region53
    $region52: #{tpu_custom_call.1} parent=1 // pred_region
      %97 = dma.done [#allocation3], 1024
    $region53: #{tpu_custom_call.1} parent=1 // pred_fallthru
      _
    // Predicated region
    $region54: #{tpu_custom_call.1} parent=1 // pred_check
      _
    $region55: #{tpu_custom_call.1} parent=1 // pred_check_branch
      %99 = sbr.rel (0) target = $region57
    $region56: #{tpu_custom_call.1} parent=1 // pred_region
      %100 = dma.done [#allocation6], 3072
    $region57: #{tpu_custom_call.1} parent=1 // pred_fallthru
      _
    // Predicated region
    $region58: #{tpu_custom_call.1} parent=1 // pred_check
      _
    $region59: #{tpu_custom_call.1} parent=1 // pred_check_branch
      %102 = sbr.rel (0) target = $region61
    $region60: #{tpu_custom_call.1} parent=1 // pred_region
      %103 = dma.done [#allocation6], 1024
    $region61: #{tpu_custom_call.1} parent=1 // pred_fallthru
      _
    // Predicated region
    $region62: #{tpu_custom_call.1} parent=1 // pred_check
      _
    $region63: #{tpu_custom_call.1} parent=1 // pred_check_branch
      %105 = sbr.rel (0) target = $region65
    $region64: #{tpu_custom_call.1} parent=1 // pred_region
      %106 = dma.done [#allocation9], 4096
    $region65: #{tpu_custom_call.1} parent=1 // pred_fallthru
      _
    // Predicated region
    $region66: #{tpu_custom_call.1} parent=1 // pred_check
      _
    $region67: #{tpu_custom_call.1} parent=1 // pred_check_branch
      %108 = sbr.rel (0) target = $region69
    $region68: #{tpu_custom_call.1} parent=1 // pred_region
      %109 = dma.done [#allocation9], 4096
    $region69: #{tpu_custom_call.1} parent=1 // pred_fallthru
      _
    %v111 = vld [vmem:[#allocation2] sm:$0xff]
    %v112 = vld [vmem:[#allocation2 + $0x8] sm:$0xff]
    %v113 = vld [vmem:[#allocation2 + $0x10] sm:$0xff]
    %v114 = vld [vmem:[#allocation2 + $0x18] sm:$0xff]
    %v115 = vld [vmem:[#allocation2 + $0x20] sm:$0xff]
    %v116 = vld [vmem:[#allocation2 + $0x28] sm:$0xff]
    %v117 = vld [vmem:[#allocation2 + $0x30] sm:$0xff]
    %v118 = vld [vmem:[#allocation2 + $0x38] sm:$0xff]
    %v119 = vld [vmem:[%s1] sm:$0x1]
    %v120 = vld [vmem:[%s2] sm:$0x1]
    %121 = vadd.xlane.f32.xlu0 %v111
    %v122 = vpop.xlane.xlu0 %121
    %123 = vadd.xlane.f32.xlu0 %v112
    %v124 = vpop.xlane.xlu0 %123
    %125 = vadd.xlane.f32.xlu0 %v113
    %v126 = vpop.xlane.xlu0 %125
    %127 = vadd.xlane.f32.xlu0 %v114
    %v128 = vpop.xlane.xlu0 %127
    %129 = vadd.xlane.f32.xlu0 %v115
    %v130 = vpop.xlane.xlu0 %129
    %131 = vadd.xlane.f32.xlu0 %v116
    %v132 = vpop.xlane.xlu0 %131
    %133 = vadd.xlane.f32.xlu0 %v117
    %v134 = vpop.xlane.xlu0 %133
    %135 = vadd.xlane.f32.xlu0 %v118
    %v136 = vpop.xlane.xlu0 %135
    %v137 = vrcp.pop 128.0
    %v138 = vmul.f32 %v122, %v137
    %v139 = vmul.f32 %v124, %v137
    %v140 = vmul.f32 %v126, %v137
    %v141 = vmul.f32 %v128, %v137
    %v142 = vmul.f32 %v130, %v137
    %v143 = vmul.f32 %v132, %v137
    %v144 = vmul.f32 %v134, %v137
    %v145 = vmul.f32 %v136, %v137
    %v146 = vsub.f32 %v111, %v138
    %v147 = vsub.f32 %v112, %v139
    %v148 = vsub.f32 %v113, %v140
    %v149 = vsub.f32 %v114, %v141
    %v150 = vsub.f32 %v115, %v142
    %v151 = vsub.f32 %v116, %v143
    %v152 = vsub.f32 %v117, %v144
    %v153 = vsub.f32 %v118, %v145
    %v154 = vmul.f32 %v146, %v146
    %v155 = vmul.f32 %v147, %v147
    %v156 = vmul.f32 %v148, %v148
    %v157 = vmul.f32 %v149, %v149
    %v158 = vmul.f32 %v150, %v150
    %v159 = vmul.f32 %v151, %v151
    %v160 = vmul.f32 %v152, %v152
    %v161 = vmul.f32 %v153, %v153
    %162 = vadd.xlane.f32.xlu0 %v154
    %v163 = vpop.xlane.xlu0 %162
    %164 = vadd.xlane.f32.xlu0 %v155
    %v165 = vpop.xlane.xlu0 %164
    %166 = vadd.xlane.f32.xlu0 %v156
    %v167 = vpop.xlane.xlu0 %166
    %168 = vadd.xlane.f32.xlu0 %v157
    %v169 = vpop.xlane.xlu0 %168
    %170 = vadd.xlane.f32.xlu0 %v158
    %v171 = vpop.xlane.xlu0 %170
    %172 = vadd.xlane.f32.xlu0 %v159
    %v173 = vpop.xlane.xlu0 %172
    %174 = vadd.xlane.f32.xlu0 %v160
    %v175 = vpop.xlane.xlu0 %174
    %176 = vadd.xlane.f32.xlu0 %v161
    %v177 = vpop.xlane.xlu0 %176
    %v178 = vmul.f32 %v163, %v137
    %v179 = vmul.f32 %v165, %v137
    %v180 = vmul.f32 %v167, %v137
    %v181 = vmul.f32 %v169, %v137
    %v182 = vmul.f32 %v171, %v137
    %v183 = vmul.f32 %v173, %v137
    %v184 = vmul.f32 %v175, %v137
    %v185 = vmul.f32 %v177, %v137
    %v186 = vadd.f32 %v178, 1e-05
    %v187 = vadd.f32 %v179, 1e-05
    %v188 = vadd.f32 %v180, 1e-05
    %v189 = vadd.f32 %v181, 1e-05
    %v190 = vadd.f32 %v182, 1e-05
    %v191 = vadd.f32 %v183, 1e-05
    %v192 = vadd.f32 %v184, 1e-05
    %v193 = vadd.f32 %v185, 1e-05
    %v194 = vrsqrt.pop %v186
    %v195 = vrsqrt.pop %v187
    %v196 = vrsqrt.pop %v188
    %v197 = vrsqrt.pop %v189
    %v198 = vrsqrt.pop %v190
    %v199 = vrsqrt.pop %v191
    %v200 = vrsqrt.pop %v192
    %v201 = vrsqrt.pop %v193
    %v202 = vmul.f32 %v146, %v194
    %v203 = vmul.f32 %v147, %v195
    %v204 = vmul.f32 %v148, %v196
    %v205 = vmul.f32 %v149, %v197
    %v206 = vmul.f32 %v150, %v198
    %v207 = vmul.f32 %v151, %v199
    %v208 = vmul.f32 %v152, %v200
    %v209 = vmul.f32 %v153, %v201
    %v211 = vlaneseq
    %v212 = vshrl.u32 %v211, 7
    %v213 = vsub.s32 0, %v212
    %v214 = vrot.slane %v119, %v213
    %v216 = vmul.f32 %v202, %v214
    %v217 = vmul.f32 %v203, %v214
    %v218 = vmul.f32 %v204, %v214
    %v219 = vmul.f32 %v205, %v214
    %v220 = vmul.f32 %v206, %v214
    %v221 = vmul.f32 %v207, %v214
    %v222 = vmul.f32 %v208, %v214
    %v223 = vmul.f32 %v209, %v214
    %v225 = vlaneseq
    %v226 = vshrl.u32 %v225, 7
    %v227 = vsub.s32 0, %v226
    %v228 = vrot.slane %v120, %v227
    %v230 = vadd.f32 %v216, %v228
    %v231 = vadd.f32 %v217, %v228
    %v232 = vadd.f32 %v218, %v228
    %v233 = vadd.f32 %v219, %v228
    %v234 = vadd.f32 %v220, %v228
    %v235 = vadd.f32 %v221, %v228
    %v236 = vadd.f32 %v222, %v228
    %v237 = vadd.f32 %v223, %v228
    %v238 = vpack.c.bf16 %v231, %v230
    %v239 = vpack.c.bf16 %v233, %v232
    %v240 = vpack.c.bf16 %v235, %v234
    %v241 = vpack.c.bf16 %v237, %v236
    %v242 = vld [vmem:[#allocation5] sm:$0xff]
    %v243 = vld [vmem:[#allocation5 + $0x8] sm:$0xf]
    %v244 = vld [vmem:[#allocation5 + $0xc] sm:$0xff]
    %v245 = vld [vmem:[#allocation5 + $0x14] sm:$0xf]
    %v246 = vld [vmem:[#allocation5 + $0x18] sm:$0xff]
    %v247 = vld [vmem:[#allocation5 + $0x20] sm:$0xf]
    %v248 = vld [vmem:[#allocation5 + $0x24] sm:$0xff]
    %v249 = vld [vmem:[#allocation5 + $0x2c] sm:$0xf]
    %v250 = vld [vmem:[#allocation5 + $0x30] sm:$0xff]
    %v251 = vld [vmem:[#allocation5 + $0x38] sm:$0xf]
    %v252 = vld [vmem:[#allocation5 + $0x3c] sm:$0xff]
    %v253 = vld [vmem:[#allocation5 + $0x44] sm:$0xf]
    %v254 = vld [vmem:[#allocation5 + $0x48] sm:$0xff]
    %v255 = vld [vmem:[#allocation5 + $0x50] sm:$0xf]
    %v256 = vld [vmem:[#allocation5 + $0x54] sm:$0xff]
    %v257 = vld [vmem:[#allocation5 + $0x5c] sm:$0xf]
    %v258 = vld [vmem:[#allocation5 + $0x60] sm:$0xff]
    %v259 = vld [vmem:[#allocation5 + $0x68] sm:$0xf]
    %v260 = vld [vmem:[#allocation5 + $0x6c] sm:$0xff]
    %v261 = vld [vmem:[#allocation5 + $0x74] sm:$0xf]
    %v262 = vld [vmem:[#allocation5 + $0x78] sm:$0xff]
    %v263 = vld [vmem:[#allocation5 + $0x80] sm:$0xf]
    %v264 = vld [vmem:[#allocation5 + $0x84] sm:$0xff]
    %v265 = vld [vmem:[#allocation5 + $0x8c] sm:$0xf]
    %v266 = vld [vmem:[#allocation5 + $0x90] sm:$0xff]
    %v267 = vld [vmem:[#allocation5 + $0x98] sm:$0xf]
    %v268 = vld [vmem:[#allocation5 + $0x9c] sm:$0xff]
    %v269 = vld [vmem:[#allocation5 + $0xa4] sm:$0xf]
    %v270 = vld [vmem:[#allocation5 + $0xa8] sm:$0xff]
    %v271 = vld [vmem:[#allocation5 + $0xb0] sm:$0xf]
    %v272 = vld [vmem:[#allocation5 + $0xb4] sm:$0xff]
    %v273 = vld [vmem:[#allocation5 + $0xbc] sm:$0xf]
    %v306 = vunpack.c.l.b16 %v242
    %v307 = vunpack.c.h.b16 %v242
    %v308 = vunpack.c.l.b16 %v243
    %v309 = vunpack.c.l.b16 %v244
    %v310 = vunpack.c.h.b16 %v244
    %v311 = vunpack.c.l.b16 %v245
    %v312 = vunpack.c.l.b16 %v246
    %v313 = vunpack.c.h.b16 %v246
    %v314 = vunpack.c.l.b16 %v247
    %v315 = vunpack.c.l.b16 %v248
    %v316 = vunpack.c.h.b16 %v248
    %v317 = vunpack.c.l.b16 %v249
    %v318 = vunpack.c.l.b16 %v250
    %v319 = vunpack.c.h.b16 %v250
    %v320 = vunpack.c.l.b16 %v251
    %v321 = vunpack.c.l.b16 %v252
    %v322 = vunpack.c.h.b16 %v252
    %v323 = vunpack.c.l.b16 %v253
    %v324 = vunpack.c.l.b16 %v254
    %v325 = vunpack.c.h.b16 %v254
    %v326 = vunpack.c.l.b16 %v255
    %v327 = vunpack.c.l.b16 %v256
    %v328 = vunpack.c.h.b16 %v256
    %v329 = vunpack.c.l.b16 %v257
    %v330 = vunpack.c.l.b16 %v258
    %v331 = vunpack.c.h.b16 %v258
    %v332 = vunpack.c.l.b16 %v259
    %v333 = vunpack.c.l.b16 %v260
    %v334 = vunpack.c.h.b16 %v260
    %v335 = vunpack.c.l.b16 %v261
    %v336 = vunpack.c.l.b16 %v262
    %v337 = vunpack.c.h.b16 %v262
    %v338 = vunpack.c.l.b16 %v263
    %v339 = vunpack.c.l.b16 %v264
    %v340 = vunpack.c.h.b16 %v264
    %v341 = vunpack.c.l.b16 %v265
    %v342 = vunpack.c.l.b16 %v266
    %v343 = vunpack.c.h.b16 %v266
    %v344 = vunpack.c.l.b16 %v267
    %v345 = vunpack.c.l.b16 %v268
    %v346 = vunpack.c.h.b16 %v268
    %v347 = vunpack.c.l.b16 %v269
    %v348 = vunpack.c.l.b16 %v270
    %v349 = vunpack.c.h.b16 %v270
    %v350 = vunpack.c.l.b16 %v271
    %v351 = vunpack.c.l.b16 %v272
    %v352 = vunpack.c.h.b16 %v272
    %v353 = vunpack.c.l.b16 %v273
    %v354 = vpack.c.b16 %v309, %v306
    %v355 = vpack.c.b16 %v310, %v307
    %v356 = vpack.c.b16 %v311, %v308
    %v357 = vpack.c.b16 %v315, %v312
    %v358 = vpack.c.b16 %v316, %v313
    %v359 = vpack.c.b16 %v317, %v314
    %v360 = vpack.c.b16 %v321, %v318
    %v361 = vpack.c.b16 %v322, %v319
    %v362 = vpack.c.b16 %v323, %v320
    %v363 = vpack.c.b16 %v327, %v324
    %v364 = vpack.c.b16 %v328, %v325
    %v365 = vpack.c.b16 %v329, %v326
    %v366 = vpack.c.b16 %v333, %v330
    %v367 = vpack.c.b16 %v334, %v331
    %v368 = vpack.c.b16 %v335, %v332
    %v369 = vpack.c.b16 %v339, %v336
    %v370 = vpack.c.b16 %v340, %v337
    %v371 = vpack.c.b16 %v341, %v338
    %v372 = vpack.c.b16 %v345, %v342
    %v373 = vpack.c.b16 %v346, %v343
    %v374 = vpack.c.b16 %v347, %v344
    %v375 = vpack.c.b16 %v351, %v348
    %v376 = vpack.c.b16 %v352, %v349
    %v377 = vpack.c.b16 %v353, %v350
    %402 = vmatprep.subr.bf16.mxu0 %v376
    %403 = vmatpush1.bf16.msra.mxu0 %v375
    %404 = vmatprep.subr.bf16.mxu0 %v373
    %405 = vmatpush1.bf16.msra.mxu0 %v372
    %406 = vmatprep.subr.bf16.mxu0 %v370
    %407 = vmatpush1.bf16.msra.mxu0 %v369
    %408 = vmatprep.subr.bf16.mxu0 %v367
    %409 = vmatpush1.bf16.msra.mxu0 %v366
    %410 = vmatprep.subr.bf16.mxu0 %v364
    %411 = vmatpush1.bf16.msra.mxu0 %v363
    %412 = vmatprep.subr.bf16.mxu0 %v361
    %413 = vmatpush1.bf16.msra.mxu0 %v360
    %414 = vmatprep.subr.bf16.mxu0 %v358
    %415 = vmatpush1.bf16.msra.mxu0 %v357
    %416 = vmatprep.subr.bf16.mxu0 %v355
    %417 = vmatpush1.bf16.msra.mxu0 %v354
    %418 = vmatprep.subr.bf16.mxu0 0
    %419 = vmatpush2.bf16.msra.mxu0 0
    %420 = vmatprep.subr.bf16.mxu0 0
    %421 = vmatpush2.bf16.msra.mxu0 0
    %422 = vmatprep.subr.bf16.mxu0 0
    %423 = vmatpush2.bf16.msra.mxu0 0
    %424 = vmatprep.subr.bf16.mxu0 0
    %425 = vmatpush2.bf16.msra.mxu0 0
    %426 = vmatprep.subr.bf16.mxu0 0
    %427 = vmatpush2.bf16.msra.mxu0 0
    %428 = vmatprep.subr.bf16.mxu0 0
    %429 = vmatpush2.bf16.msra.mxu0 0
    %430 = vmatprep.subr.bf16.mxu0 0
    %431 = vmatpush2.bf16.msra.mxu0 0
    %432 = vmatprep.subr.bf16.mxu0 0
    %433 = vmatpush2.bf16.msra.mxu0 0
    %434 = vmatprep.mubr.bf16.mxu0 0
    %435 = vmatmul.mubr.bf16.gmra.mxu0 %v238
    %v436 = vpop.f32.mrf.mxu0
    %v437 = vadd.f32 0.0, %v436
    %v438 = vpop.f32.mrf.mxu0
    %v439 = vadd.f32 0.0, %v438
    %v440 = vpop.f32.mrf.mxu0
    %v441 = vadd.f32 0.0, %v440
    %v442 = vpop.f32.mrf.mxu0
    %v443 = vadd.f32 0.0, %v442
    %444 = vmatprep.mubr.bf16.mxu0 0
    %445 = vmatmul.mubr.bf16.gmra.mxu0 %v239
    %v446 = vpop.f32.mrf.mxu0
    %v447 = vadd.f32 0.0, %v446
    %v448 = vpop.f32.mrf.mxu0
    %v449 = vadd.f32 0.0, %v448
    %v450 = vpop.f32.mrf.mxu0
    %v451 = vadd.f32 0.0, %v450
    %v452 = vpop.f32.mrf.mxu0
    %v453 = vadd.f32 0.0, %v452
    %454 = vmatprep.mubr.bf16.mxu0 0
    %455 = vmatmul.mubr.bf16.gmra.mxu0 %v240
    %v456 = vpop.f32.mrf.mxu0
    %v457 = vadd.f32 0.0, %v456
    %v458 = vpop.f32.mrf.mxu0
    %v459 = vadd.f32 0.0, %v458
    %v460 = vpop.f32.mrf.mxu0
    %v461 = vadd.f32 0.0, %v460
    %v462 = vpop.f32.mrf.mxu0
    %v463 = vadd.f32 0.0, %v462
    %464 = vmatprep.mubr.bf16.mxu0 0
    %465 = vmatmul.mubr.bf16.gmra.mxu0 %v241
    %v466 = vpop.f32.mrf.mxu0
    %v467 = vadd.f32 0.0, %v466
    %v468 = vpop.f32.mrf.mxu0
    %v469 = vadd.f32 0.0, %v468
    %v470 = vpop.f32.mrf.mxu0
    %v471 = vadd.f32 0.0, %v470
    %v472 = vpop.f32.mrf.mxu0
    %v473 = vadd.f32 0.0, %v472
    %474 = vdwg.mxu0
    %475 = vmatprep.subr.bf16.mxu0 0
    %476 = vmatpush1.bf16.msra.mxu0 %v377
    %477 = vmatprep.subr.bf16.mxu0 0
    %478 = vmatpush1.bf16.msra.mxu0 %v374
    %479 = vmatprep.subr.bf16.mxu0 0
    %480 = vmatpush1.bf16.msra.mxu0 %v371
    %481 = vmatprep.subr.bf16.mxu0 0
    %482 = vmatpush1.bf16.msra.mxu0 %v368
    %483 = vmatprep.subr.bf16.mxu0 0
    %484 = vmatpush1.bf16.msra.mxu0 %v365
    %485 = vmatprep.subr.bf16.mxu0 0
    %486 = vmatpush1.bf16.msra.mxu0 %v362
    %487 = vmatprep.subr.bf16.mxu0 0
    %488 = vmatpush1.bf16.msra.mxu0 %v359
    %489 = vmatprep.subr.bf16.mxu0 0
    %490 = vmatpush1.bf16.msra.mxu0 %v356
    %491 = vmatprep.subr.bf16.mxu0 0
    %492 = vmatpush2.bf16.msra.mxu0 0
    %493 = vmatprep.subr.bf16.mxu0 0
    %494 = vmatpush2.bf16.msra.mxu0 0
    %495 = vmatprep.subr.bf16.mxu0 0
    %496 = vmatpush2.bf16.msra.mxu0 0
    %497 = vmatprep.subr.bf16.mxu0 0
    %498 = vmatpush2.bf16.msra.mxu0 0
    %499 = vmatprep.subr.bf16.mxu0 0
    %500 = vmatpush2.bf16.msra.mxu0 0
    %501 = vmatprep.subr.bf16.mxu0 0
    %502 = vmatpush2.bf16.msra.mxu0 0
    %503 = vmatprep.subr.bf16.mxu0 0
    %504 = vmatpush2.bf16.msra.mxu0 0
    %505 = vmatprep.subr.bf16.mxu0 0
    %506 = vmatpush2.bf16.msra.mxu0 0
    %507 = vmatprep.mubr.bf16.mxu0 0
    %508 = vmatmul.mubr.bf16.gmra.mxu0 %v238
    %v509 = vpop.f32.mrf.mxu0
    %v510 = vadd.f32 0.0, %v509
    %v511 = vpop.f32.mrf.mxu0
    %v512 = vpop.f32.mrf.mxu0
    %v513 = vadd.f32 0.0, %v512
    %v514 = vpop.f32.mrf.mxu0
    %515 = vmatprep.mubr.bf16.mxu0 0
    %516 = vmatmul.mubr.bf16.gmra.mxu0 %v239
    %v517 = vpop.f32.mrf.mxu0
    %v518 = vadd.f32 0.0, %v517
    %v519 = vpop.f32.mrf.mxu0
    %v520 = vpop.f32.mrf.mxu0
    %v521 = vadd.f32 0.0, %v520
    %v522 = vpop.f32.mrf.mxu0
    %523 = vmatprep.mubr.bf16.mxu0 0
    %524 = vmatmul.mubr.bf16.gmra.mxu0 %v240
    %v525 = vpop.f32.mrf.mxu0
    %v526 = vadd.f32 0.0, %v525
    %v527 = vpop.f32.mrf.mxu0
    %v528 = vpop.f32.mrf.mxu0
    %v529 = vadd.f32 0.0, %v528
    %v530 = vpop.f32.mrf.mxu0
    %531 = vmatprep.mubr.bf16.mxu0 0
    %532 = vmatmul.mubr.bf16.gmra.mxu0 %v241
    %v533 = vpop.f32.mrf.mxu0
    %v534 = vadd.f32 0.0, %v533
    %v535 = vpop.f32.mrf.mxu0
    %v536 = vpop.f32.mrf.mxu0
    %v537 = vadd.f32 0.0, %v536
    %v538 = vpop.f32.mrf.mxu0
    %539 = vdwg.mxu0
    %v540 = vmul.f32 %v437, 0.17677669
    %v541 = vmul.f32 %v441, 0.17677669
    %v542 = vmul.f32 %v447, 0.17677669
    %v543 = vmul.f32 %v451, 0.17677669
    %v544 = vmul.f32 %v457, 0.17677669
    %v545 = vmul.f32 %v461, 0.17677669
    %v546 = vmul.f32 %v467, 0.17677669
    %v547 = vmul.f32 %v471, 0.17677669
    %v548 = vpack.c.bf16 %v541, %v540
    %v549 = vpack.c.bf16 %v543, %v542
    %v550 = vpack.c.bf16 %v545, %v544
    %v551 = vpack.c.bf16 %v547, %v546
    %v552 = vpack.c.bf16 %v443, %v439
    %v553 = vpack.c.bf16 %v453, %v449
    %v554 = vpack.c.bf16 %v463, %v459
    %v555 = vpack.c.bf16 %v473, %v469
    %v556 = vpack.c.bf16 %v513, %v510
    %v557 = vpack.c.bf16 %v521, %v518
    %v558 = vpack.c.bf16 %v529, %v526
    %v559 = vpack.c.bf16 %v537, %v534
    %vm560 = vcmask 261120
    %v562 = vsel %vm560, %v548, 0
    %v565 = vsel %vm560, %v552, 0
    %567 = vmatprep.subr.bf16.mxu0 0
    %568 = vmatpush1.bf16.xpose.msra.mxu0 0
    %569 = vmatprep.subr.bf16.mxu0 0
    %570 = vmatpush1.bf16.xpose.msra.mxu0 0
    %571 = vmatprep.subr.bf16.mxu0 0
    %572 = vmatpush1.bf16.xpose.msra.mxu0 0
    %573 = vmatprep.subr.bf16.mxu0 0
    %574 = vmatpush1.bf16.xpose.msra.mxu0 0
    %575 = vmatprep.subr.bf16.mxu0 0
    %576 = vmatpush1.bf16.xpose.msra.mxu0 0
    %577 = vmatprep.subr.bf16.mxu0 0
    %578 = vmatpush1.bf16.xpose.msra.mxu0 0
    %579 = vmatprep.subr.bf16.mxu0 0
    %580 = vmatpush1.bf16.xpose.msra.mxu0 0
    %581 = vmatprep.subr.bf16.mxu0 0
    %582 = vmatpush1.bf16.xpose.msra.mxu0 %v565
    %583 = vmatprep.subr.bf16.mxu0 0
    %584 = vmatpush2.bf16.xpose.msra.mxu0 0
    %585 = vmatprep.subr.bf16.mxu0 0
    %586 = vmatpush2.bf16.xpose.msra.mxu0 0
    %587 = vmatprep.subr.bf16.mxu0 0
    %588 = vmatpush2.bf16.xpose.msra.mxu0 0
    %589 = vmatprep.subr.bf16.mxu0 0
    %590 = vmatpush2.bf16.xpose.msra.mxu0 0
    %591 = vmatprep.subr.bf16.mxu0 0
    %592 = vmatpush2.bf16.xpose.msra.mxu0 0
    %593 = vmatprep.subr.bf16.mxu0 0
    %594 = vmatpush2.bf16.xpose.msra.mxu0 0
    %595 = vmatprep.subr.bf16.mxu0 0
    %596 = vmatpush2.bf16.xpose.msra.mxu0 0
    %597 = vmatprep.subr.bf16.mxu0 0
    %598 = vmatpush2.bf16.xpose.msra.mxu0 0
    %599 = vmatprep.mubr.bf16.mxu0 0
    %600 = vmatmul.mubr.bf16.gmra.mxu0 %v562
    %v601 = vpop.f32.mrf.mxu0
    %v602 = vadd.f32 0.0, %v601
    %v603 = vpop.f32.mrf.mxu0
    %v604 = vpop.f32.mrf.mxu0
    %v605 = vadd.f32 0.0, %v604
    %v606 = vpop.f32.mrf.mxu0
    %607 = vdwg.mxu0
    %v609 = vsel %vm560, %v549, 0
    %v612 = vsel %vm560, %v553, 0
    %614 = vmatprep.subr.bf16.mxu0 0
    %615 = vmatpush1.bf16.xpose.msra.mxu0 0
    %616 = vmatprep.subr.bf16.mxu0 0
    %617 = vmatpush1.bf16.xpose.msra.mxu0 0
    %618 = vmatprep.subr.bf16.mxu0 0
    %619 = vmatpush1.bf16.xpose.msra.mxu0 0
    %620 = vmatprep.subr.bf16.mxu0 0
    %621 = vmatpush1.bf16.xpose.msra.mxu0 0
    %622 = vmatprep.subr.bf16.mxu0 0
    %623 = vmatpush1.bf16.xpose.msra.mxu0 0
    %624 = vmatprep.subr.bf16.mxu0 0
    %625 = vmatpush1.bf16.xpose.msra.mxu0 0
    %626 = vmatprep.subr.bf16.mxu0 0
    %627 = vmatpush1.bf16.xpose.msra.mxu0 0
    %628 = vmatprep.subr.bf16.mxu0 0
    %629 = vmatpush1.bf16.xpose.msra.mxu0 %v612
    %630 = vmatprep.subr.bf16.mxu0 0
    %631 = vmatpush2.bf16.xpose.msra.mxu0 0
    %632 = vmatprep.subr.bf16.mxu0 0
    %633 = vmatpush2.bf16.xpose.msra.mxu0 0
    %634 = vmatprep.subr.bf16.mxu0 0
    %635 = vmatpush2.bf16.xpose.msra.mxu0 0
    %636 = vmatprep.subr.bf16.mxu0 0
    %637 = vmatpush2.bf16.xpose.msra.mxu0 0
    %638 = vmatprep.subr.bf16.mxu0 0
    %639 = vmatpush2.bf16.xpose.msra.mxu0 0
    %640 = vmatprep.subr.bf16.mxu0 0
    %641 = vmatpush2.bf16.xpose.msra.mxu0 0
    %642 = vmatprep.subr.bf16.mxu0 0
    %643 = vmatpush2.bf16.xpose.msra.mxu0 0
    %644 = vmatprep.subr.bf16.mxu0 0
    %645 = vmatpush2.bf16.xpose.msra.mxu0 0
    %646 = vmatprep.mubr.bf16.mxu0 0
    %647 = vmatmul.mubr.bf16.gmra.mxu0 %v609
    %v648 = vpop.f32.mrf.mxu0
    %v649 = vadd.f32 0.0, %v648
    %v650 = vpop.f32.mrf.mxu0
    %v651 = vpop.f32.mrf.mxu0
    %v652 = vadd.f32 0.0, %v651
    %v653 = vpop.f32.mrf.mxu0
    %654 = vdwg.mxu0
    %v656 = vsel %vm560, %v550, 0
    %v659 = vsel %vm560, %v554, 0
    %661 = vmatprep.subr.bf16.mxu0 0
    %662 = vmatpush1.bf16.xpose.msra.mxu0 0
    %663 = vmatprep.subr.bf16.mxu0 0
    %664 = vmatpush1.bf16.xpose.msra.mxu0 0
    %665 = vmatprep.subr.bf16.mxu0 0
    %666 = vmatpush1.bf16.xpose.msra.mxu0 0
    %667 = vmatprep.subr.bf16.mxu0 0
    %668 = vmatpush1.bf16.xpose.msra.mxu0 0
    %669 = vmatprep.subr.bf16.mxu0 0
    %670 = vmatpush1.bf16.xpose.msra.mxu0 0
    %671 = vmatprep.subr.bf16.mxu0 0
    %672 = vmatpush1.bf16.xpose.msra.mxu0 0
    %673 = vmatprep.subr.bf16.mxu0 0
    %674 = vmatpush1.bf16.xpose.msra.mxu0 0
    %675 = vmatprep.subr.bf16.mxu0 0
    %676 = vmatpush1.bf16.xpose.msra.mxu0 %v659
    %677 = vmatprep.subr.bf16.mxu0 0
    %678 = vmatpush2.bf16.xpose.msra.mxu0 0
    %679 = vmatprep.subr.bf16.mxu0 0
    %680 = vmatpush2.bf16.xpose.msra.mxu0 0
    %681 = vmatprep.subr.bf16.mxu0 0
    %682 = vmatpush2.bf16.xpose.msra.mxu0 0
    %683 = vmatprep.subr.bf16.mxu0 0
    %684 = vmatpush2.bf16.xpose.msra.mxu0 0
    %685 = vmatprep.subr.bf16.mxu0 0
    %686 = vmatpush2.bf16.xpose.msra.mxu0 0
    %687 = vmatprep.subr.bf16.mxu0 0
    %688 = vmatpush2.bf16.xpose.msra.mxu0 0
    %689 = vmatprep.subr.bf16.mxu0 0
    %690 = vmatpush2.bf16.xpose.msra.mxu0 0
    %691 = vmatprep.subr.bf16.mxu0 0
    %692 = vmatpush2.bf16.xpose.msra.mxu0 0
    %693 = vmatprep.mubr.bf16.mxu0 0
    %694 = vmatmul.mubr.bf16.gmra.mxu0 %v656
    %v695 = vpop.f32.mrf.mxu0
    %v696 = vadd.f32 0.0, %v695
    %v697 = vpop.f32.mrf.mxu0
    %v698 = vpop.f32.mrf.mxu0
    %v699 = vadd.f32 0.0, %v698
    %v700 = vpop.f32.mrf.mxu0
    %701 = vdwg.mxu0
    %v703 = vsel %vm560, %v551, 0
    %v706 = vsel %vm560, %v555, 0
    %708 = vmatprep.subr.bf16.mxu0 0
    %709 = vmatpush1.bf16.xpose.msra.mxu0 0
    %710 = vmatprep.subr.bf16.mxu0 0
    %711 = vmatpush1.bf16.xpose.msra.mxu0 0
    %712 = vmatprep.subr.bf16.mxu0 0
    %713 = vmatpush1.bf16.xpose.msra.mxu0 0
    %714 = vmatprep.subr.bf16.mxu0 0
    %715 = vmatpush1.bf16.xpose.msra.mxu0 0
    %716 = vmatprep.subr.bf16.mxu0 0
    %717 = vmatpush1.bf16.xpose.msra.mxu0 0
    %718 = vmatprep.subr.bf16.mxu0 0
    %719 = vmatpush1.bf16.xpose.msra.mxu0 0
    %720 = vmatprep.subr.bf16.mxu0 0
    %721 = vmatpush1.bf16.xpose.msra.mxu0 0
    %722 = vmatprep.subr.bf16.mxu0 0
    %723 = vmatpush1.bf16.xpose.msra.mxu0 %v706
    %724 = vmatprep.subr.bf16.mxu0 0
    %725 = vmatpush2.bf16.xpose.msra.mxu0 0
    %726 = vmatprep.subr.bf16.mxu0 0
    %727 = vmatpush2.bf16.xpose.msra.mxu0 0
    %728 = vmatprep.subr.bf16.mxu0 0
    %729 = vmatpush2.bf16.xpose.msra.mxu0 0
    %730 = vmatprep.subr.bf16.mxu0 0
    %731 = vmatpush2.bf16.xpose.msra.mxu0 0
    %732 = vmatprep.subr.bf16.mxu0 0
    %733 = vmatpush2.bf16.xpose.msra.mxu0 0
    %734 = vmatprep.subr.bf16.mxu0 0
    %735 = vmatpush2.bf16.xpose.msra.mxu0 0
    %736 = vmatprep.subr.bf16.mxu0 0
    %737 = vmatpush2.bf16.xpose.msra.mxu0 0
    %738 = vmatprep.subr.bf16.mxu0 0
    %739 = vmatpush2.bf16.xpose.msra.mxu0 0
    %740 = vmatprep.mubr.bf16.mxu0 0
    %741 = vmatmul.mubr.bf16.gmra.mxu0 %v703
    %v742 = vpop.f32.mrf.mxu0
    %v743 = vadd.f32 0.0, %v742
    %v744 = vpop.f32.mrf.mxu0
    %v745 = vpop.f32.mrf.mxu0
    %v746 = vadd.f32 0.0, %v745
    %v747 = vpop.f32.mrf.mxu0
    %748 = vdwg.mxu0
    %vm749 = vcmask 130048
    %v750 = vsel %vm749, %v602, -inf
    %751 = vmax.xlane.f32.xlu0 %v750
    %v752 = vpop.xlane.xlu0 %751
    %v753 = vsel %vm749, %v605, -inf
    %754 = vmax.xlane.f32.xlu0 %v753
    %v755 = vpop.xlane.xlu0 %754
    %v756 = vsel %vm749, %v649, -inf
    %757 = vmax.xlane.f32.xlu0 %v756
    %v758 = vpop.xlane.xlu0 %757
    %v759 = vsel %vm749, %v652, -inf
    %760 = vmax.xlane.f32.xlu0 %v759
    %v761 = vpop.xlane.xlu0 %760
    %v762 = vsel %vm749, %v696, -inf
    %763 = vmax.xlane.f32.xlu0 %v762
    %v764 = vpop.xlane.xlu0 %763
    %v765 = vsel %vm749, %v699, -inf
    %766 = vmax.xlane.f32.xlu0 %v765
    %v767 = vpop.xlane.xlu0 %766
    %v768 = vsel %vm749, %v743, -inf
    %769 = vmax.xlane.f32.xlu0 %v768
    %v770 = vpop.xlane.xlu0 %769
    %v771 = vsel %vm749, %v746, -inf
    %772 = vmax.xlane.f32.xlu0 %v771
    %v773 = vpop.xlane.xlu0 %772
    %v774 = vsub.f32 %v602, %v752
    %v775 = vsub.f32 %v605, %v755
    %v776 = vsub.f32 %v649, %v758
    %v777 = vsub.f32 %v652, %v761
    %v778 = vsub.f32 %v696, %v764
    %v779 = vsub.f32 %v699, %v767
    %v780 = vsub.f32 %v743, %v770
    %v781 = vsub.f32 %v746, %v773
    %v782 = vmul.f32 %v774, 1.442695
    %v783 = vpow.pop %v782
    %v784 = vmul.f32 %v775, 1.442695
    %v785 = vpow.pop %v784
    %v786 = vmul.f32 %v776, 1.442695
    %v787 = vpow.pop %v786
    %v788 = vmul.f32 %v777, 1.442695
    %v789 = vpow.pop %v788
    %v790 = vmul.f32 %v778, 1.442695
    %v791 = vpow.pop %v790
    %v792 = vmul.f32 %v779, 1.442695
    %v793 = vpow.pop %v792
    %v794 = vmul.f32 %v780, 1.442695
    %v795 = vpow.pop %v794
    %v796 = vmul.f32 %v781, 1.442695
    %v797 = vpow.pop %v796
    %v798 = vsel %vm749, %v783, 0.0
    %799 = vadd.xlane.f32.xlu0 %v798
    %v800 = vpop.xlane.xlu0 %799
    %v801 = vsel %vm749, %v785, 0.0
    %802 = vadd.xlane.f32.xlu0 %v801
    %v803 = vpop.xlane.xlu0 %802
    %v804 = vsel %vm749, %v787, 0.0
    %805 = vadd.xlane.f32.xlu0 %v804
    %v806 = vpop.xlane.xlu0 %805
    %v807 = vsel %vm749, %v789, 0.0
    %808 = vadd.xlane.f32.xlu0 %v807
    %v809 = vpop.xlane.xlu0 %808
    %v810 = vsel %vm749, %v791, 0.0
    %811 = vadd.xlane.f32.xlu0 %v810
    %v812 = vpop.xlane.xlu0 %811
    %v813 = vsel %vm749, %v793, 0.0
    %814 = vadd.xlane.f32.xlu0 %v813
    %v815 = vpop.xlane.xlu0 %814
    %v816 = vsel %vm749, %v795, 0.0
    %817 = vadd.xlane.f32.xlu0 %v816
    %v818 = vpop.xlane.xlu0 %817
    %v819 = vsel %vm749, %v797, 0.0
    %820 = vadd.xlane.f32.xlu0 %v819
    %v821 = vpop.xlane.xlu0 %820
    %v822 = vpack.c.bf16 %v785, %v783
    %v823 = vpack.c.bf16 %v789, %v787
    %v824 = vpack.c.bf16 %v793, %v791
    %v825 = vpack.c.bf16 %v797, %v795
    %v827 = vsel %vm749, %v822, 0
    %829 = vmatprep.subr.bf16.mxu0 0
    %830 = vmatpush1.bf16.msra.mxu0 0
    %831 = vmatprep.subr.bf16.mxu0 0
    %832 = vmatpush1.bf16.msra.mxu0 0
    %833 = vmatprep.subr.bf16.mxu0 0
    %834 = vmatpush1.bf16.msra.mxu0 0
    %835 = vmatprep.subr.bf16.mxu0 0
    %836 = vmatpush1.bf16.msra.mxu0 0
    %837 = vmatprep.subr.bf16.mxu0 0
    %838 = vmatpush1.bf16.msra.mxu0 0
    %839 = vmatprep.subr.bf16.mxu0 0
    %840 = vmatpush1.bf16.msra.mxu0 0
    %841 = vmatprep.subr.bf16.mxu0 0
    %842 = vmatpush1.bf16.msra.mxu0 0
    %843 = vmatprep.subr.bf16.mxu0 0
    %844 = vmatpush1.bf16.msra.mxu0 %v556
    %845 = vmatprep.subr.bf16.mxu0 0
    %846 = vmatpush2.bf16.msra.mxu0 0
    %847 = vmatprep.subr.bf16.mxu0 0
    %848 = vmatpush2.bf16.msra.mxu0 0
    %849 = vmatprep.subr.bf16.mxu0 0
    %850 = vmatpush2.bf16.msra.mxu0 0
    %851 = vmatprep.subr.bf16.mxu0 0
    %852 = vmatpush2.bf16.msra.mxu0 0
    %853 = vmatprep.subr.bf16.mxu0 0
    %854 = vmatpush2.bf16.msra.mxu0 0
    %855 = vmatprep.subr.bf16.mxu0 0
    %856 = vmatpush2.bf16.msra.mxu0 0
    %857 = vmatprep.subr.bf16.mxu0 0
    %858 = vmatpush2.bf16.msra.mxu0 0
    %859 = vmatprep.subr.bf16.mxu0 0
    %860 = vmatpush2.bf16.msra.mxu0 0
    %861 = vmatprep.mubr.bf16.mxu0 0
    %862 = vmatmul.mubr.bf16.gmra.mxu0 %v827
    %v863 = vpop.f32.mrf.mxu0
    %v864 = vadd.f32 0.0, %v863
    %v865 = vpop.f32.mrf.mxu0
    %v866 = vpop.f32.mrf.mxu0
    %v867 = vadd.f32 0.0, %v866
    %v868 = vpop.f32.mrf.mxu0
    %869 = vdwg.mxu0
    %v871 = vsel %vm749, %v823, 0
    %873 = vmatprep.subr.bf16.mxu0 0
    %874 = vmatpush1.bf16.msra.mxu0 0
    %875 = vmatprep.subr.bf16.mxu0 0
    %876 = vmatpush1.bf16.msra.mxu0 0
    %877 = vmatprep.subr.bf16.mxu0 0
    %878 = vmatpush1.bf16.msra.mxu0 0
    %879 = vmatprep.subr.bf16.mxu0 0
    %880 = vmatpush1.bf16.msra.mxu0 0
    %881 = vmatprep.subr.bf16.mxu0 0
    %882 = vmatpush1.bf16.msra.mxu0 0
    %883 = vmatprep.subr.bf16.mxu0 0
    %884 = vmatpush1.bf16.msra.mxu0 0
    %885 = vmatprep.subr.bf16.mxu0 0
    %886 = vmatpush1.bf16.msra.mxu0 0
    %887 = vmatprep.subr.bf16.mxu0 0
    %888 = vmatpush1.bf16.msra.mxu0 %v557
    %889 = vmatprep.subr.bf16.mxu0 0
    %890 = vmatpush2.bf16.msra.mxu0 0
    %891 = vmatprep.subr.bf16.mxu0 0
    %892 = vmatpush2.bf16.msra.mxu0 0
    %893 = vmatprep.subr.bf16.mxu0 0
    %894 = vmatpush2.bf16.msra.mxu0 0
    %895 = vmatprep.subr.bf16.mxu0 0
    %896 = vmatpush2.bf16.msra.mxu0 0
    %897 = vmatprep.subr.bf16.mxu0 0
    %898 = vmatpush2.bf16.msra.mxu0 0
    %899 = vmatprep.subr.bf16.mxu0 0
    %900 = vmatpush2.bf16.msra.mxu0 0
    %901 = vmatprep.subr.bf16.mxu0 0
    %902 = vmatpush2.bf16.msra.mxu0 0
    %903 = vmatprep.subr.bf16.mxu0 0
    %904 = vmatpush2.bf16.msra.mxu0 0
    %905 = vmatprep.mubr.bf16.mxu0 0
    %906 = vmatmul.mubr.bf16.gmra.mxu0 %v871
    %v907 = vpop.f32.mrf.mxu0
    %v908 = vadd.f32 0.0, %v907
    %v909 = vpop.f32.mrf.mxu0
    %v910 = vpop.f32.mrf.mxu0
    %v911 = vadd.f32 0.0, %v910
    %v912 = vpop.f32.mrf.mxu0
    %913 = vdwg.mxu0
    %v915 = vsel %vm749, %v824, 0
    %917 = vmatprep.subr.bf16.mxu0 0
    %918 = vmatpush1.bf16.msra.mxu0 0
    %919 = vmatprep.subr.bf16.mxu0 0
    %920 = vmatpush1.bf16.msra.mxu0 0
    %921 = vmatprep.subr.bf16.mxu0 0
    %922 = vmatpush1.bf16.msra.mxu0 0
    %923 = vmatprep.subr.bf16.mxu0 0
    %924 = vmatpush1.bf16.msra.mxu0 0
    %925 = vmatprep.subr.bf16.mxu0 0
    %926 = vmatpush1.bf16.msra.mxu0 0
    %927 = vmatprep.subr.bf16.mxu0 0
    %928 = vmatpush1.bf16.msra.mxu0 0
    %929 = vmatprep.subr.bf16.mxu0 0
    %930 = vmatpush1.bf16.msra.mxu0 0
    %931 = vmatprep.subr.bf16.mxu0 0
    %932 = vmatpush1.bf16.msra.mxu0 %v558
    %933 = vmatprep.subr.bf16.mxu0 0
    %934 = vmatpush2.bf16.msra.mxu0 0
    %935 = vmatprep.subr.bf16.mxu0 0
    %936 = vmatpush2.bf16.msra.mxu0 0
    %937 = vmatprep.subr.bf16.mxu0 0
    %938 = vmatpush2.bf16.msra.mxu0 0
    %939 = vmatprep.subr.bf16.mxu0 0
    %940 = vmatpush2.bf16.msra.mxu0 0
    %941 = vmatprep.subr.bf16.mxu0 0
    %942 = vmatpush2.bf16.msra.mxu0 0
    %943 = vmatprep.subr.bf16.mxu0 0
    %944 = vmatpush2.bf16.msra.mxu0 0
    %945 = vmatprep.subr.bf16.mxu0 0
    %946 = vmatpush2.bf16.msra.mxu0 0
    %947 = vmatprep.subr.bf16.mxu0 0
    %948 = vmatpush2.bf16.msra.mxu0 0
    %949 = vmatprep.mubr.bf16.mxu0 0
    %950 = vmatmul.mubr.bf16.gmra.mxu0 %v915
    %v951 = vpop.f32.mrf.mxu0
    %v952 = vadd.f32 0.0, %v951
    %v953 = vpop.f32.mrf.mxu0
    %v954 = vpop.f32.mrf.mxu0
    %v955 = vadd.f32 0.0, %v954
    %v956 = vpop.f32.mrf.mxu0
    %957 = vdwg.mxu0
    %v959 = vsel %vm749, %v825, 0
    %961 = vmatprep.subr.bf16.mxu0 0
    %962 = vmatpush1.bf16.msra.mxu0 0
    %963 = vmatprep.subr.bf16.mxu0 0
    %964 = vmatpush1.bf16.msra.mxu0 0
    %965 = vmatprep.subr.bf16.mxu0 0
    %966 = vmatpush1.bf16.msra.mxu0 0
    %967 = vmatprep.subr.bf16.mxu0 0
    %968 = vmatpush1.bf16.msra.mxu0 0
    %969 = vmatprep.subr.bf16.mxu0 0
    %970 = vmatpush1.bf16.msra.mxu0 0
    %971 = vmatprep.subr.bf16.mxu0 0
    %972 = vmatpush1.bf16.msra.mxu0 0
    %973 = vmatprep.subr.bf16.mxu0 0
    %974 = vmatpush1.bf16.msra.mxu0 0
    %975 = vmatprep.subr.bf16.mxu0 0
    %976 = vmatpush1.bf16.msra.mxu0 %v559
    %977 = vmatprep.subr.bf16.mxu0 0
    %978 = vmatpush2.bf16.msra.mxu0 0
    %979 = vmatprep.subr.bf16.mxu0 0
    %980 = vmatpush2.bf16.msra.mxu0 0
    %981 = vmatprep.subr.bf16.mxu0 0
    %982 = vmatpush2.bf16.msra.mxu0 0
    %983 = vmatprep.subr.bf16.mxu0 0
    %984 = vmatpush2.bf16.msra.mxu0 0
    %985 = vmatprep.subr.bf16.mxu0 0
    %986 = vmatpush2.bf16.msra.mxu0 0
    %987 = vmatprep.subr.bf16.mxu0 0
    %988 = vmatpush2.bf16.msra.mxu0 0
    %989 = vmatprep.subr.bf16.mxu0 0
    %990 = vmatpush2.bf16.msra.mxu0 0
    %991 = vmatprep.subr.bf16.mxu0 0
    %992 = vmatpush2.bf16.msra.mxu0 0
    %993 = vmatprep.mubr.bf16.mxu0 0
    %994 = vmatmul.mubr.bf16.gmra.mxu0 %v959
    %v995 = vpop.f32.mrf.mxu0
    %v996 = vadd.f32 0.0, %v995
    %v997 = vpop.f32.mrf.mxu0
    %v998 = vpop.f32.mrf.mxu0
    %v999 = vadd.f32 0.0, %v998
    %v1000 = vpop.f32.mrf.mxu0
    %1001 = vdwg.mxu0
    %v1002 = vrcp.pop %v800
    %v1003 = vrcp.pop %v803
    %v1004 = vrcp.pop %v806
    %v1005 = vrcp.pop %v809
    %v1006 = vrcp.pop %v812
    %v1007 = vrcp.pop %v815
    %v1008 = vrcp.pop %v818
    %v1009 = vrcp.pop %v821
    %v1010 = vmul.f32 %v864, %v1002
    %v1011 = vmul.f32 %v867, %v1003
    %v1012 = vmul.f32 %v908, %v1004
    %v1013 = vmul.f32 %v911, %v1005
    %v1014 = vmul.f32 %v952, %v1006
    %v1015 = vmul.f32 %v955, %v1007
    %v1016 = vmul.f32 %v996, %v1008
    %v1017 = vmul.f32 %v999, %v1009
    %1019 = vrot.lane.b32.xlu0 %v548, 96
    %v1020 = vpop.permute.xlu0 %1019
    %1022 = vrot.lane.b32.xlu0 %v552, 96
    %v1023 = vpop.permute.xlu0 %1022
    %v1025 = vsel %vm560, %v1020, 0
    %v1028 = vsel %vm560, %v1023, 0
    %1030 = vmatprep.subr.bf16.mxu0 0
    %1031 = vmatpush1.bf16.xpose.msra.mxu0 0
    %1032 = vmatprep.subr.bf16.mxu0 0
    %1033 = vmatpush1.bf16.xpose.msra.mxu0 0
    %1034 = vmatprep.subr.bf16.mxu0 0
    %1035 = vmatpush1.bf16.xpose.msra.mxu0 0
    %1036 = vmatprep.subr.bf16.mxu0 0
    %1037 = vmatpush1.bf16.xpose.msra.mxu0 0
    %1038 = vmatprep.subr.bf16.mxu0 0
    %1039 = vmatpush1.bf16.xpose.msra.mxu0 0
    %1040 = vmatprep.subr.bf16.mxu0 0
    %1041 = vmatpush1.bf16.xpose.msra.mxu0 0
    %1042 = vmatprep.subr.bf16.mxu0 0
    %1043 = vmatpush1.bf16.xpose.msra.mxu0 0
    %1044 = vmatprep.subr.bf16.mxu0 0
    %1045 = vmatpush1.bf16.xpose.msra.mxu0 %v1028
    %1046 = vmatprep.subr.bf16.mxu0 0
    %1047 = vmatpush2.bf16.xpose.msra.mxu0 0
    %1048 = vmatprep.subr.bf16.mxu0 0
    %1049 = vmatpush2.bf16.xpose.msra.mxu0 0
    %1050 = vmatprep.subr.bf16.mxu0 0
    %1051 = vmatpush2.bf16.xpose.msra.mxu0 0
    %1052 = vmatprep.subr.bf16.mxu0 0
    %1053 = vmatpush2.bf16.xpose.msra.mxu0 0
    %1054 = vmatprep.subr.bf16.mxu0 0
    %1055 = vmatpush2.bf16.xpose.msra.mxu0 0
    %1056 = vmatprep.subr.bf16.mxu0 0
    %1057 = vmatpush2.bf16.xpose.msra.mxu0 0
    %1058 = vmatprep.subr.bf16.mxu0 0
    %1059 = vmatpush2.bf16.xpose.msra.mxu0 0
    %1060 = vmatprep.subr.bf16.mxu0 0
    %1061 = vmatpush2.bf16.xpose.msra.mxu0 0
    %1062 = vmatprep.mubr.bf16.mxu0 0
    %1063 = vmatmul.mubr.bf16.gmra.mxu0 %v1025
    %v1064 = vpop.f32.mrf.mxu0
    %v1065 = vadd.f32 0.0, %v1064
    %v1066 = vpop.f32.mrf.mxu0
    %v1067 = vpop.f32.mrf.mxu0
    %v1068 = vadd.f32 0.0, %v1067
    %v1069 = vpop.f32.mrf.mxu0
    %1070 = vdwg.mxu0
    %1072 = vrot.lane.b32.xlu0 %v549, 96
    %v1073 = vpop.permute.xlu0 %1072
    %1075 = vrot.lane.b32.xlu0 %v553, 96
    %v1076 = vpop.permute.xlu0 %1075
    %v1078 = vsel %vm560, %v1073, 0
    %v1081 = vsel %vm560, %v1076, 0
    %1083 = vmatprep.subr.bf16.mxu0 0
    %1084 = vmatpush1.bf16.xpose.msra.mxu0 0
    %1085 = vmatprep.subr.bf16.mxu0 0
    %1086 = vmatpush1.bf16.xpose.msra.mxu0 0
    %1087 = vmatprep.subr.bf16.mxu0 0
    %1088 = vmatpush1.bf16.xpose.msra.mxu0 0
    %1089 = vmatprep.subr.bf16.mxu0 0
    %1090 = vmatpush1.bf16.xpose.msra.mxu0 0
    %1091 = vmatprep.subr.bf16.mxu0 0
    %1092 = vmatpush1.bf16.xpose.msra.mxu0 0
    %1093 = vmatprep.subr.bf16.mxu0 0
    %1094 = vmatpush1.bf16.xpose.msra.mxu0 0
    %1095 = vmatprep.subr.bf16.mxu0 0
    %1096 = vmatpush1.bf16.xpose.msra.mxu0 0
    %1097 = vmatprep.subr.bf16.mxu0 0
    %1098 = vmatpush1.bf16.xpose.msra.mxu0 %v1081
    %1099 = vmatprep.subr.bf16.mxu0 0
    %1100 = vmatpush2.bf16.xpose.msra.mxu0 0
    %1101 = vmatprep.subr.bf16.mxu0 0
    %1102 = vmatpush2.bf16.xpose.msra.mxu0 0
    %1103 = vmatprep.subr.bf16.mxu0 0
    %1104 = vmatpush2.bf16.xpose.msra.mxu0 0
    %1105 = vmatprep.subr.bf16.mxu0 0
    %1106 = vmatpush2.bf16.xpose.msra.mxu0 0
    %1107 = vmatprep.subr.bf16.mxu0 0
    %1108 = vmatpush2.bf16.xpose.msra.mxu0 0
    %1109 = vmatprep.subr.bf16.mxu0 0
    %1110 = vmatpush2.bf16.xpose.msra.mxu0 0
    %1111 = vmatprep.subr.bf16.mxu0 0
    %1112 = vmatpush2.bf16.xpose.msra.mxu0 0
    %1113 = vmatprep.subr.bf16.mxu0 0
    %1114 = vmatpush2.bf16.xpose.msra.mxu0 0
    %1115 = vmatprep.mubr.bf16.mxu0 0
    %1116 = vmatmul.mubr.bf16.gmra.mxu0 %v1078
    %v1117 = vpop.f32.mrf.mxu0
    %v1118 = vadd.f32 0.0, %v1117
    %v1119 = vpop.f32.mrf.mxu0
    %v1120 = vpop.f32.mrf.mxu0
    %v1121 = vadd.f32 0.0, %v1120
    %v1122 = vpop.f32.mrf.mxu0
    %1123 = vdwg.mxu0
    %1125 = vrot.lane.b32.xlu0 %v550, 96
    %v1126 = vpop.permute.xlu0 %1125
    %1128 = vrot.lane.b32.xlu0 %v554, 96
    %v1129 = vpop.permute.xlu0 %1128
    %v1131 = vsel %vm560, %v1126, 0
    %v1134 = vsel %vm560, %v1129, 0
    %1136 = vmatprep.subr.bf16.mxu0 0
    %1137 = vmatpush1.bf16.xpose.msra.mxu0 0
    %1138 = vmatprep.subr.bf16.mxu0 0
    %1139 = vmatpush1.bf16.xpose.msra.mxu0 0
    %1140 = vmatprep.subr.bf16.mxu0 0
    %1141 = vmatpush1.bf16.xpose.msra.mxu0 0
    %1142 = vmatprep.subr.bf16.mxu0 0
    %1143 = vmatpush1.bf16.xpose.msra.mxu0 0
    %1144 = vmatprep.subr.bf16.mxu0 0
    %1145 = vmatpush1.bf16.xpose.msra.mxu0 0
    %1146 = vmatprep.subr.bf16.mxu0 0
    %1147 = vmatpush1.bf16.xpose.msra.mxu0 0
    %1148 = vmatprep.subr.bf16.mxu0 0
    %1149 = vmatpush1.bf16.xpose.msra.mxu0 0
    %1150 = vmatprep.subr.bf16.mxu0 0
    %1151 = vmatpush1.bf16.xpose.msra.mxu0 %v1134
    %1152 = vmatprep.subr.bf16.mxu0 0
    %1153 = vmatpush2.bf16.xpose.msra.mxu0 0
    %1154 = vmatprep.subr.bf16.mxu0 0
    %1155 = vmatpush2.bf16.xpose.msra.mxu0 0
    %1156 = vmatprep.subr.bf16.mxu0 0
    %1157 = vmatpush2.bf16.xpose.msra.mxu0 0
    %1158 = vmatprep.subr.bf16.mxu0 0
    %1159 = vmatpush2.bf16.xpose.msra.mxu0 0
    %1160 = vmatprep.subr.bf16.mxu0 0
    %1161 = vmatpush2.bf16.xpose.msra.mxu0 0
    %1162 = vmatprep.subr.bf16.mxu0 0
    %1163 = vmatpush2.bf16.xpose.msra.mxu0 0
    %1164 = vmatprep.subr.bf16.mxu0 0
    %1165 = vmatpush2.bf16.xpose.msra.mxu0 0
    %1166 = vmatprep.subr.bf16.mxu0 0
    %1167 = vmatpush2.bf16.xpose.msra.mxu0 0
    %1168 = vmatprep.mubr.bf16.mxu0 0
    %1169 = vmatmul.mubr.bf16.gmra.mxu0 %v1131
    %v1170 = vpop.f32.mrf.mxu0
    %v1171 = vadd.f32 0.0, %v1170
    %v1172 = vpop.f32.mrf.mxu0
    %v1173 = vpop.f32.mrf.mxu0
    %v1174 = vadd.f32 0.0, %v1173
    %v1175 = vpop.f32.mrf.mxu0
    %1176 = vdwg.mxu0
    %1178 = vrot.lane.b32.xlu0 %v551, 96
    %v1179 = vpop.permute.xlu0 %1178
    %1181 = vrot.lane.b32.xlu0 %v555, 96
    %v1182 = vpop.permute.xlu0 %1181
    %v1184 = vsel %vm560, %v1179, 0
    %v1187 = vsel %vm560, %v1182, 0
    %1189 = vmatprep.subr.bf16.mxu0 0
    %1190 = vmatpush1.bf16.xpose.msra.mxu0 0
    %1191 = vmatprep.subr.bf16.mxu0 0
    %1192 = vmatpush1.bf16.xpose.msra.mxu0 0
    %1193 = vmatprep.subr.bf16.mxu0 0
    %1194 = vmatpush1.bf16.xpose.msra.mxu0 0
    %1195 = vmatprep.subr.bf16.mxu0 0
    %1196 = vmatpush1.bf16.xpose.msra.mxu0 0
    %1197 = vmatprep.subr.bf16.mxu0 0
    %1198 = vmatpush1.bf16.xpose.msra.mxu0 0
    %1199 = vmatprep.subr.bf16.mxu0 0
    %1200 = vmatpush1.bf16.xpose.msra.mxu0 0
    %1201 = vmatprep.subr.bf16.mxu0 0
    %1202 = vmatpush1.bf16.xpose.msra.mxu0 0
    %1203 = vmatprep.subr.bf16.mxu0 0
    %1204 = vmatpush1.bf16.xpose.msra.mxu0 %v1187
    %1205 = vmatprep.subr.bf16.mxu0 0
    %1206 = vmatpush2.bf16.xpose.msra.mxu0 0
    %1207 = vmatprep.subr.bf16.mxu0 0
    %1208 = vmatpush2.bf16.xpose.msra.mxu0 0
    %1209 = vmatprep.subr.bf16.mxu0 0
    %1210 = vmatpush2.bf16.xpose.msra.mxu0 0
    %1211 = vmatprep.subr.bf16.mxu0 0
    %1212 = vmatpush2.bf16.xpose.msra.mxu0 0
    %1213 = vmatprep.subr.bf16.mxu0 0
    %1214 = vmatpush2.bf16.xpose.msra.mxu0 0
    %1215 = vmatprep.subr.bf16.mxu0 0
    %1216 = vmatpush2.bf16.xpose.msra.mxu0 0
    %1217 = vmatprep.subr.bf16.mxu0 0
    %1218 = vmatpush2.bf16.xpose.msra.mxu0 0
    %1219 = vmatprep.subr.bf16.mxu0 0
    %1220 = vmatpush2.bf16.xpose.msra.mxu0 0
    %1221 = vmatprep.mubr.bf16.mxu0 0
    %1222 = vmatmul.mubr.bf16.gmra.mxu0 %v1184
    %v1223 = vpop.f32.mrf.mxu0
    %v1224 = vadd.f32 0.0, %v1223
    %v1225 = vpop.f32.mrf.mxu0
    %v1226 = vpop.f32.mrf.mxu0
    %v1227 = vadd.f32 0.0, %v1226
    %v1228 = vpop.f32.mrf.mxu0
    %1229 = vdwg.mxu0
    %v1230 = vsel %vm749, %v1065, -inf
    %1231 = vmax.xlane.f32.xlu0 %v1230
    %v1232 = vpop.xlane.xlu0 %1231
    %v1233 = vsel %vm749, %v1068, -inf
    %1234 = vmax.xlane.f32.xlu0 %v1233
    %v1235 = vpop.xlane.xlu0 %1234
    %v1236 = vsel %vm749, %v1118, -inf
    %1237 = vmax.xlane.f32.xlu0 %v1236
    %v1238 = vpop.xlane.xlu0 %1237
    %v1239 = vsel %vm749, %v1121, -inf
    %1240 = vmax.xlane.f32.xlu0 %v1239
    %v1241 = vpop.xlane.xlu0 %1240
    %v1242 = vsel %vm749, %v1171, -inf
    %1243 = vmax.xlane.f32.xlu0 %v1242
    %v1244 = vpop.xlane.xlu0 %1243
    %v1245 = vsel %vm749, %v1174, -inf
    %1246 = vmax.xlane.f32.xlu0 %v1245
    %v1247 = vpop.xlane.xlu0 %1246
    %v1248 = vsel %vm749, %v1224, -inf
    %1249 = vmax.xlane.f32.xlu0 %v1248
    %v1250 = vpop.xlane.xlu0 %1249
    %v1251 = vsel %vm749, %v1227, -inf
    %1252 = vmax.xlane.f32.xlu0 %v1251
    %v1253 = vpop.xlane.xlu0 %1252
    %v1254 = vsub.f32 %v1065, %v1232
    %v1255 = vsub.f32 %v1068, %v1235
    %v1256 = vsub.f32 %v1118, %v1238
    %v1257 = vsub.f32 %v1121, %v1241
    %v1258 = vsub.f32 %v1171, %v1244
    %v1259 = vsub.f32 %v1174, %v1247
    %v1260 = vsub.f32 %v1224, %v1250
    %v1261 = vsub.f32 %v1227, %v1253
    %v1262 = vmul.f32 %v1254, 1.442695
    %v1263 = vpow.pop %v1262
    %v1264 = vmul.f32 %v1255, 1.442695
    %v1265 = vpow.pop %v1264
    %v1266 = vmul.f32 %v1256, 1.442695
    %v1267 = vpow.pop %v1266
    %v1268 = vmul.f32 %v1257, 1.442695
    %v1269 = vpow.pop %v1268
    %v1270 = vmul.f32 %v1258, 1.442695
    %v1271 = vpow.pop %v1270
    %v1272 = vmul.f32 %v1259, 1.442695
    %v1273 = vpow.pop %v1272
    %v1274 = vmul.f32 %v1260, 1.442695
    %v1275 = vpow.pop %v1274
    %v1276 = vmul.f32 %v1261, 1.442695
    %v1277 = vpow.pop %v1276
    %v1278 = vsel %vm749, %v1263, 0.0
    %1279 = vadd.xlane.f32.xlu0 %v1278
    %v1280 = vpop.xlane.xlu0 %1279
    %v1281 = vsel %vm749, %v1265, 0.0
    %1282 = vadd.xlane.f32.xlu0 %v1281
    %v1283 = vpop.xlane.xlu0 %1282
    %v1284 = vsel %vm749, %v1267, 0.0
    %1285 = vadd.xlane.f32.xlu0 %v1284
    %v1286 = vpop.xlane.xlu0 %1285
    %v1287 = vsel %vm749, %v1269, 0.0
    %1288 = vadd.xlane.f32.xlu0 %v1287
    %v1289 = vpop.xlane.xlu0 %1288
    %v1290 = vsel %vm749, %v1271, 0.0
    %1291 = vadd.xlane.f32.xlu0 %v1290
    %v1292 = vpop.xlane.xlu0 %1291
    %v1293 = vsel %vm749, %v1273, 0.0
    %1294 = vadd.xlane.f32.xlu0 %v1293
    %v1295 = vpop.xlane.xlu0 %1294
    %v1296 = vsel %vm749, %v1275, 0.0
    %1297 = vadd.xlane.f32.xlu0 %v1296
    %v1298 = vpop.xlane.xlu0 %1297
    %v1299 = vsel %vm749, %v1277, 0.0
    %1300 = vadd.xlane.f32.xlu0 %v1299
    %v1301 = vpop.xlane.xlu0 %1300
    %v1302 = vpack.c.bf16 %v1265, %v1263
    %v1303 = vpack.c.bf16 %v1269, %v1267
    %v1304 = vpack.c.bf16 %v1273, %v1271
    %v1305 = vpack.c.bf16 %v1277, %v1275
    %1307 = vrot.lane.b32.xlu0 %v556, 96
    %v1308 = vpop.permute.xlu0 %1307
    %v1311 = vsel %vm749, %v1302, 0
    %1313 = vmatprep.subr.bf16.mxu0 0
    %1314 = vmatpush1.bf16.msra.mxu0 0
    %1315 = vmatprep.subr.bf16.mxu0 0
    %1316 = vmatpush1.bf16.msra.mxu0 0
    %1317 = vmatprep.subr.bf16.mxu0 0
    %1318 = vmatpush1.bf16.msra.mxu0 0
    %1319 = vmatprep.subr.bf16.mxu0 0
    %1320 = vmatpush1.bf16.msra.mxu0 0
    %1321 = vmatprep.subr.bf16.mxu0 0
    %1322 = vmatpush1.bf16.msra.mxu0 0
    %1323 = vmatprep.subr.bf16.mxu0 0
    %1324 = vmatpush1.bf16.msra.mxu0 0
    %1325 = vmatprep.subr.bf16.mxu0 0
    %1326 = vmatpush1.bf16.msra.mxu0 0
    %1327 = vmatprep.subr.bf16.mxu0 0
    %1328 = vmatpush1.bf16.msra.mxu0 %v1308
    %1329 = vmatprep.subr.bf16.mxu0 0
    %1330 = vmatpush2.bf16.msra.mxu0 0
    %1331 = vmatprep.subr.bf16.mxu0 0
    %1332 = vmatpush2.bf16.msra.mxu0 0
    %1333 = vmatprep.subr.bf16.mxu0 0
    %1334 = vmatpush2.bf16.msra.mxu0 0
    %1335 = vmatprep.subr.bf16.mxu0 0
    %1336 = vmatpush2.bf16.msra.mxu0 0
    %1337 = vmatprep.subr.bf16.mxu0 0
    %1338 = vmatpush2.bf16.msra.mxu0 0
    %1339 = vmatprep.subr.bf16.mxu0 0
    %1340 = vmatpush2.bf16.msra.mxu0 0
    %1341 = vmatprep.subr.bf16.mxu0 0
    %1342 = vmatpush2.bf16.msra.mxu0 0
    %1343 = vmatprep.subr.bf16.mxu0 0
    %1344 = vmatpush2.bf16.msra.mxu0 0
    %1345 = vmatprep.mubr.bf16.mxu0 0
    %1346 = vmatmul.mubr.bf16.gmra.mxu0 %v1311
    %v1347 = vpop.f32.mrf.mxu0
    %v1348 = vadd.f32 0.0, %v1347
    %v1349 = vpop.f32.mrf.mxu0
    %v1350 = vpop.f32.mrf.mxu0
    %v1351 = vadd.f32 0.0, %v1350
    %v1352 = vpop.f32.mrf.mxu0
    %1353 = vdwg.mxu0
    %1355 = vrot.lane.b32.xlu0 %v557, 96
    %v1356 = vpop.permute.xlu0 %1355
    %v1359 = vsel %vm749, %v1303, 0
    %1361 = vmatprep.subr.bf16.mxu0 0
    %1362 = vmatpush1.bf16.msra.mxu0 0
    %1363 = vmatprep.subr.bf16.mxu0 0
    %1364 = vmatpush1.bf16.msra.mxu0 0
    %1365 = vmatprep.subr.bf16.mxu0 0
    %1366 = vmatpush1.bf16.msra.mxu0 0
    %1367 = vmatprep.subr.bf16.mxu0 0
    %1368 = vmatpush1.bf16.msra.mxu0 0
    %1369 = vmatprep.subr.bf16.mxu0 0
    %1370 = vmatpush1.bf16.msra.mxu0 0
    %1371 = vmatprep.subr.bf16.mxu0 0
    %1372 = vmatpush1.bf16.msra.mxu0 0
    %1373 = vmatprep.subr.bf16.mxu0 0
    %1374 = vmatpush1.bf16.msra.mxu0 0
    %1375 = vmatprep.subr.bf16.mxu0 0
    %1376 = vmatpush1.bf16.msra.mxu0 %v1356
    %1377 = vmatprep.subr.bf16.mxu0 0
    %1378 = vmatpush2.bf16.msra.mxu0 0
    %1379 = vmatprep.subr.bf16.mxu0 0
    %1380 = vmatpush2.bf16.msra.mxu0 0
    %1381 = vmatprep.subr.bf16.mxu0 0
    %1382 = vmatpush2.bf16.msra.mxu0 0
    %1383 = vmatprep.subr.bf16.mxu0 0
    %1384 = vmatpush2.bf16.msra.mxu0 0
    %1385 = vmatprep.subr.bf16.mxu0 0
    %1386 = vmatpush2.bf16.msra.mxu0 0
    %1387 = vmatprep.subr.bf16.mxu0 0
    %1388 = vmatpush2.bf16.msra.mxu0 0
    %1389 = vmatprep.subr.bf16.mxu0 0
    %1390 = vmatpush2.bf16.msra.mxu0 0
    %1391 = vmatprep.subr.bf16.mxu0 0
    %1392 = vmatpush2.bf16.msra.mxu0 0
    %1393 = vmatprep.mubr.bf16.mxu0 0
    %1394 = vmatmul.mubr.bf16.gmra.mxu0 %v1359
    %v1395 = vpop.f32.mrf.mxu0
    %v1396 = vadd.f32 0.0, %v1395
    %v1397 = vpop.f32.mrf.mxu0
    %v1398 = vpop.f32.mrf.mxu0
    %v1399 = vadd.f32 0.0, %v1398
    %v1400 = vpop.f32.mrf.mxu0
    %1401 = vdwg.mxu0
    %1403 = vrot.lane.b32.xlu0 %v558, 96
    %v1404 = vpop.permute.xlu0 %1403
    %v1407 = vsel %vm749, %v1304, 0
    %1409 = vmatprep.subr.bf16.mxu0 0
    %1410 = vmatpush1.bf16.msra.mxu0 0
    %1411 = vmatprep.subr.bf16.mxu0 0
    %1412 = vmatpush1.bf16.msra.mxu0 0
    %1413 = vmatprep.subr.bf16.mxu0 0
    %1414 = vmatpush1.bf16.msra.mxu0 0
    %1415 = vmatprep.subr.bf16.mxu0 0
    %1416 = vmatpush1.bf16.msra.mxu0 0
    %1417 = vmatprep.subr.bf16.mxu0 0
    %1418 = vmatpush1.bf16.msra.mxu0 0
    %1419 = vmatprep.subr.bf16.mxu0 0
    %1420 = vmatpush1.bf16.msra.mxu0 0
    %1421 = vmatprep.subr.bf16.mxu0 0
    %1422 = vmatpush1.bf16.msra.mxu0 0
    %1423 = vmatprep.subr.bf16.mxu0 0
    %1424 = vmatpush1.bf16.msra.mxu0 %v1404
    %1425 = vmatprep.subr.bf16.mxu0 0
    %1426 = vmatpush2.bf16.msra.mxu0 0
    %1427 = vmatprep.subr.bf16.mxu0 0
    %1428 = vmatpush2.bf16.msra.mxu0 0
    %1429 = vmatprep.subr.bf16.mxu0 0
    %1430 = vmatpush2.bf16.msra.mxu0 0
    %1431 = vmatprep.subr.bf16.mxu0 0
    %1432 = vmatpush2.bf16.msra.mxu0 0
    %1433 = vmatprep.subr.bf16.mxu0 0
    %1434 = vmatpush2.bf16.msra.mxu0 0
    %1435 = vmatprep.subr.bf16.mxu0 0
    %1436 = vmatpush2.bf16.msra.mxu0 0
    %1437 = vmatprep.subr.bf16.mxu0 0
    %1438 = vmatpush2.bf16.msra.mxu0 0
    %1439 = vmatprep.subr.bf16.mxu0 0
    %1440 = vmatpush2.bf16.msra.mxu0 0
    %1441 = vmatprep.mubr.bf16.mxu0 0
    %1442 = vmatmul.mubr.bf16.gmra.mxu0 %v1407
    %v1443 = vpop.f32.mrf.mxu0
    %v1444 = vadd.f32 0.0, %v1443
    %v1445 = vpop.f32.mrf.mxu0
    %v1446 = vpop.f32.mrf.mxu0
    %v1447 = vadd.f32 0.0, %v1446
    %v1448 = vpop.f32.mrf.mxu0
    %1449 = vdwg.mxu0
    %1451 = vrot.lane.b32.xlu0 %v559, 96
    %v1452 = vpop.permute.xlu0 %1451
    %v1455 = vsel %vm749, %v1305, 0
    %1457 = vmatprep.subr.bf16.mxu0 0
    %1458 = vmatpush1.bf16.msra.mxu0 0
    %1459 = vmatprep.subr.bf16.mxu0 0
    %1460 = vmatpush1.bf16.msra.mxu0 0
    %1461 = vmatprep.subr.bf16.mxu0 0
    %1462 = vmatpush1.bf16.msra.mxu0 0
    %1463 = vmatprep.subr.bf16.mxu0 0
    %1464 = vmatpush1.bf16.msra.mxu0 0
    %1465 = vmatprep.subr.bf16.mxu0 0
    %1466 = vmatpush1.bf16.msra.mxu0 0
    %1467 = vmatprep.subr.bf16.mxu0 0
    %1468 = vmatpush1.bf16.msra.mxu0 0
    %1469 = vmatprep.subr.bf16.mxu0 0
    %1470 = vmatpush1.bf16.msra.mxu0 0
    %1471 = vmatprep.subr.bf16.mxu0 0
    %1472 = vmatpush1.bf16.msra.mxu0 %v1452
    %1473 = vmatprep.subr.bf16.mxu0 0
    %1474 = vmatpush2.bf16.msra.mxu0 0
    %1475 = vmatprep.subr.bf16.mxu0 0
    %1476 = vmatpush2.bf16.msra.mxu0 0
    %1477 = vmatprep.subr.bf16.mxu0 0
    %1478 = vmatpush2.bf16.msra.mxu0 0
    %1479 = vmatprep.subr.bf16.mxu0 0
    %1480 = vmatpush2.bf16.msra.mxu0 0
    %1481 = vmatprep.subr.bf16.mxu0 0
    %1482 = vmatpush2.bf16.msra.mxu0 0
    %1483 = vmatprep.subr.bf16.mxu0 0
    %1484 = vmatpush2.bf16.msra.mxu0 0
    %1485 = vmatprep.subr.bf16.mxu0 0
    %1486 = vmatpush2.bf16.msra.mxu0 0
    %1487 = vmatprep.subr.bf16.mxu0 0
    %1488 = vmatpush2.bf16.msra.mxu0 0
    %1489 = vmatprep.mubr.bf16.mxu0 0
    %1490 = vmatmul.mubr.bf16.gmra.mxu0 %v1455
    %v1491 = vpop.f32.mrf.mxu0
    %v1492 = vadd.f32 0.0, %v1491
    %v1493 = vpop.f32.mrf.mxu0
    %v1494 = vpop.f32.mrf.mxu0
    %v1495 = vadd.f32 0.0, %v1494
    %v1496 = vpop.f32.mrf.mxu0
    %1497 = vdwg.mxu0
    %v1498 = vrcp.pop %v1280
    %v1499 = vrcp.pop %v1283
    %v1500 = vrcp.pop %v1286
    %v1501 = vrcp.pop %v1289
    %v1502 = vrcp.pop %v1292
    %v1503 = vrcp.pop %v1295
    %v1504 = vrcp.pop %v1298
    %v1505 = vrcp.pop %v1301
    %v1506 = vmul.f32 %v1348, %v1498
    %v1507 = vmul.f32 %v1351, %v1499
    %v1508 = vmul.f32 %v1396, %v1500
    %v1509 = vmul.f32 %v1399, %v1501
    %v1510 = vmul.f32 %v1444, %v1502
    %v1511 = vmul.f32 %v1447, %v1503
    %v1512 = vmul.f32 %v1492, %v1504
    %v1513 = vmul.f32 %v1495, %v1505
    %1514 = vrot.lane.b32.xlu0 %v548, 64
    %v1515 = vpop.permute.xlu0 %1514
    %1516 = vrot.lane.b32.xlu0 %v552, 64
    %v1517 = vpop.permute.xlu0 %1516
    %v1519 = vsel %vm560, %v1515, 0
    %v1522 = vsel %vm560, %v1517, 0
    %1524 = vmatprep.subr.bf16.mxu0 0
    %1525 = vmatpush1.bf16.xpose.msra.mxu0 0
    %1526 = vmatprep.subr.bf16.mxu0 0
    %1527 = vmatpush1.bf16.xpose.msra.mxu0 0
    %1528 = vmatprep.subr.bf16.mxu0 0
    %1529 = vmatpush1.bf16.xpose.msra.mxu0 0
    %1530 = vmatprep.subr.bf16.mxu0 0
    %1531 = vmatpush1.bf16.xpose.msra.mxu0 0
    %1532 = vmatprep.subr.bf16.mxu0 0
    %1533 = vmatpush1.bf16.xpose.msra.mxu0 0
    %1534 = vmatprep.subr.bf16.mxu0 0
    %1535 = vmatpush1.bf16.xpose.msra.mxu0 0
    %1536 = vmatprep.subr.bf16.mxu0 0
    %1537 = vmatpush1.bf16.xpose.msra.mxu0 0
    %1538 = vmatprep.subr.bf16.mxu0 0
    %1539 = vmatpush1.bf16.xpose.msra.mxu0 %v1522
    %1540 = vmatprep.subr.bf16.mxu0 0
    %1541 = vmatpush2.bf16.xpose.msra.mxu0 0
    %1542 = vmatprep.subr.bf16.mxu0 0
    %1543 = vmatpush2.bf16.xpose.msra.mxu0 0
    %1544 = vmatprep.subr.bf16.mxu0 0
    %1545 = vmatpush2.bf16.xpose.msra.mxu0 0
    %1546 = vmatprep.subr.bf16.mxu0 0
    %1547 = vmatpush2.bf16.xpose.msra.mxu0 0
    %1548 = vmatprep.subr.bf16.mxu0 0
    %1549 = vmatpush2.bf16.xpose.msra.mxu0 0
    %1550 = vmatprep.subr.bf16.mxu0 0
    %1551 = vmatpush2.bf16.xpose.msra.mxu0 0
    %1552 = vmatprep.subr.bf16.mxu0 0
    %1553 = vmatpush2.bf16.xpose.msra.mxu0 0
    %1554 = vmatprep.subr.bf16.mxu0 0
    %1555 = vmatpush2.bf16.xpose.msra.mxu0 0
    %1556 = vmatprep.mubr.bf16.mxu0 0
    %1557 = vmatmul.mubr.bf16.gmra.mxu0 %v1519
    %v1558 = vpop.f32.mrf.mxu0
    %v1559 = vadd.f32 0.0, %v1558
    %v1560 = vpop.f32.mrf.mxu0
    %v1561 = vpop.f32.mrf.mxu0
    %v1562 = vadd.f32 0.0, %v1561
    %v1563 = vpop.f32.mrf.mxu0
    %1564 = vdwg.mxu0
    %1565 = vrot.lane.b32.xlu0 %v549, 64
    %v1566 = vpop.permute.xlu0 %1565
    %1567 = vrot.lane.b32.xlu0 %v553, 64
    %v1568 = vpop.permute.xlu0 %1567
    %v1570 = vsel %vm560, %v1566, 0
    %v1573 = vsel %vm560, %v1568, 0
    %1575 = vmatprep.subr.bf16.mxu0 0
    %1576 = vmatpush1.bf16.xpose.msra.mxu0 0
    %1577 = vmatprep.subr.bf16.mxu0 0
    %1578 = vmatpush1.bf16.xpose.msra.mxu0 0
    %1579 = vmatprep.subr.bf16.mxu0 0
    %1580 = vmatpush1.bf16.xpose.msra.mxu0 0
    %1581 = vmatprep.subr.bf16.mxu0 0
    %1582 = vmatpush1.bf16.xpose.msra.mxu0 0
    %1583 = vmatprep.subr.bf16.mxu0 0
    %1584 = vmatpush1.bf16.xpose.msra.mxu0 0
    %1585 = vmatprep.subr.bf16.mxu0 0
    %1586 = vmatpush1.bf16.xpose.msra.mxu0 0
    %1587 = vmatprep.subr.bf16.mxu0 0
    %1588 = vmatpush1.bf16.xpose.msra.mxu0 0
    %1589 = vmatprep.subr.bf16.mxu0 0
    %1590 = vmatpush1.bf16.xpose.msra.mxu0 %v1573
    %1591 = vmatprep.subr.bf16.mxu0 0
    %1592 = vmatpush2.bf16.xpose.msra.mxu0 0
    %1593 = vmatprep.subr.bf16.mxu0 0
    %1594 = vmatpush2.bf16.xpose.msra.mxu0 0
    %1595 = vmatprep.subr.bf16.mxu0 0
    %1596 = vmatpush2.bf16.xpose.msra.mxu0 0
    %1597 = vmatprep.subr.bf16.mxu0 0
    %1598 = vmatpush2.bf16.xpose.msra.mxu0 0
    %1599 = vmatprep.subr.bf16.mxu0 0
    %1600 = vmatpush2.bf16.xpose.msra.mxu0 0
    %1601 = vmatprep.subr.bf16.mxu0 0
    %1602 = vmatpush2.bf16.xpose.msra.mxu0 0
    %1603 = vmatprep.subr.bf16.mxu0 0
    %1604 = vmatpush2.bf16.xpose.msra.mxu0 0
    %1605 = vmatprep.subr.bf16.mxu0 0
    %1606 = vmatpush2.bf16.xpose.msra.mxu0 0
    %1607 = vmatprep.mubr.bf16.mxu0 0
    %1608 = vmatmul.mubr.bf16.gmra.mxu0 %v1570
    %v1609 = vpop.f32.mrf.mxu0
    %v1610 = vadd.f32 0.0, %v1609
    %v1611 = vpop.f32.mrf.mxu0
    %v1612 = vpop.f32.mrf.mxu0
    %v1613 = vadd.f32 0.0, %v1612
    %v1614 = vpop.f32.mrf.mxu0
    %1615 = vdwg.mxu0
    %1616 = vrot.lane.b32.xlu0 %v550, 64
    %v1617 = vpop.permute.xlu0 %1616
    %1618 = vrot.lane.b32.xlu0 %v554, 64
    %v1619 = vpop.permute.xlu0 %1618
    %v1621 = vsel %vm560, %v1617, 0
    %v1624 = vsel %vm560, %v1619, 0
    %1626 = vmatprep.subr.bf16.mxu0 0
    %1627 = vmatpush1.bf16.xpose.msra.mxu0 0
    %1628 = vmatprep.subr.bf16.mxu0 0
    %1629 = vmatpush1.bf16.xpose.msra.mxu0 0
    %1630 = vmatprep.subr.bf16.mxu0 0
    %1631 = vmatpush1.bf16.xpose.msra.mxu0 0
    %1632 = vmatprep.subr.bf16.mxu0 0
    %1633 = vmatpush1.bf16.xpose.msra.mxu0 0
    %1634 = vmatprep.subr.bf16.mxu0 0
    %1635 = vmatpush1.bf16.xpose.msra.mxu0 0
    %1636 = vmatprep.subr.bf16.mxu0 0
    %1637 = vmatpush1.bf16.xpose.msra.mxu0 0
    %1638 = vmatprep.subr.bf16.mxu0 0
    %1639 = vmatpush1.bf16.xpose.msra.mxu0 0
    %1640 = vmatprep.subr.bf16.mxu0 0
    %1641 = vmatpush1.bf16.xpose.msra.mxu0 %v1624
    %1642 = vmatprep.subr.bf16.mxu0 0
    %1643 = vmatpush2.bf16.xpose.msra.mxu0 0
    %1644 = vmatprep.subr.bf16.mxu0 0
    %1645 = vmatpush2.bf16.xpose.msra.mxu0 0
    %1646 = vmatprep.subr.bf16.mxu0 0
    %1647 = vmatpush2.bf16.xpose.msra.mxu0 0
    %1648 = vmatprep.subr.bf16.mxu0 0
    %1649 = vmatpush2.bf16.xpose.msra.mxu0 0
    %1650 = vmatprep.subr.bf16.mxu0 0
    %1651 = vmatpush2.bf16.xpose.msra.mxu0 0
    %1652 = vmatprep.subr.bf16.mxu0 0
    %1653 = vmatpush2.bf16.xpose.msra.mxu0 0
    %1654 = vmatprep.subr.bf16.mxu0 0
    %1655 = vmatpush2.bf16.xpose.msra.mxu0 0
    %1656 = vmatprep.subr.bf16.mxu0 0
    %1657 = vmatpush2.bf16.xpose.msra.mxu0 0
    %1658 = vmatprep.mubr.bf16.mxu0 0
    %1659 = vmatmul.mubr.bf16.gmra.mxu0 %v1621
    %v1660 = vpop.f32.mrf.mxu0
    %v1661 = vadd.f32 0.0, %v1660
    %v1662 = vpop.f32.mrf.mxu0
    %v1663 = vpop.f32.mrf.mxu0
    %v1664 = vadd.f32 0.0, %v1663
    %v1665 = vpop.f32.mrf.mxu0
    %1666 = vdwg.mxu0
    %1667 = vrot.lane.b32.xlu0 %v551, 64
    %v1668 = vpop.permute.xlu0 %1667
    %1669 = vrot.lane.b32.xlu0 %v555, 64
    %v1670 = vpop.permute.xlu0 %1669
    %v1672 = vsel %vm560, %v1668, 0
    %v1675 = vsel %vm560, %v1670, 0
    %1677 = vmatprep.subr.bf16.mxu0 0
    %1678 = vmatpush1.bf16.xpose.msra.mxu0 0
    %1679 = vmatprep.subr.bf16.mxu0 0
    %1680 = vmatpush1.bf16.xpose.msra.mxu0 0
    %1681 = vmatprep.subr.bf16.mxu0 0
    %1682 = vmatpush1.bf16.xpose.msra.mxu0 0
    %1683 = vmatprep.subr.bf16.mxu0 0
    %1684 = vmatpush1.bf16.xpose.msra.mxu0 0
    %1685 = vmatprep.subr.bf16.mxu0 0
    %1686 = vmatpush1.bf16.xpose.msra.mxu0 0
    %1687 = vmatprep.subr.bf16.mxu0 0
    %1688 = vmatpush1.bf16.xpose.msra.mxu0 0
    %1689 = vmatprep.subr.bf16.mxu0 0
    %1690 = vmatpush1.bf16.xpose.msra.mxu0 0
    %1691 = vmatprep.subr.bf16.mxu0 0
    %1692 = vmatpush1.bf16.xpose.msra.mxu0 %v1675
    %1693 = vmatprep.subr.bf16.mxu0 0
    %1694 = vmatpush2.bf16.xpose.msra.mxu0 0
    %1695 = vmatprep.subr.bf16.mxu0 0
    %1696 = vmatpush2.bf16.xpose.msra.mxu0 0
    %1697 = vmatprep.subr.bf16.mxu0 0
    %1698 = vmatpush2.bf16.xpose.msra.mxu0 0
    %1699 = vmatprep.subr.bf16.mxu0 0
    %1700 = vmatpush2.bf16.xpose.msra.mxu0 0
    %1701 = vmatprep.subr.bf16.mxu0 0
    %1702 = vmatpush2.bf16.xpose.msra.mxu0 0
    %1703 = vmatprep.subr.bf16.mxu0 0
    %1704 = vmatpush2.bf16.xpose.msra.mxu0 0
    %1705 = vmatprep.subr.bf16.mxu0 0
    %1706 = vmatpush2.bf16.xpose.msra.mxu0 0
    %1707 = vmatprep.subr.bf16.mxu0 0
    %1708 = vmatpush2.bf16.xpose.msra.mxu0 0
    %1709 = vmatprep.mubr.bf16.mxu0 0
    %1710 = vmatmul.mubr.bf16.gmra.mxu0 %v1672
    %v1711 = vpop.f32.mrf.mxu0
    %v1712 = vadd.f32 0.0, %v1711
    %v1713 = vpop.f32.mrf.mxu0
    %v1714 = vpop.f32.mrf.mxu0
    %v1715 = vadd.f32 0.0, %v1714
    %v1716 = vpop.f32.mrf.mxu0
    %1717 = vdwg.mxu0
    %v1718 = vsel %vm749, %v1559, -inf
    %1719 = vmax.xlane.f32.xlu0 %v1718
    %v1720 = vpop.xlane.xlu0 %1719
    %v1721 = vsel %vm749, %v1562, -inf
    %1722 = vmax.xlane.f32.xlu0 %v1721
    %v1723 = vpop.xlane.xlu0 %1722
    %v1724 = vsel %vm749, %v1610, -inf
    %1725 = vmax.xlane.f32.xlu0 %v1724
    %v1726 = vpop.xlane.xlu0 %1725
    %v1727 = vsel %vm749, %v1613, -inf
    %1728 = vmax.xlane.f32.xlu0 %v1727
    %v1729 = vpop.xlane.xlu0 %1728
    %v1730 = vsel %vm749, %v1661, -inf
    %1731 = vmax.xlane.f32.xlu0 %v1730
    %v1732 = vpop.xlane.xlu0 %1731
    %v1733 = vsel %vm749, %v1664, -inf
    %1734 = vmax.xlane.f32.xlu0 %v1733
    %v1735 = vpop.xlane.xlu0 %1734
    %v1736 = vsel %vm749, %v1712, -inf
    %1737 = vmax.xlane.f32.xlu0 %v1736
    %v1738 = vpop.xlane.xlu0 %1737
    %v1739 = vsel %vm749, %v1715, -inf
    %1740 = vmax.xlane.f32.xlu0 %v1739
    %v1741 = vpop.xlane.xlu0 %1740
    %v1742 = vsub.f32 %v1559, %v1720
    %v1743 = vsub.f32 %v1562, %v1723
    %v1744 = vsub.f32 %v1610, %v1726
    %v1745 = vsub.f32 %v1613, %v1729
    %v1746 = vsub.f32 %v1661, %v1732
    %v1747 = vsub.f32 %v1664, %v1735
    %v1748 = vsub.f32 %v1712, %v1738
    %v1749 = vsub.f32 %v1715, %v1741
    %v1750 = vmul.f32 %v1742, 1.442695
    %v1751 = vpow.pop %v1750
    %v1752 = vmul.f32 %v1743, 1.442695
    %v1753 = vpow.pop %v1752
    %v1754 = vmul.f32 %v1744, 1.442695
    %v1755 = vpow.pop %v1754
    %v1756 = vmul.f32 %v1745, 1.442695
    %v1757 = vpow.pop %v1756
    %v1758 = vmul.f32 %v1746, 1.442695
    %v1759 = vpow.pop %v1758
    %v1760 = vmul.f32 %v1747, 1.442695
    %v1761 = vpow.pop %v1760
    %v1762 = vmul.f32 %v1748, 1.442695
    %v1763 = vpow.pop %v1762
    %v1764 = vmul.f32 %v1749, 1.442695
    %v1765 = vpow.pop %v1764
    %v1766 = vsel %vm749, %v1751, 0.0
    %1767 = vadd.xlane.f32.xlu0 %v1766
    %v1768 = vpop.xlane.xlu0 %1767
    %v1769 = vsel %vm749, %v1753, 0.0
    %1770 = vadd.xlane.f32.xlu0 %v1769
    %v1771 = vpop.xlane.xlu0 %1770
    %v1772 = vsel %vm749, %v1755, 0.0
    %1773 = vadd.xlane.f32.xlu0 %v1772
    %v1774 = vpop.xlane.xlu0 %1773
    %v1775 = vsel %vm749, %v1757, 0.0
    %1776 = vadd.xlane.f32.xlu0 %v1775
    %v1777 = vpop.xlane.xlu0 %1776
    %v1778 = vsel %vm749, %v1759, 0.0
    %1779 = vadd.xlane.f32.xlu0 %v1778
    %v1780 = vpop.xlane.xlu0 %1779
    %v1781 = vsel %vm749, %v1761, 0.0
    %1782 = vadd.xlane.f32.xlu0 %v1781
    %v1783 = vpop.xlane.xlu0 %1782
    %v1784 = vsel %vm749, %v1763, 0.0
    %1785 = vadd.xlane.f32.xlu0 %v1784
    %v1786 = vpop.xlane.xlu0 %1785
    %v1787 = vsel %vm749, %v1765, 0.0
    %1788 = vadd.xlane.f32.xlu0 %v1787
    %v1789 = vpop.xlane.xlu0 %1788
    %v1790 = vpack.c.bf16 %v1753, %v1751
    %v1791 = vpack.c.bf16 %v1757, %v1755
    %v1792 = vpack.c.bf16 %v1761, %v1759
    %v1793 = vpack.c.bf16 %v1765, %v1763
    %1794 = vrot.lane.b32.xlu0 %v556, 64
    %v1795 = vpop.permute.xlu0 %1794
    %v1798 = vsel %vm749, %v1790, 0
    %1800 = vmatprep.subr.bf16.mxu0 0
    %1801 = vmatpush1.bf16.msra.mxu0 0
    %1802 = vmatprep.subr.bf16.mxu0 0
    %1803 = vmatpush1.bf16.msra.mxu0 0
    %1804 = vmatprep.subr.bf16.mxu0 0
    %1805 = vmatpush1.bf16.msra.mxu0 0
    %1806 = vmatprep.subr.bf16.mxu0 0
    %1807 = vmatpush1.bf16.msra.mxu0 0
    %1808 = vmatprep.subr.bf16.mxu0 0
    %1809 = vmatpush1.bf16.msra.mxu0 0
    %1810 = vmatprep.subr.bf16.mxu0 0
    %1811 = vmatpush1.bf16.msra.mxu0 0
    %1812 = vmatprep.subr.bf16.mxu0 0
    %1813 = vmatpush1.bf16.msra.mxu0 0
    %1814 = vmatprep.subr.bf16.mxu0 0
    %1815 = vmatpush1.bf16.msra.mxu0 %v1795
    %1816 = vmatprep.subr.bf16.mxu0 0
    %1817 = vmatpush2.bf16.msra.mxu0 0
    %1818 = vmatprep.subr.bf16.mxu0 0
    %1819 = vmatpush2.bf16.msra.mxu0 0
    %1820 = vmatprep.subr.bf16.mxu0 0
    %1821 = vmatpush2.bf16.msra.mxu0 0
    %1822 = vmatprep.subr.bf16.mxu0 0
    %1823 = vmatpush2.bf16.msra.mxu0 0
    %1824 = vmatprep.subr.bf16.mxu0 0
    %1825 = vmatpush2.bf16.msra.mxu0 0
    %1826 = vmatprep.subr.bf16.mxu0 0
    %1827 = vmatpush2.bf16.msra.mxu0 0
    %1828 = vmatprep.subr.bf16.mxu0 0
    %1829 = vmatpush2.bf16.msra.mxu0 0
    %1830 = vmatprep.subr.bf16.mxu0 0
    %1831 = vmatpush2.bf16.msra.mxu0 0
    %1832 = vmatprep.mubr.bf16.mxu0 0
    %1833 = vmatmul.mubr.bf16.gmra.mxu0 %v1798
    %v1834 = vpop.f32.mrf.mxu0
    %v1835 = vadd.f32 0.0, %v1834
    %v1836 = vpop.f32.mrf.mxu0
    %v1837 = vpop.f32.mrf.mxu0
    %v1838 = vadd.f32 0.0, %v1837
    %v1839 = vpop.f32.mrf.mxu0
    %1840 = vdwg.mxu0
    %1841 = vrot.lane.b32.xlu0 %v557, 64
    %v1842 = vpop.permute.xlu0 %1841
    %v1845 = vsel %vm749, %v1791, 0
    %1847 = vmatprep.subr.bf16.mxu0 0
    %1848 = vmatpush1.bf16.msra.mxu0 0
    %1849 = vmatprep.subr.bf16.mxu0 0
    %1850 = vmatpush1.bf16.msra.mxu0 0
    %1851 = vmatprep.subr.bf16.mxu0 0
    %1852 = vmatpush1.bf16.msra.mxu0 0
    %1853 = vmatprep.subr.bf16.mxu0 0
    %1854 = vmatpush1.bf16.msra.mxu0 0
    %1855 = vmatprep.subr.bf16.mxu0 0
    %1856 = vmatpush1.bf16.msra.mxu0 0
    %1857 = vmatprep.subr.bf16.mxu0 0
    %1858 = vmatpush1.bf16.msra.mxu0 0
    %1859 = vmatprep.subr.bf16.mxu0 0
    %1860 = vmatpush1.bf16.msra.mxu0 0
    %1861 = vmatprep.subr.bf16.mxu0 0
    %1862 = vmatpush1.bf16.msra.mxu0 %v1842
    %1863 = vmatprep.subr.bf16.mxu0 0
    %1864 = vmatpush2.bf16.msra.mxu0 0
    %1865 = vmatprep.subr.bf16.mxu0 0
    %1866 = vmatpush2.bf16.msra.mxu0 0
    %1867 = vmatprep.subr.bf16.mxu0 0
    %1868 = vmatpush2.bf16.msra.mxu0 0
    %1869 = vmatprep.subr.bf16.mxu0 0
    %1870 = vmatpush2.bf16.msra.mxu0 0
    %1871 = vmatprep.subr.bf16.mxu0 0
    %1872 = vmatpush2.bf16.msra.mxu0 0
    %1873 = vmatprep.subr.bf16.mxu0 0
    %1874 = vmatpush2.bf16.msra.mxu0 0
    %1875 = vmatprep.subr.bf16.mxu0 0
    %1876 = vmatpush2.bf16.msra.mxu0 0
    %1877 = vmatprep.subr.bf16.mxu0 0
    %1878 = vmatpush2.bf16.msra.mxu0 0
    %1879 = vmatprep.mubr.bf16.mxu0 0
    %1880 = vmatmul.mubr.bf16.gmra.mxu0 %v1845
    %v1881 = vpop.f32.mrf.mxu0
    %v1882 = vadd.f32 0.0, %v1881
    %v1883 = vpop.f32.mrf.mxu0
    %v1884 = vpop.f32.mrf.mxu0
    %v1885 = vadd.f32 0.0, %v1884
    %v1886 = vpop.f32.mrf.mxu0
    %1887 = vdwg.mxu0
    %1888 = vrot.lane.b32.xlu0 %v558, 64
    %v1889 = vpop.permute.xlu0 %1888
    %v1892 = vsel %vm749, %v1792, 0
    %1894 = vmatprep.subr.bf16.mxu0 0
    %1895 = vmatpush1.bf16.msra.mxu0 0
    %1896 = vmatprep.subr.bf16.mxu0 0
    %1897 = vmatpush1.bf16.msra.mxu0 0
    %1898 = vmatprep.subr.bf16.mxu0 0
    %1899 = vmatpush1.bf16.msra.mxu0 0
    %1900 = vmatprep.subr.bf16.mxu0 0
    %1901 = vmatpush1.bf16.msra.mxu0 0
    %1902 = vmatprep.subr.bf16.mxu0 0
    %1903 = vmatpush1.bf16.msra.mxu0 0
    %1904 = vmatprep.subr.bf16.mxu0 0
    %1905 = vmatpush1.bf16.msra.mxu0 0
    %1906 = vmatprep.subr.bf16.mxu0 0
    %1907 = vmatpush1.bf16.msra.mxu0 0
    %1908 = vmatprep.subr.bf16.mxu0 0
    %1909 = vmatpush1.bf16.msra.mxu0 %v1889
    %1910 = vmatprep.subr.bf16.mxu0 0
    %1911 = vmatpush2.bf16.msra.mxu0 0
    %1912 = vmatprep.subr.bf16.mxu0 0
    %1913 = vmatpush2.bf16.msra.mxu0 0
    %1914 = vmatprep.subr.bf16.mxu0 0
    %1915 = vmatpush2.bf16.msra.mxu0 0
    %1916 = vmatprep.subr.bf16.mxu0 0
    %1917 = vmatpush2.bf16.msra.mxu0 0
    %1918 = vmatprep.subr.bf16.mxu0 0
    %1919 = vmatpush2.bf16.msra.mxu0 0
    %1920 = vmatprep.subr.bf16.mxu0 0
    %1921 = vmatpush2.bf16.msra.mxu0 0
    %1922 = vmatprep.subr.bf16.mxu0 0
    %1923 = vmatpush2.bf16.msra.mxu0 0
    %1924 = vmatprep.subr.bf16.mxu0 0
    %1925 = vmatpush2.bf16.msra.mxu0 0
    %1926 = vmatprep.mubr.bf16.mxu0 0
    %1927 = vmatmul.mubr.bf16.gmra.mxu0 %v1892
    %v1928 = vpop.f32.mrf.mxu0
    %v1929 = vadd.f32 0.0, %v1928
    %v1930 = vpop.f32.mrf.mxu0
    %v1931 = vpop.f32.mrf.mxu0
    %v1932 = vadd.f32 0.0, %v1931
    %v1933 = vpop.f32.mrf.mxu0
    %1934 = vdwg.mxu0
    %1935 = vrot.lane.b32.xlu0 %v559, 64
    %v1936 = vpop.permute.xlu0 %1935
    %v1939 = vsel %vm749, %v1793, 0
    %1941 = vmatprep.subr.bf16.mxu0 0
    %1942 = vmatpush1.bf16.msra.mxu0 0
    %1943 = vmatprep.subr.bf16.mxu0 0
    %1944 = vmatpush1.bf16.msra.mxu0 0
    %1945 = vmatprep.subr.bf16.mxu0 0
    %1946 = vmatpush1.bf16.msra.mxu0 0
    %1947 = vmatprep.subr.bf16.mxu0 0
    %1948 = vmatpush1.bf16.msra.mxu0 0
    %1949 = vmatprep.subr.bf16.mxu0 0
    %1950 = vmatpush1.bf16.msra.mxu0 0
    %1951 = vmatprep.subr.bf16.mxu0 0
    %1952 = vmatpush1.bf16.msra.mxu0 0
    %1953 = vmatprep.subr.bf16.mxu0 0
    %1954 = vmatpush1.bf16.msra.mxu0 0
    %1955 = vmatprep.subr.bf16.mxu0 0
    %1956 = vmatpush1.bf16.msra.mxu0 %v1936
    %1957 = vmatprep.subr.bf16.mxu0 0
    %1958 = vmatpush2.bf16.msra.mxu0 0
    %1959 = vmatprep.subr.bf16.mxu0 0
    %1960 = vmatpush2.bf16.msra.mxu0 0
    %1961 = vmatprep.subr.bf16.mxu0 0
    %1962 = vmatpush2.bf16.msra.mxu0 0
    %1963 = vmatprep.subr.bf16.mxu0 0
    %1964 = vmatpush2.bf16.msra.mxu0 0
    %1965 = vmatprep.subr.bf16.mxu0 0
    %1966 = vmatpush2.bf16.msra.mxu0 0
    %1967 = vmatprep.subr.bf16.mxu0 0
    %1968 = vmatpush2.bf16.msra.mxu0 0
    %1969 = vmatprep.subr.bf16.mxu0 0
    %1970 = vmatpush2.bf16.msra.mxu0 0
    %1971 = vmatprep.subr.bf16.mxu0 0
    %1972 = vmatpush2.bf16.msra.mxu0 0
    %1973 = vmatprep.mubr.bf16.mxu0 0
    %1974 = vmatmul.mubr.bf16.gmra.mxu0 %v1939
    %v1975 = vpop.f32.mrf.mxu0
    %v1976 = vadd.f32 0.0, %v1975
    %v1977 = vpop.f32.mrf.mxu0
    %v1978 = vpop.f32.mrf.mxu0
    %v1979 = vadd.f32 0.0, %v1978
    %v1980 = vpop.f32.mrf.mxu0
    %1981 = vdwg.mxu0
    %v1982 = vrcp.pop %v1768
    %v1983 = vrcp.pop %v1771
    %v1984 = vrcp.pop %v1774
    %v1985 = vrcp.pop %v1777
    %v1986 = vrcp.pop %v1780
    %v1987 = vrcp.pop %v1783
    %v1988 = vrcp.pop %v1786
    %v1989 = vrcp.pop %v1789
    %v1990 = vmul.f32 %v1835, %v1982
    %v1991 = vmul.f32 %v1838, %v1983
    %v1992 = vmul.f32 %v1882, %v1984
    %v1993 = vmul.f32 %v1885, %v1985
    %v1994 = vmul.f32 %v1929, %v1986
    %v1995 = vmul.f32 %v1932, %v1987
    %v1996 = vmul.f32 %v1976, %v1988
    %v1997 = vmul.f32 %v1979, %v1989
    %1998 = vrot.lane.b32.xlu0 %v548, 32
    %v1999 = vpop.permute.xlu0 %1998
    %2000 = vrot.lane.b32.xlu0 %v552, 32
    %v2001 = vpop.permute.xlu0 %2000
    %v2003 = vsel %vm560, %v1999, 0
    %v2006 = vsel %vm560, %v2001, 0
    %2008 = vmatprep.subr.bf16.mxu0 0
    %2009 = vmatpush1.bf16.xpose.msra.mxu0 0
    %2010 = vmatprep.subr.bf16.mxu0 0
    %2011 = vmatpush1.bf16.xpose.msra.mxu0 0
    %2012 = vmatprep.subr.bf16.mxu0 0
    %2013 = vmatpush1.bf16.xpose.msra.mxu0 0
    %2014 = vmatprep.subr.bf16.mxu0 0
    %2015 = vmatpush1.bf16.xpose.msra.mxu0 0
    %2016 = vmatprep.subr.bf16.mxu0 0
    %2017 = vmatpush1.bf16.xpose.msra.mxu0 0
    %2018 = vmatprep.subr.bf16.mxu0 0
    %2019 = vmatpush1.bf16.xpose.msra.mxu0 0
    %2020 = vmatprep.subr.bf16.mxu0 0
    %2021 = vmatpush1.bf16.xpose.msra.mxu0 0
    %2022 = vmatprep.subr.bf16.mxu0 0
    %2023 = vmatpush1.bf16.xpose.msra.mxu0 %v2006
    %2024 = vmatprep.subr.bf16.mxu0 0
    %2025 = vmatpush2.bf16.xpose.msra.mxu0 0
    %2026 = vmatprep.subr.bf16.mxu0 0
    %2027 = vmatpush2.bf16.xpose.msra.mxu0 0
    %2028 = vmatprep.subr.bf16.mxu0 0
    %2029 = vmatpush2.bf16.xpose.msra.mxu0 0
    %2030 = vmatprep.subr.bf16.mxu0 0
    %2031 = vmatpush2.bf16.xpose.msra.mxu0 0
    %2032 = vmatprep.subr.bf16.mxu0 0
    %2033 = vmatpush2.bf16.xpose.msra.mxu0 0
    %2034 = vmatprep.subr.bf16.mxu0 0
    %2035 = vmatpush2.bf16.xpose.msra.mxu0 0
    %2036 = vmatprep.subr.bf16.mxu0 0
    %2037 = vmatpush2.bf16.xpose.msra.mxu0 0
    %2038 = vmatprep.subr.bf16.mxu0 0
    %2039 = vmatpush2.bf16.xpose.msra.mxu0 0
    %2040 = vmatprep.mubr.bf16.mxu0 0
    %2041 = vmatmul.mubr.bf16.gmra.mxu0 %v2003
    %v2042 = vpop.f32.mrf.mxu0
    %v2043 = vadd.f32 0.0, %v2042
    %v2044 = vpop.f32.mrf.mxu0
    %v2045 = vpop.f32.mrf.mxu0
    %v2046 = vadd.f32 0.0, %v2045
    %v2047 = vpop.f32.mrf.mxu0
    %2048 = vdwg.mxu0
    %2049 = vrot.lane.b32.xlu0 %v549, 32
    %v2050 = vpop.permute.xlu0 %2049
    %2051 = vrot.lane.b32.xlu0 %v553, 32
    %v2052 = vpop.permute.xlu0 %2051
    %v2054 = vsel %vm560, %v2050, 0
    %v2057 = vsel %vm560, %v2052, 0
    %2059 = vmatprep.subr.bf16.mxu0 0
    %2060 = vmatpush1.bf16.xpose.msra.mxu0 0
    %2061 = vmatprep.subr.bf16.mxu0 0
    %2062 = vmatpush1.bf16.xpose.msra.mxu0 0
    %2063 = vmatprep.subr.bf16.mxu0 0
    %2064 = vmatpush1.bf16.xpose.msra.mxu0 0
    %2065 = vmatprep.subr.bf16.mxu0 0
    %2066 = vmatpush1.bf16.xpose.msra.mxu0 0
    %2067 = vmatprep.subr.bf16.mxu0 0
    %2068 = vmatpush1.bf16.xpose.msra.mxu0 0
    %2069 = vmatprep.subr.bf16.mxu0 0
    %2070 = vmatpush1.bf16.xpose.msra.mxu0 0
    %2071 = vmatprep.subr.bf16.mxu0 0
    %2072 = vmatpush1.bf16.xpose.msra.mxu0 0
    %2073 = vmatprep.subr.bf16.mxu0 0
    %2074 = vmatpush1.bf16.xpose.msra.mxu0 %v2057
    %2075 = vmatprep.subr.bf16.mxu0 0
    %2076 = vmatpush2.bf16.xpose.msra.mxu0 0
    %2077 = vmatprep.subr.bf16.mxu0 0
    %2078 = vmatpush2.bf16.xpose.msra.mxu0 0
    %2079 = vmatprep.subr.bf16.mxu0 0
    %2080 = vmatpush2.bf16.xpose.msra.mxu0 0
    %2081 = vmatprep.subr.bf16.mxu0 0
    %2082 = vmatpush2.bf16.xpose.msra.mxu0 0
    %2083 = vmatprep.subr.bf16.mxu0 0
    %2084 = vmatpush2.bf16.xpose.msra.mxu0 0
    %2085 = vmatprep.subr.bf16.mxu0 0
    %2086 = vmatpush2.bf16.xpose.msra.mxu0 0
    %2087 = vmatprep.subr.bf16.mxu0 0
    %2088 = vmatpush2.bf16.xpose.msra.mxu0 0
    %2089 = vmatprep.subr.bf16.mxu0 0
    %2090 = vmatpush2.bf16.xpose.msra.mxu0 0
    %2091 = vmatprep.mubr.bf16.mxu0 0
    %2092 = vmatmul.mubr.bf16.gmra.mxu0 %v2054
    %v2093 = vpop.f32.mrf.mxu0
    %v2094 = vadd.f32 0.0, %v2093
    %v2095 = vpop.f32.mrf.mxu0
    %v2096 = vpop.f32.mrf.mxu0
    %v2097 = vadd.f32 0.0, %v2096
    %v2098 = vpop.f32.mrf.mxu0
    %2099 = vdwg.mxu0
    %2100 = vrot.lane.b32.xlu0 %v550, 32
    %v2101 = vpop.permute.xlu0 %2100
    %2102 = vrot.lane.b32.xlu0 %v554, 32
    %v2103 = vpop.permute.xlu0 %2102
    %v2105 = vsel %vm560, %v2101, 0
    %v2108 = vsel %vm560, %v2103, 0
    %2110 = vmatprep.subr.bf16.mxu0 0
    %2111 = vmatpush1.bf16.xpose.msra.mxu0 0
    %2112 = vmatprep.subr.bf16.mxu0 0
    %2113 = vmatpush1.bf16.xpose.msra.mxu0 0
    %2114 = vmatprep.subr.bf16.mxu0 0
    %2115 = vmatpush1.bf16.xpose.msra.mxu0 0
    %2116 = vmatprep.subr.bf16.mxu0 0
    %2117 = vmatpush1.bf16.xpose.msra.mxu0 0
    %2118 = vmatprep.subr.bf16.mxu0 0
    %2119 = vmatpush1.bf16.xpose.msra.mxu0 0
    %2120 = vmatprep.subr.bf16.mxu0 0
    %2121 = vmatpush1.bf16.xpose.msra.mxu0 0
    %2122 = vmatprep.subr.bf16.mxu0 0
    %2123 = vmatpush1.bf16.xpose.msra.mxu0 0
    %2124 = vmatprep.subr.bf16.mxu0 0
    %2125 = vmatpush1.bf16.xpose.msra.mxu0 %v2108
    %2126 = vmatprep.subr.bf16.mxu0 0
    %2127 = vmatpush2.bf16.xpose.msra.mxu0 0
    %2128 = vmatprep.subr.bf16.mxu0 0
    %2129 = vmatpush2.bf16.xpose.msra.mxu0 0
    %2130 = vmatprep.subr.bf16.mxu0 0
    %2131 = vmatpush2.bf16.xpose.msra.mxu0 0
    %2132 = vmatprep.subr.bf16.mxu0 0
    %2133 = vmatpush2.bf16.xpose.msra.mxu0 0
    %2134 = vmatprep.subr.bf16.mxu0 0
    %2135 = vmatpush2.bf16.xpose.msra.mxu0 0
    %2136 = vmatprep.subr.bf16.mxu0 0
    %2137 = vmatpush2.bf16.xpose.msra.mxu0 0
    %2138 = vmatprep.subr.bf16.mxu0 0
    %2139 = vmatpush2.bf16.xpose.msra.mxu0 0
    %2140 = vmatprep.subr.bf16.mxu0 0
    %2141 = vmatpush2.bf16.xpose.msra.mxu0 0
    %2142 = vmatprep.mubr.bf16.mxu0 0
    %2143 = vmatmul.mubr.bf16.gmra.mxu0 %v2105
    %v2144 = vpop.f32.mrf.mxu0
    %v2145 = vadd.f32 0.0, %v2144
    %v2146 = vpop.f32.mrf.mxu0
    %v2147 = vpop.f32.mrf.mxu0
    %v2148 = vadd.f32 0.0, %v2147
    %v2149 = vpop.f32.mrf.mxu0
    %2150 = vdwg.mxu0
    %2151 = vrot.lane.b32.xlu0 %v551, 32
    %v2152 = vpop.permute.xlu0 %2151
    %2153 = vrot.lane.b32.xlu0 %v555, 32
    %v2154 = vpop.permute.xlu0 %2153
    %v2156 = vsel %vm560, %v2152, 0
    %v2159 = vsel %vm560, %v2154, 0
    %2161 = vmatprep.subr.bf16.mxu0 0
    %2162 = vmatpush1.bf16.xpose.msra.mxu0 0
    %2163 = vmatprep.subr.bf16.mxu0 0
    %2164 = vmatpush1.bf16.xpose.msra.mxu0 0
    %2165 = vmatprep.subr.bf16.mxu0 0
    %2166 = vmatpush1.bf16.xpose.msra.mxu0 0
    %2167 = vmatprep.subr.bf16.mxu0 0
    %2168 = vmatpush1.bf16.xpose.msra.mxu0 0
    %2169 = vmatprep.subr.bf16.mxu0 0
    %2170 = vmatpush1.bf16.xpose.msra.mxu0 0
    %2171 = vmatprep.subr.bf16.mxu0 0
    %2172 = vmatpush1.bf16.xpose.msra.mxu0 0
    %2173 = vmatprep.subr.bf16.mxu0 0
    %2174 = vmatpush1.bf16.xpose.msra.mxu0 0
    %2175 = vmatprep.subr.bf16.mxu0 0
    %2176 = vmatpush1.bf16.xpose.msra.mxu0 %v2159
    %2177 = vmatprep.subr.bf16.mxu0 0
    %2178 = vmatpush2.bf16.xpose.msra.mxu0 0
    %2179 = vmatprep.subr.bf16.mxu0 0
    %2180 = vmatpush2.bf16.xpose.msra.mxu0 0
    %2181 = vmatprep.subr.bf16.mxu0 0
    %2182 = vmatpush2.bf16.xpose.msra.mxu0 0
    %2183 = vmatprep.subr.bf16.mxu0 0
    %2184 = vmatpush2.bf16.xpose.msra.mxu0 0
    %2185 = vmatprep.subr.bf16.mxu0 0
    %2186 = vmatpush2.bf16.xpose.msra.mxu0 0
    %2187 = vmatprep.subr.bf16.mxu0 0
    %2188 = vmatpush2.bf16.xpose.msra.mxu0 0
    %2189 = vmatprep.subr.bf16.mxu0 0
    %2190 = vmatpush2.bf16.xpose.msra.mxu0 0
    %2191 = vmatprep.subr.bf16.mxu0 0
    %2192 = vmatpush2.bf16.xpose.msra.mxu0 0
    %2193 = vmatprep.mubr.bf16.mxu0 0
    %2194 = vmatmul.mubr.bf16.gmra.mxu0 %v2156
    %v2195 = vpop.f32.mrf.mxu0
    %v2196 = vadd.f32 0.0, %v2195
    %v2197 = vpop.f32.mrf.mxu0
    %v2198 = vpop.f32.mrf.mxu0
    %v2199 = vadd.f32 0.0, %v2198
    %v2200 = vpop.f32.mrf.mxu0
    %2201 = vdwg.mxu0
    %v2202 = vsel %vm749, %v2043, -inf
    %2203 = vmax.xlane.f32.xlu0 %v2202
    %v2204 = vpop.xlane.xlu0 %2203
    %v2205 = vsel %vm749, %v2046, -inf
    %2206 = vmax.xlane.f32.xlu0 %v2205
    %v2207 = vpop.xlane.xlu0 %2206
    %v2208 = vsel %vm749, %v2094, -inf
    %2209 = vmax.xlane.f32.xlu0 %v2208
    %v2210 = vpop.xlane.xlu0 %2209
    %v2211 = vsel %vm749, %v2097, -inf
    %2212 = vmax.xlane.f32.xlu0 %v2211
    %v2213 = vpop.xlane.xlu0 %2212
    %v2214 = vsel %vm749, %v2145, -inf
    %2215 = vmax.xlane.f32.xlu0 %v2214
    %v2216 = vpop.xlane.xlu0 %2215
    %v2217 = vsel %vm749, %v2148, -inf
    %2218 = vmax.xlane.f32.xlu0 %v2217
    %v2219 = vpop.xlane.xlu0 %2218
    %v2220 = vsel %vm749, %v2196, -inf
    %2221 = vmax.xlane.f32.xlu0 %v2220
    %v2222 = vpop.xlane.xlu0 %2221
    %v2223 = vsel %vm749, %v2199, -inf
    %2224 = vmax.xlane.f32.xlu0 %v2223
    %v2225 = vpop.xlane.xlu0 %2224
    %v2226 = vsub.f32 %v2043, %v2204
    %v2227 = vsub.f32 %v2046, %v2207
    %v2228 = vsub.f32 %v2094, %v2210
    %v2229 = vsub.f32 %v2097, %v2213
    %v2230 = vsub.f32 %v2145, %v2216
    %v2231 = vsub.f32 %v2148, %v2219
    %v2232 = vsub.f32 %v2196, %v2222
    %v2233 = vsub.f32 %v2199, %v2225
    %v2234 = vmul.f32 %v2226, 1.442695
    %v2235 = vpow.pop %v2234
    %v2236 = vmul.f32 %v2227, 1.442695
    %v2237 = vpow.pop %v2236
    %v2238 = vmul.f32 %v2228, 1.442695
    %v2239 = vpow.pop %v2238
    %v2240 = vmul.f32 %v2229, 1.442695
    %v2241 = vpow.pop %v2240
    %v2242 = vmul.f32 %v2230, 1.442695
    %v2243 = vpow.pop %v2242
    %v2244 = vmul.f32 %v2231, 1.442695
    %v2245 = vpow.pop %v2244
    %v2246 = vmul.f32 %v2232, 1.442695
    %v2247 = vpow.pop %v2246
    %v2248 = vmul.f32 %v2233, 1.442695
    %v2249 = vpow.pop %v2248
    %v2250 = vsel %vm749, %v2235, 0.0
    %2251 = vadd.xlane.f32.xlu0 %v2250
    %v2252 = vpop.xlane.xlu0 %2251
    %v2253 = vsel %vm749, %v2237, 0.0
    %2254 = vadd.xlane.f32.xlu0 %v2253
    %v2255 = vpop.xlane.xlu0 %2254
    %v2256 = vsel %vm749, %v2239, 0.0
    %2257 = vadd.xlane.f32.xlu0 %v2256
    %v2258 = vpop.xlane.xlu0 %2257
    %v2259 = vsel %vm749, %v2241, 0.0
    %2260 = vadd.xlane.f32.xlu0 %v2259
    %v2261 = vpop.xlane.xlu0 %2260
    %v2262 = vsel %vm749, %v2243, 0.0
    %2263 = vadd.xlane.f32.xlu0 %v2262
    %v2264 = vpop.xlane.xlu0 %2263
    %v2265 = vsel %vm749, %v2245, 0.0
    %2266 = vadd.xlane.f32.xlu0 %v2265
    %v2267 = vpop.xlane.xlu0 %2266
    %v2268 = vsel %vm749, %v2247, 0.0
    %2269 = vadd.xlane.f32.xlu0 %v2268
    %v2270 = vpop.xlane.xlu0 %2269
    %v2271 = vsel %vm749, %v2249, 0.0
    %2272 = vadd.xlane.f32.xlu0 %v2271
    %v2273 = vpop.xlane.xlu0 %2272
    %v2274 = vpack.c.bf16 %v2237, %v2235
    %v2275 = vpack.c.bf16 %v2241, %v2239
    %v2276 = vpack.c.bf16 %v2245, %v2243
    %v2277 = vpack.c.bf16 %v2249, %v2247
    %2278 = vrot.lane.b32.xlu0 %v556, 32
    %v2279 = vpop.permute.xlu0 %2278
    %v2282 = vsel %vm749, %v2274, 0
    %2284 = vmatprep.subr.bf16.mxu0 0
    %2285 = vmatpush1.bf16.msra.mxu0 0
    %2286 = vmatprep.subr.bf16.mxu0 0
    %2287 = vmatpush1.bf16.msra.mxu0 0
    %2288 = vmatprep.subr.bf16.mxu0 0
    %2289 = vmatpush1.bf16.msra.mxu0 0
    %2290 = vmatprep.subr.bf16.mxu0 0
    %2291 = vmatpush1.bf16.msra.mxu0 0
    %2292 = vmatprep.subr.bf16.mxu0 0
    %2293 = vmatpush1.bf16.msra.mxu0 0
    %2294 = vmatprep.subr.bf16.mxu0 0
    %2295 = vmatpush1.bf16.msra.mxu0 0
    %2296 = vmatprep.subr.bf16.mxu0 0
    %2297 = vmatpush1.bf16.msra.mxu0 0
    %2298 = vmatprep.subr.bf16.mxu0 0
    %2299 = vmatpush1.bf16.msra.mxu0 %v2279
    %2300 = vmatprep.subr.bf16.mxu0 0
    %2301 = vmatpush2.bf16.msra.mxu0 0
    %2302 = vmatprep.subr.bf16.mxu0 0
    %2303 = vmatpush2.bf16.msra.mxu0 0
    %2304 = vmatprep.subr.bf16.mxu0 0
    %2305 = vmatpush2.bf16.msra.mxu0 0
    %2306 = vmatprep.subr.bf16.mxu0 0
    %2307 = vmatpush2.bf16.msra.mxu0 0
    %2308 = vmatprep.subr.bf16.mxu0 0
    %2309 = vmatpush2.bf16.msra.mxu0 0
    %2310 = vmatprep.subr.bf16.mxu0 0
    %2311 = vmatpush2.bf16.msra.mxu0 0
    %2312 = vmatprep.subr.bf16.mxu0 0
    %2313 = vmatpush2.bf16.msra.mxu0 0
    %2314 = vmatprep.subr.bf16.mxu0 0
    %2315 = vmatpush2.bf16.msra.mxu0 0
    %2316 = vmatprep.mubr.bf16.mxu0 0
    %2317 = vmatmul.mubr.bf16.gmra.mxu0 %v2282
    %v2318 = vpop.f32.mrf.mxu0
    %v2319 = vadd.f32 0.0, %v2318
    %v2320 = vpop.f32.mrf.mxu0
    %v2321 = vpop.f32.mrf.mxu0
    %v2322 = vadd.f32 0.0, %v2321
    %v2323 = vpop.f32.mrf.mxu0
    %2324 = vdwg.mxu0
    %2325 = vrot.lane.b32.xlu0 %v557, 32
    %v2326 = vpop.permute.xlu0 %2325
    %v2329 = vsel %vm749, %v2275, 0
    %2331 = vmatprep.subr.bf16.mxu0 0
    %2332 = vmatpush1.bf16.msra.mxu0 0
    %2333 = vmatprep.subr.bf16.mxu0 0
    %2334 = vmatpush1.bf16.msra.mxu0 0
    %2335 = vmatprep.subr.bf16.mxu0 0
    %2336 = vmatpush1.bf16.msra.mxu0 0
    %2337 = vmatprep.subr.bf16.mxu0 0
    %2338 = vmatpush1.bf16.msra.mxu0 0
    %2339 = vmatprep.subr.bf16.mxu0 0
    %2340 = vmatpush1.bf16.msra.mxu0 0
    %2341 = vmatprep.subr.bf16.mxu0 0
    %2342 = vmatpush1.bf16.msra.mxu0 0
    %2343 = vmatprep.subr.bf16.mxu0 0
    %2344 = vmatpush1.bf16.msra.mxu0 0
    %2345 = vmatprep.subr.bf16.mxu0 0
    %2346 = vmatpush1.bf16.msra.mxu0 %v2326
    %2347 = vmatprep.subr.bf16.mxu0 0
    %2348 = vmatpush2.bf16.msra.mxu0 0
    %2349 = vmatprep.subr.bf16.mxu0 0
    %2350 = vmatpush2.bf16.msra.mxu0 0
    %2351 = vmatprep.subr.bf16.mxu0 0
    %2352 = vmatpush2.bf16.msra.mxu0 0
    %2353 = vmatprep.subr.bf16.mxu0 0
    %2354 = vmatpush2.bf16.msra.mxu0 0
    %2355 = vmatprep.subr.bf16.mxu0 0
    %2356 = vmatpush2.bf16.msra.mxu0 0
    %2357 = vmatprep.subr.bf16.mxu0 0
    %2358 = vmatpush2.bf16.msra.mxu0 0
    %2359 = vmatprep.subr.bf16.mxu0 0
    %2360 = vmatpush2.bf16.msra.mxu0 0
    %2361 = vmatprep.subr.bf16.mxu0 0
    %2362 = vmatpush2.bf16.msra.mxu0 0
    %2363 = vmatprep.mubr.bf16.mxu0 0
    %2364 = vmatmul.mubr.bf16.gmra.mxu0 %v2329
    %v2365 = vpop.f32.mrf.mxu0
    %v2366 = vadd.f32 0.0, %v2365
    %v2367 = vpop.f32.mrf.mxu0
    %v2368 = vpop.f32.mrf.mxu0
    %v2369 = vadd.f32 0.0, %v2368
    %v2370 = vpop.f32.mrf.mxu0
    %2371 = vdwg.mxu0
    %2372 = vrot.lane.b32.xlu0 %v558, 32
    %v2373 = vpop.permute.xlu0 %2372
    %v2376 = vsel %vm749, %v2276, 0
    %2378 = vmatprep.subr.bf16.mxu0 0
    %2379 = vmatpush1.bf16.msra.mxu0 0
    %2380 = vmatprep.subr.bf16.mxu0 0
    %2381 = vmatpush1.bf16.msra.mxu0 0
    %2382 = vmatprep.subr.bf16.mxu0 0
    %2383 = vmatpush1.bf16.msra.mxu0 0
    %2384 = vmatprep.subr.bf16.mxu0 0
    %2385 = vmatpush1.bf16.msra.mxu0 0
    %2386 = vmatprep.subr.bf16.mxu0 0
    %2387 = vmatpush1.bf16.msra.mxu0 0
    %2388 = vmatprep.subr.bf16.mxu0 0
    %2389 = vmatpush1.bf16.msra.mxu0 0
    %2390 = vmatprep.subr.bf16.mxu0 0
    %2391 = vmatpush1.bf16.msra.mxu0 0
    %2392 = vmatprep.subr.bf16.mxu0 0
    %2393 = vmatpush1.bf16.msra.mxu0 %v2373
    %2394 = vmatprep.subr.bf16.mxu0 0
    %2395 = vmatpush2.bf16.msra.mxu0 0
    %2396 = vmatprep.subr.bf16.mxu0 0
    %2397 = vmatpush2.bf16.msra.mxu0 0
    %2398 = vmatprep.subr.bf16.mxu0 0
    %2399 = vmatpush2.bf16.msra.mxu0 0
    %2400 = vmatprep.subr.bf16.mxu0 0
    %2401 = vmatpush2.bf16.msra.mxu0 0
    %2402 = vmatprep.subr.bf16.mxu0 0
    %2403 = vmatpush2.bf16.msra.mxu0 0
    %2404 = vmatprep.subr.bf16.mxu0 0
    %2405 = vmatpush2.bf16.msra.mxu0 0
    %2406 = vmatprep.subr.bf16.mxu0 0
    %2407 = vmatpush2.bf16.msra.mxu0 0
    %2408 = vmatprep.subr.bf16.mxu0 0
    %2409 = vmatpush2.bf16.msra.mxu0 0
    %2410 = vmatprep.mubr.bf16.mxu0 0
    %2411 = vmatmul.mubr.bf16.gmra.mxu0 %v2376
    %v2412 = vpop.f32.mrf.mxu0
    %v2413 = vadd.f32 0.0, %v2412
    %v2414 = vpop.f32.mrf.mxu0
    %v2415 = vpop.f32.mrf.mxu0
    %v2416 = vadd.f32 0.0, %v2415
    %v2417 = vpop.f32.mrf.mxu0
    %2418 = vdwg.mxu0
    %2419 = vrot.lane.b32.xlu0 %v559, 32
    %v2420 = vpop.permute.xlu0 %2419
    %v2423 = vsel %vm749, %v2277, 0
    %2425 = vmatprep.subr.bf16.mxu0 0
    %2426 = vmatpush1.bf16.msra.mxu0 0
    %2427 = vmatprep.subr.bf16.mxu0 0
    %2428 = vmatpush1.bf16.msra.mxu0 0
    %2429 = vmatprep.subr.bf16.mxu0 0
    %2430 = vmatpush1.bf16.msra.mxu0 0
    %2431 = vmatprep.subr.bf16.mxu0 0
    %2432 = vmatpush1.bf16.msra.mxu0 0
    %2433 = vmatprep.subr.bf16.mxu0 0
    %2434 = vmatpush1.bf16.msra.mxu0 0
    %2435 = vmatprep.subr.bf16.mxu0 0
    %2436 = vmatpush1.bf16.msra.mxu0 0
    %2437 = vmatprep.subr.bf16.mxu0 0
    %2438 = vmatpush1.bf16.msra.mxu0 0
    %2439 = vmatprep.subr.bf16.mxu0 0
    %2440 = vmatpush1.bf16.msra.mxu0 %v2420
    %2441 = vmatprep.subr.bf16.mxu0 0
    %2442 = vmatpush2.bf16.msra.mxu0 0
    %2443 = vmatprep.subr.bf16.mxu0 0
    %2444 = vmatpush2.bf16.msra.mxu0 0
    %2445 = vmatprep.subr.bf16.mxu0 0
    %2446 = vmatpush2.bf16.msra.mxu0 0
    %2447 = vmatprep.subr.bf16.mxu0 0
    %2448 = vmatpush2.bf16.msra.mxu0 0
    %2449 = vmatprep.subr.bf16.mxu0 0
    %2450 = vmatpush2.bf16.msra.mxu0 0
    %2451 = vmatprep.subr.bf16.mxu0 0
    %2452 = vmatpush2.bf16.msra.mxu0 0
    %2453 = vmatprep.subr.bf16.mxu0 0
    %2454 = vmatpush2.bf16.msra.mxu0 0
    %2455 = vmatprep.subr.bf16.mxu0 0
    %2456 = vmatpush2.bf16.msra.mxu0 0
    %2457 = vmatprep.mubr.bf16.mxu0 0
    %2458 = vmatmul.mubr.bf16.gmra.mxu0 %v2423
    %v2459 = vpop.f32.mrf.mxu0
    %v2460 = vadd.f32 0.0, %v2459
    %v2461 = vpop.f32.mrf.mxu0
    %v2462 = vpop.f32.mrf.mxu0
    %v2463 = vadd.f32 0.0, %v2462
    %v2464 = vpop.f32.mrf.mxu0
    %2465 = vdwg.mxu0
    %v2466 = vrcp.pop %v2252
    %v2467 = vrcp.pop %v2255
    %v2468 = vrcp.pop %v2258
    %v2469 = vrcp.pop %v2261
    %v2470 = vrcp.pop %v2264
    %v2471 = vrcp.pop %v2267
    %v2472 = vrcp.pop %v2270
    %v2473 = vrcp.pop %v2273
    %v2474 = vmul.f32 %v2319, %v2466
    %v2475 = vmul.f32 %v2322, %v2467
    %v2476 = vmul.f32 %v2366, %v2468
    %v2477 = vmul.f32 %v2369, %v2469
    %v2478 = vmul.f32 %v2413, %v2470
    %v2479 = vmul.f32 %v2416, %v2471
    %v2480 = vmul.f32 %v2460, %v2472
    %v2481 = vmul.f32 %v2463, %v2473
    %2490 = vrot.lane.b32.xlu0 %v1506, 32
    %v2491 = vpop.permute.xlu0 %2490
    %2492 = vrot.lane.b32.xlu0 %v1507, 32
    %v2493 = vpop.permute.xlu0 %2492
    %2494 = vrot.lane.b32.xlu0 %v1508, 32
    %v2495 = vpop.permute.xlu0 %2494
    %2496 = vrot.lane.b32.xlu0 %v1509, 32
    %v2497 = vpop.permute.xlu0 %2496
    %2498 = vrot.lane.b32.xlu0 %v1510, 32
    %v2499 = vpop.permute.xlu0 %2498
    %2500 = vrot.lane.b32.xlu0 %v1511, 32
    %v2501 = vpop.permute.xlu0 %2500
    %2502 = vrot.lane.b32.xlu0 %v1512, 32
    %v2503 = vpop.permute.xlu0 %2502
    %2504 = vrot.lane.b32.xlu0 %v1513, 32
    %v2505 = vpop.permute.xlu0 %2504
    %2522 = vrot.lane.b32.xlu0 %v1990, 64
    %v2523 = vpop.permute.xlu0 %2522
    %2524 = vrot.lane.b32.xlu0 %v1991, 64
    %v2525 = vpop.permute.xlu0 %2524
    %2526 = vrot.lane.b32.xlu0 %v1992, 64
    %v2527 = vpop.permute.xlu0 %2526
    %2528 = vrot.lane.b32.xlu0 %v1993, 64
    %v2529 = vpop.permute.xlu0 %2528
    %2530 = vrot.lane.b32.xlu0 %v1994, 64
    %v2531 = vpop.permute.xlu0 %2530
    %2532 = vrot.lane.b32.xlu0 %v1995, 64
    %v2533 = vpop.permute.xlu0 %2532
    %2534 = vrot.lane.b32.xlu0 %v1996, 64
    %v2535 = vpop.permute.xlu0 %2534
    %2536 = vrot.lane.b32.xlu0 %v1997, 64
    %v2537 = vpop.permute.xlu0 %2536
    %2554 = vrot.lane.b32.xlu0 %v2474, 96
    %v2555 = vpop.permute.xlu0 %2554
    %2556 = vrot.lane.b32.xlu0 %v2475, 96
    %v2557 = vpop.permute.xlu0 %2556
    %2558 = vrot.lane.b32.xlu0 %v2476, 96
    %v2559 = vpop.permute.xlu0 %2558
    %2560 = vrot.lane.b32.xlu0 %v2477, 96
    %v2561 = vpop.permute.xlu0 %2560
    %2562 = vrot.lane.b32.xlu0 %v2478, 96
    %v2563 = vpop.permute.xlu0 %2562
    %2564 = vrot.lane.b32.xlu0 %v2479, 96
    %v2565 = vpop.permute.xlu0 %2564
    %2566 = vrot.lane.b32.xlu0 %v2480, 96
    %v2567 = vpop.permute.xlu0 %2566
    %2568 = vrot.lane.b32.xlu0 %v2481, 96
    %v2569 = vpop.permute.xlu0 %2568
    %v2578 = vsel %vm560, %v1010, %v2491
    %v2579 = vsel %vm560, %v1011, %v2493
    %v2580 = vsel %vm560, %v1012, %v2495
    %v2581 = vsel %vm560, %v1013, %v2497
    %v2582 = vsel %vm560, %v1014, %v2499
    %v2583 = vsel %vm560, %v1015, %v2501
    %v2584 = vsel %vm560, %v1016, %v2503
    %v2585 = vsel %vm560, %v1017, %v2505
    %vm2586 = vcmask 523264
    %v2587 = vsel %vm2586, %v2578, %v2523
    %v2588 = vsel %vm2586, %v2579, %v2525
    %v2589 = vsel %vm2586, %v2580, %v2527
    %v2590 = vsel %vm2586, %v2581, %v2529
    %v2591 = vsel %vm2586, %v2582, %v2531
    %v2592 = vsel %vm2586, %v2583, %v2533
    %v2593 = vsel %vm2586, %v2584, %v2535
    %v2594 = vsel %vm2586, %v2585, %v2537
    %vm2595 = vcmask 785408
    %v2596 = vsel %vm2595, %v2587, %v2555
    %v2597 = vsel %vm2595, %v2588, %v2557
    %v2598 = vsel %vm2595, %v2589, %v2559
    %v2599 = vsel %vm2595, %v2590, %v2561
    %v2600 = vsel %vm2595, %v2591, %v2563
    %v2601 = vsel %vm2595, %v2592, %v2565
    %v2602 = vsel %vm2595, %v2593, %v2567
    %v2603 = vsel %vm2595, %v2594, %v2569
    %v2604 = vpack.c.bf16 %v2597, %v2596
    %v2605 = vpack.c.bf16 %v2599, %v2598
    %v2606 = vpack.c.bf16 %v2601, %v2600
    %v2607 = vpack.c.bf16 %v2603, %v2602
    %v2608 = vld [vmem:[#allocation7] sm:$0xf]
    %v2609 = vld [vmem:[#allocation7 + $0x4] sm:$0xf]
    %v2610 = vld [vmem:[#allocation7 + $0x8] sm:$0xf]
    %v2611 = vld [vmem:[#allocation7 + $0xc] sm:$0xf]
    %v2612 = vld [vmem:[#allocation7 + $0x10] sm:$0xf]
    %v2613 = vld [vmem:[#allocation7 + $0x14] sm:$0xf]
    %v2614 = vld [vmem:[#allocation7 + $0x18] sm:$0xf]
    %v2615 = vld [vmem:[#allocation7 + $0x1c] sm:$0xf]
    %v2616 = vld [vmem:[#allocation7 + $0x20] sm:$0xf]
    %v2617 = vld [vmem:[#allocation7 + $0x24] sm:$0xf]
    %v2618 = vld [vmem:[#allocation7 + $0x28] sm:$0xf]
    %v2619 = vld [vmem:[#allocation7 + $0x2c] sm:$0xf]
    %v2620 = vld [vmem:[#allocation7 + $0x30] sm:$0xf]
    %v2621 = vld [vmem:[#allocation7 + $0x34] sm:$0xf]
    %v2622 = vld [vmem:[#allocation7 + $0x38] sm:$0xf]
    %v2623 = vld [vmem:[#allocation7 + $0x3c] sm:$0xf]
    %v2624 = vld [vmem:[%s5] sm:$0x1]
    %v2626 = vlaneseq
    %v2627 = vshrl.u32 %v2626, 7
    %v2628 = vsub.s32 0, %v2627
    %v2629 = vrot.slane %v2624, %v2628
    %v2647 = vunpack.c.l.b16 %v2608
    %v2648 = vunpack.c.l.b16 %v2609
    %v2649 = vunpack.c.l.b16 %v2610
    %v2650 = vunpack.c.l.b16 %v2611
    %v2651 = vunpack.c.l.b16 %v2612
    %v2652 = vunpack.c.l.b16 %v2613
    %v2653 = vunpack.c.l.b16 %v2614
    %v2654 = vunpack.c.l.b16 %v2615
    %v2655 = vunpack.c.l.b16 %v2616
    %v2656 = vunpack.c.l.b16 %v2617
    %v2657 = vunpack.c.l.b16 %v2618
    %v2658 = vunpack.c.l.b16 %v2619
    %v2659 = vunpack.c.l.b16 %v2620
    %v2660 = vunpack.c.l.b16 %v2621
    %v2661 = vunpack.c.l.b16 %v2622
    %v2662 = vunpack.c.l.b16 %v2623
    %v2663 = vpack.c.b16 %v2648, %v2647
    %v2664 = vpack.c.b16 %v2650, %v2649
    %v2665 = vpack.c.b16 %v2652, %v2651
    %v2666 = vpack.c.b16 %v2654, %v2653
    %v2667 = vpack.c.b16 %v2656, %v2655
    %v2668 = vpack.c.b16 %v2658, %v2657
    %v2669 = vpack.c.b16 %v2660, %v2659
    %v2670 = vpack.c.b16 %v2662, %v2661
    %2679 = vmatprep.subr.bf16.mxu0 0
    %2680 = vmatpush1.bf16.msra.mxu0 %v2670
    %2681 = vmatprep.subr.bf16.mxu0 0
    %2682 = vmatpush1.bf16.msra.mxu0 %v2669
    %2683 = vmatprep.subr.bf16.mxu0 0
    %2684 = vmatpush1.bf16.msra.mxu0 %v2668
    %2685 = vmatprep.subr.bf16.mxu0 0
    %2686 = vmatpush1.bf16.msra.mxu0 %v2667
    %2687 = vmatprep.subr.bf16.mxu0 0
    %2688 = vmatpush1.bf16.msra.mxu0 %v2666
    %2689 = vmatprep.subr.bf16.mxu0 0
    %2690 = vmatpush1.bf16.msra.mxu0 %v2665
    %2691 = vmatprep.subr.bf16.mxu0 0
    %2692 = vmatpush1.bf16.msra.mxu0 %v2664
    %2693 = vmatprep.subr.bf16.mxu0 0
    %2694 = vmatpush1.bf16.msra.mxu0 %v2663
    %2695 = vmatprep.subr.bf16.mxu0 0
    %2696 = vmatpush2.bf16.msra.mxu0 0
    %2697 = vmatprep.subr.bf16.mxu0 0
    %2698 = vmatpush2.bf16.msra.mxu0 0
    %2699 = vmatprep.subr.bf16.mxu0 0
    %2700 = vmatpush2.bf16.msra.mxu0 0
    %2701 = vmatprep.subr.bf16.mxu0 0
    %2702 = vmatpush2.bf16.msra.mxu0 0
    %2703 = vmatprep.subr.bf16.mxu0 0
    %2704 = vmatpush2.bf16.msra.mxu0 0
    %2705 = vmatprep.subr.bf16.mxu0 0
    %2706 = vmatpush2.bf16.msra.mxu0 0
    %2707 = vmatprep.subr.bf16.mxu0 0
    %2708 = vmatpush2.bf16.msra.mxu0 0
    %2709 = vmatprep.subr.bf16.mxu0 0
    %2710 = vmatpush2.bf16.msra.mxu0 0
    %2711 = vmatprep.mubr.bf16.mxu0 0
    %2712 = vmatmul.mubr.bf16.gmra.mxu0 %v2604
    %v2713 = vpop.f32.mrf.mxu0
    %v2714 = vadd.f32 %v2629, %v2713
    %v2715 = vpop.f32.mrf.mxu0
    %v2716 = vpop.f32.mrf.mxu0
    %v2717 = vadd.f32 %v2629, %v2716
    %v2718 = vpop.f32.mrf.mxu0
    %2719 = vmatprep.mubr.bf16.mxu0 0
    %2720 = vmatmul.mubr.bf16.gmra.mxu0 %v2605
    %v2721 = vpop.f32.mrf.mxu0
    %v2722 = vadd.f32 %v2629, %v2721
    %v2723 = vpop.f32.mrf.mxu0
    %v2724 = vpop.f32.mrf.mxu0
    %v2725 = vadd.f32 %v2629, %v2724
    %v2726 = vpop.f32.mrf.mxu0
    %2727 = vmatprep.mubr.bf16.mxu0 0
    %2728 = vmatmul.mubr.bf16.gmra.mxu0 %v2606
    %v2729 = vpop.f32.mrf.mxu0
    %v2730 = vadd.f32 %v2629, %v2729
    %v2731 = vpop.f32.mrf.mxu0
    %v2732 = vpop.f32.mrf.mxu0
    %v2733 = vadd.f32 %v2629, %v2732
    %v2734 = vpop.f32.mrf.mxu0
    %2735 = vmatprep.mubr.bf16.mxu0 0
    %2736 = vmatmul.mubr.bf16.gmra.mxu0 %v2607
    %v2737 = vpop.f32.mrf.mxu0
    %v2738 = vadd.f32 %v2629, %v2737
    %v2739 = vpop.f32.mrf.mxu0
    %v2740 = vpop.f32.mrf.mxu0
    %v2741 = vadd.f32 %v2629, %v2740
    %v2742 = vpop.f32.mrf.mxu0
    %2743 = vdwg.mxu0
    %v2744 = vadd.f32 %v111, %v2714
    %v2745 = vadd.f32 %v112, %v2717
    %v2746 = vadd.f32 %v113, %v2722
    %v2747 = vadd.f32 %v114, %v2725
    %v2748 = vadd.f32 %v115, %v2730
    %v2749 = vadd.f32 %v116, %v2733
    %v2750 = vadd.f32 %v117, %v2738
    %v2751 = vadd.f32 %v118, %v2741
    %v2752 = vld [vmem:[%s6] sm:$0x1]
    %v2753 = vld [vmem:[%s7] sm:$0x1]
    %2754 = vadd.xlane.f32.xlu0 %v2744
    %v2755 = vpop.xlane.xlu0 %2754
    %2756 = vadd.xlane.f32.xlu0 %v2745
    %v2757 = vpop.xlane.xlu0 %2756
    %2758 = vadd.xlane.f32.xlu0 %v2746
    %v2759 = vpop.xlane.xlu0 %2758
    %2760 = vadd.xlane.f32.xlu0 %v2747
    %v2761 = vpop.xlane.xlu0 %2760
    %2762 = vadd.xlane.f32.xlu0 %v2748
    %v2763 = vpop.xlane.xlu0 %2762
    %2764 = vadd.xlane.f32.xlu0 %v2749
    %v2765 = vpop.xlane.xlu0 %2764
    %2766 = vadd.xlane.f32.xlu0 %v2750
    %v2767 = vpop.xlane.xlu0 %2766
    %2768 = vadd.xlane.f32.xlu0 %v2751
    %v2769 = vpop.xlane.xlu0 %2768
    %v2770 = vmul.f32 %v2755, %v137
    %v2771 = vmul.f32 %v2757, %v137
    %v2772 = vmul.f32 %v2759, %v137
    %v2773 = vmul.f32 %v2761, %v137
    %v2774 = vmul.f32 %v2763, %v137
    %v2775 = vmul.f32 %v2765, %v137
    %v2776 = vmul.f32 %v2767, %v137
    %v2777 = vmul.f32 %v2769, %v137
    %v2778 = vsub.f32 %v2744, %v2770
    %v2779 = vsub.f32 %v2745, %v2771
    %v2780 = vsub.f32 %v2746, %v2772
    %v2781 = vsub.f32 %v2747, %v2773
    %v2782 = vsub.f32 %v2748, %v2774
    %v2783 = vsub.f32 %v2749, %v2775
    %v2784 = vsub.f32 %v2750, %v2776
    %v2785 = vsub.f32 %v2751, %v2777
    %v2786 = vmul.f32 %v2778, %v2778
    %v2787 = vmul.f32 %v2779, %v2779
    %v2788 = vmul.f32 %v2780, %v2780
    %v2789 = vmul.f32 %v2781, %v2781
    %v2790 = vmul.f32 %v2782, %v2782
    %v2791 = vmul.f32 %v2783, %v2783
    %v2792 = vmul.f32 %v2784, %v2784
    %v2793 = vmul.f32 %v2785, %v2785
    %2794 = vadd.xlane.f32.xlu0 %v2786
    %v2795 = vpop.xlane.xlu0 %2794
    %2796 = vadd.xlane.f32.xlu0 %v2787
    %v2797 = vpop.xlane.xlu0 %2796
    %2798 = vadd.xlane.f32.xlu0 %v2788
    %v2799 = vpop.xlane.xlu0 %2798
    %2800 = vadd.xlane.f32.xlu0 %v2789
    %v2801 = vpop.xlane.xlu0 %2800
    %2802 = vadd.xlane.f32.xlu0 %v2790
    %v2803 = vpop.xlane.xlu0 %2802
    %2804 = vadd.xlane.f32.xlu0 %v2791
    %v2805 = vpop.xlane.xlu0 %2804
    %2806 = vadd.xlane.f32.xlu0 %v2792
    %v2807 = vpop.xlane.xlu0 %2806
    %2808 = vadd.xlane.f32.xlu0 %v2793
    %v2809 = vpop.xlane.xlu0 %2808
    %v2810 = vmul.f32 %v2795, %v137
    %v2811 = vmul.f32 %v2797, %v137
    %v2812 = vmul.f32 %v2799, %v137
    %v2813 = vmul.f32 %v2801, %v137
    %v2814 = vmul.f32 %v2803, %v137
    %v2815 = vmul.f32 %v2805, %v137
    %v2816 = vmul.f32 %v2807, %v137
    %v2817 = vmul.f32 %v2809, %v137
    %v2818 = vadd.f32 %v2810, 1e-05
    %v2819 = vadd.f32 %v2811, 1e-05
    %v2820 = vadd.f32 %v2812, 1e-05
    %v2821 = vadd.f32 %v2813, 1e-05
    %v2822 = vadd.f32 %v2814, 1e-05
    %v2823 = vadd.f32 %v2815, 1e-05
    %v2824 = vadd.f32 %v2816, 1e-05
    %v2825 = vadd.f32 %v2817, 1e-05
    %v2826 = vrsqrt.pop %v2818
    %v2827 = vrsqrt.pop %v2819
    %v2828 = vrsqrt.pop %v2820
    %v2829 = vrsqrt.pop %v2821
    %v2830 = vrsqrt.pop %v2822
    %v2831 = vrsqrt.pop %v2823
    %v2832 = vrsqrt.pop %v2824
    %v2833 = vrsqrt.pop %v2825
    %v2834 = vmul.f32 %v2778, %v2826
    %v2835 = vmul.f32 %v2779, %v2827
    %v2836 = vmul.f32 %v2780, %v2828
    %v2837 = vmul.f32 %v2781, %v2829
    %v2838 = vmul.f32 %v2782, %v2830
    %v2839 = vmul.f32 %v2783, %v2831
    %v2840 = vmul.f32 %v2784, %v2832
    %v2841 = vmul.f32 %v2785, %v2833
    %v2843 = vlaneseq
    %v2844 = vshrl.u32 %v2843, 7
    %v2845 = vsub.s32 0, %v2844
    %v2846 = vrot.slane %v2752, %v2845
    %v2848 = vmul.f32 %v2834, %v2846
    %v2849 = vmul.f32 %v2835, %v2846
    %v2850 = vmul.f32 %v2836, %v2846
    %v2851 = vmul.f32 %v2837, %v2846
    %v2852 = vmul.f32 %v2838, %v2846
    %v2853 = vmul.f32 %v2839, %v2846
    %v2854 = vmul.f32 %v2840, %v2846
    %v2855 = vmul.f32 %v2841, %v2846
    %v2857 = vlaneseq
    %v2858 = vshrl.u32 %v2857, 7
    %v2859 = vsub.s32 0, %v2858
    %v2860 = vrot.slane %v2753, %v2859
    %v2862 = vadd.f32 %v2848, %v2860
    %v2863 = vadd.f32 %v2849, %v2860
    %v2864 = vadd.f32 %v2850, %v2860
    %v2865 = vadd.f32 %v2851, %v2860
    %v2866 = vadd.f32 %v2852, %v2860
    %v2867 = vadd.f32 %v2853, %v2860
    %v2868 = vadd.f32 %v2854, %v2860
    %v2869 = vadd.f32 %v2855, %v2860
    %v2870 = vpack.c.bf16 %v2863, %v2862
    %v2871 = vpack.c.bf16 %v2865, %v2864
    %v2872 = vpack.c.bf16 %v2867, %v2866
    %v2873 = vpack.c.bf16 %v2869, %v2868
    %v2874 = vld [vmem:[#allocation8] sm:$0xff]
    %v2875 = vld [vmem:[#allocation8 + $0x8] sm:$0xff]
    %v2876 = vld [vmem:[#allocation8 + $0x10] sm:$0xff]
    %v2877 = vld [vmem:[#allocation8 + $0x18] sm:$0xff]
    %v2878 = vld [vmem:[#allocation8 + $0x20] sm:$0xff]
    %v2879 = vld [vmem:[#allocation8 + $0x28] sm:$0xff]
    %v2880 = vld [vmem:[#allocation8 + $0x30] sm:$0xff]
    %v2881 = vld [vmem:[#allocation8 + $0x38] sm:$0xff]
    %v2882 = vld [vmem:[#allocation8 + $0x40] sm:$0xff]
    %v2883 = vld [vmem:[#allocation8 + $0x48] sm:$0xff]
    %v2884 = vld [vmem:[#allocation8 + $0x50] sm:$0xff]
    %v2885 = vld [vmem:[#allocation8 + $0x58] sm:$0xff]
    %v2886 = vld [vmem:[#allocation8 + $0x60] sm:$0xff]
    %v2887 = vld [vmem:[#allocation8 + $0x68] sm:$0xff]
    %v2888 = vld [vmem:[#allocation8 + $0x70] sm:$0xff]
    %v2889 = vld [vmem:[#allocation8 + $0x78] sm:$0xff]
    %v2890 = vld [vmem:[#allocation8 + $0x80] sm:$0xff]
    %v2891 = vld [vmem:[#allocation8 + $0x88] sm:$0xff]
    %v2892 = vld [vmem:[#allocation8 + $0x90] sm:$0xff]
    %v2893 = vld [vmem:[#allocation8 + $0x98] sm:$0xff]
    %v2894 = vld [vmem:[#allocation8 + $0xa0] sm:$0xff]
    %v2895 = vld [vmem:[#allocation8 + $0xa8] sm:$0xff]
    %v2896 = vld [vmem:[#allocation8 + $0xb0] sm:$0xff]
    %v2897 = vld [vmem:[#allocation8 + $0xb8] sm:$0xff]
    %v2898 = vld [vmem:[#allocation8 + $0xc0] sm:$0xff]
    %v2899 = vld [vmem:[#allocation8 + $0xc8] sm:$0xff]
    %v2900 = vld [vmem:[#allocation8 + $0xd0] sm:$0xff]
    %v2901 = vld [vmem:[#allocation8 + $0xd8] sm:$0xff]
    %v2902 = vld [vmem:[#allocation8 + $0xe0] sm:$0xff]
    %v2903 = vld [vmem:[#allocation8 + $0xe8] sm:$0xff]
    %v2904 = vld [vmem:[#allocation8 + $0xf0] sm:$0xff]
    %v2905 = vld [vmem:[#allocation8 + $0xf8] sm:$0xff]
    %v2906 = vld [vmem:[%s9] sm:$0xf]
    %v2908 = vlaneseq
    %v2909 = vshrl.u32 %v2908, 7
    %v2910 = vsub.s32 0, %v2909
    %v2911 = vrot.slane %v2906, %v2910
    %v2912 = vlaneseq
    %v2913 = vshrl.u32 %v2912, 7
    %v2914 = vsub.s32 1, %v2913
    %v2915 = vrot.slane %v2906, %v2914
    %v2916 = vlaneseq
    %v2917 = vshrl.u32 %v2916, 7
    %v2918 = vsub.s32 2, %v2917
    %v2919 = vrot.slane %v2906, %v2918
    %v2920 = vlaneseq
    %v2921 = vshrl.u32 %v2920, 7
    %v2922 = vsub.s32 3, %v2921
    %v2923 = vrot.slane %v2906, %v2922
    %v2960 = vunpack.c.l.b16 %v2874
    %v2961 = vunpack.c.h.b16 %v2874
    %v2962 = vunpack.c.l.b16 %v2875
    %v2963 = vunpack.c.h.b16 %v2875
    %v2964 = vunpack.c.l.b16 %v2876
    %v2965 = vunpack.c.h.b16 %v2876
    %v2966 = vunpack.c.l.b16 %v2877
    %v2967 = vunpack.c.h.b16 %v2877
    %v2968 = vunpack.c.l.b16 %v2878
    %v2969 = vunpack.c.h.b16 %v2878
    %v2970 = vunpack.c.l.b16 %v2879
    %v2971 = vunpack.c.h.b16 %v2879
    %v2972 = vunpack.c.l.b16 %v2880
    %v2973 = vunpack.c.h.b16 %v2880
    %v2974 = vunpack.c.l.b16 %v2881
    %v2975 = vunpack.c.h.b16 %v2881
    %v2976 = vunpack.c.l.b16 %v2882
    %v2977 = vunpack.c.h.b16 %v2882
    %v2978 = vunpack.c.l.b16 %v2883
    %v2979 = vunpack.c.h.b16 %v2883
    %v2980 = vunpack.c.l.b16 %v2884
    %v2981 = vunpack.c.h.b16 %v2884
    %v2982 = vunpack.c.l.b16 %v2885
    %v2983 = vunpack.c.h.b16 %v2885
    %v2984 = vunpack.c.l.b16 %v2886
    %v2985 = vunpack.c.h.b16 %v2886
    %v2986 = vunpack.c.l.b16 %v2887
    %v2987 = vunpack.c.h.b16 %v2887
    %v2988 = vunpack.c.l.b16 %v2888
    %v2989 = vunpack.c.h.b16 %v2888
    %v2990 = vunpack.c.l.b16 %v2889
    %v2991 = vunpack.c.h.b16 %v2889
    %v2992 = vunpack.c.l.b16 %v2890
    %v2993 = vunpack.c.h.b16 %v2890
    %v2994 = vunpack.c.l.b16 %v2891
    %v2995 = vunpack.c.h.b16 %v2891
    %v2996 = vunpack.c.l.b16 %v2892
    %v2997 = vunpack.c.h.b16 %v2892
    %v2998 = vunpack.c.l.b16 %v2893
    %v2999 = vunpack.c.h.b16 %v2893
    %v3000 = vunpack.c.l.b16 %v2894
    %v3001 = vunpack.c.h.b16 %v2894
    %v3002 = vunpack.c.l.b16 %v2895
    %v3003 = vunpack.c.h.b16 %v2895
    %v3004 = vunpack.c.l.b16 %v2896
    %v3005 = vunpack.c.h.b16 %v2896
    %v3006 = vunpack.c.l.b16 %v2897
    %v3007 = vunpack.c.h.b16 %v2897
    %v3008 = vunpack.c.l.b16 %v2898
    %v3009 = vunpack.c.h.b16 %v2898
    %v3010 = vunpack.c.l.b16 %v2899
    %v3011 = vunpack.c.h.b16 %v2899
    %v3012 = vunpack.c.l.b16 %v2900
    %v3013 = vunpack.c.h.b16 %v2900
    %v3014 = vunpack.c.l.b16 %v2901
    %v3015 = vunpack.c.h.b16 %v2901
    %v3016 = vunpack.c.l.b16 %v2902
    %v3017 = vunpack.c.h.b16 %v2902
    %v3018 = vunpack.c.l.b16 %v2903
    %v3019 = vunpack.c.h.b16 %v2903
    %v3020 = vunpack.c.l.b16 %v2904
    %v3021 = vunpack.c.h.b16 %v2904
    %v3022 = vunpack.c.l.b16 %v2905
    %v3023 = vunpack.c.h.b16 %v2905
    %v3024 = vpack.c.b16 %v2964, %v2960
    %v3025 = vpack.c.b16 %v2965, %v2961
    %v3026 = vpack.c.b16 %v2966, %v2962
    %v3027 = vpack.c.b16 %v2967, %v2963
    %v3028 = vpack.c.b16 %v2972, %v2968
    %v3029 = vpack.c.b16 %v2973, %v2969
    %v3030 = vpack.c.b16 %v2974, %v2970
    %v3031 = vpack.c.b16 %v2975, %v2971
    %v3032 = vpack.c.b16 %v2980, %v2976
    %v3033 = vpack.c.b16 %v2981, %v2977
    %v3034 = vpack.c.b16 %v2982, %v2978
    %v3035 = vpack.c.b16 %v2983, %v2979
    %v3036 = vpack.c.b16 %v2988, %v2984
    %v3037 = vpack.c.b16 %v2989, %v2985
    %v3038 = vpack.c.b16 %v2990, %v2986
    %v3039 = vpack.c.b16 %v2991, %v2987
    %v3040 = vpack.c.b16 %v2996, %v2992
    %v3041 = vpack.c.b16 %v2997, %v2993
    %v3042 = vpack.c.b16 %v2998, %v2994
    %v3043 = vpack.c.b16 %v2999, %v2995
    %v3044 = vpack.c.b16 %v3004, %v3000
    %v3045 = vpack.c.b16 %v3005, %v3001
    %v3046 = vpack.c.b16 %v3006, %v3002
    %v3047 = vpack.c.b16 %v3007, %v3003
    %v3048 = vpack.c.b16 %v3012, %v3008
    %v3049 = vpack.c.b16 %v3013, %v3009
    %v3050 = vpack.c.b16 %v3014, %v3010
    %v3051 = vpack.c.b16 %v3015, %v3011
    %v3052 = vpack.c.b16 %v3020, %v3016
    %v3053 = vpack.c.b16 %v3021, %v3017
    %v3054 = vpack.c.b16 %v3022, %v3018
    %v3055 = vpack.c.b16 %v3023, %v3019
    %3088 = vmatprep.subr.bf16.mxu0 %v3053
    %3089 = vmatpush1.bf16.msra.mxu0 %v3052
    %3090 = vmatprep.subr.bf16.mxu0 %v3049
    %3091 = vmatpush1.bf16.msra.mxu0 %v3048
    %3092 = vmatprep.subr.bf16.mxu0 %v3045
    %3093 = vmatpush1.bf16.msra.mxu0 %v3044
    %3094 = vmatprep.subr.bf16.mxu0 %v3041
    %3095 = vmatpush1.bf16.msra.mxu0 %v3040
    %3096 = vmatprep.subr.bf16.mxu0 %v3037
    %3097 = vmatpush1.bf16.msra.mxu0 %v3036
    %3098 = vmatprep.subr.bf16.mxu0 %v3033
    %3099 = vmatpush1.bf16.msra.mxu0 %v3032
    %3100 = vmatprep.subr.bf16.mxu0 %v3029
    %3101 = vmatpush1.bf16.msra.mxu0 %v3028
    %3102 = vmatprep.subr.bf16.mxu0 %v3025
    %3103 = vmatpush1.bf16.msra.mxu0 %v3024
    %3104 = vmatprep.subr.bf16.mxu0 0
    %3105 = vmatpush2.bf16.msra.mxu0 0
    %3106 = vmatprep.subr.bf16.mxu0 0
    %3107 = vmatpush2.bf16.msra.mxu0 0
    %3108 = vmatprep.subr.bf16.mxu0 0
    %3109 = vmatpush2.bf16.msra.mxu0 0
    %3110 = vmatprep.subr.bf16.mxu0 0
    %3111 = vmatpush2.bf16.msra.mxu0 0
    %3112 = vmatprep.subr.bf16.mxu0 0
    %3113 = vmatpush2.bf16.msra.mxu0 0
    %3114 = vmatprep.subr.bf16.mxu0 0
    %3115 = vmatpush2.bf16.msra.mxu0 0
    %3116 = vmatprep.subr.bf16.mxu0 0
    %3117 = vmatpush2.bf16.msra.mxu0 0
    %3118 = vmatprep.subr.bf16.mxu0 0
    %3119 = vmatpush2.bf16.msra.mxu0 0
    %3120 = vmatprep.mubr.bf16.mxu0 0
    %3121 = vmatmul.mubr.bf16.gmra.mxu0 %v2870
    %v3122 = vpop.f32.mrf.mxu0
    %v3123 = vadd.f32 %v2911, %v3122
    %v3124 = vpop.f32.mrf.mxu0
    %v3125 = vadd.f32 %v2915, %v3124
    %v3126 = vpop.f32.mrf.mxu0
    %v3127 = vadd.f32 %v2911, %v3126
    %v3128 = vpop.f32.mrf.mxu0
    %v3129 = vadd.f32 %v2915, %v3128
    %3130 = vmatprep.mubr.bf16.mxu0 0
    %3131 = vmatmul.mubr.bf16.gmra.mxu0 %v2871
    %v3132 = vpop.f32.mrf.mxu0
    %v3133 = vadd.f32 %v2911, %v3132
    %v3134 = vpop.f32.mrf.mxu0
    %v3135 = vadd.f32 %v2915, %v3134
    %v3136 = vpop.f32.mrf.mxu0
    %v3137 = vadd.f32 %v2911, %v3136
    %v3138 = vpop.f32.mrf.mxu0
    %v3139 = vadd.f32 %v2915, %v3138
    %3140 = vmatprep.mubr.bf16.mxu0 0
    %3141 = vmatmul.mubr.bf16.gmra.mxu0 %v2872
    %v3142 = vpop.f32.mrf.mxu0
    %v3143 = vadd.f32 %v2911, %v3142
    %v3144 = vpop.f32.mrf.mxu0
    %v3145 = vadd.f32 %v2915, %v3144
    %v3146 = vpop.f32.mrf.mxu0
    %v3147 = vadd.f32 %v2911, %v3146
    %v3148 = vpop.f32.mrf.mxu0
    %v3149 = vadd.f32 %v2915, %v3148
    %3150 = vmatprep.mubr.bf16.mxu0 0
    %3151 = vmatmul.mubr.bf16.gmra.mxu0 %v2873
    %v3152 = vpop.f32.mrf.mxu0
    %v3153 = vadd.f32 %v2911, %v3152
    %v3154 = vpop.f32.mrf.mxu0
    %v3155 = vadd.f32 %v2915, %v3154
    %v3156 = vpop.f32.mrf.mxu0
    %v3157 = vadd.f32 %v2911, %v3156
    %v3158 = vpop.f32.mrf.mxu0
    %v3159 = vadd.f32 %v2915, %v3158
    %3160 = vdwg.mxu0
    %3161 = vmatprep.subr.bf16.mxu0 %v3055
    %3162 = vmatpush1.bf16.msra.mxu0 %v3054
    %3163 = vmatprep.subr.bf16.mxu0 %v3051
    %3164 = vmatpush1.bf16.msra.mxu0 %v3050
    %3165 = vmatprep.subr.bf16.mxu0 %v3047
    %3166 = vmatpush1.bf16.msra.mxu0 %v3046
    %3167 = vmatprep.subr.bf16.mxu0 %v3043
    %3168 = vmatpush1.bf16.msra.mxu0 %v3042
    %3169 = vmatprep.subr.bf16.mxu0 %v3039
    %3170 = vmatpush1.bf16.msra.mxu0 %v3038
    %3171 = vmatprep.subr.bf16.mxu0 %v3035
    %3172 = vmatpush1.bf16.msra.mxu0 %v3034
    %3173 = vmatprep.subr.bf16.mxu0 %v3031
    %3174 = vmatpush1.bf16.msra.mxu0 %v3030
    %3175 = vmatprep.subr.bf16.mxu0 %v3027
    %3176 = vmatpush1.bf16.msra.mxu0 %v3026
    %3177 = vmatprep.subr.bf16.mxu0 0
    %3178 = vmatpush2.bf16.msra.mxu0 0
    %3179 = vmatprep.subr.bf16.mxu0 0
    %3180 = vmatpush2.bf16.msra.mxu0 0
    %3181 = vmatprep.subr.bf16.mxu0 0
    %3182 = vmatpush2.bf16.msra.mxu0 0
    %3183 = vmatprep.subr.bf16.mxu0 0
    %3184 = vmatpush2.bf16.msra.mxu0 0
    %3185 = vmatprep.subr.bf16.mxu0 0
    %3186 = vmatpush2.bf16.msra.mxu0 0
    %3187 = vmatprep.subr.bf16.mxu0 0
    %3188 = vmatpush2.bf16.msra.mxu0 0
    %3189 = vmatprep.subr.bf16.mxu0 0
    %3190 = vmatpush2.bf16.msra.mxu0 0
    %3191 = vmatprep.subr.bf16.mxu0 0
    %3192 = vmatpush2.bf16.msra.mxu0 0
    %3193 = vmatprep.mubr.bf16.mxu0 0
    %3194 = vmatmul.mubr.bf16.gmra.mxu0 %v2870
    %v3195 = vpop.f32.mrf.mxu0
    %v3196 = vadd.f32 %v2919, %v3195
    %v3197 = vpop.f32.mrf.mxu0
    %v3198 = vadd.f32 %v2923, %v3197
    %v3199 = vpop.f32.mrf.mxu0
    %v3200 = vadd.f32 %v2919, %v3199
    %v3201 = vpop.f32.mrf.mxu0
    %v3202 = vadd.f32 %v2923, %v3201
    %3203 = vmatprep.mubr.bf16.mxu0 0
    %3204 = vmatmul.mubr.bf16.gmra.mxu0 %v2871
    %v3205 = vpop.f32.mrf.mxu0
    %v3206 = vadd.f32 %v2919, %v3205
    %v3207 = vpop.f32.mrf.mxu0
    %v3208 = vadd.f32 %v2923, %v3207
    %v3209 = vpop.f32.mrf.mxu0
    %v3210 = vadd.f32 %v2919, %v3209
    %v3211 = vpop.f32.mrf.mxu0
    %v3212 = vadd.f32 %v2923, %v3211
    %3213 = vmatprep.mubr.bf16.mxu0 0
    %3214 = vmatmul.mubr.bf16.gmra.mxu0 %v2872
    %v3215 = vpop.f32.mrf.mxu0
    %v3216 = vadd.f32 %v2919, %v3215
    %v3217 = vpop.f32.mrf.mxu0
    %v3218 = vadd.f32 %v2923, %v3217
    %v3219 = vpop.f32.mrf.mxu0
    %v3220 = vadd.f32 %v2919, %v3219
    %v3221 = vpop.f32.mrf.mxu0
    %v3222 = vadd.f32 %v2923, %v3221
    %3223 = vmatprep.mubr.bf16.mxu0 0
    %3224 = vmatmul.mubr.bf16.gmra.mxu0 %v2873
    %v3225 = vpop.f32.mrf.mxu0
    %v3226 = vadd.f32 %v2919, %v3225
    %v3227 = vpop.f32.mrf.mxu0
    %v3228 = vadd.f32 %v2923, %v3227
    %v3229 = vpop.f32.mrf.mxu0
    %v3230 = vadd.f32 %v2919, %v3229
    %v3231 = vpop.f32.mrf.mxu0
    %v3232 = vadd.f32 %v2923, %v3231
    %3233 = vdwg.mxu0
    %v3234 = vmul.f32 %v3123, 0.5
    %v3235 = vmul.f32 %v3125, 0.5
    %v3236 = vmul.f32 %v3196, 0.5
    %v3237 = vmul.f32 %v3198, 0.5
    %v3238 = vmul.f32 %v3127, 0.5
    %v3239 = vmul.f32 %v3129, 0.5
    %v3240 = vmul.f32 %v3200, 0.5
    %v3241 = vmul.f32 %v3202, 0.5
    %v3242 = vmul.f32 %v3133, 0.5
    %v3243 = vmul.f32 %v3135, 0.5
    %v3244 = vmul.f32 %v3206, 0.5
    %v3245 = vmul.f32 %v3208, 0.5
    %v3246 = vmul.f32 %v3137, 0.5
    %v3247 = vmul.f32 %v3139, 0.5
    %v3248 = vmul.f32 %v3210, 0.5
    %v3249 = vmul.f32 %v3212, 0.5
    %v3250 = vmul.f32 %v3143, 0.5
    %v3251 = vmul.f32 %v3145, 0.5
    %v3252 = vmul.f32 %v3216, 0.5
    %v3253 = vmul.f32 %v3218, 0.5
    %v3254 = vmul.f32 %v3147, 0.5
    %v3255 = vmul.f32 %v3149, 0.5
    %v3256 = vmul.f32 %v3220, 0.5
    %v3257 = vmul.f32 %v3222, 0.5
    %v3258 = vmul.f32 %v3153, 0.5
    %v3259 = vmul.f32 %v3155, 0.5
    %v3260 = vmul.f32 %v3226, 0.5
    %v3261 = vmul.f32 %v3228, 0.5
    %v3262 = vmul.f32 %v3157, 0.5
    %v3263 = vmul.f32 %v3159, 0.5
    %v3264 = vmul.f32 %v3230, 0.5
    %v3265 = vmul.f32 %v3232, 0.5
    %v3266 = vmul.f32 %v3123, 0.70710677
    %v3267 = vmul.f32 %v3125, 0.70710677
    %v3268 = vmul.f32 %v3196, 0.70710677
    %v3269 = vmul.f32 %v3198, 0.70710677
    %v3270 = vmul.f32 %v3127, 0.70710677
    %v3271 = vmul.f32 %v3129, 0.70710677
    %v3272 = vmul.f32 %v3200, 0.70710677
    %v3273 = vmul.f32 %v3202, 0.70710677
    %v3274 = vmul.f32 %v3133, 0.70710677
    %v3275 = vmul.f32 %v3135, 0.70710677
    %v3276 = vmul.f32 %v3206, 0.70710677
    %v3277 = vmul.f32 %v3208, 0.70710677
    %v3278 = vmul.f32 %v3137, 0.70710677
    %v3279 = vmul.f32 %v3139, 0.70710677
    %v3280 = vmul.f32 %v3210, 0.70710677
    %v3281 = vmul.f32 %v3212, 0.70710677
    %v3282 = vmul.f32 %v3143, 0.70710677
    %v3283 = vmul.f32 %v3145, 0.70710677
    %v3284 = vmul.f32 %v3216, 0.70710677
    %v3285 = vmul.f32 %v3218, 0.70710677
    %v3286 = vmul.f32 %v3147, 0.70710677
    %v3287 = vmul.f32 %v3149, 0.70710677
    %v3288 = vmul.f32 %v3220, 0.70710677
    %v3289 = vmul.f32 %v3222, 0.70710677
    %v3290 = vmul.f32 %v3153, 0.70710677
    %v3291 = vmul.f32 %v3155, 0.70710677
    %v3292 = vmul.f32 %v3226, 0.70710677
    %v3293 = vmul.f32 %v3228, 0.70710677
    %v3294 = vmul.f32 %v3157, 0.70710677
    %v3295 = vmul.f32 %v3159, 0.70710677
    %v3296 = vmul.f32 %v3230, 0.70710677
    %v3297 = vmul.f32 %v3232, 0.70710677
    %v3298 = verf.f32.pop %v3266
    %v3299 = verf.f32.pop %v3267
    %v3300 = verf.f32.pop %v3268
    %v3301 = verf.f32.pop %v3269
    %v3302 = verf.f32.pop %v3270
    %v3303 = verf.f32.pop %v3271
    %v3304 = verf.f32.pop %v3272
    %v3305 = verf.f32.pop %v3273
    %v3306 = verf.f32.pop %v3274
    %v3307 = verf.f32.pop %v3275
    %v3308 = verf.f32.pop %v3276
    %v3309 = verf.f32.pop %v3277
    %v3310 = verf.f32.pop %v3278
    %v3311 = verf.f32.pop %v3279
    %v3312 = verf.f32.pop %v3280
    %v3313 = verf.f32.pop %v3281
    %v3314 = verf.f32.pop %v3282
    %v3315 = verf.f32.pop %v3283
    %v3316 = verf.f32.pop %v3284
    %v3317 = verf.f32.pop %v3285
    %v3318 = verf.f32.pop %v3286
    %v3319 = verf.f32.pop %v3287
    %v3320 = verf.f32.pop %v3288
    %v3321 = verf.f32.pop %v3289
    %v3322 = verf.f32.pop %v3290
    %v3323 = verf.f32.pop %v3291
    %v3324 = verf.f32.pop %v3292
    %v3325 = verf.f32.pop %v3293
    %v3326 = verf.f32.pop %v3294
    %v3327 = verf.f32.pop %v3295
    %v3328 = verf.f32.pop %v3296
    %v3329 = verf.f32.pop %v3297
    %v3330 = vadd.f32 %v3298, 1.0
    %v3331 = vadd.f32 %v3299, 1.0
    %v3332 = vadd.f32 %v3300, 1.0
    %v3333 = vadd.f32 %v3301, 1.0
    %v3334 = vadd.f32 %v3302, 1.0
    %v3335 = vadd.f32 %v3303, 1.0
    %v3336 = vadd.f32 %v3304, 1.0
    %v3337 = vadd.f32 %v3305, 1.0
    %v3338 = vadd.f32 %v3306, 1.0
    %v3339 = vadd.f32 %v3307, 1.0
    %v3340 = vadd.f32 %v3308, 1.0
    %v3341 = vadd.f32 %v3309, 1.0
    %v3342 = vadd.f32 %v3310, 1.0
    %v3343 = vadd.f32 %v3311, 1.0
    %v3344 = vadd.f32 %v3312, 1.0
    %v3345 = vadd.f32 %v3313, 1.0
    %v3346 = vadd.f32 %v3314, 1.0
    %v3347 = vadd.f32 %v3315, 1.0
    %v3348 = vadd.f32 %v3316, 1.0
    %v3349 = vadd.f32 %v3317, 1.0
    %v3350 = vadd.f32 %v3318, 1.0
    %v3351 = vadd.f32 %v3319, 1.0
    %v3352 = vadd.f32 %v3320, 1.0
    %v3353 = vadd.f32 %v3321, 1.0
    %v3354 = vadd.f32 %v3322, 1.0
    %v3355 = vadd.f32 %v3323, 1.0
    %v3356 = vadd.f32 %v3324, 1.0
    %v3357 = vadd.f32 %v3325, 1.0
    %v3358 = vadd.f32 %v3326, 1.0
    %v3359 = vadd.f32 %v3327, 1.0
    %v3360 = vadd.f32 %v3328, 1.0
    %v3361 = vadd.f32 %v3329, 1.0
    %v3362 = vmul.f32 %v3234, %v3330
    %v3363 = vmul.f32 %v3235, %v3331
    %v3364 = vmul.f32 %v3236, %v3332
    %v3365 = vmul.f32 %v3237, %v3333
    %v3366 = vmul.f32 %v3238, %v3334
    %v3367 = vmul.f32 %v3239, %v3335
    %v3368 = vmul.f32 %v3240, %v3336
    %v3369 = vmul.f32 %v3241, %v3337
    %v3370 = vmul.f32 %v3242, %v3338
    %v3371 = vmul.f32 %v3243, %v3339
    %v3372 = vmul.f32 %v3244, %v3340
    %v3373 = vmul.f32 %v3245, %v3341
    %v3374 = vmul.f32 %v3246, %v3342
    %v3375 = vmul.f32 %v3247, %v3343
    %v3376 = vmul.f32 %v3248, %v3344
    %v3377 = vmul.f32 %v3249, %v3345
    %v3378 = vmul.f32 %v3250, %v3346
    %v3379 = vmul.f32 %v3251, %v3347
    %v3380 = vmul.f32 %v3252, %v3348
    %v3381 = vmul.f32 %v3253, %v3349
    %v3382 = vmul.f32 %v3254, %v3350
    %v3383 = vmul.f32 %v3255, %v3351
    %v3384 = vmul.f32 %v3256, %v3352
    %v3385 = vmul.f32 %v3257, %v3353
    %v3386 = vmul.f32 %v3258, %v3354
    %v3387 = vmul.f32 %v3259, %v3355
    %v3388 = vmul.f32 %v3260, %v3356
    %v3389 = vmul.f32 %v3261, %v3357
    %v3390 = vmul.f32 %v3262, %v3358
    %v3391 = vmul.f32 %v3263, %v3359
    %v3392 = vmul.f32 %v3264, %v3360
    %v3393 = vmul.f32 %v3265, %v3361
    %v3394 = vpack.c.bf16 %v3366, %v3362
    %v3395 = vpack.c.bf16 %v3367, %v3363
    %v3396 = vpack.c.bf16 %v3368, %v3364
    %v3397 = vpack.c.bf16 %v3369, %v3365
    %v3398 = vpack.c.bf16 %v3374, %v3370
    %v3399 = vpack.c.bf16 %v3375, %v3371
    %v3400 = vpack.c.bf16 %v3376, %v3372
    %v3401 = vpack.c.bf16 %v3377, %v3373
    %v3402 = vpack.c.bf16 %v3382, %v3378
    %v3403 = vpack.c.bf16 %v3383, %v3379
    %v3404 = vpack.c.bf16 %v3384, %v3380
    %v3405 = vpack.c.bf16 %v3385, %v3381
    %v3406 = vpack.c.bf16 %v3390, %v3386
    %v3407 = vpack.c.bf16 %v3391, %v3387
    %v3408 = vpack.c.bf16 %v3392, %v3388
    %v3409 = vpack.c.bf16 %v3393, %v3389
    %v3410 = vld [vmem:[#allocation10] sm:$0xf]
    %v3411 = vld [vmem:[#allocation10 + $0x4] sm:$0xf]
    %v3412 = vld [vmem:[#allocation10 + $0x8] sm:$0xf]
    %v3413 = vld [vmem:[#allocation10 + $0xc] sm:$0xf]
    %v3414 = vld [vmem:[#allocation10 + $0x10] sm:$0xf]
    %v3415 = vld [vmem:[#allocation10 + $0x14] sm:$0xf]
    %v3416 = vld [vmem:[#allocation10 + $0x18] sm:$0xf]
    %v3417 = vld [vmem:[#allocation10 + $0x1c] sm:$0xf]
    %v3418 = vld [vmem:[#allocation10 + $0x20] sm:$0xf]
    %v3419 = vld [vmem:[#allocation10 + $0x24] sm:$0xf]
    %v3420 = vld [vmem:[#allocation10 + $0x28] sm:$0xf]
    %v3421 = vld [vmem:[#allocation10 + $0x2c] sm:$0xf]
    %v3422 = vld [vmem:[#allocation10 + $0x30] sm:$0xf]
    %v3423 = vld [vmem:[#allocation10 + $0x34] sm:$0xf]
    %v3424 = vld [vmem:[#allocation10 + $0x38] sm:$0xf]
    %v3425 = vld [vmem:[#allocation10 + $0x3c] sm:$0xf]
    %v3426 = vld [vmem:[#allocation10 + $0x40] sm:$0xf]
    %v3427 = vld [vmem:[#allocation10 + $0x44] sm:$0xf]
    %v3428 = vld [vmem:[#allocation10 + $0x48] sm:$0xf]
    %v3429 = vld [vmem:[#allocation10 + $0x4c] sm:$0xf]
    %v3430 = vld [vmem:[#allocation10 + $0x50] sm:$0xf]
    %v3431 = vld [vmem:[#allocation10 + $0x54] sm:$0xf]
    %v3432 = vld [vmem:[#allocation10 + $0x58] sm:$0xf]
    %v3433 = vld [vmem:[#allocation10 + $0x5c] sm:$0xf]
    %v3434 = vld [vmem:[#allocation10 + $0x60] sm:$0xf]
    %v3435 = vld [vmem:[#allocation10 + $0x64] sm:$0xf]
    %v3436 = vld [vmem:[#allocation10 + $0x68] sm:$0xf]
    %v3437 = vld [vmem:[#allocation10 + $0x6c] sm:$0xf]
    %v3438 = vld [vmem:[#allocation10 + $0x70] sm:$0xf]
    %v3439 = vld [vmem:[#allocation10 + $0x74] sm:$0xf]
    %v3440 = vld [vmem:[#allocation10 + $0x78] sm:$0xf]
    %v3441 = vld [vmem:[#allocation10 + $0x7c] sm:$0xf]
    %v3442 = vld [vmem:[#allocation10 + $0x80] sm:$0xf]
    %v3443 = vld [vmem:[#allocation10 + $0x84] sm:$0xf]
    %v3444 = vld [vmem:[#allocation10 + $0x88] sm:$0xf]
    %v3445 = vld [vmem:[#allocation10 + $0x8c] sm:$0xf]
    %v3446 = vld [vmem:[#allocation10 + $0x90] sm:$0xf]
    %v3447 = vld [vmem:[#allocation10 + $0x94] sm:$0xf]
    %v3448 = vld [vmem:[#allocation10 + $0x98] sm:$0xf]
    %v3449 = vld [vmem:[#allocation10 + $0x9c] sm:$0xf]
    %v3450 = vld [vmem:[#allocation10 + $0xa0] sm:$0xf]
    %v3451 = vld [vmem:[#allocation10 + $0xa4] sm:$0xf]
    %v3452 = vld [vmem:[#allocation10 + $0xa8] sm:$0xf]
    %v3453 = vld [vmem:[#allocation10 + $0xac] sm:$0xf]
    %v3454 = vld [vmem:[#allocation10 + $0xb0] sm:$0xf]
    %v3455 = vld [vmem:[#allocation10 + $0xb4] sm:$0xf]
    %v3456 = vld [vmem:[#allocation10 + $0xb8] sm:$0xf]
    %v3457 = vld [vmem:[#allocation10 + $0xbc] sm:$0xf]
    %v3458 = vld [vmem:[#allocation10 + $0xc0] sm:$0xf]
    %v3459 = vld [vmem:[#allocation10 + $0xc4] sm:$0xf]
    %v3460 = vld [vmem:[#allocation10 + $0xc8] sm:$0xf]
    %v3461 = vld [vmem:[#allocation10 + $0xcc] sm:$0xf]
    %v3462 = vld [vmem:[#allocation10 + $0xd0] sm:$0xf]
    %v3463 = vld [vmem:[#allocation10 + $0xd4] sm:$0xf]
    %v3464 = vld [vmem:[#allocation10 + $0xd8] sm:$0xf]
    %v3465 = vld [vmem:[#allocation10 + $0xdc] sm:$0xf]
    %v3466 = vld [vmem:[#allocation10 + $0xe0] sm:$0xf]
    %v3467 = vld [vmem:[#allocation10 + $0xe4] sm:$0xf]
    %v3468 = vld [vmem:[#allocation10 + $0xe8] sm:$0xf]
    %v3469 = vld [vmem:[#allocation10 + $0xec] sm:$0xf]
    %v3470 = vld [vmem:[#allocation10 + $0xf0] sm:$0xf]
    %v3471 = vld [vmem:[#allocation10 + $0xf4] sm:$0xf]
    %v3472 = vld [vmem:[#allocation10 + $0xf8] sm:$0xf]
    %v3473 = vld [vmem:[#allocation10 + $0xfc] sm:$0xf]
    %v3474 = vld [vmem:[%s11] sm:$0x1]
    %v3476 = vlaneseq
    %v3477 = vshrl.u32 %v3476, 7
    %v3478 = vsub.s32 0, %v3477
    %v3479 = vrot.slane %v3474, %v3478
    %v3545 = vunpack.c.l.b16 %v3410
    %v3546 = vunpack.c.l.b16 %v3411
    %v3547 = vunpack.c.l.b16 %v3412
    %v3548 = vunpack.c.l.b16 %v3413
    %v3549 = vunpack.c.l.b16 %v3414
    %v3550 = vunpack.c.l.b16 %v3415
    %v3551 = vunpack.c.l.b16 %v3416
    %v3552 = vunpack.c.l.b16 %v3417
    %v3553 = vunpack.c.l.b16 %v3418
    %v3554 = vunpack.c.l.b16 %v3419
    %v3555 = vunpack.c.l.b16 %v3420
    %v3556 = vunpack.c.l.b16 %v3421
    %v3557 = vunpack.c.l.b16 %v3422
    %v3558 = vunpack.c.l.b16 %v3423
    %v3559 = vunpack.c.l.b16 %v3424
    %v3560 = vunpack.c.l.b16 %v3425
    %v3561 = vunpack.c.l.b16 %v3426
    %v3562 = vunpack.c.l.b16 %v3427
    %v3563 = vunpack.c.l.b16 %v3428
    %v3564 = vunpack.c.l.b16 %v3429
    %v3565 = vunpack.c.l.b16 %v3430
    %v3566 = vunpack.c.l.b16 %v3431
    %v3567 = vunpack.c.l.b16 %v3432
    %v3568 = vunpack.c.l.b16 %v3433
    %v3569 = vunpack.c.l.b16 %v3434
    %v3570 = vunpack.c.l.b16 %v3435
    %v3571 = vunpack.c.l.b16 %v3436
    %v3572 = vunpack.c.l.b16 %v3437
    %v3573 = vunpack.c.l.b16 %v3438
    %v3574 = vunpack.c.l.b16 %v3439
    %v3575 = vunpack.c.l.b16 %v3440
    %v3576 = vunpack.c.l.b16 %v3441
    %v3577 = vunpack.c.l.b16 %v3442
    %v3578 = vunpack.c.l.b16 %v3443
    %v3579 = vunpack.c.l.b16 %v3444
    %v3580 = vunpack.c.l.b16 %v3445
    %v3581 = vunpack.c.l.b16 %v3446
    %v3582 = vunpack.c.l.b16 %v3447
    %v3583 = vunpack.c.l.b16 %v3448
    %v3584 = vunpack.c.l.b16 %v3449
    %v3585 = vunpack.c.l.b16 %v3450
    %v3586 = vunpack.c.l.b16 %v3451
    %v3587 = vunpack.c.l.b16 %v3452
    %v3588 = vunpack.c.l.b16 %v3453
    %v3589 = vunpack.c.l.b16 %v3454
    %v3590 = vunpack.c.l.b16 %v3455
    %v3591 = vunpack.c.l.b16 %v3456
    %v3592 = vunpack.c.l.b16 %v3457
    %v3593 = vunpack.c.l.b16 %v3458
    %v3594 = vunpack.c.l.b16 %v3459
    %v3595 = vunpack.c.l.b16 %v3460
    %v3596 = vunpack.c.l.b16 %v3461
    %v3597 = vunpack.c.l.b16 %v3462
    %v3598 = vunpack.c.l.b16 %v3463
    %v3599 = vunpack.c.l.b16 %v3464
    %v3600 = vunpack.c.l.b16 %v3465
    %v3601 = vunpack.c.l.b16 %v3466
    %v3602 = vunpack.c.l.b16 %v3467
    %v3603 = vunpack.c.l.b16 %v3468
    %v3604 = vunpack.c.l.b16 %v3469
    %v3605 = vunpack.c.l.b16 %v3470
    %v3606 = vunpack.c.l.b16 %v3471
    %v3607 = vunpack.c.l.b16 %v3472
    %v3608 = vunpack.c.l.b16 %v3473
    %v3609 = vpack.c.b16 %v3546, %v3545
    %v3610 = vpack.c.b16 %v3548, %v3547
    %v3611 = vpack.c.b16 %v3550, %v3549
    %v3612 = vpack.c.b16 %v3552, %v3551
    %v3613 = vpack.c.b16 %v3554, %v3553
    %v3614 = vpack.c.b16 %v3556, %v3555
    %v3615 = vpack.c.b16 %v3558, %v3557
    %v3616 = vpack.c.b16 %v3560, %v3559
    %v3617 = vpack.c.b16 %v3562, %v3561
    %v3618 = vpack.c.b16 %v3564, %v3563
    %v3619 = vpack.c.b16 %v3566, %v3565
    %v3620 = vpack.c.b16 %v3568, %v3567
    %v3621 = vpack.c.b16 %v3570, %v3569
    %v3622 = vpack.c.b16 %v3572, %v3571
    %v3623 = vpack.c.b16 %v3574, %v3573
    %v3624 = vpack.c.b16 %v3576, %v3575
    %v3625 = vpack.c.b16 %v3578, %v3577
    %v3626 = vpack.c.b16 %v3580, %v3579
    %v3627 = vpack.c.b16 %v3582, %v3581
    %v3628 = vpack.c.b16 %v3584, %v3583
    %v3629 = vpack.c.b16 %v3586, %v3585
    %v3630 = vpack.c.b16 %v3588, %v3587
    %v3631 = vpack.c.b16 %v3590, %v3589
    %v3632 = vpack.c.b16 %v3592, %v3591
    %v3633 = vpack.c.b16 %v3594, %v3593
    %v3634 = vpack.c.b16 %v3596, %v3595
    %v3635 = vpack.c.b16 %v3598, %v3597
    %v3636 = vpack.c.b16 %v3600, %v3599
    %v3637 = vpack.c.b16 %v3602, %v3601
    %v3638 = vpack.c.b16 %v3604, %v3603
    %v3639 = vpack.c.b16 %v3606, %v3605
    %v3640 = vpack.c.b16 %v3608, %v3607
    %3673 = vmatprep.subr.bf16.mxu0 0
    %3674 = vmatpush1.bf16.msra.mxu0 %v3616
    %3675 = vmatprep.subr.bf16.mxu0 0
    %3676 = vmatpush1.bf16.msra.mxu0 %v3615
    %3677 = vmatprep.subr.bf16.mxu0 0
    %3678 = vmatpush1.bf16.msra.mxu0 %v3614
    %3679 = vmatprep.subr.bf16.mxu0 0
    %3680 = vmatpush1.bf16.msra.mxu0 %v3613
    %3681 = vmatprep.subr.bf16.mxu0 0
    %3682 = vmatpush1.bf16.msra.mxu0 %v3612
    %3683 = vmatprep.subr.bf16.mxu0 0
    %3684 = vmatpush1.bf16.msra.mxu0 %v3611
    %3685 = vmatprep.subr.bf16.mxu0 0
    %3686 = vmatpush1.bf16.msra.mxu0 %v3610
    %3687 = vmatprep.subr.bf16.mxu0 0
    %3688 = vmatpush1.bf16.msra.mxu0 %v3609
    %3689 = vmatprep.subr.bf16.mxu0 0
    %3690 = vmatpush2.bf16.msra.mxu0 %v3624
    %3691 = vmatprep.subr.bf16.mxu0 0
    %3692 = vmatpush2.bf16.msra.mxu0 %v3623
    %3693 = vmatprep.subr.bf16.mxu0 0
    %3694 = vmatpush2.bf16.msra.mxu0 %v3622
    %3695 = vmatprep.subr.bf16.mxu0 0
    %3696 = vmatpush2.bf16.msra.mxu0 %v3621
    %3697 = vmatprep.subr.bf16.mxu0 0
    %3698 = vmatpush2.bf16.msra.mxu0 %v3620
    %3699 = vmatprep.subr.bf16.mxu0 0
    %3700 = vmatpush2.bf16.msra.mxu0 %v3619
    %3701 = vmatprep.subr.bf16.mxu0 0
    %3702 = vmatpush2.bf16.msra.mxu0 %v3618
    %3703 = vmatprep.subr.bf16.mxu0 0
    %3704 = vmatpush2.bf16.msra.mxu0 %v3617
    %3705 = vmatprep.mubr.bf16.mxu0 %v3395
    %3706 = vmatmul.mubr.bf16.gmra.mxu0 %v3394
    %v3707 = vpop.f32.mrf.mxu0
    %v3708 = vadd.f32 %v3479, %v3707
    %v3709 = vpop.f32.mrf.mxu0
    %v3710 = vpop.f32.mrf.mxu0
    %v3711 = vadd.f32 %v3479, %v3710
    %v3712 = vpop.f32.mrf.mxu0
    %3713 = vmatprep.mubr.bf16.mxu0 %v3399
    %3714 = vmatmul.mubr.bf16.gmra.mxu0 %v3398
    %v3715 = vpop.f32.mrf.mxu0
    %v3716 = vadd.f32 %v3479, %v3715
    %v3717 = vpop.f32.mrf.mxu0
    %v3718 = vpop.f32.mrf.mxu0
    %v3719 = vadd.f32 %v3479, %v3718
    %v3720 = vpop.f32.mrf.mxu0
    %3721 = vmatprep.mubr.bf16.mxu0 %v3403
    %3722 = vmatmul.mubr.bf16.gmra.mxu0 %v3402
    %v3723 = vpop.f32.mrf.mxu0
    %v3724 = vadd.f32 %v3479, %v3723
    %v3725 = vpop.f32.mrf.mxu0
    %v3726 = vpop.f32.mrf.mxu0
    %v3727 = vadd.f32 %v3479, %v3726
    %v3728 = vpop.f32.mrf.mxu0
    %3729 = vmatprep.mubr.bf16.mxu0 %v3407
    %3730 = vmatmul.mubr.bf16.gmra.mxu0 %v3406
    %v3731 = vpop.f32.mrf.mxu0
    %v3732 = vadd.f32 %v3479, %v3731
    %v3733 = vpop.f32.mrf.mxu0
    %v3734 = vpop.f32.mrf.mxu0
    %v3735 = vadd.f32 %v3479, %v3734
    %v3736 = vpop.f32.mrf.mxu0
    %3737 = vdwg.mxu0
    %3738 = vmatprep.subr.bf16.mxu0 0
    %3739 = vmatpush1.bf16.msra.mxu0 %v3632
    %3740 = vmatprep.subr.bf16.mxu0 0
    %3741 = vmatpush1.bf16.msra.mxu0 %v3631
    %3742 = vmatprep.subr.bf16.mxu0 0
    %3743 = vmatpush1.bf16.msra.mxu0 %v3630
    %3744 = vmatprep.subr.bf16.mxu0 0
    %3745 = vmatpush1.bf16.msra.mxu0 %v3629
    %3746 = vmatprep.subr.bf16.mxu0 0
    %3747 = vmatpush1.bf16.msra.mxu0 %v3628
    %3748 = vmatprep.subr.bf16.mxu0 0
    %3749 = vmatpush1.bf16.msra.mxu0 %v3627
    %3750 = vmatprep.subr.bf16.mxu0 0
    %3751 = vmatpush1.bf16.msra.mxu0 %v3626
    %3752 = vmatprep.subr.bf16.mxu0 0
    %3753 = vmatpush1.bf16.msra.mxu0 %v3625
    %3754 = vmatprep.subr.bf16.mxu0 0
    %3755 = vmatpush2.bf16.msra.mxu0 %v3640
    %3756 = vmatprep.subr.bf16.mxu0 0
    %3757 = vmatpush2.bf16.msra.mxu0 %v3639
    %3758 = vmatprep.subr.bf16.mxu0 0
    %3759 = vmatpush2.bf16.msra.mxu0 %v3638
    %3760 = vmatprep.subr.bf16.mxu0 0
    %3761 = vmatpush2.bf16.msra.mxu0 %v3637
    %3762 = vmatprep.subr.bf16.mxu0 0
    %3763 = vmatpush2.bf16.msra.mxu0 %v3636
    %3764 = vmatprep.subr.bf16.mxu0 0
    %3765 = vmatpush2.bf16.msra.mxu0 %v3635
    %3766 = vmatprep.subr.bf16.mxu0 0
    %3767 = vmatpush2.bf16.msra.mxu0 %v3634
    %3768 = vmatprep.subr.bf16.mxu0 0
    %3769 = vmatpush2.bf16.msra.mxu0 %v3633
    %3770 = vmatprep.mubr.bf16.mxu0 %v3397
    %3771 = vmatmul.mubr.bf16.gmra.mxu0 %v3396
    %v3772 = vpop.f32.mrf.mxu0
    %v3773 = vadd.f32 %v3708, %v3772
    %v3774 = vpop.f32.mrf.mxu0
    %v3775 = vpop.f32.mrf.mxu0
    %v3776 = vadd.f32 %v3711, %v3775
    %v3777 = vpop.f32.mrf.mxu0
    %3778 = vmatprep.mubr.bf16.mxu0 %v3401
    %3779 = vmatmul.mubr.bf16.gmra.mxu0 %v3400
    %v3780 = vpop.f32.mrf.mxu0
    %v3781 = vadd.f32 %v3716, %v3780
    %v3782 = vpop.f32.mrf.mxu0
    %v3783 = vpop.f32.mrf.mxu0
    %v3784 = vadd.f32 %v3719, %v3783
    %v3785 = vpop.f32.mrf.mxu0
    %3786 = vmatprep.mubr.bf16.mxu0 %v3405
    %3787 = vmatmul.mubr.bf16.gmra.mxu0 %v3404
    %v3788 = vpop.f32.mrf.mxu0
    %v3789 = vadd.f32 %v3724, %v3788
    %v3790 = vpop.f32.mrf.mxu0
    %v3791 = vpop.f32.mrf.mxu0
    %v3792 = vadd.f32 %v3727, %v3791
    %v3793 = vpop.f32.mrf.mxu0
    %3794 = vmatprep.mubr.bf16.mxu0 %v3409
    %3795 = vmatmul.mubr.bf16.gmra.mxu0 %v3408
    %v3796 = vpop.f32.mrf.mxu0
    %v3797 = vadd.f32 %v3732, %v3796
    %v3798 = vpop.f32.mrf.mxu0
    %v3799 = vpop.f32.mrf.mxu0
    %v3800 = vadd.f32 %v3735, %v3799
    %v3801 = vpop.f32.mrf.mxu0
    %3802 = vdwg.mxu0
    %v3803 = vadd.f32 %v2744, %v3773
    %v3804 = vadd.f32 %v2745, %v3776
    %v3805 = vadd.f32 %v2746, %v3781
    %v3806 = vadd.f32 %v2747, %v3784
    %v3807 = vadd.f32 %v2748, %v3789
    %v3808 = vadd.f32 %v2749, %v3792
    %v3809 = vadd.f32 %v2750, %v3797
    %v3810 = vadd.f32 %v2751, %v3800
    %3811 = vst [vmem:[#allocation11] sm:$0xff] %v3803
    %3812 = vst [vmem:[#allocation11 + $0x8] sm:$0xff] %v3804
    %3813 = vst [vmem:[#allocation11 + $0x10] sm:$0xff] %v3805
    %3814 = vst [vmem:[#allocation11 + $0x18] sm:$0xff] %v3806
    %3815 = vst [vmem:[#allocation11 + $0x20] sm:$0xff] %v3807
    %3816 = vst [vmem:[#allocation11 + $0x28] sm:$0xff] %v3808
    %3817 = vst [vmem:[#allocation11 + $0x30] sm:$0xff] %v3809
    %3818 = vst [vmem:[#allocation11 + $0x38] sm:$0xff] %v3810
    // Predicated region
    $region70: #{tpu_custom_call.1} parent=1 // pred_check
      _
    $region71: #{tpu_custom_call.1} parent=1 // pred_check_branch
      %3820 = sbr.rel (0) target = $region73
    $region72: #{tpu_custom_call.1} parent=1 // pred_region
      %s3822 = ssub.s32 1024, 1024
      %3823 = vsyncadd [#allocation4], %s3822
      %s3824 = sshll.u32 [#allocation11], 4
      %s3825 = int_to_ptr.vmem [resolvable:$true] %s3824
      %3830 = dma.vmem_to_hbm [thread:$0]  %s3825, 1024, %s12, [#allocation4], 128, 128, 8
    $region73: #{tpu_custom_call.1} parent=1 // pred_fallthru
      _
    // Predicated region
    $region74: #{tpu_custom_call.1} parent=1 // pred_check
      _
    $region75: #{tpu_custom_call.1} parent=1 // pred_check_branch
      %3832 = sbr.rel (0) target = $region77
    $region76: #{tpu_custom_call.1} parent=1 // pred_region
      %3833 = dma.done [#allocation4], 1024
    $region77: #{tpu_custom_call.1} parent=1 // pred_fallthru
      _
    %3834 = vsyncpa [#allocation3], 1
    %3835 = vsyncpa [#allocation6], 1
    %3836 = vsyncpa [#allocation9], 1
    %3837 = vsyncpa [#allocation4], 1

// kernel: tpu_custom_call.1
$region0: #{tpu_custom_call.1}
  #allocation0 [shape = 'u32[]', space=smem, size = 0x4, offset = 0x4, fixed_abs, tag = 'smem constant byte address 0x4 - core index']
  #allocation1 [shape = 'u32[144,128]{1,0:T(1,128)}', space=vmem, size = 0x12000, scoped, tag = 'internal scratch']
  %s0 = inlined_call_operand.hbm [shape: f32[4,16,128], index: 0, kind: input, shape index: {}]
  %s1 = inlined_call_operand.vmem [shape: f32[1,128], index: 1, kind: input, shape index: {}]
  %s2 = inlined_call_operand.vmem [shape: f32[1,128], index: 2, kind: input, shape index: {}]
  %s3 = inlined_call_operand.hbm [shape: bf16[128,384], index: 3, kind: input, shape index: {}]
  %s4 = inlined_call_operand.hbm [shape: bf16[128,128], index: 4, kind: input, shape index: {}]
  %s5 = inlined_call_operand.vmem [shape: f32[1,128], index: 5, kind: input, shape index: {}]
  %s6 = inlined_call_operand.vmem [shape: f32[1,128], index: 6, kind: input, shape index: {}]
  %s7 = inlined_call_operand.vmem [shape: f32[1,128], index: 7, kind: input, shape index: {}]
  %s8 = inlined_call_operand.hbm [shape: bf16[128,512], index: 8, kind: input, shape index: {}]
  %s9 = inlined_call_operand.vmem [shape: f32[1,512], index: 9, kind: input, shape index: {}]
  %s10 = inlined_call_operand.hbm [shape: bf16[512,128], index: 10, kind: input, shape index: {}]
  %s11 = inlined_call_operand.vmem [shape: f32[1,128], index: 11, kind: input, shape index: {}]
  %s12 = inlined_call_operand.hbm [shape: f32[4,16,128], index: 12, kind: output, shape index: {}]
  %s13 = sld [smem:[#allocation0]]
  $region78: #{tpu_custom_call.1} parent=0
    _
  %s15 = ssub.s32 1, %s13
  %s16 = scalar_select 0, %s15, %s13
  $region1: #{tpu_custom_call.1} parent=0
    #allocation2 [shape = 'u8[32768]{0}', space=vmem, size = 0x8000, scoped, tag = 'input window, operand 0, single buffered']
    #allocation3 [shape = 's32[1]{0}', space=sflag, size = 0x4, scoped, tag = 'scoped memory for tpu_custom_call.1']
    #allocation4 [shape = 's32[1]{0}', space=sflag, size = 0x4, scoped, tag = 'scoped memory for tpu_custom_call.1']
    #allocation5 [shape = 'u8[98304]{0}', space=vmem, size = 0x18000, scoped, tag = 'input window, operand 3, single buffered']
    #allocation6 [shape = 's32[1]{0}', space=sflag, size = 0x4, scoped, tag = 'scoped memory for tpu_custom_call.1']
    #allocation7 [shape = 'u8[32768]{0}', space=vmem, size = 0x8000, scoped, tag = 'input window, operand 4, single buffered']
    #allocation8 [shape = 'u8[131072]{0}', space=vmem, size = 0x20000, scoped, tag = 'input window, operand 8, single buffered']
    #allocation9 [shape = 's32[1]{0}', space=sflag, size = 0x4, scoped, tag = 'scoped memory for tpu_custom_call.1']
    #allocation10 [shape = 'u8[131072]{0}', space=vmem, size = 0x20000, scoped, tag = 'input window, operand 10, single buffered']
    #allocation11 [shape = 'u8[32768]{0}', space=vmem, size = 0x8000, scoped, tag = 'output window, operand 0, single buffered']
    %17 = vsyncpa [#allocation3], 0
    %18 = vsyncpa [#allocation6], 0
    %19 = vsyncpa [#allocation9], 0
    %20 = vsyncpa [#allocation4], 0
    // Predicated region
    $region2: #{tpu_custom_call.1} parent=1 // pred_check
      _
    $region3: #{tpu_custom_call.1} parent=1 // pred_check_branch
      %22 = sbr.rel (0) target = $region5
    $region4: #{tpu_custom_call.1} parent=1 // pred_region
      %s24 = ssub.s32 1024, 1024
      %25 = vsyncadd [#allocation3], %s24
      %s26 = sshll.u32 [#allocation2], 4
      %s27 = int_to_ptr.vmem [resolvable:$true] %s26
      %32 = dma.hbm_to_vmem [thread:$0]  %s0, 1024, %s27, [#allocation3], 128, 128, 8
    $region5: #{tpu_custom_call.1} parent=1 // pred_fallthru
      _
    // Predicated region
    $region6: #{tpu_custom_call.1} parent=1 // pred_check
      _
    $region7: #{tpu_custom_call.1} parent=1 // pred_check_branch
      %34 = sbr.rel (0) target = $region9
    $region8: #{tpu_custom_call.1} parent=1 // pred_region
      _
    $region9: #{tpu_custom_call.1} parent=1 // pred_fallthru
      _
    // Predicated region
    $region10: #{tpu_custom_call.1} parent=1 // pred_check
      _
    $region11: #{tpu_custom_call.1} parent=1 // pred_check_branch
      %36 = sbr.rel (0) target = $region13
    $region12: #{tpu_custom_call.1} parent=1 // pred_region
      _
    $region13: #{tpu_custom_call.1} parent=1 // pred_fallthru
      _
    // Predicated region
    $region14: #{tpu_custom_call.1} parent=1 // pred_check
      _
    $region15: #{tpu_custom_call.1} parent=1 // pred_check_branch
      %38 = sbr.rel (0) target = $region17
    $region16: #{tpu_custom_call.1} parent=1 // pred_region
      %s40 = ssub.s32 3072, 3072
      %41 = vsyncadd [#allocation6], %s40
      %s42 = sshll.u32 [#allocation5], 4
      %s43 = int_to_ptr.vmem [resolvable:$true] %s42
      %48 = dma.hbm_to_vmem [thread:$0]  %s3, 3072, %s43, [#allocation6], 192, 192, 12
    $region17: #{tpu_custom_call.1} parent=1 // pred_fallthru
      _
    // Predicated region
    $region18: #{tpu_custom_call.1} parent=1 // pred_check
      _
    $region19: #{tpu_custom_call.1} parent=1 // pred_check_branch
      %50 = sbr.rel (0) target = $region21
    $region20: #{tpu_custom_call.1} parent=1 // pred_region
      %s52 = ssub.s32 1024, 1024
      %53 = vsyncadd [#allocation6], %s52
      %s54 = sshll.u32 [#allocation7], 4
      %s55 = int_to_ptr.vmem [resolvable:$true] %s54
      %60 = dma.hbm_to_vmem [thread:$0]  %s4, 1024, %s55, [#allocation6], 64, 64, 4
    $region21: #{tpu_custom_call.1} parent=1 // pred_fallthru
      _
    // Predicated region
    $region22: #{tpu_custom_call.1} parent=1 // pred_check
      _
    $region23: #{tpu_custom_call.1} parent=1 // pred_check_branch
      %62 = sbr.rel (0) target = $region25
    $region24: #{tpu_custom_call.1} parent=1 // pred_region
      _
    $region25: #{tpu_custom_call.1} parent=1 // pred_fallthru
      _
    // Predicated region
    $region26: #{tpu_custom_call.1} parent=1 // pred_check
      _
    $region27: #{tpu_custom_call.1} parent=1 // pred_check_branch
      %64 = sbr.rel (0) target = $region29
    $region28: #{tpu_custom_call.1} parent=1 // pred_region
      _
    $region29: #{tpu_custom_call.1} parent=1 // pred_fallthru
      _
    // Predicated region
    $region30: #{tpu_custom_call.1} parent=1 // pred_check
      _
    $region31: #{tpu_custom_call.1} parent=1 // pred_check_branch
      %66 = sbr.rel (0) target = $region33
    $region32: #{tpu_custom_call.1} parent=1 // pred_region
      _
    $region33: #{tpu_custom_call.1} parent=1 // pred_fallthru
      _
    // Predicated region
    $region34: #{tpu_custom_call.1} parent=1 // pred_check
      _
    $region35: #{tpu_custom_call.1} parent=1 // pred_check_branch
      %68 = sbr.rel (0) target = $region37
    $region36: #{tpu_custom_call.1} parent=1 // pred_region
      %s70 = ssub.s32 4096, 4096
      %71 = vsyncadd [#allocation9], %s70
      %s72 = sshll.u32 [#allocation8], 4
      %s73 = int_to_ptr.vmem [resolvable:$true] %s72
      %78 = dma.hbm_to_vmem [thread:$0]  %s8, 4096, %s73, [#allocation9], 256, 256, 16
    $region37: #{tpu_custom_call.1} parent=1 // pred_fallthru
      _
    // Predicated region
    $region38: #{tpu_custom_call.1} parent=1 // pred_check
      _
    $region39: #{tpu_custom_call.1} parent=1 // pred_check_branch
      %80 = sbr.rel (0) target = $region41
    $region40: #{tpu_custom_call.1} parent=1 // pred_region
      _
    $region41: #{tpu_custom_call.1} parent=1 // pred_fallthru
      _
    // Predicated region
    $region42: #{tpu_custom_call.1} parent=1 // pred_check
      _
    $region43: #{tpu_custom_call.1} parent=1 // pred_check_branch
      %82 = sbr.rel (0) target = $region45
    $region44: #{tpu_custom_call.1} parent=1 // pred_region
      %s84 = ssub.s32 4096, 4096
      %85 = vsyncadd [#allocation9], %s84
      %s86 = sshll.u32 [#allocation10], 4
      %s87 = int_to_ptr.vmem [resolvable:$true] %s86
      %92 = dma.hbm_to_vmem [thread:$0]  %s10, 4096, %s87, [#allocation9], 64, 64, 4
    $region45: #{tpu_custom_call.1} parent=1 // pred_fallthru
      _
    // Predicated region
    $region46: #{tpu_custom_call.1} parent=1 // pred_check
      _
    $region47: #{tpu_custom_call.1} parent=1 // pred_check_branch
      %94 = sbr.rel (0) target = $region49
    $region48: #{tpu_custom_call.1} parent=1 // pred_region
      _
    $region49: #{tpu_custom_call.1} parent=1 // pred_fallthru
      _
    // Predicated region
    $region50: #{tpu_custom_call.1} parent=1 // pred_check
      _
    $region51: #{tpu_custom_call.1} parent=1 // pred_check_branch
      %96 = sbr.rel (0) target = $region53
    $region52: #{tpu_custom_call.1} parent=1 // pred_region
      %97 = dma.done [#allocation3], 1024
    $region53: #{tpu_custom_call.1} parent=1 // pred_fallthru
      _
    // Predicated region
    $region54: #{tpu_custom_call.1} parent=1 // pred_check
      _
    $region55: #{tpu_custom_call.1} parent=1 // pred_check_branch
      %99 = sbr.rel (0) target = $region57
    $region56: #{tpu_custom_call.1} parent=1 // pred_region
      %100 = dma.done [#allocation6], 3072
    $region57: #{tpu_custom_call.1} parent=1 // pred_fallthru
      _
    // Predicated region
    $region58: #{tpu_custom_call.1} parent=1 // pred_check
      _
    $region59: #{tpu_custom_call.1} parent=1 // pred_check_branch
      %102 = sbr.rel (0) target = $region61
    $region60: #{tpu_custom_call.1} parent=1 // pred_region
      %103 = dma.done [#allocation6], 1024
    $region61: #{tpu_custom_call.1} parent=1 // pred_fallthru
      _
    // Predicated region
    $region62: #{tpu_custom_call.1} parent=1 // pred_check
      _
    $region63: #{tpu_custom_call.1} parent=1 // pred_check_branch
      %105 = sbr.rel (0) target = $region65
    $region64: #{tpu_custom_call.1} parent=1 // pred_region
      %106 = dma.done [#allocation9], 4096
    $region65: #{tpu_custom_call.1} parent=1 // pred_fallthru
      _
    // Predicated region
    $region66: #{tpu_custom_call.1} parent=1 // pred_check
      _
    $region67: #{tpu_custom_call.1} parent=1 // pred_check_branch
      %108 = sbr.rel (0) target = $region69
    $region68: #{tpu_custom_call.1} parent=1 // pred_region
      %109 = dma.done [#allocation9], 4096
    $region69: #{tpu_custom_call.1} parent=1 // pred_fallthru
      _
    %v111 = vld [vmem:[#allocation2] sm:$0xff]
    %v112 = vld [vmem:[#allocation2 + $0x8] sm:$0xff]
    %v113 = vld [vmem:[#allocation2 + $0x10] sm:$0xff]
    %v114 = vld [vmem:[#allocation2 + $0x18] sm:$0xff]
    %v115 = vld [vmem:[#allocation2 + $0x20] sm:$0xff]
    %v116 = vld [vmem:[#allocation2 + $0x28] sm:$0xff]
    %v117 = vld [vmem:[#allocation2 + $0x30] sm:$0xff]
    %v118 = vld [vmem:[#allocation2 + $0x38] sm:$0xff]
    %v119 = vld [vmem:[%s1] sm:$0x1]
    %v120 = vld [vmem:[%s2] sm:$0x1]
    %121 = vadd.xlane.f32.xlu0 %v111
    %v122 = vpop.xlane.xlu0 %121
    %123 = vadd.xlane.f32.xlu0 %v112
    %v124 = vpop.xlane.xlu0 %123
    %125 = vadd.xlane.f32.xlu0 %v113
    %v126 = vpop.xlane.xlu0 %125
    %127 = vadd.xlane.f32.xlu0 %v114
    %v128 = vpop.xlane.xlu0 %127
    %129 = vadd.xlane.f32.xlu0 %v115
    %v130 = vpop.xlane.xlu0 %129
    %131 = vadd.xlane.f32.xlu0 %v116
    %v132 = vpop.xlane.xlu0 %131
    %133 = vadd.xlane.f32.xlu0 %v117
    %v134 = vpop.xlane.xlu0 %133
    %135 = vadd.xlane.f32.xlu0 %v118
    %v136 = vpop.xlane.xlu0 %135
    %v137 = vrcp.pop 128.0
    %v138 = vmul.f32 %v122, %v137
    %v139 = vmul.f32 %v124, %v137
    %v140 = vmul.f32 %v126, %v137
    %v141 = vmul.f32 %v128, %v137
    %v142 = vmul.f32 %v130, %v137
    %v143 = vmul.f32 %v132, %v137
    %v144 = vmul.f32 %v134, %v137
    %v145 = vmul.f32 %v136, %v137
    %v146 = vsub.f32 %v111, %v138
    %v147 = vsub.f32 %v112, %v139
    %v148 = vsub.f32 %v113, %v140
    %v149 = vsub.f32 %v114, %v141
    %v150 = vsub.f32 %v115, %v142
    %v151 = vsub.f32 %v116, %v143
    %v152 = vsub.f32 %v117, %v144
    %v153 = vsub.f32 %v118, %v145
    %v154 = vmul.f32 %v146, %v146
    %v155 = vmul.f32 %v147, %v147
    %v156 = vmul.f32 %v148, %v148
    %v157 = vmul.f32 %v149, %v149
    %v158 = vmul.f32 %v150, %v150
    %v159 = vmul.f32 %v151, %v151
    %v160 = vmul.f32 %v152, %v152
    %v161 = vmul.f32 %v153, %v153
    %162 = vadd.xlane.f32.xlu0 %v154
    %v163 = vpop.xlane.xlu0 %162
    %164 = vadd.xlane.f32.xlu0 %v155
    %v165 = vpop.xlane.xlu0 %164
    %166 = vadd.xlane.f32.xlu0 %v156
    %v167 = vpop.xlane.xlu0 %166
    %168 = vadd.xlane.f32.xlu0 %v157
    %v169 = vpop.xlane.xlu0 %168
    %170 = vadd.xlane.f32.xlu0 %v158
    %v171 = vpop.xlane.xlu0 %170
    %172 = vadd.xlane.f32.xlu0 %v159
    %v173 = vpop.xlane.xlu0 %172
    %174 = vadd.xlane.f32.xlu0 %v160
    %v175 = vpop.xlane.xlu0 %174
    %176 = vadd.xlane.f32.xlu0 %v161
    %v177 = vpop.xlane.xlu0 %176
    %v178 = vmul.f32 %v163, %v137
    %v179 = vmul.f32 %v165, %v137
    %v180 = vmul.f32 %v167, %v137
    %v181 = vmul.f32 %v169, %v137
    %v182 = vmul.f32 %v171, %v137
    %v183 = vmul.f32 %v173, %v137
    %v184 = vmul.f32 %v175, %v137
    %v185 = vmul.f32 %v177, %v137
    %v186 = vadd.f32 %v178, 1e-05
    %v187 = vadd.f32 %v179, 1e-05
    %v188 = vadd.f32 %v180, 1e-05
    %v189 = vadd.f32 %v181, 1e-05
    %v190 = vadd.f32 %v182, 1e-05
    %v191 = vadd.f32 %v183, 1e-05
    %v192 = vadd.f32 %v184, 1e-05
    %v193 = vadd.f32 %v185, 1e-05
    %v194 = vrsqrt.pop %v186
    %v195 = vrsqrt.pop %v187
    %v196 = vrsqrt.pop %v188
    %v197 = vrsqrt.pop %v189
    %v198 = vrsqrt.pop %v190
    %v199 = vrsqrt.pop %v191
    %v200 = vrsqrt.pop %v192
    %v201 = vrsqrt.pop %v193
    %v202 = vmul.f32 %v146, %v194
    %v203 = vmul.f32 %v147, %v195
    %v204 = vmul.f32 %v148, %v196
    %v205 = vmul.f32 %v149, %v197
    %v206 = vmul.f32 %v150, %v198
    %v207 = vmul.f32 %v151, %v199
    %v208 = vmul.f32 %v152, %v200
    %v209 = vmul.f32 %v153, %v201
    %v211 = vlaneseq
    %v212 = vshrl.u32 %v211, 7
    %v213 = vsub.s32 0, %v212
    %v214 = vrot.slane %v119, %v213
    %v216 = vmul.f32 %v202, %v214
    %v217 = vmul.f32 %v203, %v214
    %v218 = vmul.f32 %v204, %v214
    %v219 = vmul.f32 %v205, %v214
    %v220 = vmul.f32 %v206, %v214
    %v221 = vmul.f32 %v207, %v214
    %v222 = vmul.f32 %v208, %v214
    %v223 = vmul.f32 %v209, %v214
    %v225 = vlaneseq
    %v226 = vshrl.u32 %v225, 7
    %v227 = vsub.s32 0, %v226
    %v228 = vrot.slane %v120, %v227
    %v230 = vadd.f32 %v216, %v228
    %v231 = vadd.f32 %v217, %v228
    %v232 = vadd.f32 %v218, %v228
    %v233 = vadd.f32 %v219, %v228
    %v234 = vadd.f32 %v220, %v228
    %v235 = vadd.f32 %v221, %v228
    %v236 = vadd.f32 %v222, %v228
    %v237 = vadd.f32 %v223, %v228
    %v238 = vpack.c.bf16 %v231, %v230
    %v239 = vpack.c.bf16 %v233, %v232
    %v240 = vpack.c.bf16 %v235, %v234
    %v241 = vpack.c.bf16 %v237, %v236
    %v242 = vld [vmem:[#allocation5] sm:$0xff]
    %v243 = vld [vmem:[#allocation5 + $0x8] sm:$0xf]
    %v244 = vld [vmem:[#allocation5 + $0xc] sm:$0xff]
    %v245 = vld [vmem:[#allocation5 + $0x14] sm:$0xf]
    %v246 = vld [vmem:[#allocation5 + $0x18] sm:$0xff]
    %v247 = vld [vmem:[#allocation5 + $0x20] sm:$0xf]
    %v248 = vld [vmem:[#allocation5 + $0x24] sm:$0xff]
    %v249 = vld [vmem:[#allocation5 + $0x2c] sm:$0xf]
    %v250 = vld [vmem:[#allocation5 + $0x30] sm:$0xff]
    %v251 = vld [vmem:[#allocation5 + $0x38] sm:$0xf]
    %v252 = vld [vmem:[#allocation5 + $0x3c] sm:$0xff]
    %v253 = vld [vmem:[#allocation5 + $0x44] sm:$0xf]
    %v254 = vld [vmem:[#allocation5 + $0x48] sm:$0xff]
    %v255 = vld [vmem:[#allocation5 + $0x50] sm:$0xf]
    %v256 = vld [vmem:[#allocation5 + $0x54] sm:$0xff]
    %v257 = vld [vmem:[#allocation5 + $0x5c] sm:$0xf]
    %v258 = vld [vmem:[#allocation5 + $0x60] sm:$0xff]
    %v259 = vld [vmem:[#allocation5 + $0x68] sm:$0xf]
    %v260 = vld [vmem:[#allocation5 + $0x6c] sm:$0xff]
    %v261 = vld [vmem:[#allocation5 + $0x74] sm:$0xf]
    %v262 = vld [vmem:[#allocation5 + $0x78] sm:$0xff]
    %v263 = vld [vmem:[#allocation5 + $0x80] sm:$0xf]
    %v264 = vld [vmem:[#allocation5 + $0x84] sm:$0xff]
    %v265 = vld [vmem:[#allocation5 + $0x8c] sm:$0xf]
    %v266 = vld [vmem:[#allocation5 + $0x90] sm:$0xff]
    %v267 = vld [vmem:[#allocation5 + $0x98] sm:$0xf]
    %v268 = vld [vmem:[#allocation5 + $0x9c] sm:$0xff]
    %v269 = vld [vmem:[#allocation5 + $0xa4] sm:$0xf]
    %v270 = vld [vmem:[#allocation5 + $0xa8] sm:$0xff]
    %v271 = vld [vmem:[#allocation5 + $0xb0] sm:$0xf]
    %v272 = vld [vmem:[#allocation5 + $0xb4] sm:$0xff]
    %v273 = vld [vmem:[#allocation5 + $0xbc] sm:$0xf]
    %v306 = vunpack.c.l.b16 %v242
    %v307 = vunpack.c.h.b16 %v242
    %v308 = vunpack.c.l.b16 %v243
    %v309 = vunpack.c.l.b16 %v244
    %v310 = vunpack.c.h.b16 %v244
    %v311 = vunpack.c.l.b16 %v245
    %v312 = vunpack.c.l.b16 %v246
    %v313 = vunpack.c.h.b16 %v246
    %v314 = vunpack.c.l.b16 %v247
    %v315 = vunpack.c.l.b16 %v248
    %v316 = vunpack.c.h.b16 %v248
    %v317 = vunpack.c.l.b16 %v249
    %v318 = vunpack.c.l.b16 %v250
    %v319 = vunpack.c.h.b16 %v250
    %v320 = vunpack.c.l.b16 %v251
    %v321 = vunpack.c.l.b16 %v252
    %v322 = vunpack.c.h.b16 %v252
    %v323 = vunpack.c.l.b16 %v253
    %v324 = vunpack.c.l.b16 %v254
    %v325 = vunpack.c.h.b16 %v254
    %v326 = vunpack.c.l.b16 %v255
    %v327 = vunpack.c.l.b16 %v256
    %v328 = vunpack.c.h.b16 %v256
    %v329 = vunpack.c.l.b16 %v257
    %v330 = vunpack.c.l.b16 %v258
    %v331 = vunpack.c.h.b16 %v258
    %v332 = vunpack.c.l.b16 %v259
    %v333 = vunpack.c.l.b16 %v260
    %v334 = vunpack.c.h.b16 %v260
    %v335 = vunpack.c.l.b16 %v261
    %v336 = vunpack.c.l.b16 %v262
    %v337 = vunpack.c.h.b16 %v262
    %v338 = vunpack.c.l.b16 %v263
    %v339 = vunpack.c.l.b16 %v264
    %v340 = vunpack.c.h.b16 %v264
    %v341 = vunpack.c.l.b16 %v265
    %v342 = vunpack.c.l.b16 %v266
    %v343 = vunpack.c.h.b16 %v266
    %v344 = vunpack.c.l.b16 %v267
    %v345 = vunpack.c.l.b16 %v268
    %v346 = vunpack.c.h.b16 %v268
    %v347 = vunpack.c.l.b16 %v269
    %v348 = vunpack.c.l.b16 %v270
    %v349 = vunpack.c.h.b16 %v270
    %v350 = vunpack.c.l.b16 %v271
    %v351 = vunpack.c.l.b16 %v272
    %v352 = vunpack.c.h.b16 %v272
    %v353 = vunpack.c.l.b16 %v273
    %v354 = vpack.c.b16 %v309, %v306
    %v355 = vpack.c.b16 %v310, %v307
    %v356 = vpack.c.b16 %v311, %v308
    %v357 = vpack.c.b16 %v315, %v312
    %v358 = vpack.c.b16 %v316, %v313
    %v359 = vpack.c.b16 %v317, %v314
    %v360 = vpack.c.b16 %v321, %v318
    %v361 = vpack.c.b16 %v322, %v319
    %v362 = vpack.c.b16 %v323, %v320
    %v363 = vpack.c.b16 %v327, %v324
    %v364 = vpack.c.b16 %v328, %v325
    %v365 = vpack.c.b16 %v329, %v326
    %v366 = vpack.c.b16 %v333, %v330
    %v367 = vpack.c.b16 %v334, %v331
    %v368 = vpack.c.b16 %v335, %v332
    %v369 = vpack.c.b16 %v339, %v336
    %v370 = vpack.c.b16 %v340, %v337
    %v371 = vpack.c.b16 %v341, %v338
    %v372 = vpack.c.b16 %v345, %v342
    %v373 = vpack.c.b16 %v346, %v343
    %v374 = vpack.c.b16 %v347, %v344
    %v375 = vpack.c.b16 %v351, %v348
    %v376 = vpack.c.b16 %v352, %v349
    %v377 = vpack.c.b16 %v353, %v350
    %402 = vmatprep.subr.bf16.mxu0 %v376
    %403 = vmatpush1.bf16.msra.mxu0 %v375
    %404 = vmatprep.subr.bf16.mxu0 %v373
    %405 = vmatpush1.bf16.msra.mxu0 %v372
    %406 = vmatprep.subr.bf16.mxu0 %v370
    %407 = vmatpush1.bf16.msra.mxu0 %v369
    %408 = vmatprep.subr.bf16.mxu0 %v367
    %409 = vmatpush1.bf16.msra.mxu0 %v366
    %410 = vmatprep.subr.bf16.mxu0 %v364
    %411 = vmatpush1.bf16.msra.mxu0 %v363
    %412 = vmatprep.subr.bf16.mxu0 %v361
    %413 = vmatpush1.bf16.msra.mxu0 %v360
    %414 = vmatprep.subr.bf16.mxu0 %v358
    %415 = vmatpush1.bf16.msra.mxu0 %v357
    %416 = vmatprep.subr.bf16.mxu0 %v355
    %417 = vmatpush1.bf16.msra.mxu0 %v354
    %418 = vmatprep.subr.bf16.mxu0 0
    %419 = vmatpush2.bf16.msra.mxu0 0
    %420 = vmatprep.subr.bf16.mxu0 0
    %421 = vmatpush2.bf16.msra.mxu0 0
    %422 = vmatprep.subr.bf16.mxu0 0
    %423 = vmatpush2.bf16.msra.mxu0 0
    %424 = vmatprep.subr.bf16.mxu0 0
    %425 = vmatpush2.bf16.msra.mxu0 0
    %426 = vmatprep.subr.bf16.mxu0 0
    %427 = vmatpush2.bf16.msra.mxu0 0
    %428 = vmatprep.subr.bf16.mxu0 0
    %429 = vmatpush2.bf16.msra.mxu0 0
    %430 = vmatprep.subr.bf16.mxu0 0
    %431 = vmatpush2.bf16.msra.mxu0 0
    %432 = vmatprep.subr.bf16.mxu0 0
    %433 = vmatpush2.bf16.msra.mxu0 0
    %434 = vmatprep.mubr.bf16.mxu0 0
    %435 = vmatmul.mubr.bf16.gmra.mxu0 %v238
    %v436 = vpop.f32.mrf.mxu0
    %v437 = vadd.f32 0.0, %v436
    %v438 = vpop.f32.mrf.mxu0
    %v439 = vadd.f32 0.0, %v438
    %v440 = vpop.f32.mrf.mxu0
    %v441 = vadd.f32 0.0, %v440
    %v442 = vpop.f32.mrf.mxu0
    %v443 = vadd.f32 0.0, %v442
    %444 = vmatprep.mubr.bf16.mxu0 0
    %445 = vmatmul.mubr.bf16.gmra.mxu0 %v239
    %v446 = vpop.f32.mrf.mxu0
    %v447 = vadd.f32 0.0, %v446
    %v448 = vpop.f32.mrf.mxu0
    %v449 = vadd.f32 0.0, %v448
    %v450 = vpop.f32.mrf.mxu0
    %v451 = vadd.f32 0.0, %v450
    %v452 = vpop.f32.mrf.mxu0
    %v453 = vadd.f32 0.0, %v452
    %454 = vmatprep.mubr.bf16.mxu0 0
    %455 = vmatmul.mubr.bf16.gmra.mxu0 %v240
    %v456 = vpop.f32.mrf.mxu0
    %v457 = vadd.f32 0.0, %v456
    %v458 = vpop.f32.mrf.mxu0
    %v459 = vadd.f32 0.0, %v458
    %v460 = vpop.f32.mrf.mxu0
    %v461 = vadd.f32 0.0, %v460
    %v462 = vpop.f32.mrf.mxu0
    %v463 = vadd.f32 0.0, %v462
    %464 = vmatprep.mubr.bf16.mxu0 0
    %465 = vmatmul.mubr.bf16.gmra.mxu0 %v241
    %v466 = vpop.f32.mrf.mxu0
    %v467 = vadd.f32 0.0, %v466
    %v468 = vpop.f32.mrf.mxu0
    %v469 = vadd.f32 0.0, %v468
    %v470 = vpop.f32.mrf.mxu0
    %v471 = vadd.f32 0.0, %v470
    %v472 = vpop.f32.mrf.mxu0
    %v473 = vadd.f32 0.0, %v472
    %474 = vdwg.mxu0
    %475 = vmatprep.subr.bf16.mxu0 0
    %476 = vmatpush1.bf16.msra.mxu0 %v377
    %477 = vmatprep.subr.bf16.mxu0 0
    %478 = vmatpush1.bf16.msra.mxu0 %v374
    %479 = vmatprep.subr.bf16.mxu0 0
    %480 = vmatpush1.bf16.msra.mxu0 %v371
    %481 = vmatprep.subr.bf16.mxu0 0
    %482 = vmatpush1.bf16.msra.mxu0 %v368
    %483 = vmatprep.subr.bf16.mxu0 0
    %484 = vmatpush1.bf16.msra.mxu0 %v365
    %485 = vmatprep.subr.bf16.mxu0 0
    %486 = vmatpush1.bf16.msra.mxu0 %v362
    %487 = vmatprep.subr.bf16.mxu0 0
    %488 = vmatpush1.bf16.msra.mxu0 %v359
    %489 = vmatprep.subr.bf16.mxu0 0
    %490 = vmatpush1.bf16.msra.mxu0 %v356
    %491 = vmatprep.subr.bf16.mxu0 0
    %492 = vmatpush2.bf16.msra.mxu0 0
    %493 = vmatprep.subr.bf16.mxu0 0
    %494 = vmatpush2.bf16.msra.mxu0 0
    %495 = vmatprep.subr.bf16.mxu0 0
    %496 = vmatpush2.bf16.msra.mxu0 0
    %497 = vmatprep.subr.bf16.mxu0 0
    %498 = vmatpush2.bf16.msra.mxu0 0
    %499 = vmatprep.subr.bf16.mxu0 0
    %500 = vmatpush2.bf16.msra.mxu0 0
    %501 = vmatprep.subr.bf16.mxu0 0
    %502 = vmatpush2.bf16.msra.mxu0 0
    %503 = vmatprep.subr.bf16.mxu0 0
    %504 = vmatpush2.bf16.msra.mxu0 0
    %505 = vmatprep.subr.bf16.mxu0 0
    %506 = vmatpush2.bf16.msra.mxu0 0
    %507 = vmatprep.mubr.bf16.mxu0 0
    %508 = vmatmul.mubr.bf16.gmra.mxu0 %v238
    %v509 = vpop.f32.mrf.mxu0
    %v510 = vadd.f32 0.0, %v509
    %v511 = vpop.f32.mrf.mxu0
    %v512 = vpop.f32.mrf.mxu0
    %v513 = vadd.f32 0.0, %v512
    %v514 = vpop.f32.mrf.mxu0
    %515 = vmatprep.mubr.bf16.mxu0 0
    %516 = vmatmul.mubr.bf16.gmra.mxu0 %v239
    %v517 = vpop.f32.mrf.mxu0
    %v518 = vadd.f32 0.0, %v517
    %v519 = vpop.f32.mrf.mxu0
    %v520 = vpop.f32.mrf.mxu0
    %v521 = vadd.f32 0.0, %v520
    %v522 = vpop.f32.mrf.mxu0
    %523 = vmatprep.mubr.bf16.mxu0 0
    %524 = vmatmul.mubr.bf16.gmra.mxu0 %v240
    %v525 = vpop.f32.mrf.mxu0
    %v526 = vadd.f32 0.0, %v525
    %v527 = vpop.f32.mrf.mxu0
    %v528 = vpop.f32.mrf.mxu0
    %v529 = vadd.f32 0.0, %v528
    %v530 = vpop.f32.mrf.mxu0
    %531 = vmatprep.mubr.bf16.mxu0 0
    %532 = vmatmul.mubr.bf16.gmra.mxu0 %v241
    %v533 = vpop.f32.mrf.mxu0
    %v534 = vadd.f32 0.0, %v533
    %v535 = vpop.f32.mrf.mxu0
    %v536 = vpop.f32.mrf.mxu0
    %v537 = vadd.f32 0.0, %v536
    %v538 = vpop.f32.mrf.mxu0
    %539 = vdwg.mxu0
    %v540 = vmul.f32 %v437, 0.17677669
    %v541 = vmul.f32 %v441, 0.17677669
    %v542 = vmul.f32 %v447, 0.17677669
    %v543 = vmul.f32 %v451, 0.17677669
    %v544 = vmul.f32 %v457, 0.17677669
    %v545 = vmul.f32 %v461, 0.17677669
    %v546 = vmul.f32 %v467, 0.17677669
    %v547 = vmul.f32 %v471, 0.17677669
    %v548 = vpack.c.bf16 %v541, %v540
    %v549 = vpack.c.bf16 %v543, %v542
    %v550 = vpack.c.bf16 %v545, %v544
    %v551 = vpack.c.bf16 %v547, %v546
    %v552 = vpack.c.bf16 %v443, %v439
    %v553 = vpack.c.bf16 %v453, %v449
    %v554 = vpack.c.bf16 %v463, %v459
    %v555 = vpack.c.bf16 %v473, %v469
    %v556 = vpack.c.bf16 %v513, %v510
    %v557 = vpack.c.bf16 %v521, %v518
    %v558 = vpack.c.bf16 %v529, %v526
    %v559 = vpack.c.bf16 %v537, %v534
    %vm560 = vcmask 261120
    %v562 = vsel %vm560, %v548, 0
    %v565 = vsel %vm560, %v552, 0
    %567 = vmatprep.subr.bf16.mxu0 0
    %568 = vmatpush1.bf16.xpose.msra.mxu0 0
    %569 = vmatprep.subr.bf16.mxu0 0
    %570 = vmatpush1.bf16.xpose.msra.mxu0 0
    %571 = vmatprep.subr.bf16.mxu0 0
    %572 = vmatpush1.bf16.xpose.msra.mxu0 0
    %573 = vmatprep.subr.bf16.mxu0 0
    %574 = vmatpush1.bf16.xpose.msra.mxu0 0
    %575 = vmatprep.subr.bf16.mxu0 0
    %576 = vmatpush1.bf16.xpose.msra.mxu0 0
    %577 = vmatprep.subr.bf16.mxu0 0
    %578 = vmatpush1.bf16.xpose.msra.mxu0 0
    %579 = vmatprep.subr.bf16.mxu0 0
    %580 = vmatpush1.bf16.xpose.msra.mxu0 0
    %581 = vmatprep.subr.bf16.mxu0 0
    %582 = vmatpush1.bf16.xpose.msra.mxu0 %v565
    %583 = vmatprep.subr.bf16.mxu0 0
    %584 = vmatpush2.bf16.xpose.msra.mxu0 0
    %585 = vmatprep.subr.bf16.mxu0 0
    %586 = vmatpush2.bf16.xpose.msra.mxu0 0
    %587 = vmatprep.subr.bf16.mxu0 0
    %588 = vmatpush2.bf16.xpose.msra.mxu0 0
    %589 = vmatprep.subr.bf16.mxu0 0
    %590 = vmatpush2.bf16.xpose.msra.mxu0 0
    %591 = vmatprep.subr.bf16.mxu0 0
    %592 = vmatpush2.bf16.xpose.msra.mxu0 0
    %593 = vmatprep.subr.bf16.mxu0 0
    %594 = vmatpush2.bf16.xpose.msra.mxu0 0
    %595 = vmatprep.subr.bf16.mxu0 0
    %596 = vmatpush2.bf16.xpose.msra.mxu0 0
    %597 = vmatprep.subr.bf16.mxu0 0
    %598 = vmatpush2.bf16.xpose.msra.mxu0 0
    %599 = vmatprep.mubr.bf16.mxu0 0
    %600 = vmatmul.mubr.bf16.gmra.mxu0 %v562
    %v601 = vpop.f32.mrf.mxu0
    %v602 = vadd.f32 0.0, %v601
    %v603 = vpop.f32.mrf.mxu0
    %v604 = vpop.f32.mrf.mxu0
    %v605 = vadd.f32 0.0, %v604
    %v606 = vpop.f32.mrf.mxu0
    %607 = vdwg.mxu0
    %v609 = vsel %vm560, %v549, 0
    %v612 = vsel %vm560, %v553, 0
    %614 = vmatprep.subr.bf16.mxu0 0
    %615 = vmatpush1.bf16.xpose.msra.mxu0 0
    %616 = vmatprep.subr.bf16.mxu0 0
    %617 = vmatpush1.bf16.xpose.msra.mxu0 0
    %618 = vmatprep.subr.bf16.mxu0 0
    %619 = vmatpush1.bf16.xpose.msra.mxu0 0
    %620 = vmatprep.subr.bf16.mxu0 0
    %621 = vmatpush1.bf16.xpose.msra.mxu0 0
    %622 = vmatprep.subr.bf16.mxu0 0
    %623 = vmatpush1.bf16.xpose.msra.mxu0 0
    %624 = vmatprep.subr.bf16.mxu0 0
    %625 = vmatpush1.bf16.xpose.msra.mxu0 0
    %626 = vmatprep.subr.bf16.mxu0 0
    %627 = vmatpush1.bf16.xpose.msra.mxu0 0
    %628 = vmatprep.subr.bf16.mxu0 0
    %629 = vmatpush1.bf16.xpose.msra.mxu0 %v612
    %630 = vmatprep.subr.bf16.mxu0 0
    %631 = vmatpush2.bf16.xpose.msra.mxu0 0
    %632 = vmatprep.subr.bf16.mxu0 0
    %633 = vmatpush2.bf16.xpose.msra.mxu0 0
    %634 = vmatprep.subr.bf16.mxu0 0
    %635 = vmatpush2.bf16.xpose.msra.mxu0 0
    %636 = vmatprep.subr.bf16.mxu0 0
    %637 = vmatpush2.bf16.xpose.msra.mxu0 0
    %638 = vmatprep.subr.bf16.mxu0 0
    %639 = vmatpush2.bf16.xpose.msra.mxu0 0
    %640 = vmatprep.subr.bf16.mxu0 0
    %641 = vmatpush2.bf16.xpose.msra.mxu0 0
    %642 = vmatprep.subr.bf16.mxu0 0
    %643 = vmatpush2.bf16.xpose.msra.mxu0 0
    %644 = vmatprep.subr.bf16.mxu0 0
    %645 = vmatpush2.bf16.xpose.msra.mxu0 0
    %646 = vmatprep.mubr.bf16.mxu0 0
    %647 = vmatmul.mubr.bf16.gmra.mxu0 %v609
    %v648 = vpop.f32.mrf.mxu0
    %v649 = vadd.f32 0.0, %v648
    %v650 = vpop.f32.mrf.mxu0
    %v651 = vpop.f32.mrf.mxu0
    %v652 = vadd.f32 0.0, %v651
    %v653 = vpop.f32.mrf.mxu0
    %654 = vdwg.mxu0
    %v656 = vsel %vm560, %v550, 0
    %v659 = vsel %vm560, %v554, 0
    %661 = vmatprep.subr.bf16.mxu0 0
    %662 = vmatpush1.bf16.xpose.msra.mxu0 0
    %663 = vmatprep.subr.bf16.mxu0 0
    %664 = vmatpush1.bf16.xpose.msra.mxu0 0
    %665 = vmatprep.subr.bf16.mxu0 0
    %666 = vmatpush1.bf16.xpose.msra.mxu0 0
    %667 = vmatprep.subr.bf16.mxu0 0
    %668 = vmatpush1.bf16.xpose.msra.mxu0 0
    %669 = vmatprep.subr.bf16.mxu0 0
    %670 = vmatpush1.bf16.xpose.msra.mxu0 0
    %671 = vmatprep.subr.bf16.mxu0 0
    %672 = vmatpush1.bf16.xpose.msra.mxu0 0
    %673 = vmatprep.subr.bf16.mxu0 0
    %674 = vmatpush1.bf16.xpose.msra.mxu0 0
    %675 = vmatprep.subr.bf16.mxu0 0
    %676 = vmatpush1.bf16.xpose.msra.mxu0 %v659
    %677 = vmatprep.subr.bf16.mxu0 0
    %678 = vmatpush2.bf16.xpose.msra.mxu0 0
    %679 = vmatprep.subr.bf16.mxu0 0
    %680 = vmatpush2.bf16.xpose.msra.mxu0 0
    %681 = vmatprep.subr.bf16.mxu0 0
    %682 = vmatpush2.bf16.xpose.msra.mxu0 0
    %683 = vmatprep.subr.bf16.mxu0 0
    %684 = vmatpush2.bf16.xpose.msra.mxu0 0
    %685 = vmatprep.subr.bf16.mxu0 0
    %686 = vmatpush2.bf16.xpose.msra.mxu0 0
    %687 = vmatprep.subr.bf16.mxu0 0
    %688 = vmatpush2.bf16.xpose.msra.mxu0 0
    %689 = vmatprep.subr.bf16.mxu0 0
    %690 = vmatpush2.bf16.xpose.msra.mxu0 0
    %691 = vmatprep.subr.bf16.mxu0 0
    %692 = vmatpush2.bf16.xpose.msra.mxu0 0
    %693 = vmatprep.mubr.bf16.mxu0 0
    %694 = vmatmul.mubr.bf16.gmra.mxu0 %v656
    %v695 = vpop.f32.mrf.mxu0
    %v696 = vadd.f32 0.0, %v695
    %v697 = vpop.f32.mrf.mxu0
    %v698 = vpop.f32.mrf.mxu0
    %v699 = vadd.f32 0.0, %v698
    %v700 = vpop.f32.mrf.mxu0
    %701 = vdwg.mxu0
    %v703 = vsel %vm560, %v551, 0
    %v706 = vsel %vm560, %v555, 0
    %708 = vmatprep.subr.bf16.mxu0 0
    %709 = vmatpush1.bf16.xpose.msra.mxu0 0
    %710 = vmatprep.subr.bf16.mxu0 0
    %711 = vmatpush1.bf16.xpose.msra.mxu0 0
    %712 = vmatprep.subr.bf16.mxu0 0
    %713 = vmatpush1.bf16.xpose.msra.mxu0 0
    %714 = vmatprep.subr.bf16.mxu0 0
    %715 = vmatpush1.bf16.xpose.msra.mxu0 0
    %716 = vmatprep.subr.bf16.mxu0 0
    %717 = vmatpush1.bf16.xpose.msra.mxu0 0
    %718 = vmatprep.subr.bf16.mxu0 0
    %719 = vmatpush1.bf16.xpose.msra.mxu0 0
    %720 = vmatprep.subr.bf16.mxu0 0
    %721 = vmatpush1.bf16.xpose.msra.mxu0 0
    %722 = vmatprep.subr.bf16.mxu0 0
    %723 = vmatpush1.bf16.xpose.msra.mxu0 %v706
    %724 = vmatprep.subr.bf16.mxu0 0
    %725 = vmatpush2.bf16.xpose.msra.mxu0 0
    %726 = vmatprep.subr.bf16.mxu0 0
    %727 = vmatpush2.bf16.xpose.msra.mxu0 0
    %728 = vmatprep.subr.bf16.mxu0 0
    %729 = vmatpush2.bf16.xpose.msra.mxu0 0
    %730 = vmatprep.subr.bf16.mxu0 0
    %731 = vmatpush2.bf16.xpose.msra.mxu0 0
    %732 = vmatprep.subr.bf16.mxu0 0
    %733 = vmatpush2.bf16.xpose.msra.mxu0 0
    %734 = vmatprep.subr.bf16.mxu0 0
    %735 = vmatpush2.bf16.xpose.msra.mxu0 0
    %736 = vmatprep.subr.bf16.mxu0 0
    %737 = vmatpush2.bf16.xpose.msra.mxu0 0
    %738 = vmatprep.subr.bf16.mxu0 0
    %739 = vmatpush2.bf16.xpose.msra.mxu0 0
    %740 = vmatprep.mubr.bf16.mxu0 0
    %741 = vmatmul.mubr.bf16.gmra.mxu0 %v703
    %v742 = vpop.f32.mrf.mxu0
    %v743 = vadd.f32 0.0, %v742
    %v744 = vpop.f32.mrf.mxu0
    %v745 = vpop.f32.mrf.mxu0
    %v746 = vadd.f32 0.0, %v745
    %v747 = vpop.f32.mrf.mxu0
    %748 = vdwg.mxu0
    %vm749 = vcmask 130048
    %v750 = vsel %vm749, %v602, -inf
    %751 = vmax.xlane.f32.xlu0 %v750
    %v752 = vpop.xlane.xlu0 %751
    %v753 = vsel %vm749, %v605, -inf
    %754 = vmax.xlane.f32.xlu0 %v753
    %v755 = vpop.xlane.xlu0 %754
    %v756 = vsel %vm749, %v649, -inf
    %757 = vmax.xlane.f32.xlu0 %v756
    %v758 = vpop.xlane.xlu0 %757
    %v759 = vsel %vm749, %v652, -inf
    %760 = vmax.xlane.f32.xlu0 %v759
    %v761 = vpop.xlane.xlu0 %760
    %v762 = vsel %vm749, %v696, -inf
    %763 = vmax.xlane.f32.xlu0 %v762
    %v764 = vpop.xlane.xlu0 %763
    %v765 = vsel %vm749, %v699, -inf
    %766 = vmax.xlane.f32.xlu0 %v765
    %v767 = vpop.xlane.xlu0 %766
    %v768 = vsel %vm749, %v743, -inf
    %769 = vmax.xlane.f32.xlu0 %v768
    %v770 = vpop.xlane.xlu0 %769
    %v771 = vsel %vm749, %v746, -inf
    %772 = vmax.xlane.f32.xlu0 %v771
    %v773 = vpop.xlane.xlu0 %772
    %v774 = vsub.f32 %v602, %v752
    %v775 = vsub.f32 %v605, %v755
    %v776 = vsub.f32 %v649, %v758
    %v777 = vsub.f32 %v652, %v761
    %v778 = vsub.f32 %v696, %v764
    %v779 = vsub.f32 %v699, %v767
    %v780 = vsub.f32 %v743, %v770
    %v781 = vsub.f32 %v746, %v773
    %v782 = vmul.f32 %v774, 1.442695
    %v783 = vpow.pop %v782
    %v784 = vmul.f32 %v775, 1.442695
    %v785 = vpow.pop %v784
    %v786 = vmul.f32 %v776, 1.442695
    %v787 = vpow.pop %v786
    %v788 = vmul.f32 %v777, 1.442695
    %v789 = vpow.pop %v788
    %v790 = vmul.f32 %v778, 1.442695
    %v791 = vpow.pop %v790
    %v792 = vmul.f32 %v779, 1.442695
    %v793 = vpow.pop %v792
    %v794 = vmul.f32 %v780, 1.442695
    %v795 = vpow.pop %v794
    %v796 = vmul.f32 %v781, 1.442695
    %v797 = vpow.pop %v796
    %v798 = vsel %vm749, %v783, 0.0
    %799 = vadd.xlane.f32.xlu0 %v798
    %v800 = vpop.xlane.xlu0 %799
    %v801 = vsel %vm749, %v785, 0.0
    %802 = vadd.xlane.f32.xlu0 %v801
    %v803 = vpop.xlane.xlu0 %802
    %v804 = vsel %vm749, %v787, 0.0
    %805 = vadd.xlane.f32.xlu0 %v804
    %v806 = vpop.xlane.xlu0 %805
    %v807 = vsel %vm749, %v789, 0.0
    %808 = vadd.xlane.f32.xlu0 %v807
    %v809 = vpop.xlane.xlu0 %808
    %v810 = vsel %vm749, %v791, 0.0
    %811 = vadd.xlane.f32.xlu0 %v810
    %v812 = vpop.xlane.xlu0 %811
    %v813 = vsel %vm749, %v793, 0.0
    %814 = vadd.xlane.f32.xlu0 %v813
    %v815 = vpop.xlane.xlu0 %814
    %v816 = vsel %vm749, %v795, 0.0
    %817 = vadd.xlane.f32.xlu0 %v816
    %v818 = vpop.xlane.xlu0 %817
    %v819 = vsel %vm749, %v797, 0.0
    %820 = vadd.xlane.f32.xlu0 %v819
    %v821 = vpop.xlane.xlu0 %820
    %v822 = vpack.c.bf16 %v785, %v783
    %v823 = vpack.c.bf16 %v789, %v787
    %v824 = vpack.c.bf16 %v793, %v791
    %v825 = vpack.c.bf16 %v797, %v795
    %v827 = vsel %vm749, %v822, 0
    %829 = vmatprep.subr.bf16.mxu0 0
    %830 = vmatpush1.bf16.msra.mxu0 0
    %831 = vmatprep.subr.bf16.mxu0 0
    %832 = vmatpush1.bf16.msra.mxu0 0
    %833 = vmatprep.subr.bf16.mxu0 0
    %834 = vmatpush1.bf16.msra.mxu0 0
    %835 = vmatprep.subr.bf16.mxu0 0
    %836 = vmatpush1.bf16.msra.mxu0 0
    %837 = vmatprep.subr.bf16.mxu0 0
    %838 = vmatpush1.bf16.msra.mxu0 0
    %839 = vmatprep.subr.bf16.mxu0 0
    %840 = vmatpush1.bf16.msra.mxu0 0
    %841 = vmatprep.subr.bf16.mxu0 0
    %842 = vmatpush1.bf16.msra.mxu0 0
    %843 = vmatprep.subr.bf16.mxu0 0
    %844 = vmatpush1.bf16.msra.mxu0 %v556
    %845 = vmatprep.subr.bf16.mxu0 0
    %846 = vmatpush2.bf16.msra.mxu0 0
    %847 = vmatprep.subr.bf16.mxu0 0
    %848 = vmatpush2.bf16.msra.mxu0 0
    %849 = vmatprep.subr.bf16.mxu0 0
    %850 = vmatpush2.bf16.msra.mxu0 0
    %851 = vmatprep.subr.bf16.mxu0 0
    %852 = vmatpush2.bf16.msra.mxu0 0
    %853 = vmatprep.subr.bf16.mxu0 0
    %854 = vmatpush2.bf16.msra.mxu0 0
    %855 = vmatprep.subr.bf16.mxu0 0
    %856 = vmatpush2.bf16.msra.mxu0 0
    %857 = vmatprep.subr.bf16.mxu0 0
    %858 = vmatpush2.bf16.msra.mxu0 0
    %859 = vmatprep.subr.bf16.mxu0 0
    %860 = vmatpush2.bf16.msra.mxu0 0
    %861 = vmatprep.mubr.bf16.mxu0 0
    %862 = vmatmul.mubr.bf16.gmra.mxu0 %v827
    %v863 = vpop.f32.mrf.mxu0
    %v864 = vadd.f32 0.0, %v863
    %v865 = vpop.f32.mrf.mxu0
    %v866 = vpop.f32.mrf.mxu0
    %v867 = vadd.f32 0.0, %v866
    %v868 = vpop.f32.mrf.mxu0
    %869 = vdwg.mxu0
    %v871 = vsel %vm749, %v823, 0
    %873 = vmatprep.subr.bf16.mxu0 0
    %874 = vmatpush1.bf16.msra.mxu0 0
    %875 = vmatprep.subr.bf16.mxu0 0
    %876 = vmatpush1.bf16.msra.mxu0 0
    %877 = vmatprep.subr.bf16.mxu0 0
    %878 = vmatpush1.bf16.msra.mxu0 0
    %879 = vmatprep.subr.bf16.mxu0 0
    %880 = vmatpush1.bf16.msra.mxu0 0
    %881 = vmatprep.subr.bf16.mxu0 0
    %882 = vmatpush1.bf16.msra.mxu0 0
    %883 = vmatprep.subr.bf16.mxu0 0
    %884 = vmatpush1.bf16.msra.mxu0 0
    %885 = vmatprep.subr.bf16.mxu0 0
    %886 = vmatpush1.bf16.msra.mxu0 0
    %887 = vmatprep.subr.bf16.mxu0 0
    %888 = vmatpush1.bf16.msra.mxu0 %v557
    %889 = vmatprep.subr.bf16.mxu0 0
    %890 = vmatpush2.bf16.msra.mxu0 0
    %891 = vmatprep.subr.bf16.mxu0 0
    %892 = vmatpush2.bf16.msra.mxu0 0
    %893 = vmatprep.subr.bf16.mxu0 0
    %894 = vmatpush2.bf16.msra.mxu0 0
    %895 = vmatprep.subr.bf16.mxu0 0
    %896 = vmatpush2.bf16.msra.mxu0 0
    %897 = vmatprep.subr.bf16.mxu0 0
    %898 = vmatpush2.bf16.msra.mxu0 0
    %899 = vmatprep.subr.bf16.mxu0 0
    %900 = vmatpush2.bf16.msra.mxu0 0
    %901 = vmatprep.subr.bf16.mxu0 0
    %902 = vmatpush2.bf16.msra.mxu0 0
    %903 = vmatprep.subr.bf16.mxu0 0
    %904 = vmatpush2.bf16.msra.mxu0 0
    %905 = vmatprep.mubr.bf16.mxu0 0
    %906 = vmatmul.mubr.bf16.gmra.mxu0 %v871
    %v907 = vpop.f32.mrf.mxu0
    %v908 = vadd.f32 0.0, %v907
    %v909 = vpop.f32.mrf.mxu0
    %v910 = vpop.f32.mrf.mxu0
    %v911 = vadd.f32 0.0, %v910
    %v912 = vpop.f32.mrf.mxu0
    %913 = vdwg.mxu0
    %v915 = vsel %vm749, %v824, 0
    %917 = vmatprep.subr.bf16.mxu0 0
    %918 = vmatpush1.bf16.msra.mxu0 0
    %919 = vmatprep.subr.bf16.mxu0 0
    %920 = vmatpush1.bf16.msra.mxu0 0
    %921 = vmatprep.subr.bf16.mxu0 0
    %922 = vmatpush1.bf16.msra.mxu0 0
    %923 = vmatprep.subr.bf16.mxu0 0
    %924 = vmatpush1.bf16.msra.mxu0 0
    %925 = vmatprep.subr.bf16.mxu0 0
    %926 = vmatpush1.bf16.msra.mxu0 0
    %927 = vmatprep.subr.bf16.mxu0 0
    %928 = vmatpush1.bf16.msra.mxu0 0
    %929 = vmatprep.subr.bf16.mxu0 0
    %930 = vmatpush1.bf16.msra.mxu0 0
    %931 = vmatprep.subr.bf16.mxu0 0
    %932 = vmatpush1.bf16.msra.mxu0 %v558
    %933 = vmatprep.subr.bf16.mxu0 0
    %934 = vmatpush2.bf16.msra.mxu0 0
    %935 = vmatprep.subr.bf16.mxu0 0
    %936 = vmatpush2.bf16.msra.mxu0 0
    %937 = vmatprep.subr.bf16.mxu0 0
    %938 = vmatpush2.bf16.msra.mxu0 0
    %939 = vmatprep.subr.bf16.mxu0 0
    %940 = vmatpush2.bf16.msra.mxu0 0
    %941 = vmatprep.subr.bf16.mxu0 0
    %942 = vmatpush2.bf16.msra.mxu0 0
    %943 = vmatprep.subr.bf16.mxu0 0
    %944 = vmatpush2.bf16.msra.mxu0 0
    %945 = vmatprep.subr.bf16.mxu0 0
    %946 = vmatpush2.bf16.msra.mxu0 0
    %947 = vmatprep.subr.bf16.mxu0 0
    %948 = vmatpush2.bf16.msra.mxu0 0
    %949 = vmatprep.mubr.bf16.mxu0 0
    %950 = vmatmul.mubr.bf16.gmra.mxu0 %v915
    %v951 = vpop.f32.mrf.mxu0
    %v952 = vadd.f32 0.0, %v951
    %v953 = vpop.f32.mrf.mxu0
    %v954 = vpop.f32.mrf.mxu0
    %v955 = vadd.f32 0.0, %v954
    %v956 = vpop.f32.mrf.mxu0
    %957 = vdwg.mxu0
    %v959 = vsel %vm749, %v825, 0
    %961 = vmatprep.subr.bf16.mxu0 0
    %962 = vmatpush1.bf16.msra.mxu0 0
    %963 = vmatprep.subr.bf16.mxu0 0
    %964 = vmatpush1.bf16.msra.mxu0 0
    %965 = vmatprep.subr.bf16.mxu0 0
    %966 = vmatpush1.bf16.msra.mxu0 0
    %967 = vmatprep.subr.bf16.mxu0 0
    %968 = vmatpush1.bf16.msra.mxu0 0
    %969 = vmatprep.subr.bf16.mxu0 0
    %970 = vmatpush1.bf16.msra.mxu0 0
    %971 = vmatprep.subr.bf16.mxu0 0
    %972 = vmatpush1.bf16.msra.mxu0 0
    %973 = vmatprep.subr.bf16.mxu0 0
    %974 = vmatpush1.bf16.msra.mxu0 0
    %975 = vmatprep.subr.bf16.mxu0 0
    %976 = vmatpush1.bf16.msra.mxu0 %v559
    %977 = vmatprep.subr.bf16.mxu0 0
    %978 = vmatpush2.bf16.msra.mxu0 0
    %979 = vmatprep.subr.bf16.mxu0 0
    %980 = vmatpush2.bf16.msra.mxu0 0
    %981 = vmatprep.subr.bf16.mxu0 0
    %982 = vmatpush2.bf16.msra.mxu0 0
    %983 = vmatprep.subr.bf16.mxu0 0
    %984 = vmatpush2.bf16.msra.mxu0 0
    %985 = vmatprep.subr.bf16.mxu0 0
    %986 = vmatpush2.bf16.msra.mxu0 0
    %987 = vmatprep.subr.bf16.mxu0 0
    %988 = vmatpush2.bf16.msra.mxu0 0
    %989 = vmatprep.subr.bf16.mxu0 0
    %990 = vmatpush2.bf16.msra.mxu0 0
    %991 = vmatprep.subr.bf16.mxu0 0
    %992 = vmatpush2.bf16.msra.mxu0 0
    %993 = vmatprep.mubr.bf16.mxu0 0
    %994 = vmatmul.mubr.bf16.gmra.mxu0 %v959
    %v995 = vpop.f32.mrf.mxu0
    %v996 = vadd.f32 0.0, %v995
    %v997 = vpop.f32.mrf.mxu0
    %v998 = vpop.f32.mrf.mxu0
    %v999 = vadd.f32 0.0, %v998
    %v1000 = vpop.f32.mrf.mxu0
    %1001 = vdwg.mxu0
    %v1002 = vrcp.pop %v800
    %v1003 = vrcp.pop %v803
    %v1004 = vrcp.pop %v806
    %v1005 = vrcp.pop %v809
    %v1006 = vrcp.pop %v812
    %v1007 = vrcp.pop %v815
    %v1008 = vrcp.pop %v818
    %v1009 = vrcp.pop %v821
    %v1010 = vmul.f32 %v864, %v1002
    %v1011 = vmul.f32 %v867, %v1003
    %v1012 = vmul.f32 %v908, %v1004
    %v1013 = vmul.f32 %v911, %v1005
    %v1014 = vmul.f32 %v952, %v1006
    %v1015 = vmul.f32 %v955, %v1007
    %v1016 = vmul.f32 %v996, %v1008
    %v1017 = vmul.f32 %v999, %v1009
    %1019 = vrot.lane.b32.xlu0 %v548, 96
    %v1020 = vpop.permute.xlu0 %1019
    %1022 = vrot.lane.b32.xlu0 %v552, 96
    %v1023 = vpop.permute.xlu0 %1022
    %v1025 = vsel %vm560, %v1020, 0
    %v1028 = vsel %vm560, %v1023, 0
    %1030 = vmatprep.subr.bf16.mxu0 0
    %1031 = vmatpush1.bf16.xpose.msra.mxu0 0
    %1032 = vmatprep.subr.bf16.mxu0 0
    %1033 = vmatpush1.bf16.xpose.msra.mxu0 0
    %1034 = vmatprep.subr.bf16.mxu0 0
    %1035 = vmatpush1.bf16.xpose.msra.mxu0 0
    %1036 = vmatprep.subr.bf16.mxu0 0
    %1037 = vmatpush1.bf16.xpose.msra.mxu0 0
    %1038 = vmatprep.subr.bf16.mxu0 0
    %1039 = vmatpush1.bf16.xpose.msra.mxu0 0
    %1040 = vmatprep.subr.bf16.mxu0 0
    %1041 = vmatpush1.bf16.xpose.msra.mxu0 0
    %1042 = vmatprep.subr.bf16.mxu0 0
    %1043 = vmatpush1.bf16.xpose.msra.mxu0 0
    %1044 = vmatprep.subr.bf16.mxu0 0
    %1045 = vmatpush1.bf16.xpose.msra.mxu0 %v1028
    %1046 = vmatprep.subr.bf16.mxu0 0
    %1047 = vmatpush2.bf16.xpose.msra.mxu0 0
    %1048 = vmatprep.subr.bf16.mxu0 0
    %1049 = vmatpush2.bf16.xpose.msra.mxu0 0
    %1050 = vmatprep.subr.bf16.mxu0 0
    %1051 = vmatpush2.bf16.xpose.msra.mxu0 0
    %1052 = vmatprep.subr.bf16.mxu0 0
    %1053 = vmatpush2.bf16.xpose.msra.mxu0 0
    %1054 = vmatprep.subr.bf16.mxu0 0
    %1055 = vmatpush2.bf16.xpose.msra.mxu0 0
    %1056 = vmatprep.subr.bf16.mxu0 0
    %1057 = vmatpush2.bf16.xpose.msra.mxu0 0
    %1058 = vmatprep.subr.bf16.mxu0 0
    %1059 = vmatpush2.bf16.xpose.msra.mxu0 0
    %1060 = vmatprep.subr.bf16.mxu0 0
    %1061 = vmatpush2.bf16.xpose.msra.mxu0 0
    %1062 = vmatprep.mubr.bf16.mxu0 0
    %1063 = vmatmul.mubr.bf16.gmra.mxu0 %v1025
    %v1064 = vpop.f32.mrf.mxu0
    %v1065 = vadd.f32 0.0, %v1064
    %v1066 = vpop.f32.mrf.mxu0
    %v1067 = vpop.f32.mrf.mxu0
    %v1068 = vadd.f32 0.0, %v1067
    %v1069 = vpop.f32.mrf.mxu0
    %1070 = vdwg.mxu0
    %1072 = vrot.lane.b32.xlu0 %v549, 96
    %v1073 = vpop.permute.xlu0 %1072
    %1075 = vrot.lane.b32.xlu0 %v553, 96
    %v1076 = vpop.permute.xlu0 %1075
    %v1078 = vsel %vm560, %v1073, 0
    %v1081 = vsel %vm560, %v1076, 0
    %1083 = vmatprep.subr.bf16.mxu0 0
    %1084 = vmatpush1.bf16.xpose.msra.mxu0 0
    %1085 = vmatprep.subr.bf16.mxu0 0
    %1086 = vmatpush1.bf16.xpose.msra.mxu0 0
    %1087 = vmatprep.subr.bf16.mxu0 0
    %1088 = vmatpush1.bf16.xpose.msra.mxu0 0
    %1089 = vmatprep.subr.bf16.mxu0 0
    %1090 = vmatpush1.bf16.xpose.msra.mxu0 0
    %1091 = vmatprep.subr.bf16.mxu0 0
    %1092 = vmatpush1.bf16.xpose.msra.mxu0 0
    %1093 = vmatprep.subr.bf16.mxu0 0
    %1094 = vmatpush1.bf16.xpose.msra.mxu0 0
    %1095 = vmatprep.subr.bf16.mxu0 0
    %1096 = vmatpush1.bf16.xpose.msra.mxu0 0
    %1097 = vmatprep.subr.bf16.mxu0 0
    %1098 = vmatpush1.bf16.xpose.msra.mxu0 %v1081
    %1099 = vmatprep.subr.bf16.mxu0 0
    %1100 = vmatpush2.bf16.xpose.msra.mxu0 0
    %1101 = vmatprep.subr.bf16.mxu0 0
    %1102 = vmatpush2.bf16.xpose.msra.mxu0 0
    %1103 = vmatprep.subr.bf16.mxu0 0
    %1104 = vmatpush2.bf16.xpose.msra.mxu0 0
    %1105 = vmatprep.subr.bf16.mxu0 0
    %1106 = vmatpush2.bf16.xpose.msra.mxu0 0
    %1107 = vmatprep.subr.bf16.mxu0 0
    %1108 = vmatpush2.bf16.xpose.msra.mxu0 0
    %1109 = vmatprep.subr.bf16.mxu0 0
    %1110 = vmatpush2.bf16.xpose.msra.mxu0 0
    %1111 = vmatprep.subr.bf16.mxu0 0
    %1112 = vmatpush2.bf16.xpose.msra.mxu0 0
    %1113 = vmatprep.subr.bf16.mxu0 0
    %1114 = vmatpush2.bf16.xpose.msra.mxu0 0
    %1115 = vmatprep.mubr.bf16.mxu0 0
    %1116 = vmatmul.mubr.bf16.gmra.mxu0 %v1078
    %v1117 = vpop.f32.mrf.mxu0
    %v1118 = vadd.f32 0.0, %v1117
    %v1119 = vpop.f32.mrf.mxu0
    %v1120 = vpop.f32.mrf.mxu0
    %v1121 = vadd.f32 0.0, %v1120
    %v1122 = vpop.f32.mrf.mxu0
    %1123 = vdwg.mxu0
    %1125 = vrot.lane.b32.xlu0 %v550, 96
    %v1126 = vpop.permute.xlu0 %1125
    %1128 = vrot.lane.b32.xlu0 %v554, 96
    %v1129 = vpop.permute.xlu0 %1128
    %v1131 = vsel %vm560, %v1126, 0
    %v1134 = vsel %vm560, %v1129, 0
    %1136 = vmatprep.subr.bf16.mxu0 0
    %1137 = vmatpush1.bf16.xpose.msra.mxu0 0
    %1138 = vmatprep.subr.bf16.mxu0 0
    %1139 = vmatpush1.bf16.xpose.msra.mxu0 0
    %1140 = vmatprep.subr.bf16.mxu0 0
    %1141 = vmatpush1.bf16.xpose.msra.mxu0 0
    %1142 = vmatprep.subr.bf16.mxu0 0
    %1143 = vmatpush1.bf16.xpose.msra.mxu0 0
    %1144 = vmatprep.subr.bf16.mxu0 0
    %1145 = vmatpush1.bf16.xpose.msra.mxu0 0
    %1146 = vmatprep.subr.bf16.mxu0 0
    %1147 = vmatpush1.bf16.xpose.msra.mxu0 0
    %1148 = vmatprep.subr.bf16.mxu0 0
    %1149 = vmatpush1.bf16.xpose.msra.mxu0 0
    %1150 = vmatprep.subr.bf16.mxu0 0
    %1151 = vmatpush1.bf16.xpose.msra.mxu0 %v1134
    %1152 = vmatprep.subr.bf16.mxu0 0
    %1153 = vmatpush2.bf16.xpose.msra.mxu0 0
    %1154 = vmatprep.subr.bf16.mxu0 0
    %1155 = vmatpush2.bf16.xpose.msra.mxu0 0
    %1156 = vmatprep.subr.bf16.mxu0 0
    %1157 = vmatpush2.bf16.xpose.msra.mxu0 0
    %1158 = vmatprep.subr.bf16.mxu0 0
    %1159 = vmatpush2.bf16.xpose.msra.mxu0 0
    %1160 = vmatprep.subr.bf16.mxu0 0
    %1161 = vmatpush2.bf16.xpose.msra.mxu0 0
    %1162 = vmatprep.subr.bf16.mxu0 0
    %1163 = vmatpush2.bf16.xpose.msra.mxu0 0
    %1164 = vmatprep.subr.bf16.mxu0 0
    %1165 = vmatpush2.bf16.xpose.msra.mxu0 0
    %1166 = vmatprep.subr.bf16.mxu0 0
    %1167 = vmatpush2.bf16.xpose.msra.mxu0 0
    %1168 = vmatprep.mubr.bf16.mxu0 0
    %1169 = vmatmul.mubr.bf16.gmra.mxu0 %v1131
    %v1170 = vpop.f32.mrf.mxu0
    %v1171 = vadd.f32 0.0, %v1170
    %v1172 = vpop.f32.mrf.mxu0
    %v1173 = vpop.f32.mrf.mxu0
    %v1174 = vadd.f32 0.0, %v1173
    %v1175 = vpop.f32.mrf.mxu0
    %1176 = vdwg.mxu0
    %1178 = vrot.lane.b32.xlu0 %v551, 96
    %v1179 = vpop.permute.xlu0 %1178
    %1181 = vrot.lane.b32.xlu0 %v555, 96
    %v1182 = vpop.permute.xlu0 %1181
    %v1184 = vsel %vm560, %v1179, 0
    %v1187 = vsel %vm560, %v1182, 0
    %1189 = vmatprep.subr.bf16.mxu0 0
    %1190 = vmatpush1.bf16.xpose.msra.mxu0 0
    %1191 = vmatprep.subr.bf16.mxu0 0
    %1192 = vmatpush1.bf16.xpose.msra.mxu0 0
    %1193 = vmatprep.subr.bf16.mxu0 0
    %1194 = vmatpush1.bf16.xpose.msra.mxu0 0
    %1195 = vmatprep.subr.bf16.mxu0 0
    %1196 = vmatpush1.bf16.xpose.msra.mxu0 0
    %1197 = vmatprep.subr.bf16.mxu0 0
    %1198 = vmatpush1.bf16.xpose.msra.mxu0 0
    %1199 = vmatprep.subr.bf16.mxu0 0
    %1200 = vmatpush1.bf16.xpose.msra.mxu0 0
    %1201 = vmatprep.subr.bf16.mxu0 0
    %1202 = vmatpush1.bf16.xpose.msra.mxu0 0
    %1203 = vmatprep.subr.bf16.mxu0 0
    %1204 = vmatpush1.bf16.xpose.msra.mxu0 %v1187
    %1205 = vmatprep.subr.bf16.mxu0 0
    %1206 = vmatpush2.bf16.xpose.msra.mxu0 0
    %1207 = vmatprep.subr.bf16.mxu0 0
    %1208 = vmatpush2.bf16.xpose.msra.mxu0 0
    %1209 = vmatprep.subr.bf16.mxu0 0
    %1210 = vmatpush2.bf16.xpose.msra.mxu0 0
    %1211 = vmatprep.subr.bf16.mxu0 0
    %1212 = vmatpush2.bf16.xpose.msra.mxu0 0
    %1213 = vmatprep.subr.bf16.mxu0 0
    %1214 = vmatpush2.bf16.xpose.msra.mxu0 0
    %1215 = vmatprep.subr.bf16.mxu0 0
    %1216 = vmatpush2.bf16.xpose.msra.mxu0 0
    %1217 = vmatprep.subr.bf16.mxu0 0
    %1218 = vmatpush2.bf16.xpose.msra.mxu0 0
    %1219 = vmatprep.subr.bf16.mxu0 0
    %1220 = vmatpush2.bf16.xpose.msra.mxu0 0
    %1221 = vmatprep.mubr.bf16.mxu0 0
    %1222 = vmatmul.mubr.bf16.gmra.mxu0 %v1184
    %v1223 = vpop.f32.mrf.mxu0
    %v1224 = vadd.f32 0.0, %v1223
    %v1225 = vpop.f32.mrf.mxu0
    %v1226 = vpop.f32.mrf.mxu0
    %v1227 = vadd.f32 0.0, %v1226
    %v1228 = vpop.f32.mrf.mxu0
    %1229 = vdwg.mxu0
    %v1230 = vsel %vm749, %v1065, -inf
    %1231 = vmax.xlane.f32.xlu0 %v1230
    %v1232 = vpop.xlane.xlu0 %1231
    %v1233 = vsel %vm749, %v1068, -inf
    %1234 = vmax.xlane.f32.xlu0 %v1233
    %v1235 = vpop.xlane.xlu0 %1234
    %v1236 = vsel %vm749, %v1118, -inf
    %1237 = vmax.xlane.f32.xlu0 %v1236
    %v1238 = vpop.xlane.xlu0 %1237
    %v1239 = vsel %vm749, %v1121, -inf
    %1240 = vmax.xlane.f32.xlu0 %v1239
    %v1241 = vpop.xlane.xlu0 %1240
    %v1242 = vsel %vm749, %v1171, -inf
    %1243 = vmax.xlane.f32.xlu0 %v1242
    %v1244 = vpop.xlane.xlu0 %1243
    %v1245 = vsel %vm749, %v1174, -inf
    %1246 = vmax.xlane.f32.xlu0 %v1245
    %v1247 = vpop.xlane.xlu0 %1246
    %v1248 = vsel %vm749, %v1224, -inf
    %1249 = vmax.xlane.f32.xlu0 %v1248
    %v1250 = vpop.xlane.xlu0 %1249
    %v1251 = vsel %vm749, %v1227, -inf
    %1252 = vmax.xlane.f32.xlu0 %v1251
    %v1253 = vpop.xlane.xlu0 %1252
    %v1254 = vsub.f32 %v1065, %v1232
    %v1255 = vsub.f32 %v1068, %v1235
    %v1256 = vsub.f32 %v1118, %v1238
    %v1257 = vsub.f32 %v1121, %v1241
    %v1258 = vsub.f32 %v1171, %v1244
    %v1259 = vsub.f32 %v1174, %v1247
    %v1260 = vsub.f32 %v1224, %v1250
    %v1261 = vsub.f32 %v1227, %v1253
    %v1262 = vmul.f32 %v1254, 1.442695
    %v1263 = vpow.pop %v1262
    %v1264 = vmul.f32 %v1255, 1.442695
    %v1265 = vpow.pop %v1264
    %v1266 = vmul.f32 %v1256, 1.442695
    %v1267 = vpow.pop %v1266
    %v1268 = vmul.f32 %v1257, 1.442695
    %v1269 = vpow.pop %v1268
    %v1270 = vmul.f32 %v1258, 1.442695
    %v1271 = vpow.pop %v1270
    %v1272 = vmul.f32 %v1259, 1.442695
    %v1273 = vpow.pop %v1272
    %v1274 = vmul.f32 %v1260, 1.442695
    %v1275 = vpow.pop %v1274
    %v1276 = vmul.f32 %v1261, 1.442695
    %v1277 = vpow.pop %v1276
    %v1278 = vsel %vm749, %v1263, 0.0
    %1279 = vadd.xlane.f32.xlu0 %v1278
    %v1280 = vpop.xlane.xlu0 %1279
    %v1281 = vsel %vm749, %v1265, 0.0
    %1282 = vadd.xlane.f32.xlu0 %v1281
    %v1283 = vpop.xlane.xlu0 %1282
    %v1284 = vsel %vm749, %v1267, 0.0
    %1285 = vadd.xlane.f32.xlu0 %v1284
    %v1286 = vpop.xlane.xlu0 %1285
    %v1287 = vsel %vm749, %v1269, 0.0
    %1288 = vadd.xlane.f32.xlu0 %v1287
    %v1289 = vpop.xlane.xlu0 %1288
    %v1290 = vsel %vm749, %v1271, 0.0
    %1291 = vadd.xlane.f32.xlu0 %v1290
    %v1292 = vpop.xlane.xlu0 %1291
    %v1293 = vsel %vm749, %v1273, 0.0
    %1294 = vadd.xlane.f32.xlu0 %v1293
    %v1295 = vpop.xlane.xlu0 %1294
    %v1296 = vsel %vm749, %v1275, 0.0
    %1297 = vadd.xlane.f32.xlu0 %v1296
    %v1298 = vpop.xlane.xlu0 %1297
    %v1299 = vsel %vm749, %v1277, 0.0
    %1300 = vadd.xlane.f32.xlu0 %v1299
    %v1301 = vpop.xlane.xlu0 %1300
    %v1302 = vpack.c.bf16 %v1265, %v1263
    %v1303 = vpack.c.bf16 %v1269, %v1267
    %v1304 = vpack.c.bf16 %v1273, %v1271
    %v1305 = vpack.c.bf16 %v1277, %v1275
    %1307 = vrot.lane.b32.xlu0 %v556, 96
    %v1308 = vpop.permute.xlu0 %1307
    %v1311 = vsel %vm749, %v1302, 0
    %1313 = vmatprep.subr.bf16.mxu0 0
    %1314 = vmatpush1.bf16.msra.mxu0 0
    %1315 = vmatprep.subr.bf16.mxu0 0
    %1316 = vmatpush1.bf16.msra.mxu0 0
    %1317 = vmatprep.subr.bf16.mxu0 0
    %1318 = vmatpush1.bf16.msra.mxu0 0
    %1319 = vmatprep.subr.bf16.mxu0 0
    %1320 = vmatpush1.bf16.msra.mxu0 0
    %1321 = vmatprep.subr.bf16.mxu0 0
    %1322 = vmatpush1.bf16.msra.mxu0 0
    %1323 = vmatprep.subr.bf16.mxu0 0
    %1324 = vmatpush1.bf16.msra.mxu0 0
    %1325 = vmatprep.subr.bf16.mxu0 0
    %1326 = vmatpush1.bf16.msra.mxu0 0
    %1327 = vmatprep.subr.bf16.mxu0 0
    %1328 = vmatpush1.bf16.msra.mxu0 %v1308
    %1329 = vmatprep.subr.bf16.mxu0 0
    %1330 = vmatpush2.bf16.msra.mxu0 0
    %1331 = vmatprep.subr.bf16.mxu0 0
    %1332 = vmatpush2.bf16.msra.mxu0 0
    %1333 = vmatprep.subr.bf16.mxu0 0
    %1334 = vmatpush2.bf16.msra.mxu0 0
    %1335 = vmatprep.subr.bf16.mxu0 0
    %1336 = vmatpush2.bf16.msra.mxu0 0
    %1337 = vmatprep.subr.bf16.mxu0 0
    %1338 = vmatpush2.bf16.msra.mxu0 0
    %1339 = vmatprep.subr.bf16.mxu0 0
    %1340 = vmatpush2.bf16.msra.mxu0 0
    %1341 = vmatprep.subr.bf16.mxu0 0
    %1342 = vmatpush2.bf16.msra.mxu0 0
    %1343 = vmatprep.subr.bf16.mxu0 0
    %1344 = vmatpush2.bf16.msra.mxu0 0
    %1345 = vmatprep.mubr.bf16.mxu0 0
    %1346 = vmatmul.mubr.bf16.gmra.mxu0 %v1311
    %v1347 = vpop.f32.mrf.mxu0
    %v1348 = vadd.f32 0.0, %v1347
    %v1349 = vpop.f32.mrf.mxu0
    %v1350 = vpop.f32.mrf.mxu0
    %v1351 = vadd.f32 0.0, %v1350
    %v1352 = vpop.f32.mrf.mxu0
    %1353 = vdwg.mxu0
    %1355 = vrot.lane.b32.xlu0 %v557, 96
    %v1356 = vpop.permute.xlu0 %1355
    %v1359 = vsel %vm749, %v1303, 0
    %1361 = vmatprep.subr.bf16.mxu0 0
    %1362 = vmatpush1.bf16.msra.mxu0 0
    %1363 = vmatprep.subr.bf16.mxu0 0
    %1364 = vmatpush1.bf16.msra.mxu0 0
    %1365 = vmatprep.subr.bf16.mxu0 0
    %1366 = vmatpush1.bf16.msra.mxu0 0
    %1367 = vmatprep.subr.bf16.mxu0 0
    %1368 = vmatpush1.bf16.msra.mxu0 0
    %1369 = vmatprep.subr.bf16.mxu0 0
    %1370 = vmatpush1.bf16.msra.mxu0 0
    %1371 = vmatprep.subr.bf16.mxu0 0
    %1372 = vmatpush1.bf16.msra.mxu0 0
    %1373 = vmatprep.subr.bf16.mxu0 0
    %1374 = vmatpush1.bf16.msra.mxu0 0
    %1375 = vmatprep.subr.bf16.mxu0 0
    %1376 = vmatpush1.bf16.msra.mxu0 %v1356
    %1377 = vmatprep.subr.bf16.mxu0 0
    %1378 = vmatpush2.bf16.msra.mxu0 0
    %1379 = vmatprep.subr.bf16.mxu0 0
    %1380 = vmatpush2.bf16.msra.mxu0 0
    %1381 = vmatprep.subr.bf16.mxu0 0
    %1382 = vmatpush2.bf16.msra.mxu0 0
    %1383 = vmatprep.subr.bf16.mxu0 0
    %1384 = vmatpush2.bf16.msra.mxu0 0
    %1385 = vmatprep.subr.bf16.mxu0 0
    %1386 = vmatpush2.bf16.msra.mxu0 0
    %1387 = vmatprep.subr.bf16.mxu0 0
    %1388 = vmatpush2.bf16.msra.mxu0 0
    %1389 = vmatprep.subr.bf16.mxu0 0
    %1390 = vmatpush2.bf16.msra.mxu0 0
    %1391 = vmatprep.subr.bf16.mxu0 0
    %1392 = vmatpush2.bf16.msra.mxu0 0
    %1393 = vmatprep.mubr.bf16.mxu0 0
    %1394 = vmatmul.mubr.bf16.gmra.mxu0 %v1359
    %v1395 = vpop.f32.mrf.mxu0
    %v1396 = vadd.f32 0.0, %v1395
    %v1397 = vpop.f32.mrf.mxu0
    %v1398 = vpop.f32.mrf.mxu0
    %v1399 = vadd.f32 0.0, %v1398
    %v1400 = vpop.f32.mrf.mxu0
    %1401 = vdwg.mxu0
    %1403 = vrot.lane.b32.xlu0 %v558, 96
    %v1404 = vpop.permute.xlu0 %1403
    %v1407 = vsel %vm749, %v1304, 0
    %1409 = vmatprep.subr.bf16.mxu0 0
    %1410 = vmatpush1.bf16.msra.mxu0 0
    %1411 = vmatprep.subr.bf16.mxu0 0
    %1412 = vmatpush1.bf16.msra.mxu0 0
    %1413 = vmatprep.subr.bf16.mxu0 0
    %1414 = vmatpush1.bf16.msra.mxu0 0
    %1415 = vmatprep.subr.bf16.mxu0 0
    %1416 = vmatpush1.bf16.msra.mxu0 0
    %1417 = vmatprep.subr.bf16.mxu0 0
    %1418 = vmatpush1.bf16.msra.mxu0 0
    %1419 = vmatprep.subr.bf16.mxu0 0
    %1420 = vmatpush1.bf16.msra.mxu0 0
    %1421 = vmatprep.subr.bf16.mxu0 0
    %1422 = vmatpush1.bf16.msra.mxu0 0
    %1423 = vmatprep.subr.bf16.mxu0 0
    %1424 = vmatpush1.bf16.msra.mxu0 %v1404
    %1425 = vmatprep.subr.bf16.mxu0 0
    %1426 = vmatpush2.bf16.msra.mxu0 0
    %1427 = vmatprep.subr.bf16.mxu0 0
    %1428 = vmatpush2.bf16.msra.mxu0 0
    %1429 = vmatprep.subr.bf16.mxu0 0
    %1430 = vmatpush2.bf16.msra.mxu0 0
    %1431 = vmatprep.subr.bf16.mxu0 0
    %1432 = vmatpush2.bf16.msra.mxu0 0
    %1433 = vmatprep.subr.bf16.mxu0 0
    %1434 = vmatpush2.bf16.msra.mxu0 0
    %1435 = vmatprep.subr.bf16.mxu0 0
    %1436 = vmatpush2.bf16.msra.mxu0 0
    %1437 = vmatprep.subr.bf16.mxu0 0
    %1438 = vmatpush2.bf16.msra.mxu0 0
    %1439 = vmatprep.subr.bf16.mxu0 0
    %1440 = vmatpush2.bf16.msra.mxu0 0
    %1441 = vmatprep.mubr.bf16.mxu0 0
    %1442 = vmatmul.mubr.bf16.gmra.mxu0 %v1407
    %v1443 = vpop.f32.mrf.mxu0
    %v1444 = vadd.f32 0.0, %v1443
    %v1445 = vpop.f32.mrf.mxu0
    %v1446 = vpop.f32.mrf.mxu0
    %v1447 = vadd.f32 0.0, %v1446
    %v1448 = vpop.f32.mrf.mxu0
    %1449 = vdwg.mxu0
    %1451 = vrot.lane.b32.xlu0 %v559, 96
    %v1452 = vpop.permute.xlu0 %1451
    %v1455 = vsel %vm749, %v1305, 0
    %1457 = vmatprep.subr.bf16.mxu0 0
    %1458 = vmatpush1.bf16.msra.mxu0 0
    %1459 = vmatprep.subr.bf16.mxu0 0
    %1460 = vmatpush1.bf16.msra.mxu0 0
    %1461 = vmatprep.subr.bf16.mxu0 0
    %1462 = vmatpush1.bf16.msra.mxu0 0
    %1463 = vmatprep.subr.bf16.mxu0 0
    %1464 = vmatpush1.bf16.msra.mxu0 0
    %1465 = vmatprep.subr.bf16.mxu0 0
    %1466 = vmatpush1.bf16.msra.mxu0 0
    %1467 = vmatprep.subr.bf16.mxu0 0
    %1468 = vmatpush1.bf16.msra.mxu0 0
    %1469 = vmatprep.subr.bf16.mxu0 0
    %1470 = vmatpush1.bf16.msra.mxu0 0
    %1471 = vmatprep.subr.bf16.mxu0 0
    %1472 = vmatpush1.bf16.msra.mxu0 %v1452
    %1473 = vmatprep.subr.bf16.mxu0 0
    %1474 = vmatpush2.bf16.msra.mxu0 0
    %1475 = vmatprep.subr.bf16.mxu0 0
    %1476 = vmatpush2.bf16.msra.mxu0 0
    %1477 = vmatprep.subr.bf16.mxu0 0
    %1478 = vmatpush2.bf16.msra.mxu0 0
    %1479 = vmatprep.subr.bf16.mxu0 0
    %1480 = vmatpush2.bf16.msra.mxu0 0
    %1481 = vmatprep.subr.bf16.mxu0 0
    %1482 = vmatpush2.bf16.msra.mxu0 0
    %1483 = vmatprep.subr.bf16.mxu0 0
    %1484 = vmatpush2.bf16.msra.mxu0 0
    %1485 = vmatprep.subr.bf16.mxu0 0
    %1486 = vmatpush2.bf16.msra.mxu0 0
    %1487 = vmatprep.subr.bf16.mxu0 0
    %1488 = vmatpush2.bf16.msra.mxu0 0
    %1489 = vmatprep.mubr.bf16.mxu0 0
    %1490 = vmatmul.mubr.bf16.gmra.mxu0 %v1455
    %v1491 = vpop.f32.mrf.mxu0
    %v1492 = vadd.f32 0.0, %v1491
    %v1493 = vpop.f32.mrf.mxu0
    %v1494 = vpop.f32.mrf.mxu0
    %v1495 = vadd.f32 0.0, %v1494
    %v1496 = vpop.f32.mrf.mxu0
    %1497 = vdwg.mxu0
    %v1498 = vrcp.pop %v1280
    %v1499 = vrcp.pop %v1283
    %v1500 = vrcp.pop %v1286
    %v1501 = vrcp.pop %v1289
    %v1502 = vrcp.pop %v1292
    %v1503 = vrcp.pop %v1295
    %v1504 = vrcp.pop %v1298
    %v1505 = vrcp.pop %v1301
    %v1506 = vmul.f32 %v1348, %v1498
    %v1507 = vmul.f32 %v1351, %v1499
    %v1508 = vmul.f32 %v1396, %v1500
    %v1509 = vmul.f32 %v1399, %v1501
    %v1510 = vmul.f32 %v1444, %v1502
    %v1511 = vmul.f32 %v1447, %v1503
    %v1512 = vmul.f32 %v1492, %v1504
    %v1513 = vmul.f32 %v1495, %v1505
    %1514 = vrot.lane.b32.xlu0 %v548, 64
    %v1515 = vpop.permute.xlu0 %1514
    %1516 = vrot.lane.b32.xlu0 %v552, 64
    %v1517 = vpop.permute.xlu0 %1516
    %v1519 = vsel %vm560, %v1515, 0
    %v1522 = vsel %vm560, %v1517, 0
    %1524 = vmatprep.subr.bf16.mxu0 0
    %1525 = vmatpush1.bf16.xpose.msra.mxu0 0
    %1526 = vmatprep.subr.bf16.mxu0 0
    %1527 = vmatpush1.bf16.xpose.msra.mxu0 0
    %1528 = vmatprep.subr.bf16.mxu0 0
    %1529 = vmatpush1.bf16.xpose.msra.mxu0 0
    %1530 = vmatprep.subr.bf16.mxu0 0
    %1531 = vmatpush1.bf16.xpose.msra.mxu0 0
    %1532 = vmatprep.subr.bf16.mxu0 0
    %1533 = vmatpush1.bf16.xpose.msra.mxu0 0
    %1534 = vmatprep.subr.bf16.mxu0 0
    %1535 = vmatpush1.bf16.xpose.msra.mxu0 0
    %1536 = vmatprep.subr.bf16.mxu0 0
    %1537 = vmatpush1.bf16.xpose.msra.mxu0 0
    %1538 = vmatprep.subr.bf16.mxu0 0
    %1539 = vmatpush1.bf16.xpose.msra.mxu0 %v1522
    %1540 = vmatprep.subr.bf16.mxu0 0
    %1541 = vmatpush2.bf16.xpose.msra.mxu0 0
    %1542 = vmatprep.subr.bf16.mxu0 0
    %1543 = vmatpush2.bf16.xpose.msra.mxu0 0
    %1544 = vmatprep.subr.bf16.mxu0 0
    %1545 = vmatpush2.bf16.xpose.msra.mxu0 0
    %1546 = vmatprep.subr.bf16.mxu0 0
    %1547 = vmatpush2.bf16.xpose.msra.mxu0 0
    %1548 = vmatprep.subr.bf16.mxu0 0
    %1549 = vmatpush2.bf16.xpose.msra.mxu0 0
    %1550 = vmatprep.subr.bf16.mxu0 0
    %1551 = vmatpush2.bf16.xpose.msra.mxu0 0
    %1552 = vmatprep.subr.bf16.mxu0 0
    %1553 = vmatpush2.bf16.xpose.msra.mxu0 0
    %1554 = vmatprep.subr.bf16.mxu0 0
    %1555 = vmatpush2.bf16.xpose.msra.mxu0 0
    %1556 = vmatprep.mubr.bf16.mxu0 0
    %1557 = vmatmul.mubr.bf16.gmra.mxu0 %v1519
    %v1558 = vpop.f32.mrf.mxu0
    %v1559 = vadd.f32 0.0, %v1558
    %v1560 = vpop.f32.mrf.mxu0
    %v1561 = vpop.f32.mrf.mxu0
    %v1562 = vadd.f32 0.0, %v1561
    %v1563 = vpop.f32.mrf.mxu0
    %1564 = vdwg.mxu0
    %1565 = vrot.lane.b32.xlu0 %v549, 64
    %v1566 = vpop.permute.xlu0 %1565
    %1567 = vrot.lane.b32.xlu0 %v553, 64
    %v1568 = vpop.permute.xlu0 %1567
    %v1570 = vsel %vm560, %v1566, 0
    %v1573 = vsel %vm560, %v1568, 0
    %1575 = vmatprep.subr.bf16.mxu0 0
    %1576 = vmatpush1.bf16.xpose.msra.mxu0 0
    %1577 = vmatprep.subr.bf16.mxu0 0
    %1578 = vmatpush1.bf16.xpose.msra.mxu0 0
    %1579 = vmatprep.subr.bf16.mxu0 0
    %1580 = vmatpush1.bf16.xpose.msra.mxu0 0
    %1581 = vmatprep.subr.bf16.mxu0 0
    %1582 = vmatpush1.bf16.xpose.msra.mxu0 0
    %1583 = vmatprep.subr.bf16.mxu0 0
    %1584 = vmatpush1.bf16.xpose.msra.mxu0 0
    %1585 = vmatprep.subr.bf16.mxu0 0
    %1586 = vmatpush1.bf16.xpose.msra.mxu0 0
    %1587 = vmatprep.subr.bf16.mxu0 0
    %1588 = vmatpush1.bf16.xpose.msra.mxu0 0
    %1589 = vmatprep.subr.bf16.mxu0 0
    %1590 = vmatpush1.bf16.xpose.msra.mxu0 %v1573
    %1591 = vmatprep.subr.bf16.mxu0 0
    %1592 = vmatpush2.bf16.xpose.msra.mxu0 0
    %1593 = vmatprep.subr.bf16.mxu0 0
    %1594 = vmatpush2.bf16.xpose.msra.mxu0 0
    %1595 = vmatprep.subr.bf16.mxu0 0
    %1596 = vmatpush2.bf16.xpose.msra.mxu0 0
    %1597 = vmatprep.subr.bf16.mxu0 0
    %1598 = vmatpush2.bf16.xpose.msra.mxu0 0
    %1599 = vmatprep.subr.bf16.mxu0 0
    %1600 = vmatpush2.bf16.xpose.msra.mxu0 0
    %1601 = vmatprep.subr.bf16.mxu0 0
    %1602 = vmatpush2.bf16.xpose.msra.mxu0 0
    %1603 = vmatprep.subr.bf16.mxu0 0
    %1604 = vmatpush2.bf16.xpose.msra.mxu0 0
    %1605 = vmatprep.subr.bf16.mxu0 0
    %1606 = vmatpush2.bf16.xpose.msra.mxu0 0
    %1607 = vmatprep.mubr.bf16.mxu0 0
    %1608 = vmatmul.mubr.bf16.gmra.mxu0 %v1570
    %v1609 = vpop.f32.mrf.mxu0
    %v1610 = vadd.f32 0.0, %v1609
    %v1611 = vpop.f32.mrf.mxu0
    %v1612 = vpop.f32.mrf.mxu0
    %v1613 = vadd.f32 0.0, %v1612
    %v1614 = vpop.f32.mrf.mxu0
    %1615 = vdwg.mxu0
    %1616 = vrot.lane.b32.xlu0 %v550, 64
    %v1617 = vpop.permute.xlu0 %1616
    %1618 = vrot.lane.b32.xlu0 %v554, 64
    %v1619 = vpop.permute.xlu0 %1618
    %v1621 = vsel %vm560, %v1617, 0
    %v1624 = vsel %vm560, %v1619, 0
    %1626 = vmatprep.subr.bf16.mxu0 0
    %1627 = vmatpush1.bf16.xpose.msra.mxu0 0
    %1628 = vmatprep.subr.bf16.mxu0 0
    %1629 = vmatpush1.bf16.xpose.msra.mxu0 0
    %1630 = vmatprep.subr.bf16.mxu0 0
    %1631 = vmatpush1.bf16.xpose.msra.mxu0 0
    %1632 = vmatprep.subr.bf16.mxu0 0
    %1633 = vmatpush1.bf16.xpose.msra.mxu0 0
    %1634 = vmatprep.subr.bf16.mxu0 0
    %1635 = vmatpush1.bf16.xpose.msra.mxu0 0
    %1636 = vmatprep.subr.bf16.mxu0 0
    %1637 = vmatpush1.bf16.xpose.msra.mxu0 0
    %1638 = vmatprep.subr.bf16.mxu0 0
    %1639 = vmatpush1.bf16.xpose.msra.mxu0 0
    %1640 = vmatprep.subr.bf16.mxu0 0
    %1641 = vmatpush1.bf16.xpose.msra.mxu0 %v1624
    %1642 = vmatprep.subr.bf16.mxu0 0
    %1643 = vmatpush2.bf16.xpose.msra.mxu0 0
    %1644 = vmatprep.subr.bf16.mxu0 0
    %1645 = vmatpush2.bf16.xpose.msra.mxu0 0
    %1646 = vmatprep.subr.bf16.mxu0 0
    %1647 = vmatpush2.bf16.xpose.msra.mxu0 0
    %1648 = vmatprep.subr.bf16.mxu0 0
    %1649 = vmatpush2.bf16.xpose.msra.mxu0 0
    %1650 = vmatprep.subr.bf16.mxu0 0
    %1651 = vmatpush2.bf16.xpose.msra.mxu0 0
    %1652 = vmatprep.subr.bf16.mxu0 0
    %1653 = vmatpush2.bf16.xpose.msra.mxu0 0
    %1654 = vmatprep.subr.bf16.mxu0 0
    %1655 = vmatpush2.bf16.xpose.msra.mxu0 0
    %1656 = vmatprep.subr.bf16.mxu0 0
    %1657 = vmatpush2.bf16.xpose.msra.mxu0 0
    %1658 = vmatprep.mubr.bf16.mxu0 0
    %1659 = vmatmul.mubr.bf16.gmra.mxu0 %v1621
    %v1660 = vpop.f32.mrf.mxu0
    %v1661 = vadd.f32 0.0, %v1660
    %v1662 = vpop.f32.mrf.mxu0
    %v1663 = vpop.f32.mrf.mxu0
    %v1664 = vadd.f32 0.0, %v1663
    %v1665 = vpop.f32.mrf.mxu0
    %1666 = vdwg.mxu0
    %1667 = vrot.lane.b32.xlu0 %v551, 64
    %v1668 = vpop.permute.xlu0 %1667
    %1669 = vrot.lane.b32.xlu0 %v555, 64
    %v1670 = vpop.permute.xlu0 %1669
    %v1672 = vsel %vm560, %v1668, 0
    %v1675 = vsel %vm560, %v1670, 0
    %1677 = vmatprep.subr.bf16.mxu0 0
    %1678 = vmatpush1.bf16.xpose.msra.mxu0 0
    %1679 = vmatprep.subr.bf16.mxu0 0
    %1680 = vmatpush1.bf16.xpose.msra.mxu0 0
    %1681 = vmatprep.subr.bf16.mxu0 0
    %1682 = vmatpush1.bf16.xpose.msra.mxu0 0
    %1683 = vmatprep.subr.bf16.mxu0 0
    %1684 = vmatpush1.bf16.xpose.msra.mxu0 0
    %1685 = vmatprep.subr.bf16.mxu0 0
    %1686 = vmatpush1.bf16.xpose.msra.mxu0 0
    %1687 = vmatprep.subr.bf16.mxu0 0
    %1688 = vmatpush1.bf16.xpose.msra.mxu0 0
    %1689 = vmatprep.subr.bf16.mxu0 0
    %1690 = vmatpush1.bf16.xpose.msra.mxu0 0
    %1691 = vmatprep.subr.bf16.mxu0 0
    %1692 = vmatpush1.bf16.xpose.msra.mxu0 %v1675
    %1693 = vmatprep.subr.bf16.mxu0 0
    %1694 = vmatpush2.bf16.xpose.msra.mxu0 0
    %1695 = vmatprep.subr.bf16.mxu0 0
    %1696 = vmatpush2.bf16.xpose.msra.mxu0 0
    %1697 = vmatprep.subr.bf16.mxu0 0
    %1698 = vmatpush2.bf16.xpose.msra.mxu0 0
    %1699 = vmatprep.subr.bf16.mxu0 0
    %1700 = vmatpush2.bf16.xpose.msra.mxu0 0
    %1701 = vmatprep.subr.bf16.mxu0 0
    %1702 = vmatpush2.bf16.xpose.msra.mxu0 0
    %1703 = vmatprep.subr.bf16.mxu0 0
    %1704 = vmatpush2.bf16.xpose.msra.mxu0 0
    %1705 = vmatprep.subr.bf16.mxu0 0
    %1706 = vmatpush2.bf16.xpose.msra.mxu0 0
    %1707 = vmatprep.subr.bf16.mxu0 0
    %1708 = vmatpush2.bf16.xpose.msra.mxu0 0
    %1709 = vmatprep.mubr.bf16.mxu0 0
    %1710 = vmatmul.mubr.bf16.gmra.mxu0 %v1672
    %v1711 = vpop.f32.mrf.mxu0
    %v1712 = vadd.f32 0.0, %v1711
    %v1713 = vpop.f32.mrf.mxu0
    %v1714 = vpop.f32.mrf.mxu0
    %v1715 = vadd.f32 0.0, %v1714
    %v1716 = vpop.f32.mrf.mxu0
    %1717 = vdwg.mxu0
    %v1718 = vsel %vm749, %v1559, -inf
    %1719 = vmax.xlane.f32.xlu0 %v1718
    %v1720 = vpop.xlane.xlu0 %1719
    %v1721 = vsel %vm749, %v1562, -inf
    %1722 = vmax.xlane.f32.xlu0 %v1721
    %v1723 = vpop.xlane.xlu0 %1722
    %v1724 = vsel %vm749, %v1610, -inf
    %1725 = vmax.xlane.f32.xlu0 %v1724
    %v1726 = vpop.xlane.xlu0 %1725
    %v1727 = vsel %vm749, %v1613, -inf
    %1728 = vmax.xlane.f32.xlu0 %v1727
    %v1729 = vpop.xlane.xlu0 %1728
    %v1730 = vsel %vm749, %v1661, -inf
    %1731 = vmax.xlane.f32.xlu0 %v1730
    %v1732 = vpop.xlane.xlu0 %1731
    %v1733 = vsel %vm749, %v1664, -inf
    %1734 = vmax.xlane.f32.xlu0 %v1733
    %v1735 = vpop.xlane.xlu0 %1734
    %v1736 = vsel %vm749, %v1712, -inf
    %1737 = vmax.xlane.f32.xlu0 %v1736
    %v1738 = vpop.xlane.xlu0 %1737
    %v1739 = vsel %vm749, %v1715, -inf
    %1740 = vmax.xlane.f32.xlu0 %v1739
    %v1741 = vpop.xlane.xlu0 %1740
    %v1742 = vsub.f32 %v1559, %v1720
    %v1743 = vsub.f32 %v1562, %v1723
    %v1744 = vsub.f32 %v1610, %v1726
    %v1745 = vsub.f32 %v1613, %v1729
    %v1746 = vsub.f32 %v1661, %v1732
    %v1747 = vsub.f32 %v1664, %v1735
    %v1748 = vsub.f32 %v1712, %v1738
    %v1749 = vsub.f32 %v1715, %v1741
    %v1750 = vmul.f32 %v1742, 1.442695
    %v1751 = vpow.pop %v1750
    %v1752 = vmul.f32 %v1743, 1.442695
    %v1753 = vpow.pop %v1752
    %v1754 = vmul.f32 %v1744, 1.442695
    %v1755 = vpow.pop %v1754
    %v1756 = vmul.f32 %v1745, 1.442695
    %v1757 = vpow.pop %v1756
    %v1758 = vmul.f32 %v1746, 1.442695
    %v1759 = vpow.pop %v1758
    %v1760 = vmul.f32 %v1747, 1.442695
    %v1761 = vpow.pop %v1760
    %v1762 = vmul.f32 %v1748, 1.442695
    %v1763 = vpow.pop %v1762
    %v1764 = vmul.f32 %v1749, 1.442695
    %v1765 = vpow.pop %v1764
    %v1766 = vsel %vm749, %v1751, 0.0
    %1767 = vadd.xlane.f32.xlu0 %v1766
    %v1768 = vpop.xlane.xlu0 %1767
    %v1769 = vsel %vm749, %v1753, 0.0
    %1770 = vadd.xlane.f32.xlu0 %v1769
    %v1771 = vpop.xlane.xlu0 %1770
    %v1772 = vsel %vm749, %v1755, 0.0
    %1773 = vadd.xlane.f32.xlu0 %v1772
    %v1774 = vpop.xlane.xlu0 %1773
    %v1775 = vsel %vm749, %v1757, 0.0
    %1776 = vadd.xlane.f32.xlu0 %v1775
    %v1777 = vpop.xlane.xlu0 %1776
    %v1778 = vsel %vm749, %v1759, 0.0
    %1779 = vadd.xlane.f32.xlu0 %v1778
    %v1780 = vpop.xlane.xlu0 %1779
    %v1781 = vsel %vm749, %v1761, 0.0
    %1782 = vadd.xlane.f32.xlu0 %v1781
    %v1783 = vpop.xlane.xlu0 %1782
    %v1784 = vsel %vm749, %v1763, 0.0
    %1785 = vadd.xlane.f32.xlu0 %v1784
    %v1786 = vpop.xlane.xlu0 %1785
    %v1787 = vsel %vm749, %v1765, 0.0
    %1788 = vadd.xlane.f32.xlu0 %v1787
    %v1789 = vpop.xlane.xlu0 %1788
    %v1790 = vpack.c.bf16 %v1753, %v1751
    %v1791 = vpack.c.bf16 %v1757, %v1755
    %v1792 = vpack.c.bf16 %v1761, %v1759
    %v1793 = vpack.c.bf16 %v1765, %v1763
    %1794 = vrot.lane.b32.xlu0 %v556, 64
    %v1795 = vpop.permute.xlu0 %1794
    %v1798 = vsel %vm749, %v1790, 0
    %1800 = vmatprep.subr.bf16.mxu0 0
    %1801 = vmatpush1.bf16.msra.mxu0 0
    %1802 = vmatprep.subr.bf16.mxu0 0
    %1803 = vmatpush1.bf16.msra.mxu0 0
    %1804 = vmatprep.subr.bf16.mxu0 0
    %1805 = vmatpush1.bf16.msra.mxu0 0
    %1806 = vmatprep.subr.bf16.mxu0 0
    %1807 = vmatpush1.bf16.msra.mxu0 0
    %1808 = vmatprep.subr.bf16.mxu0 0
    %1809 = vmatpush1.bf16.msra.mxu0 0
    %1810 = vmatprep.subr.bf16.mxu0 0
    %1811 = vmatpush1.bf16.msra.mxu0 0
    %1812 = vmatprep.subr.bf16.mxu0 0
    %1813 = vmatpush1.bf16.msra.mxu0 0
    %1814 = vmatprep.subr.bf16.mxu0 0
    %1815 = vmatpush1.bf16.msra.mxu0 %v1795
    %1816 = vmatprep.subr.bf16.mxu0 0
    %1817 = vmatpush2.bf16.msra.mxu0 0
    %1818 = vmatprep.subr.bf16.mxu0 0
    %1819 = vmatpush2.bf16.msra.mxu0 0
    %1820 = vmatprep.subr.bf16.mxu0 0
    %1821 = vmatpush2.bf16.msra.mxu0 0
    %1822 = vmatprep.subr.bf16.mxu0 0
    %1823 = vmatpush2.bf16.msra.mxu0 0
    %1824 = vmatprep.subr.bf16.mxu0 0
    %1825 = vmatpush2.bf16.msra.mxu0 0
    %1826 = vmatprep.subr.bf16.mxu0 0
    %1827 = vmatpush2.bf16.msra.mxu0 0
    %1828 = vmatprep.subr.bf16.mxu0 0
    %1829 = vmatpush2.bf16.msra.mxu0 0
    %1830 = vmatprep.subr.bf16.mxu0 0
    %1831 = vmatpush2.bf16.msra.mxu0 0
    %1832 = vmatprep.mubr.bf16.mxu0 0
    %1833 = vmatmul.mubr.bf16.gmra.mxu0 %v1798
    %v1834 = vpop.f32.mrf.mxu0
    %v1835 = vadd.f32 0.0, %v1834
    %v1836 = vpop.f32.mrf.mxu0
    %v1837 = vpop.f32.mrf.mxu0
    %v1838 = vadd.f32 0.0, %v1837
    %v1839 = vpop.f32.mrf.mxu0
    %1840 = vdwg.mxu0
    %1841 = vrot.lane.b32.xlu0 %v557, 64
    %v1842 = vpop.permute.xlu0 %1841
    %v1845 = vsel %vm749, %v1791, 0
    %1847 = vmatprep.subr.bf16.mxu0 0
    %1848 = vmatpush1.bf16.msra.mxu0 0
    %1849 = vmatprep.subr.bf16.mxu0 0
    %1850 = vmatpush1.bf16.msra.mxu0 0
    %1851 = vmatprep.subr.bf16.mxu0 0
    %1852 = vmatpush1.bf16.msra.mxu0 0
    %1853 = vmatprep.subr.bf16.mxu0 0
    %1854 = vmatpush1.bf16.msra.mxu0 0
    %1855 = vmatprep.subr.bf16.mxu0 0
    %1856 = vmatpush1.bf16.msra.mxu0 0
    %1857 = vmatprep.subr.bf16.mxu0 0
    %1858 = vmatpush1.bf16.msra.mxu0 0
    %1859 = vmatprep.subr.bf16.mxu0 0
    %1860 = vmatpush1.bf16.msra.mxu0 0
    %1861 = vmatprep.subr.bf16.mxu0 0
    %1862 = vmatpush1.bf16.msra.mxu0 %v1842
    %1863 = vmatprep.subr.bf16.mxu0 0
    %1864 = vmatpush2.bf16.msra.mxu0 0
    %1865 = vmatprep.subr.bf16.mxu0 0
    %1866 = vmatpush2.bf16.msra.mxu0 0
    %1867 = vmatprep.subr.bf16.mxu0 0
    %1868 = vmatpush2.bf16.msra.mxu0 0
    %1869 = vmatprep.subr.bf16.mxu0 0
    %1870 = vmatpush2.bf16.msra.mxu0 0
    %1871 = vmatprep.subr.bf16.mxu0 0
    %1872 = vmatpush2.bf16.msra.mxu0 0
    %1873 = vmatprep.subr.bf16.mxu0 0
    %1874 = vmatpush2.bf16.msra.mxu0 0
    %1875 = vmatprep.subr.bf16.mxu0 0
    %1876 = vmatpush2.bf16.msra.mxu0 0
    %1877 = vmatprep.subr.bf16.mxu0 0
    %1878 = vmatpush2.bf16.msra.mxu0 0
    %1879 = vmatprep.mubr.bf16.mxu0 0
    %1880 = vmatmul.mubr.bf16.gmra.mxu0 %v1845
    %v1881 = vpop.f32.mrf.mxu0
    %v1882 = vadd.f32 0.0, %v1881
    %v1883 = vpop.f32.mrf.mxu0
    %v1884 = vpop.f32.mrf.mxu0
    %v1885 = vadd.f32 0.0, %v1884
    %v1886 = vpop.f32.mrf.mxu0
    %1887 = vdwg.mxu0
    %1888 = vrot.lane.b32.xlu0 %v558, 64
    %v1889 = vpop.permute.xlu0 %1888
    %v1892 = vsel %vm749, %v1792, 0
    %1894 = vmatprep.subr.bf16.mxu0 0
    %1895 = vmatpush1.bf16.msra.mxu0 0
    %1896 = vmatprep.subr.bf16.mxu0 0
    %1897 = vmatpush1.bf16.msra.mxu0 0
    %1898 = vmatprep.subr.bf16.mxu0 0
    %1899 = vmatpush1.bf16.msra.mxu0 0
    %1900 = vmatprep.subr.bf16.mxu0 0
    %1901 = vmatpush1.bf16.msra.mxu0 0
    %1902 = vmatprep.subr.bf16.mxu0 0
    %1903 = vmatpush1.bf16.msra.mxu0 0
    %1904 = vmatprep.subr.bf16.mxu0 0
    %1905 = vmatpush1.bf16.msra.mxu0 0
    %1906 = vmatprep.subr.bf16.mxu0 0
    %1907 = vmatpush1.bf16.msra.mxu0 0
    %1908 = vmatprep.subr.bf16.mxu0 0
    %1909 = vmatpush1.bf16.msra.mxu0 %v1889
    %1910 = vmatprep.subr.bf16.mxu0 0
    %1911 = vmatpush2.bf16.msra.mxu0 0
    %1912 = vmatprep.subr.bf16.mxu0 0
    %1913 = vmatpush2.bf16.msra.mxu0 0
    %1914 = vmatprep.subr.bf16.mxu0 0
    %1915 = vmatpush2.bf16.msra.mxu0 0
    %1916 = vmatprep.subr.bf16.mxu0 0
    %1917 = vmatpush2.bf16.msra.mxu0 0
    %1918 = vmatprep.subr.bf16.mxu0 0
    %1919 = vmatpush2.bf16.msra.mxu0 0
    %1920 = vmatprep.subr.bf16.mxu0 0
    %1921 = vmatpush2.bf16.msra.mxu0 0
    %1922 = vmatprep.subr.bf16.mxu0 0
    %1923 = vmatpush2.bf16.msra.mxu0 0
    %1924 = vmatprep.subr.bf16.mxu0 0
    %1925 = vmatpush2.bf16.msra.mxu0 0
    %1926 = vmatprep.mubr.bf16.mxu0 0
    %1927 = vmatmul.mubr.bf16.gmra.mxu0 %v1892
    %v1928 = vpop.f32.mrf.mxu0
    %v1929 = vadd.f32 0.0, %v1928
    %v1930 = vpop.f32.mrf.mxu0
    %v1931 = vpop.f32.mrf.mxu0
    %v1932 = vadd.f32 0.0, %v1931
    %v1933 = vpop.f32.mrf.mxu0
    %1934 = vdwg.mxu0
    %1935 = vrot.lane.b32.xlu0 %v559, 64
    %v1936 = vpop.permute.xlu0 %1935
    %v1939 = vsel %vm749, %v1793, 0
    %1941 = vmatprep.subr.bf16.mxu0 0
    %1942 = vmatpush1.bf16.msra.mxu0 0
    %1943 = vmatprep.subr.bf16.mxu0 0
    %1944 = vmatpush1.bf16.msra.mxu0 0
    %1945 = vmatprep.subr.bf16.mxu0 0
    %1946 = vmatpush1.bf16.msra.mxu0 0
    %1947 = vmatprep.subr.bf16.mxu0 0
    %1948 = vmatpush1.bf16.msra.mxu0 0
    %1949 = vmatprep.subr.bf16.mxu0 0
    %1950 = vmatpush1.bf16.msra.mxu0 0
    %1951 = vmatprep.subr.bf16.mxu0 0
    %1952 = vmatpush1.bf16.msra.mxu0 0
    %1953 = vmatprep.subr.bf16.mxu0 0
    %1954 = vmatpush1.bf16.msra.mxu0 0
    %1955 = vmatprep.subr.bf16.mxu0 0
    %1956 = vmatpush1.bf16.msra.mxu0 %v1936
    %1957 = vmatprep.subr.bf16.mxu0 0
    %1958 = vmatpush2.bf16.msra.mxu0 0
    %1959 = vmatprep.subr.bf16.mxu0 0
    %1960 = vmatpush2.bf16.msra.mxu0 0
    %1961 = vmatprep.subr.bf16.mxu0 0
    %1962 = vmatpush2.bf16.msra.mxu0 0
    %1963 = vmatprep.subr.bf16.mxu0 0
    %1964 = vmatpush2.bf16.msra.mxu0 0
    %1965 = vmatprep.subr.bf16.mxu0 0
    %1966 = vmatpush2.bf16.msra.mxu0 0
    %1967 = vmatprep.subr.bf16.mxu0 0
    %1968 = vmatpush2.bf16.msra.mxu0 0
    %1969 = vmatprep.subr.bf16.mxu0 0
    %1970 = vmatpush2.bf16.msra.mxu0 0
    %1971 = vmatprep.subr.bf16.mxu0 0
    %1972 = vmatpush2.bf16.msra.mxu0 0
    %1973 = vmatprep.mubr.bf16.mxu0 0
    %1974 = vmatmul.mubr.bf16.gmra.mxu0 %v1939
    %v1975 = vpop.f32.mrf.mxu0
    %v1976 = vadd.f32 0.0, %v1975
    %v1977 = vpop.f32.mrf.mxu0
    %v1978 = vpop.f32.mrf.mxu0
    %v1979 = vadd.f32 0.0, %v1978
    %v1980 = vpop.f32.mrf.mxu0
    %1981 = vdwg.mxu0
    %v1982 = vrcp.pop %v1768
    %v1983 = vrcp.pop %v1771
    %v1984 = vrcp.pop %v1774
    %v1985 = vrcp.pop %v1777
    %v1986 = vrcp.pop %v1780
    %v1987 = vrcp.pop %v1783
    %v1988 = vrcp.pop %v1786
    %v1989 = vrcp.pop %v1789
    %v1990 = vmul.f32 %v1835, %v1982
    %v1991 = vmul.f32 %v1838, %v1983
    %v1992 = vmul.f32 %v1882, %v1984
    %v1993 = vmul.f32 %v1885, %v1985
    %v1994 = vmul.f32 %v1929, %v1986
    %v1995 = vmul.f32 %v1932, %v1987
    %v1996 = vmul.f32 %v1976, %v1988
    %v1997 = vmul.f32 %v1979, %v1989
    %1998 = vrot.lane.b32.xlu0 %v548, 32
    %v1999 = vpop.permute.xlu0 %1998
    %2000 = vrot.lane.b32.xlu0 %v552, 32
    %v2001 = vpop.permute.xlu0 %2000
    %v2003 = vsel %vm560, %v1999, 0
    %v2006 = vsel %vm560, %v2001, 0
    %2008 = vmatprep.subr.bf16.mxu0 0
    %2009 = vmatpush1.bf16.xpose.msra.mxu0 0
    %2010 = vmatprep.subr.bf16.mxu0 0
    %2011 = vmatpush1.bf16.xpose.msra.mxu0 0
    %2012 = vmatprep.subr.bf16.mxu0 0
    %2013 = vmatpush1.bf16.xpose.msra.mxu0 0
    %2014 = vmatprep.subr.bf16.mxu0 0
    %2015 = vmatpush1.bf16.xpose.msra.mxu0 0
    %2016 = vmatprep.subr.bf16.mxu0 0
    %2017 = vmatpush1.bf16.xpose.msra.mxu0 0
    %2018 = vmatprep.subr.bf16.mxu0 0
    %2019 = vmatpush1.bf16.xpose.msra.mxu0 0
    %2020 = vmatprep.subr.bf16.mxu0 0
    %2021 = vmatpush1.bf16.xpose.msra.mxu0 0
    %2022 = vmatprep.subr.bf16.mxu0 0
    %2023 = vmatpush1.bf16.xpose.msra.mxu0 %v2006
    %2024 = vmatprep.subr.bf16.mxu0 0
    %2025 = vmatpush2.bf16.xpose.msra.mxu0 0
    %2026 = vmatprep.subr.bf16.mxu0 0
    %2027 = vmatpush2.bf16.xpose.msra.mxu0 0
    %2028 = vmatprep.subr.bf16.mxu0 0
    %2029 = vmatpush2.bf16.xpose.msra.mxu0 0
    %2030 = vmatprep.subr.bf16.mxu0 0
    %2031 = vmatpush2.bf16.xpose.msra.mxu0 0
    %2032 = vmatprep.subr.bf16.mxu0 0
    %2033 = vmatpush2.bf16.xpose.msra.mxu0 0
    %2034 = vmatprep.subr.bf16.mxu0 0
    %2035 = vmatpush2.bf16.xpose.msra.mxu0 0
    %2036 = vmatprep.subr.bf16.mxu0 0
    %2037 = vmatpush2.bf16.xpose.msra.mxu0 0
    %2038 = vmatprep.subr.bf16.mxu0 0
    %2039 = vmatpush2.bf16.xpose.msra.mxu0 0
    %2040 = vmatprep.mubr.bf16.mxu0 0
    %2041 = vmatmul.mubr.bf16.gmra.mxu0 %v2003
    %v2042 = vpop.f32.mrf.mxu0
    %v2043 = vadd.f32 0.0, %v2042
    %v2044 = vpop.f32.mrf.mxu0
    %v2045 = vpop.f32.mrf.mxu0
    %v2046 = vadd.f32 0.0, %v2045
    %v2047 = vpop.f32.mrf.mxu0
    %2048 = vdwg.mxu0
    %2049 = vrot.lane.b32.xlu0 %v549, 32
    %v2050 = vpop.permute.xlu0 %2049
    %2051 = vrot.lane.b32.xlu0 %v553, 32
    %v2052 = vpop.permute.xlu0 %2051
    %v2054 = vsel %vm560, %v2050, 0
    %v2057 = vsel %vm560, %v2052, 0
    %2059 = vmatprep.subr.bf16.mxu0 0
    %2060 = vmatpush1.bf16.xpose.msra.mxu0 0
    %2061 = vmatprep.subr.bf16.mxu0 0
    %2062 = vmatpush1.bf16.xpose.msra.mxu0 0
    %2063 = vmatprep.subr.bf16.mxu0 0
    %2064 = vmatpush1.bf16.xpose.msra.mxu0 0
    %2065 = vmatprep.subr.bf16.mxu0 0
    %2066 = vmatpush1.bf16.xpose.msra.mxu0 0
    %2067 = vmatprep.subr.bf16.mxu0 0
    %2068 = vmatpush1.bf16.xpose.msra.mxu0 0
    %2069 = vmatprep.subr.bf16.mxu0 0
    %2070 = vmatpush1.bf16.xpose.msra.mxu0 0
    %2071 = vmatprep.subr.bf16.mxu0 0
    %2072 = vmatpush1.bf16.xpose.msra.mxu0 0
    %2073 = vmatprep.subr.bf16.mxu0 0
    %2074 = vmatpush1.bf16.xpose.msra.mxu0 %v2057
    %2075 = vmatprep.subr.bf16.mxu0 0
    %2076 = vmatpush2.bf16.xpose.msra.mxu0 0
    %2077 = vmatprep.subr.bf16.mxu0 0
    %2078 = vmatpush2.bf16.xpose.msra.mxu0 0
    %2079 = vmatprep.subr.bf16.mxu0 0
    %2080 = vmatpush2.bf16.xpose.msra.mxu0 0
    %2081 = vmatprep.subr.bf16.mxu0 0
    %2082 = vmatpush2.bf16.xpose.msra.mxu0 0
    %2083 = vmatprep.subr.bf16.mxu0 0
    %2084 = vmatpush2.bf16.xpose.msra.mxu0 0
    %2085 = vmatprep.subr.bf16.mxu0 0
    %2086 = vmatpush2.bf16.xpose.msra.mxu0 0
    %2087 = vmatprep.subr.bf16.mxu0 0
    %2088 = vmatpush2.bf16.xpose.msra.mxu0 0
    %2089 = vmatprep.subr.bf16.mxu0 0
    %2090 = vmatpush2.bf16.xpose.msra.mxu0 0
    %2091 = vmatprep.mubr.bf16.mxu0 0
    %2092 = vmatmul.mubr.bf16.gmra.mxu0 %v2054
    %v2093 = vpop.f32.mrf.mxu0
    %v2094 = vadd.f32 0.0, %v2093
    %v2095 = vpop.f32.mrf.mxu0
    %v2096 = vpop.f32.mrf.mxu0
    %v2097 = vadd.f32 0.0, %v2096
    %v2098 = vpop.f32.mrf.mxu0
    %2099 = vdwg.mxu0
    %2100 = vrot.lane.b32.xlu0 %v550, 32
    %v2101 = vpop.permute.xlu0 %2100
    %2102 = vrot.lane.b32.xlu0 %v554, 32
    %v2103 = vpop.permute.xlu0 %2102
    %v2105 = vsel %vm560, %v2101, 0
    %v2108 = vsel %vm560, %v2103, 0
    %2110 = vmatprep.subr.bf16.mxu0 0
    %2111 = vmatpush1.bf16.xpose.msra.mxu0 0
    %2112 = vmatprep.subr.bf16.mxu0 0
    %2113 = vmatpush1.bf16.xpose.msra.mxu0 0
    %2114 = vmatprep.subr.bf16.mxu0 0
    %2115 = vmatpush1.bf16.xpose.msra.mxu0 0
    %2116 = vmatprep.subr.bf16.mxu0 0
    %2117 = vmatpush1.bf16.xpose.msra.mxu0 0
    %2118 = vmatprep.subr.bf16.mxu0 0
    %2119 = vmatpush1.bf16.xpose.msra.mxu0 0
    %2120 = vmatprep.subr.bf16.mxu0 0
    %2121 = vmatpush1.bf16.xpose.msra.mxu0 0
    %2122 = vmatprep.subr.bf16.mxu0 0
    %2123 = vmatpush1.bf16.xpose.msra.mxu0 0
    %2124 = vmatprep.subr.bf16.mxu0 0
    %2125 = vmatpush1.bf16.xpose.msra.mxu0 %v2108
    %2126 = vmatprep.subr.bf16.mxu0 0
    %2127 = vmatpush2.bf16.xpose.msra.mxu0 0
    %2128 = vmatprep.subr.bf16.mxu0 0
    %2129 = vmatpush2.bf16.xpose.msra.mxu0 0
    %2130 = vmatprep.subr.bf16.mxu0 0
    %2131 = vmatpush2.bf16.xpose.msra.mxu0 0
    %2132 = vmatprep.subr.bf16.mxu0 0
    %2133 = vmatpush2.bf16.xpose.msra.mxu0 0
    %2134 = vmatprep.subr.bf16.mxu0 0
    %2135 = vmatpush2.bf16.xpose.msra.mxu0 0
    %2136 = vmatprep.subr.bf16.mxu0 0
    %2137 = vmatpush2.bf16.xpose.msra.mxu0 0
    %2138 = vmatprep.subr.bf16.mxu0 0
    %2139 = vmatpush2.bf16.xpose.msra.mxu0 0
    %2140 = vmatprep.subr.bf16.mxu0 0
    %2141 = vmatpush2.bf16.xpose.msra.mxu0 0
    %2142 = vmatprep.mubr.bf16.mxu0 0
    %2143 = vmatmul.mubr.bf16.gmra.mxu0 %v2105
    %v2144 = vpop.f32.mrf.mxu0
    %v2145 = vadd.f32 0.0, %v2144
    %v2146 = vpop.f32.mrf.mxu0
    %v2147 = vpop.f32.mrf.mxu0
    %v2148 = vadd.f32 0.0, %v2147
    %v2149 = vpop.f32.mrf.mxu0
    %2150 = vdwg.mxu0
    %2151 = vrot.lane.b32.xlu0 %v551, 32
    %v2152 = vpop.permute.xlu0 %2151
    %2153 = vrot.lane.b32.xlu0 %v555, 32
    %v2154 = vpop.permute.xlu0 %2153
    %v2156 = vsel %vm560, %v2152, 0
    %v2159 = vsel %vm560, %v2154, 0
    %2161 = vmatprep.subr.bf16.mxu0 0
    %2162 = vmatpush1.bf16.xpose.msra.mxu0 0
    %2163 = vmatprep.subr.bf16.mxu0 0
    %2164 = vmatpush1.bf16.xpose.msra.mxu0 0
    %2165 = vmatprep.subr.bf16.mxu0 0
    %2166 = vmatpush1.bf16.xpose.msra.mxu0 0
    %2167 = vmatprep.subr.bf16.mxu0 0
    %2168 = vmatpush1.bf16.xpose.msra.mxu0 0
    %2169 = vmatprep.subr.bf16.mxu0 0
    %2170 = vmatpush1.bf16.xpose.msra.mxu0 0
    %2171 = vmatprep.subr.bf16.mxu0 0
    %2172 = vmatpush1.bf16.xpose.msra.mxu0 0
    %2173 = vmatprep.subr.bf16.mxu0 0
    %2174 = vmatpush1.bf16.xpose.msra.mxu0 0
    %2175 = vmatprep.subr.bf16.mxu0 0
    %2176 = vmatpush1.bf16.xpose.msra.mxu0 %v2159
    %2177 = vmatprep.subr.bf16.mxu0 0
    %2178 = vmatpush2.bf16.xpose.msra.mxu0 0
    %2179 = vmatprep.subr.bf16.mxu0 0
    %2180 = vmatpush2.bf16.xpose.msra.mxu0 0
    %2181 = vmatprep.subr.bf16.mxu0 0
    %2182 = vmatpush2.bf16.xpose.msra.mxu0 0
    %2183 = vmatprep.subr.bf16.mxu0 0
    %2184 = vmatpush2.bf16.xpose.msra.mxu0 0
    %2185 = vmatprep.subr.bf16.mxu0 0
    %2186 = vmatpush2.bf16.xpose.msra.mxu0 0
    %2187 = vmatprep.subr.bf16.mxu0 0
    %2188 = vmatpush2.bf16.xpose.msra.mxu0 0
    %2189 = vmatprep.subr.bf16.mxu0 0
    %2190 = vmatpush2.bf16.xpose.msra.mxu0 0
    %2191 = vmatprep.subr.bf16.mxu0 0
    %2192 = vmatpush2.bf16.xpose.msra.mxu0 0
    %2193 = vmatprep.mubr.bf16.mxu0 0
    %2194 = vmatmul.mubr.bf16.gmra.mxu0 %v2156
    %v2195 = vpop.f32.mrf.mxu0
    %v2196 = vadd.f32 0.0, %v2195
    %v2197 = vpop.f32.mrf.mxu0
    %v2198 = vpop.f32.mrf.mxu0
    %v2199 = vadd.f32 0.0, %v2198
    %v2200 = vpop.f32.mrf.mxu0
    %2201 = vdwg.mxu0
    %v2202 = vsel %vm749, %v2043, -inf
    %2203 = vmax.xlane.f32.xlu0 %v2202
    %v2204 = vpop.xlane.xlu0 %2203
    %v2205 = vsel %vm749, %v2046, -inf
    %2206 = vmax.xlane.f32.xlu0 %v2205
    %v2207 = vpop.xlane.xlu0 %2206
    %v2208 = vsel %vm749, %v2094, -inf
    %2209 = vmax.xlane.f32.xlu0 %v2208
    %v2210 = vpop.xlane.xlu0 %2209
    %v2211 = vsel %vm749, %v2097, -inf
    %2212 = vmax.xlane.f32.xlu0 %v2211
    %v2213 = vpop.xlane.xlu0 %2212
    %v2214 = vsel %vm749, %v2145, -inf
    %2215 = vmax.xlane.f32.xlu0 %v2214
    %v2216 = vpop.xlane.xlu0 %2215
    %v2217 = vsel %vm749, %v2148, -inf
    %2218 = vmax.xlane.f32.xlu0 %v2217
    %v2219 = vpop.xlane.xlu0 %2218
    %v2220 = vsel %vm749, %v2196, -inf
    %2221 = vmax.xlane.f32.xlu0 %v2220
    %v2222 = vpop.xlane.xlu0 %2221
    %v2223 = vsel %vm749, %v2199, -inf
    %2224 = vmax.xlane.f32.xlu0 %v2223
    %v2225 = vpop.xlane.xlu0 %2224
    %v2226 = vsub.f32 %v2043, %v2204
    %v2227 = vsub.f32 %v2046, %v2207
    %v2228 = vsub.f32 %v2094, %v2210
    %v2229 = vsub.f32 %v2097, %v2213
    %v2230 = vsub.f32 %v2145, %v2216
    %v2231 = vsub.f32 %v2148, %v2219
    %v2232 = vsub.f32 %v2196, %v2222
    %v2233 = vsub.f32 %v2199, %v2225
    %v2234 = vmul.f32 %v2226, 1.442695
    %v2235 = vpow.pop %v2234
    %v2236 = vmul.f32 %v2227, 1.442695
    %v2237 = vpow.pop %v2236
    %v2238 = vmul.f32 %v2228, 1.442695
    %v2239 = vpow.pop %v2238
    %v2240 = vmul.f32 %v2229, 1.442695
    %v2241 = vpow.pop %v2240
    %v2242 = vmul.f32 %v2230, 1.442695
    %v2243 = vpow.pop %v2242
    %v2244 = vmul.f32 %v2231, 1.442695
    %v2245 = vpow.pop %v2244
    %v2246 = vmul.f32 %v2232, 1.442695
    %v2247 = vpow.pop %v2246
    %v2248 = vmul.f32 %v2233, 1.442695
    %v2249 = vpow.pop %v2248
    %v2250 = vsel %vm749, %v2235, 0.0
    %2251 = vadd.xlane.f32.xlu0 %v2250
    %v2252 = vpop.xlane.xlu0 %2251
    %v2253 = vsel %vm749, %v2237, 0.0
    %2254 = vadd.xlane.f32.xlu0 %v2253
    %v2255 = vpop.xlane.xlu0 %2254
    %v2256 = vsel %vm749, %v2239, 0.0
    %2257 = vadd.xlane.f32.xlu0 %v2256
    %v2258 = vpop.xlane.xlu0 %2257
    %v2259 = vsel %vm749, %v2241, 0.0
    %2260 = vadd.xlane.f32.xlu0 %v2259
    %v2261 = vpop.xlane.xlu0 %2260
    %v2262 = vsel %vm749, %v2243, 0.0
    %2263 = vadd.xlane.f32.xlu0 %v2262
    %v2264 = vpop.xlane.xlu0 %2263
    %v2265 = vsel %vm749, %v2245, 0.0
    %2266 = vadd.xlane.f32.xlu0 %v2265
    %v2267 = vpop.xlane.xlu0 %2266
    %v2268 = vsel %vm749, %v2247, 0.0
    %2269 = vadd.xlane.f32.xlu0 %v2268
    %v2270 = vpop.xlane.xlu0 %2269
    %v2271 = vsel %vm749, %v2249, 0.0
    %2272 = vadd.xlane.f32.xlu0 %v2271
    %v2273 = vpop.xlane.xlu0 %2272
    %v2274 = vpack.c.bf16 %v2237, %v2235
    %v2275 = vpack.c.bf16 %v2241, %v2239
    %v2276 = vpack.c.bf16 %v2245, %v2243
    %v2277 = vpack.c.bf16 %v2249, %v2247
    %2278 = vrot.lane.b32.xlu0 %v556, 32
    %v2279 = vpop.permute.xlu0 %2278
    %v2282 = vsel %vm749, %v2274, 0
    %2284 = vmatprep.subr.bf16.mxu0 0
    %2285 = vmatpush1.bf16.msra.mxu0 0
    %2286 = vmatprep.subr.bf16.mxu0 0
    %2287 = vmatpush1.bf16.msra.mxu0 0
    %2288 = vmatprep.subr.bf16.mxu0 0
    %2289 = vmatpush1.bf16.msra.mxu0 0
    %2290 = vmatprep.subr.bf16.mxu0 0
    %2291 = vmatpush1.bf16.msra.mxu0 0
    %2292 = vmatprep.subr.bf16.mxu0 0
    %2293 = vmatpush1.bf16.msra.mxu0 0
    %2294 = vmatprep.subr.bf16.mxu0 0
    %2295 = vmatpush1.bf16.msra.mxu0 0
    %2296 = vmatprep.subr.bf16.mxu0 0
    %2297 = vmatpush1.bf16.msra.mxu0 0
    %2298 = vmatprep.subr.bf16.mxu0 0
    %2299 = vmatpush1.bf16.msra.mxu0 %v2279
    %2300 = vmatprep.subr.bf16.mxu0 0
    %2301 = vmatpush2.bf16.msra.mxu0 0
    %2302 = vmatprep.subr.bf16.mxu0 0
    %2303 = vmatpush2.bf16.msra.mxu0 0
    %2304 = vmatprep.subr.bf16.mxu0 0
    %2305 = vmatpush2.bf16.msra.mxu0 0
    %2306 = vmatprep.subr.bf16.mxu0 0
    %2307 = vmatpush2.bf16.msra.mxu0 0
    %2308 = vmatprep.subr.bf16.mxu0 0
    %2309 = vmatpush2.bf16.msra.mxu0 0
    %2310 = vmatprep.subr.bf16.mxu0 0
    %2311 = vmatpush2.bf16.msra.mxu0 0
    %2312 = vmatprep.subr.bf16.mxu0 0
    %2313 = vmatpush2.bf16.msra.mxu0 0
    %2314 = vmatprep.subr.bf16.mxu0 0
    %2315 = vmatpush2.bf16.msra.mxu0 0
    %2316 = vmatprep.mubr.bf16.mxu0 0
    %2317 = vmatmul.mubr.bf16.gmra.mxu0 %v2282
    %v2318 = vpop.f32.mrf.mxu0
    %v2319 = vadd.f32 0.0, %v2318
    %v2320 = vpop.f32.mrf.mxu0
    %v2321 = vpop.f32.mrf.mxu0
    %v2322 = vadd.f32 0.0, %v2321
    %v2323 = vpop.f32.mrf.mxu0
    %2324 = vdwg.mxu0
    %2325 = vrot.lane.b32.xlu0 %v557, 32
    %v2326 = vpop.permute.xlu0 %2325
    %v2329 = vsel %vm749, %v2275, 0
    %2331 = vmatprep.subr.bf16.mxu0 0
    %2332 = vmatpush1.bf16.msra.mxu0 0
    %2333 = vmatprep.subr.bf16.mxu0 0
    %2334 = vmatpush1.bf16.msra.mxu0 0
    %2335 = vmatprep.subr.bf16.mxu0 0
    %2336 = vmatpush1.bf16.msra.mxu0 0
    %2337 = vmatprep.subr.bf16.mxu0 0
    %2338 = vmatpush1.bf16.msra.mxu0 0
    %2339 = vmatprep.subr.bf16.mxu0 0
    %2340 = vmatpush1.bf16.msra.mxu0 0
    %2341 = vmatprep.subr.bf16.mxu0 0
    %2342 = vmatpush1.bf16.msra.mxu0 0
    %2343 = vmatprep.subr.bf16.mxu0 0
    %2344 = vmatpush1.bf16.msra.mxu0 0
    %2345 = vmatprep.subr.bf16.mxu0 0
    %2346 = vmatpush1.bf16.msra.mxu0 %v2326
    %2347 = vmatprep.subr.bf16.mxu0 0
    %2348 = vmatpush2.bf16.msra.mxu0 0
    %2349 = vmatprep.subr.bf16.mxu0 0
    %2350 = vmatpush2.bf16.msra.mxu0 0
    %2351 = vmatprep.subr.bf16.mxu0 0
    %2352 = vmatpush2.bf16.msra.mxu0 0
    %2353 = vmatprep.subr.bf16.mxu0 0
    %2354 = vmatpush2.bf16.msra.mxu0 0
    %2355 = vmatprep.subr.bf16.mxu0 0
    %2356 = vmatpush2.bf16.msra.mxu0 0
    %2357 = vmatprep.subr.bf16.mxu0 0
    %2358 = vmatpush2.bf16.msra.mxu0 0
    %2359 = vmatprep.subr.bf16.mxu0 0
    %2360 = vmatpush2.bf16.msra.mxu0 0
    %2361 = vmatprep.subr.bf16.mxu0 0
    %2362 = vmatpush2.bf16.msra.mxu0 0
    %2363 = vmatprep.mubr.bf16.mxu0 0
    %2364 = vmatmul.mubr.bf16.gmra.mxu0 %v2329
    %v2365 = vpop.f32.mrf.mxu0
    %v2366 = vadd.f32 0.0, %v2365
    %v2367 = vpop.f32.mrf.mxu0
    %v2368 = vpop.f32.mrf.mxu0
    %v2369 = vadd.f32 0.0, %v2368
    %v2370 = vpop.f32.mrf.mxu0
    %2371 = vdwg.mxu0
    %2372 = vrot.lane.b32.xlu0 %v558, 32
    %v2373 = vpop.permute.xlu0 %2372
    %v2376 = vsel %vm749, %v2276, 0
    %2378 = vmatprep.subr.bf16.mxu0 0
    %2379 = vmatpush1.bf16.msra.mxu0 0
    %2380 = vmatprep.subr.bf16.mxu0 0
    %2381 = vmatpush1.bf16.msra.mxu0 0
    %2382 = vmatprep.subr.bf16.mxu0 0
    %2383 = vmatpush1.bf16.msra.mxu0 0
    %2384 = vmatprep.subr.bf16.mxu0 0
    %2385 = vmatpush1.bf16.msra.mxu0 0
    %2386 = vmatprep.subr.bf16.mxu0 0
    %2387 = vmatpush1.bf16.msra.mxu0 0
    %2388 = vmatprep.subr.bf16.mxu0 0
    %2389 = vmatpush1.bf16.msra.mxu0 0
    %2390 = vmatprep.subr.bf16.mxu0 0
    %2391 = vmatpush1.bf16.msra.mxu0 0
    %2392 = vmatprep.subr.bf16.mxu0 0
    %2393 = vmatpush1.bf16.msra.mxu0 %v2373
    %2394 = vmatprep.subr.bf16.mxu0 0
    %2395 = vmatpush2.bf16.msra.mxu0 0
    %2396 = vmatprep.subr.bf16.mxu0 0
    %2397 = vmatpush2.bf16.msra.mxu0 0
    %2398 = vmatprep.subr.bf16.mxu0 0
    %2399 = vmatpush2.bf16.msra.mxu0 0
    %2400 = vmatprep.subr.bf16.mxu0 0
    %2401 = vmatpush2.bf16.msra.mxu0 0
    %2402 = vmatprep.subr.bf16.mxu0 0
    %2403 = vmatpush2.bf16.msra.mxu0 0
    %2404 = vmatprep.subr.bf16.mxu0 0
    %2405 = vmatpush2.bf16.msra.mxu0 0
    %2406 = vmatprep.subr.bf16.mxu0 0
    %2407 = vmatpush2.bf16.msra.mxu0 0
    %2408 = vmatprep.subr.bf16.mxu0 0
    %2409 = vmatpush2.bf16.msra.mxu0 0
    %2410 = vmatprep.mubr.bf16.mxu0 0
    %2411 = vmatmul.mubr.bf16.gmra.mxu0 %v2376
    %v2412 = vpop.f32.mrf.mxu0
    %v2413 = vadd.f32 0.0, %v2412
    %v2414 = vpop.f32.mrf.mxu0
    %v2415 = vpop.f32.mrf.mxu0
    %v2416 = vadd.f32 0.0, %v2415
    %v2417 = vpop.f32.mrf.mxu0
    %2418 = vdwg.mxu0
    %2419 = vrot.lane.b32.xlu0 %v559, 32
    %v2420 = vpop.permute.xlu0 %2419
    %v2423 = vsel %vm749, %v2277, 0
    %2425 = vmatprep.subr.bf16.mxu0 0
    %2426 = vmatpush1.bf16.msra.mxu0 0
    %2427 = vmatprep.subr.bf16.mxu0 0
    %2428 = vmatpush1.bf16.msra.mxu0 0
    %2429 = vmatprep.subr.bf16.mxu0 0
    %2430 = vmatpush1.bf16.msra.mxu0 0
    %2431 = vmatprep.subr.bf16.mxu0 0
    %2432 = vmatpush1.bf16.msra.mxu0 0
    %2433 = vmatprep.subr.bf16.mxu0 0
    %2434 = vmatpush1.bf16.msra.mxu0 0
    %2435 = vmatprep.subr.bf16.mxu0 0
    %2436 = vmatpush1.bf16.msra.mxu0 0
    %2437 = vmatprep.subr.bf16.mxu0 0
    %2438 = vmatpush1.bf16.msra.mxu0 0
    %2439 = vmatprep.subr.bf16.mxu0 0
    %2440 = vmatpush1.bf16.msra.mxu0 %v2420
    %2441 = vmatprep.subr.bf16.mxu0 0
    %2442 = vmatpush2.bf16.msra.mxu0 0
    %2443 = vmatprep.subr.bf16.mxu0 0
    %2444 = vmatpush2.bf16.msra.mxu0 0
    %2445 = vmatprep.subr.bf16.mxu0 0
    %2446 = vmatpush2.bf16.msra.mxu0 0
    %2447 = vmatprep.subr.bf16.mxu0 0
    %2448 = vmatpush2.bf16.msra.mxu0 0
    %2449 = vmatprep.subr.bf16.mxu0 0
    %2450 = vmatpush2.bf16.msra.mxu0 0
    %2451 = vmatprep.subr.bf16.mxu0 0
    %2452 = vmatpush2.bf16.msra.mxu0 0
    %2453 = vmatprep.subr.bf16.mxu0 0
    %2454 = vmatpush2.bf16.msra.mxu0 0
    %2455 = vmatprep.subr.bf16.mxu0 0
    %2456 = vmatpush2.bf16.msra.mxu0 0
    %2457 = vmatprep.mubr.bf16.mxu0 0
    %2458 = vmatmul.mubr.bf16.gmra.mxu0 %v2423
    %v2459 = vpop.f32.mrf.mxu0
    %v2460 = vadd.f32 0.0, %v2459
    %v2461 = vpop.f32.mrf.mxu0
    %v2462 = vpop.f32.mrf.mxu0
    %v2463 = vadd.f32 0.0, %v2462
    %v2464 = vpop.f32.mrf.mxu0
    %2465 = vdwg.mxu0
    %v2466 = vrcp.pop %v2252
    %v2467 = vrcp.pop %v2255
    %v2468 = vrcp.pop %v2258
    %v2469 = vrcp.pop %v2261
    %v2470 = vrcp.pop %v2264
    %v2471 = vrcp.pop %v2267
    %v2472 = vrcp.pop %v2270
    %v2473 = vrcp.pop %v2273
    %v2474 = vmul.f32 %v2319, %v2466
    %v2475 = vmul.f32 %v2322, %v2467
    %v2476 = vmul.f32 %v2366, %v2468
    %v2477 = vmul.f32 %v2369, %v2469
    %v2478 = vmul.f32 %v2413, %v2470
    %v2479 = vmul.f32 %v2416, %v2471
    %v2480 = vmul.f32 %v2460, %v2472
    %v2481 = vmul.f32 %v2463, %v2473
    %2490 = vrot.lane.b32.xlu0 %v1506, 32
    %v2491 = vpop.permute.xlu0 %2490
    %2492 = vrot.lane.b32.xlu0 %v1507, 32
    %v2493 = vpop.permute.xlu0 %2492
    %2494 = vrot.lane.b32.xlu0 %v1508, 32
    %v2495 = vpop.permute.xlu0 %2494
    %2496 = vrot.lane.b32.xlu0 %v1509, 32
    %v2497 = vpop.permute.xlu0 %2496
    %2498 = vrot.lane.b32.xlu0 %v1510, 32
    %v2499 = vpop.permute.xlu0 %2498
    %2500 = vrot.lane.b32.xlu0 %v1511, 32
    %v2501 = vpop.permute.xlu0 %2500
    %2502 = vrot.lane.b32.xlu0 %v1512, 32
    %v2503 = vpop.permute.xlu0 %2502
    %2504 = vrot.lane.b32.xlu0 %v1513, 32
    %v2505 = vpop.permute.xlu0 %2504
    %2522 = vrot.lane.b32.xlu0 %v1990, 64
    %v2523 = vpop.permute.xlu0 %2522
    %2524 = vrot.lane.b32.xlu0 %v1991, 64
    %v2525 = vpop.permute.xlu0 %2524
    %2526 = vrot.lane.b32.xlu0 %v1992, 64
    %v2527 = vpop.permute.xlu0 %2526
    %2528 = vrot.lane.b32.xlu0 %v1993, 64
    %v2529 = vpop.permute.xlu0 %2528
    %2530 = vrot.lane.b32.xlu0 %v1994, 64
    %v2531 = vpop.permute.xlu0 %2530
    %2532 = vrot.lane.b32.xlu0 %v1995, 64
    %v2533 = vpop.permute.xlu0 %2532
    %2534 = vrot.lane.b32.xlu0 %v1996, 64
    %v2535 = vpop.permute.xlu0 %2534
    %2536 = vrot.lane.b32.xlu0 %v1997, 64
    %v2537 = vpop.permute.xlu0 %2536
    %2554 = vrot.lane.b32.xlu0 %v2474, 96
    %v2555 = vpop.permute.xlu0 %2554
    %2556 = vrot.lane.b32.xlu0 %v2475, 96
    %v2557 = vpop.permute.xlu0 %2556
    %2558 = vrot.lane.b32.xlu0 %v2476, 96
    %v2559 = vpop.permute.xlu0 %2558
    %2560 = vrot.lane.b32.xlu0 %v2477, 96
    %v2561 = vpop.permute.xlu0 %2560
    %2562 = vrot.lane.b32.xlu0 %v2478, 96
    %v2563 = vpop.permute.xlu0 %2562
    %2564 = vrot.lane.b32.xlu0 %v2479, 96
    %v2565 = vpop.permute.xlu0 %2564
    %2566 = vrot.lane.b32.xlu0 %v2480, 96
    %v2567 = vpop.permute.xlu0 %2566
    %2568 = vrot.lane.b32.xlu0 %v2481, 96
    %v2569 = vpop.permute.xlu0 %2568
    %v2578 = vsel %vm560, %v1010, %v2491
    %v2579 = vsel %vm560, %v1011, %v2493
    %v2580 = vsel %vm560, %v1012, %v2495
    %v2581 = vsel %vm560, %v1013, %v2497
    %v2582 = vsel %vm560, %v1014, %v2499
    %v2583 = vsel %vm560, %v1015, %v2501
    %v2584 = vsel %vm560, %v1016, %v2503
    %v2585 = vsel %vm560, %v1017, %v2505
    %vm2586 = vcmask 523264
    %v2587 = vsel %vm2586, %v2578, %v2523
    %v2588 = vsel %vm2586, %v2579, %v2525
    %v2589 = vsel %vm2586, %v2580, %v2527
    %v2590 = vsel %vm2586, %v2581, %v2529
    %v2591 = vsel %vm2586, %v2582, %v2531
    %v2592 = vsel %vm2586, %v2583, %v2533
    %v2593 = vsel %vm2586, %v2584, %v2535
    %v2594 = vsel %vm2586, %v2585, %v2537
    %vm2595 = vcmask 785408
    %v2596 = vsel %vm2595, %v2587, %v2555
    %v2597 = vsel %vm2595, %v2588, %v2557
    %v2598 = vsel %vm2595, %v2589, %v2559
    %v2599 = vsel %vm2595, %v2590, %v2561
    %v2600 = vsel %vm2595, %v2591, %v2563
    %v2601 = vsel %vm2595, %v2592, %v2565
    %v2602 = vsel %vm2595, %v2593, %v2567
    %v2603 = vsel %vm2595, %v2594, %v2569
    %v2604 = vpack.c.bf16 %v2597, %v2596
    %v2605 = vpack.c.bf16 %v2599, %v2598
    %v2606 = vpack.c.bf16 %v2601, %v2600
    %v2607 = vpack.c.bf16 %v2603, %v2602
    %v2608 = vld [vmem:[#allocation7] sm:$0xf]
    %v2609 = vld [vmem:[#allocation7 + $0x4] sm:$0xf]
    %v2610 = vld [vmem:[#allocation7 + $0x8] sm:$0xf]
    %v2611 = vld [vmem:[#allocation7 + $0xc] sm:$0xf]
    %v2612 = vld [vmem:[#allocation7 + $0x10] sm:$0xf]
    %v2613 = vld [vmem:[#allocation7 + $0x14] sm:$0xf]
    %v2614 = vld [vmem:[#allocation7 + $0x18] sm:$0xf]
    %v2615 = vld [vmem:[#allocation7 + $0x1c] sm:$0xf]
    %v2616 = vld [vmem:[#allocation7 + $0x20] sm:$0xf]
    %v2617 = vld [vmem:[#allocation7 + $0x24] sm:$0xf]
    %v2618 = vld [vmem:[#allocation7 + $0x28] sm:$0xf]
    %v2619 = vld [vmem:[#allocation7 + $0x2c] sm:$0xf]
    %v2620 = vld [vmem:[#allocation7 + $0x30] sm:$0xf]
    %v2621 = vld [vmem:[#allocation7 + $0x34] sm:$0xf]
    %v2622 = vld [vmem:[#allocation7 + $0x38] sm:$0xf]
    %v2623 = vld [vmem:[#allocation7 + $0x3c] sm:$0xf]
    %v2624 = vld [vmem:[%s5] sm:$0x1]
    %v2626 = vlaneseq
    %v2627 = vshrl.u32 %v2626, 7
    %v2628 = vsub.s32 0, %v2627
    %v2629 = vrot.slane %v2624, %v2628
    %v2647 = vunpack.c.l.b16 %v2608
    %v2648 = vunpack.c.l.b16 %v2609
    %v2649 = vunpack.c.l.b16 %v2610
    %v2650 = vunpack.c.l.b16 %v2611
    %v2651 = vunpack.c.l.b16 %v2612
    %v2652 = vunpack.c.l.b16 %v2613
    %v2653 = vunpack.c.l.b16 %v2614
    %v2654 = vunpack.c.l.b16 %v2615
    %v2655 = vunpack.c.l.b16 %v2616
    %v2656 = vunpack.c.l.b16 %v2617
    %v2657 = vunpack.c.l.b16 %v2618
    %v2658 = vunpack.c.l.b16 %v2619
    %v2659 = vunpack.c.l.b16 %v2620
    %v2660 = vunpack.c.l.b16 %v2621
    %v2661 = vunpack.c.l.b16 %v2622
    %v2662 = vunpack.c.l.b16 %v2623
    %v2663 = vpack.c.b16 %v2648, %v2647
    %v2664 = vpack.c.b16 %v2650, %v2649
    %v2665 = vpack.c.b16 %v2652, %v2651
    %v2666 = vpack.c.b16 %v2654, %v2653
    %v2667 = vpack.c.b16 %v2656, %v2655
    %v2668 = vpack.c.b16 %v2658, %v2657
    %v2669 = vpack.c.b16 %v2660, %v2659
    %v2670 = vpack.c.b16 %v2662, %v2661
    %2679 = vmatprep.subr.bf16.mxu0 0
    %2680 = vmatpush1.bf16.msra.mxu0 %v2670
    %2681 = vmatprep.subr.bf16.mxu0 0
    %2682 = vmatpush1.bf16.msra.mxu0 %v2669
    %2683 = vmatprep.subr.bf16.mxu0 0
    %2684 = vmatpush1.bf16.msra.mxu0 %v2668
    %2685 = vmatprep.subr.bf16.mxu0 0
    %2686 = vmatpush1.bf16.msra.mxu0 %v2667
    %2687 = vmatprep.subr.bf16.mxu0 0
    %2688 = vmatpush1.bf16.msra.mxu0 %v2666
    %2689 = vmatprep.subr.bf16.mxu0 0
    %2690 = vmatpush1.bf16.msra.mxu0 %v2665
    %2691 = vmatprep.subr.bf16.mxu0 0
    %2692 = vmatpush1.bf16.msra.mxu0 %v2664
    %2693 = vmatprep.subr.bf16.mxu0 0
    %2694 = vmatpush1.bf16.msra.mxu0 %v2663
    %2695 = vmatprep.subr.bf16.mxu0 0
    %2696 = vmatpush2.bf16.msra.mxu0 0
    %2697 = vmatprep.subr.bf16.mxu0 0
    %2698 = vmatpush2.bf16.msra.mxu0 0
    %2699 = vmatprep.subr.bf16.mxu0 0
    %2700 = vmatpush2.bf16.msra.mxu0 0
    %2701 = vmatprep.subr.bf16.mxu0 0
    %2702 = vmatpush2.bf16.msra.mxu0 0
    %2703 = vmatprep.subr.bf16.mxu0 0
    %2704 = vmatpush2.bf16.msra.mxu0 0
    %2705 = vmatprep.subr.bf16.mxu0 0
    %2706 = vmatpush2.bf16.msra.mxu0 0
    %2707 = vmatprep.subr.bf16.mxu0 0
    %2708 = vmatpush2.bf16.msra.mxu0 0
    %2709 = vmatprep.subr.bf16.mxu0 0
    %2710 = vmatpush2.bf16.msra.mxu0 0
    %2711 = vmatprep.mubr.bf16.mxu0 0
    %2712 = vmatmul.mubr.bf16.gmra.mxu0 %v2604
    %v2713 = vpop.f32.mrf.mxu0
    %v2714 = vadd.f32 %v2629, %v2713
    %v2715 = vpop.f32.mrf.mxu0
    %v2716 = vpop.f32.mrf.mxu0
    %v2717 = vadd.f32 %v2629, %v2716
    %v2718 = vpop.f32.mrf.mxu0
    %2719 = vmatprep.mubr.bf16.mxu0 0
    %2720 = vmatmul.mubr.bf16.gmra.mxu0 %v2605
    %v2721 = vpop.f32.mrf.mxu0
    %v2722 = vadd.f32 %v2629, %v2721
    %v2723 = vpop.f32.mrf.mxu0
    %v2724 = vpop.f32.mrf.mxu0
    %v2725 = vadd.f32 %v2629, %v2724
    %v2726 = vpop.f32.mrf.mxu0
    %2727 = vmatprep.mubr.bf16.mxu0 0
    %2728 = vmatmul.mubr.bf16.gmra.mxu0 %v2606
    %v2729 = vpop.f32.mrf.mxu0
    %v2730 = vadd.f32 %v2629, %v2729
    %v2731 = vpop.f32.mrf.mxu0
    %v2732 = vpop.f32.mrf.mxu0
    %v2733 = vadd.f32 %v2629, %v2732
    %v2734 = vpop.f32.mrf.mxu0
    %2735 = vmatprep.mubr.bf16.mxu0 0
    %2736 = vmatmul.mubr.bf16.gmra.mxu0 %v2607
    %v2737 = vpop.f32.mrf.mxu0
    %v2738 = vadd.f32 %v2629, %v2737
    %v2739 = vpop.f32.mrf.mxu0
    %v2740 = vpop.f32.mrf.mxu0
    %v2741 = vadd.f32 %v2629, %v2740
    %v2742 = vpop.f32.mrf.mxu0
    %2743 = vdwg.mxu0
    %v2744 = vadd.f32 %v111, %v2714
    %v2745 = vadd.f32 %v112, %v2717
    %v2746 = vadd.f32 %v113, %v2722
    %v2747 = vadd.f32 %v114, %v2725
    %v2748 = vadd.f32 %v115, %v2730
    %v2749 = vadd.f32 %v116, %v2733
    %v2750 = vadd.f32 %v117, %v2738
    %v2751 = vadd.f32 %v118, %v2741
    %v2752 = vld [vmem:[%s6] sm:$0x1]
    %v2753 = vld [vmem:[%s7] sm:$0x1]
    %2754 = vadd.xlane.f32.xlu0 %v2744
    %v2755 = vpop.xlane.xlu0 %2754
    %2756 = vadd.xlane.f32.xlu0 %v2745
    %v2757 = vpop.xlane.xlu0 %2756
    %2758 = vadd.xlane.f32.xlu0 %v2746
    %v2759 = vpop.xlane.xlu0 %2758
    %2760 = vadd.xlane.f32.xlu0 %v2747
    %v2761 = vpop.xlane.xlu0 %2760
    %2762 = vadd.xlane.f32.xlu0 %v2748
    %v2763 = vpop.xlane.xlu0 %2762
    %2764 = vadd.xlane.f32.xlu0 %v2749
    %v2765 = vpop.xlane.xlu0 %2764
    %2766 = vadd.xlane.f32.xlu0 %v2750
    %v2767 = vpop.xlane.xlu0 %2766
    %2768 = vadd.xlane.f32.xlu0 %v2751
    %v2769 = vpop.xlane.xlu0 %2768
    %v2770 = vmul.f32 %v2755, %v137
    %v2771 = vmul.f32 %v2757, %v137
    %v2772 = vmul.f32 %v2759, %v137
    %v2773 = vmul.f32 %v2761, %v137
    %v2774 = vmul.f32 %v2763, %v137
    %v2775 = vmul.f32 %v2765, %v137
    %v2776 = vmul.f32 %v2767, %v137
    %v2777 = vmul.f32 %v2769, %v137
    %v2778 = vsub.f32 %v2744, %v2770
    %v2779 = vsub.f32 %v2745, %v2771
    %v2780 = vsub.f32 %v2746, %v2772
    %v2781 = vsub.f32 %v2747, %v2773
    %v2782 = vsub.f32 %v2748, %v2774
    %v2783 = vsub.f32 %v2749, %v2775
    %v2784 = vsub.f32 %v2750, %v2776
    %v2785 = vsub.f32 %v2751, %v2777
    %v2786 = vmul.f32 %v2778, %v2778
    %v2787 = vmul.f32 %v2779, %v2779
    %v2788 = vmul.f32 %v2780, %v2780
    %v2789 = vmul.f32 %v2781, %v2781
    %v2790 = vmul.f32 %v2782, %v2782
    %v2791 = vmul.f32 %v2783, %v2783
    %v2792 = vmul.f32 %v2784, %v2784
    %v2793 = vmul.f32 %v2785, %v2785
    %2794 = vadd.xlane.f32.xlu0 %v2786
    %v2795 = vpop.xlane.xlu0 %2794
    %2796 = vadd.xlane.f32.xlu0 %v2787
    %v2797 = vpop.xlane.xlu0 %2796
    %2798 = vadd.xlane.f32.xlu0 %v2788
    %v2799 = vpop.xlane.xlu0 %2798
    %2800 = vadd.xlane.f32.xlu0 %v2789
    %v2801 = vpop.xlane.xlu0 %2800
    %2802 = vadd.xlane.f32.xlu0 %v2790
    %v2803 = vpop.xlane.xlu0 %2802
    %2804 = vadd.xlane.f32.xlu0 %v2791
    %v2805 = vpop.xlane.xlu0 %2804
    %2806 = vadd.xlane.f32.xlu0 %v2792
    %v2807 = vpop.xlane.xlu0 %2806
    %2808 = vadd.xlane.f32.xlu0 %v2793
    %v2809 = vpop.xlane.xlu0 %2808
    %v2810 = vmul.f32 %v2795, %v137
    %v2811 = vmul.f32 %v2797, %v137
    %v2812 = vmul.f32 %v2799, %v137
    %v2813 = vmul.f32 %v2801, %v137
    %v2814 = vmul.f32 %v2803, %v137
    %v2815 = vmul.f32 %v2805, %v137
    %v2816 = vmul.f32 %v2807, %v137
    %v2817 = vmul.f32 %v2809, %v137
    %v2818 = vadd.f32 %v2810, 1e-05
    %v2819 = vadd.f32 %v2811, 1e-05
    %v2820 = vadd.f32 %v2812, 1e-05
    %v2821 = vadd.f32 %v2813, 1e-05
    %v2822 = vadd.f32 %v2814, 1e-05
    %v2823 = vadd.f32 %v2815, 1e-05
    %v2824 = vadd.f32 %v2816, 1e-05
    %v2825 = vadd.f32 %v2817, 1e-05
    %v2826 = vrsqrt.pop %v2818
    %v2827 = vrsqrt.pop %v2819
    %v2828 = vrsqrt.pop %v2820
    %v2829 = vrsqrt.pop %v2821
    %v2830 = vrsqrt.pop %v2822
    %v2831 = vrsqrt.pop %v2823
    %v2832 = vrsqrt.pop %v2824
    %v2833 = vrsqrt.pop %v2825
    %v2834 = vmul.f32 %v2778, %v2826
    %v2835 = vmul.f32 %v2779, %v2827
    %v2836 = vmul.f32 %v2780, %v2828
    %v2837 = vmul.f32 %v2781, %v2829
    %v2838 = vmul.f32 %v2782, %v2830
    %v2839 = vmul.f32 %v2783, %v2831
    %v2840 = vmul.f32 %v2784, %v2832
    %v2841 = vmul.f32 %v2785, %v2833
    %v2843 = vlaneseq
    %v2844 = vshrl.u32 %v2843, 7
    %v2845 = vsub.s32 0, %v2844
    %v2846 = vrot.slane %v2752, %v2845
    %v2848 = vmul.f32 %v2834, %v2846
    %v2849 = vmul.f32 %v2835, %v2846
    %v2850 = vmul.f32 %v2836, %v2846
    %v2851 = vmul.f32 %v2837, %v2846
    %v2852 = vmul.f32 %v2838, %v2846
    %v2853 = vmul.f32 %v2839, %v2846
    %v2854 = vmul.f32 %v2840, %v2846
    %v2855 = vmul.f32 %v2841, %v2846
    %v2857 = vlaneseq
    %v2858 = vshrl.u32 %v2857, 7
    %v2859 = vsub.s32 0, %v2858
    %v2860 = vrot.slane %v2753, %v2859
    %v2862 = vadd.f32 %v2848, %v2860
    %v2863 = vadd.f32 %v2849, %v2860
    %v2864 = vadd.f32 %v2850, %v2860
    %v2865 = vadd.f32 %v2851, %v2860
    %v2866 = vadd.f32 %v2852, %v2860
    %v2867 = vadd.f32 %v2853, %v2860
    %v2868 = vadd.f32 %v2854, %v2860
    %v2869 = vadd.f32 %v2855, %v2860
    %v2870 = vpack.c.bf16 %v2863, %v2862
    %v2871 = vpack.c.bf16 %v2865, %v2864
    %v2872 = vpack.c.bf16 %v2867, %v2866
    %v2873 = vpack.c.bf16 %v2869, %v2868
    %v2874 = vld [vmem:[#allocation8] sm:$0xff]
    %v2875 = vld [vmem:[#allocation8 + $0x8] sm:$0xff]
    %v2876 = vld [vmem:[#allocation8 + $0x10] sm:$0xff]
    %v2877 = vld [vmem:[#allocation8 + $0x18] sm:$0xff]
    %v2878 = vld [vmem:[#allocation8 + $0x20] sm:$0xff]
    %v2879 = vld [vmem:[#allocation8 + $0x28] sm:$0xff]
    %v2880 = vld [vmem:[#allocation8 + $0x30] sm:$0xff]
    %v2881 = vld [vmem:[#allocation8 + $0x38] sm:$0xff]
    %v2882 = vld [vmem:[#allocation8 + $0x40] sm:$0xff]
    %v2883 = vld [vmem:[#allocation8 + $0x48] sm:$0xff]
    %v2884 = vld [vmem:[#allocation8 + $0x50] sm:$0xff]
    %v2885 = vld [vmem:[#allocation8 + $0x58] sm:$0xff]
    %v2886 = vld [vmem:[#allocation8 + $0x60] sm:$0xff]
    %v2887 = vld [vmem:[#allocation8 + $0x68] sm:$0xff]
    %v2888 = vld [vmem:[#allocation8 + $0x70] sm:$0xff]
    %v2889 = vld [vmem:[#allocation8 + $0x78] sm:$0xff]
    %v2890 = vld [vmem:[#allocation8 + $0x80] sm:$0xff]
    %v2891 = vld [vmem:[#allocation8 + $0x88] sm:$0xff]
    %v2892 = vld [vmem:[#allocation8 + $0x90] sm:$0xff]
    %v2893 = vld [vmem:[#allocation8 + $0x98] sm:$0xff]
    %v2894 = vld [vmem:[#allocation8 + $0xa0] sm:$0xff]
    %v2895 = vld [vmem:[#allocation8 + $0xa8] sm:$0xff]
    %v2896 = vld [vmem:[#allocation8 + $0xb0] sm:$0xff]
    %v2897 = vld [vmem:[#allocation8 + $0xb8] sm:$0xff]
    %v2898 = vld [vmem:[#allocation8 + $0xc0] sm:$0xff]
    %v2899 = vld [vmem:[#allocation8 + $0xc8] sm:$0xff]
    %v2900 = vld [vmem:[#allocation8 + $0xd0] sm:$0xff]
    %v2901 = vld [vmem:[#allocation8 + $0xd8] sm:$0xff]
    %v2902 = vld [vmem:[#allocation8 + $0xe0] sm:$0xff]
    %v2903 = vld [vmem:[#allocation8 + $0xe8] sm:$0xff]
    %v2904 = vld [vmem:[#allocation8 + $0xf0] sm:$0xff]
    %v2905 = vld [vmem:[#allocation8 + $0xf8] sm:$0xff]
    %v2906 = vld [vmem:[%s9] sm:$0xf]
    %v2908 = vlaneseq
    %v2909 = vshrl.u32 %v2908, 7
    %v2910 = vsub.s32 0, %v2909
    %v2911 = vrot.slane %v2906, %v2910
    %v2912 = vlaneseq
    %v2913 = vshrl.u32 %v2912, 7
    %v2914 = vsub.s32 1, %v2913
    %v2915 = vrot.slane %v2906, %v2914
    %v2916 = vlaneseq
    %v2917 = vshrl.u32 %v2916, 7
    %v2918 = vsub.s32 2, %v2917
    %v2919 = vrot.slane %v2906, %v2918
    %v2920 = vlaneseq
    %v2921 = vshrl.u32 %v2920, 7
    %v2922 = vsub.s32 3, %v2921
    %v2923 = vrot.slane %v2906, %v2922
    %v2960 = vunpack.c.l.b16 %v2874
    %v2961 = vunpack.c.h.b16 %v2874
    %v2962 = vunpack.c.l.b16 %v2875
    %v2963 = vunpack.c.h.b16 %v2875
    %v2964 = vunpack.c.l.b16 %v2876
    %v2965 = vunpack.c.h.b16 %v2876
    %v2966 = vunpack.c.l.b16 %v2877
    %v2967 = vunpack.c.h.b16 %v2877
    %v2968 = vunpack.c.l.b16 %v2878
    %v2969 = vunpack.c.h.b16 %v2878
    %v2970 = vunpack.c.l.b16 %v2879
    %v2971 = vunpack.c.h.b16 %v2879
    %v2972 = vunpack.c.l.b16 %v2880
    %v2973 = vunpack.c.h.b16 %v2880
    %v2974 = vunpack.c.l.b16 %v2881
    %v2975 = vunpack.c.h.b16 %v2881
    %v2976 = vunpack.c.l.b16 %v2882
    %v2977 = vunpack.c.h.b16 %v2882
    %v2978 = vunpack.c.l.b16 %v2883
    %v2979 = vunpack.c.h.b16 %v2883
    %v2980 = vunpack.c.l.b16 %v2884
    %v2981 = vunpack.c.h.b16 %v2884
    %v2982 = vunpack.c.l.b16 %v2885
    %v2983 = vunpack.c.h.b16 %v2885
    %v2984 = vunpack.c.l.b16 %v2886
    %v2985 = vunpack.c.h.b16 %v2886
    %v2986 = vunpack.c.l.b16 %v2887
    %v2987 = vunpack.c.h.b16 %v2887
    %v2988 = vunpack.c.l.b16 %v2888
    %v2989 = vunpack.c.h.b16 %v2888
    %v2990 = vunpack.c.l.b16 %v2889
    %v2991 = vunpack.c.h.b16 %v2889
    %v2992 = vunpack.c.l.b16 %v2890
    %v2993 = vunpack.c.h.b16 %v2890
    %v2994 = vunpack.c.l.b16 %v2891
    %v2995 = vunpack.c.h.b16 %v2891
    %v2996 = vunpack.c.l.b16 %v2892
    %v2997 = vunpack.c.h.b16 %v2892
    %v2998 = vunpack.c.l.b16 %v2893
    %v2999 = vunpack.c.h.b16 %v2893
    %v3000 = vunpack.c.l.b16 %v2894
    %v3001 = vunpack.c.h.b16 %v2894
    %v3002 = vunpack.c.l.b16 %v2895
    %v3003 = vunpack.c.h.b16 %v2895
    %v3004 = vunpack.c.l.b16 %v2896
    %v3005 = vunpack.c.h.b16 %v2896
    %v3006 = vunpack.c.l.b16 %v2897
    %v3007 = vunpack.c.h.b16 %v2897
    %v3008 = vunpack.c.l.b16 %v2898
    %v3009 = vunpack.c.h.b16 %v2898
    %v3010 = vunpack.c.l.b16 %v2899
    %v3011 = vunpack.c.h.b16 %v2899
    %v3012 = vunpack.c.l.b16 %v2900
    %v3013 = vunpack.c.h.b16 %v2900
    %v3014 = vunpack.c.l.b16 %v2901
    %v3015 = vunpack.c.h.b16 %v2901
    %v3016 = vunpack.c.l.b16 %v2902
    %v3017 = vunpack.c.h.b16 %v2902
    %v3018 = vunpack.c.l.b16 %v2903
    %v3019 = vunpack.c.h.b16 %v2903
    %v3020 = vunpack.c.l.b16 %v2904
    %v3021 = vunpack.c.h.b16 %v2904
    %v3022 = vunpack.c.l.b16 %v2905
    %v3023 = vunpack.c.h.b16 %v2905
    %v3024 = vpack.c.b16 %v2964, %v2960
    %v3025 = vpack.c.b16 %v2965, %v2961
    %v3026 = vpack.c.b16 %v2966, %v2962
    %v3027 = vpack.c.b16 %v2967, %v2963
    %v3028 = vpack.c.b16 %v2972, %v2968
    %v3029 = vpack.c.b16 %v2973, %v2969
    %v3030 = vpack.c.b16 %v2974, %v2970
    %v3031 = vpack.c.b16 %v2975, %v2971
    %v3032 = vpack.c.b16 %v2980, %v2976
    %v3033 = vpack.c.b16 %v2981, %v2977
    %v3034 = vpack.c.b16 %v2982, %v2978
    %v3035 = vpack.c.b16 %v2983, %v2979
    %v3036 = vpack.c.b16 %v2988, %v2984
    %v3037 = vpack.c.b16 %v2989, %v2985
    %v3038 = vpack.c.b16 %v2990, %v2986
    %v3039 = vpack.c.b16 %v2991, %v2987
    %v3040 = vpack.c.b16 %v2996, %v2992
    %v3041 = vpack.c.b16 %v2997, %v2993
    %v3042 = vpack.c.b16 %v2998, %v2994
    %v3043 = vpack.c.b16 %v2999, %v2995
    %v3044 = vpack.c.b16 %v3004, %v3000
    %v3045 = vpack.c.b16 %v3005, %v3001
    %v3046 = vpack.c.b16 %v3006, %v3002
    %v3047 = vpack.c.b16 %v3007, %v3003
    %v3048 = vpack.c.b16 %v3012, %v3008
    %v3049 = vpack.c.b16 %v3013, %v3009
    %v3050 = vpack.c.b16 %v3014, %v3010
    %v3051 = vpack.c.b16 %v3015, %v3011
    %v3052 = vpack.c.b16 %v3020, %v3016
    %v3053 = vpack.c.b16 %v3021, %v3017
    %v3054 = vpack.c.b16 %v3022, %v3018
    %v3055 = vpack.c.b16 %v3023, %v3019
    %3088 = vmatprep.subr.bf16.mxu0 %v3053
    %3089 = vmatpush1.bf16.msra.mxu0 %v3052
    %3090 = vmatprep.subr.bf16.mxu0 %v3049
    %3091 = vmatpush1.bf16.msra.mxu0 %v3048
    %3092 = vmatprep.subr.bf16.mxu0 %v3045
    %3093 = vmatpush1.bf16.msra.mxu0 %v3044
    %3094 = vmatprep.subr.bf16.mxu0 %v3041
    %3095 = vmatpush1.bf16.msra.mxu0 %v3040
    %3096 = vmatprep.subr.bf16.mxu0 %v3037
    %3097 = vmatpush1.bf16.msra.mxu0 %v3036
    %3098 = vmatprep.subr.bf16.mxu0 %v3033
    %3099 = vmatpush1.bf16.msra.mxu0 %v3032
    %3100 = vmatprep.subr.bf16.mxu0 %v3029
    %3101 = vmatpush1.bf16.msra.mxu0 %v3028
    %3102 = vmatprep.subr.bf16.mxu0 %v3025
    %3103 = vmatpush1.bf16.msra.mxu0 %v3024
    %3104 = vmatprep.subr.bf16.mxu0 0
    %3105 = vmatpush2.bf16.msra.mxu0 0
    %3106 = vmatprep.subr.bf16.mxu0 0
    %3107 = vmatpush2.bf16.msra.mxu0 0
    %3108 = vmatprep.subr.bf16.mxu0 0
    %3109 = vmatpush2.bf16.msra.mxu0 0
    %3110 = vmatprep.subr.bf16.mxu0 0
    %3111 = vmatpush2.bf16.msra.mxu0 0
    %3112 = vmatprep.subr.bf16.mxu0 0
    %3113 = vmatpush2.bf16.msra.mxu0 0
    %3114 = vmatprep.subr.bf16.mxu0 0
    %3115 = vmatpush2.bf16.msra.mxu0 0
    %3116 = vmatprep.subr.bf16.mxu0 0
    %3117 = vmatpush2.bf16.msra.mxu0 0
    %3118 = vmatprep.subr.bf16.mxu0 0
    %3119 = vmatpush2.bf16.msra.mxu0 0
    %3120 = vmatprep.mubr.bf16.mxu0 0
    %3121 = vmatmul.mubr.bf16.gmra.mxu0 %v2870
    %v3122 = vpop.f32.mrf.mxu0
    %v3123 = vadd.f32 %v2911, %v3122
    %v3124 = vpop.f32.mrf.mxu0
    %v3125 = vadd.f32 %v2915, %v3124
    %v3126 = vpop.f32.mrf.mxu0
    %v3127 = vadd.f32 %v2911, %v3126
    %v3128 = vpop.f32.mrf.mxu0
    %v3129 = vadd.f32 %v2915, %v3128
    %3130 = vmatprep.mubr.bf16.mxu0 0
    %3131 = vmatmul.mubr.bf16.gmra.mxu0 %v2871
    %v3132 = vpop.f32.mrf.mxu0
    %v3133 = vadd.f32 %v2911, %v3132
    %v3134 = vpop.f32.mrf.mxu0
    %v3135 = vadd.f32 %v2915, %v3134
    %v3136 = vpop.f32.mrf.mxu0
    %v3137 = vadd.f32 %v2911, %v3136
    %v3138 = vpop.f32.mrf.mxu0
    %v3139 = vadd.f32 %v2915, %v3138
    %3140 = vmatprep.mubr.bf16.mxu0 0
    %3141 = vmatmul.mubr.bf16.gmra.mxu0 %v2872
    %v3142 = vpop.f32.mrf.mxu0
    %v3143 = vadd.f32 %v2911, %v3142
    %v3144 = vpop.f32.mrf.mxu0
    %v3145 = vadd.f32 %v2915, %v3144
    %v3146 = vpop.f32.mrf.mxu0
    %v3147 = vadd.f32 %v2911, %v3146
    %v3148 = vpop.f32.mrf.mxu0
    %v3149 = vadd.f32 %v2915, %v3148
    %3150 = vmatprep.mubr.bf16.mxu0 0
    %3151 = vmatmul.mubr.bf16.gmra.mxu0 %v2873
    %v3152 = vpop.f32.mrf.mxu0
    %v3153 = vadd.f32 %v2911, %v3152
    %v3154 = vpop.f32.mrf.mxu0
    %v3155 = vadd.f32 %v2915, %v3154
    %v3156 = vpop.f32.mrf.mxu0
    %v3157 = vadd.f32 %v2911, %v3156
    %v3158 = vpop.f32.mrf.mxu0
    %v3159 = vadd.f32 %v2915, %v3158
    %3160 = vdwg.mxu0
    %3161 = vmatprep.subr.bf16.mxu0 %v3055
    %3162 = vmatpush1.bf16.msra.mxu0 %v3054
    %3163 = vmatprep.subr.bf16.mxu0 %v3051
    %3164 = vmatpush1.bf16.msra.mxu0 %v3050
    %3165 = vmatprep.subr.bf16.mxu0 %v3047
    %3166 = vmatpush1.bf16.msra.mxu0 %v3046
    %3167 = vmatprep.subr.bf16.mxu0 %v3043
    %3168 = vmatpush1.bf16.msra.mxu0 %v3042
    %3169 = vmatprep.subr.bf16.mxu0 %v3039
    %3170 = vmatpush1.bf16.msra.mxu0 %v3038
    %3171 = vmatprep.subr.bf16.mxu0 %v3035
    %3172 = vmatpush1.bf16.msra.mxu0 %v3034
    %3173 = vmatprep.subr.bf16.mxu0 %v3031
    %3174 = vmatpush1.bf16.msra.mxu0 %v3030
    %3175 = vmatprep.subr.bf16.mxu0 %v3027
    %3176 = vmatpush1.bf16.msra.mxu0 %v3026
    %3177 = vmatprep.subr.bf16.mxu0 0
    %3178 = vmatpush2.bf16.msra.mxu0 0
    %3179 = vmatprep.subr.bf16.mxu0 0
    %3180 = vmatpush2.bf16.msra.mxu0 0
    %3181 = vmatprep.subr.bf16.mxu0 0
    %3182 = vmatpush2.bf16.msra.mxu0 0
    %3183 = vmatprep.subr.bf16.mxu0 0
    %3184 = vmatpush2.bf16.msra.mxu0 0
    %3185 = vmatprep.subr.bf16.mxu0 0
    %3186 = vmatpush2.bf16.msra.mxu0 0
    %3187 = vmatprep.subr.bf16.mxu0 0
    %3188 = vmatpush2.bf16.msra.mxu0 0
    %3189 = vmatprep.subr.bf16.mxu0 0
    %3190 = vmatpush2.bf16.msra.mxu0 0
    %3191 = vmatprep.subr.bf16.mxu0 0
    %3192 = vmatpush2.bf16.msra.mxu0 0
    %3193 = vmatprep.mubr.bf16.mxu0 0
    %3194 = vmatmul.mubr.bf16.gmra.mxu0 %v2870
    %v3195 = vpop.f32.mrf.mxu0
    %v3196 = vadd.f32 %v2919, %v3195
    %v3197 = vpop.f32.mrf.mxu0
    %v3198 = vadd.f32 %v2923, %v3197
    %v3199 = vpop.f32.mrf.mxu0
    %v3200 = vadd.f32 %v2919, %v3199
    %v3201 = vpop.f32.mrf.mxu0
    %v3202 = vadd.f32 %v2923, %v3201
    %3203 = vmatprep.mubr.bf16.mxu0 0
    %3204 = vmatmul.mubr.bf16.gmra.mxu0 %v2871
    %v3205 = vpop.f32.mrf.mxu0
    %v3206 = vadd.f32 %v2919, %v3205
    %v3207 = vpop.f32.mrf.mxu0
    %v3208 = vadd.f32 %v2923, %v3207
    %v3209 = vpop.f32.mrf.mxu0
    %v3210 = vadd.f32 %v2919, %v3209
    %v3211 = vpop.f32.mrf.mxu0
    %v3212 = vadd.f32 %v2923, %v3211
    %3213 = vmatprep.mubr.bf16.mxu0 0
    %3214 = vmatmul.mubr.bf16.gmra.mxu0 %v2872
    %v3215 = vpop.f32.mrf.mxu0
    %v3216 = vadd.f32 %v2919, %v3215
    %v3217 = vpop.f32.mrf.mxu0
    %v3218 = vadd.f32 %v2923, %v3217
    %v3219 = vpop.f32.mrf.mxu0
    %v3220 = vadd.f32 %v2919, %v3219
    %v3221 = vpop.f32.mrf.mxu0
    %v3222 = vadd.f32 %v2923, %v3221
    %3223 = vmatprep.mubr.bf16.mxu0 0
    %3224 = vmatmul.mubr.bf16.gmra.mxu0 %v2873
    %v3225 = vpop.f32.mrf.mxu0
    %v3226 = vadd.f32 %v2919, %v3225
    %v3227 = vpop.f32.mrf.mxu0
    %v3228 = vadd.f32 %v2923, %v3227
    %v3229 = vpop.f32.mrf.mxu0
    %v3230 = vadd.f32 %v2919, %v3229
    %v3231 = vpop.f32.mrf.mxu0
    %v3232 = vadd.f32 %v2923, %v3231
    %3233 = vdwg.mxu0
    %v3234 = vmul.f32 %v3123, 0.5
    %v3235 = vmul.f32 %v3125, 0.5
    %v3236 = vmul.f32 %v3196, 0.5
    %v3237 = vmul.f32 %v3198, 0.5
    %v3238 = vmul.f32 %v3127, 0.5
    %v3239 = vmul.f32 %v3129, 0.5
    %v3240 = vmul.f32 %v3200, 0.5
    %v3241 = vmul.f32 %v3202, 0.5
    %v3242 = vmul.f32 %v3133, 0.5
    %v3243 = vmul.f32 %v3135, 0.5
    %v3244 = vmul.f32 %v3206, 0.5
    %v3245 = vmul.f32 %v3208, 0.5
    %v3246 = vmul.f32 %v3137, 0.5
    %v3247 = vmul.f32 %v3139, 0.5
    %v3248 = vmul.f32 %v3210, 0.5
    %v3249 = vmul.f32 %v3212, 0.5
    %v3250 = vmul.f32 %v3143, 0.5
    %v3251 = vmul.f32 %v3145, 0.5
    %v3252 = vmul.f32 %v3216, 0.5
    %v3253 = vmul.f32 %v3218, 0.5
    %v3254 = vmul.f32 %v3147, 0.5
    %v3255 = vmul.f32 %v3149, 0.5
    %v3256 = vmul.f32 %v3220, 0.5
    %v3257 = vmul.f32 %v3222, 0.5
    %v3258 = vmul.f32 %v3153, 0.5
    %v3259 = vmul.f32 %v3155, 0.5
    %v3260 = vmul.f32 %v3226, 0.5
    %v3261 = vmul.f32 %v3228, 0.5
    %v3262 = vmul.f32 %v3157, 0.5
    %v3263 = vmul.f32 %v3159, 0.5
    %v3264 = vmul.f32 %v3230, 0.5
    %v3265 = vmul.f32 %v3232, 0.5
    %v3266 = vmul.f32 %v3123, 0.70710677
    %v3267 = vmul.f32 %v3125, 0.70710677
    %v3268 = vmul.f32 %v3196, 0.70710677
    %v3269 = vmul.f32 %v3198, 0.70710677
    %v3270 = vmul.f32 %v3127, 0.70710677
    %v3271 = vmul.f32 %v3129, 0.70710677
    %v3272 = vmul.f32 %v3200, 0.70710677
    %v3273 = vmul.f32 %v3202, 0.70710677
    %v3274 = vmul.f32 %v3133, 0.70710677
    %v3275 = vmul.f32 %v3135, 0.70710677
    %v3276 = vmul.f32 %v3206, 0.70710677
    %v3277 = vmul.f32 %v3208, 0.70710677
    %v3278 = vmul.f32 %v3137, 0.70710677
    %v3279 = vmul.f32 %v3139, 0.70710677
    %v3280 = vmul.f32 %v3210, 0.70710677
    %v3281 = vmul.f32 %v3212, 0.70710677
    %v3282 = vmul.f32 %v3143, 0.70710677
    %v3283 = vmul.f32 %v3145, 0.70710677
    %v3284 = vmul.f32 %v3216, 0.70710677
    %v3285 = vmul.f32 %v3218, 0.70710677
    %v3286 = vmul.f32 %v3147, 0.70710677
    %v3287 = vmul.f32 %v3149, 0.70710677
    %v3288 = vmul.f32 %v3220, 0.70710677
    %v3289 = vmul.f32 %v3222, 0.70710677
    %v3290 = vmul.f32 %v3153, 0.70710677
    %v3291 = vmul.f32 %v3155, 0.70710677
    %v3292 = vmul.f32 %v3226, 0.70710677
    %v3293 = vmul.f32 %v3228, 0.70710677
    %v3294 = vmul.f32 %v3157, 0.70710677
    %v3295 = vmul.f32 %v3159, 0.70710677
    %v3296 = vmul.f32 %v3230, 0.70710677
    %v3297 = vmul.f32 %v3232, 0.70710677
    %v3298 = verf.f32.pop %v3266
    %v3299 = verf.f32.pop %v3267
    %v3300 = verf.f32.pop %v3268
    %v3301 = verf.f32.pop %v3269
    %v3302 = verf.f32.pop %v3270
    %v3303 = verf.f32.pop %v3271
    %v3304 = verf.f32.pop %v3272
    %v3305 = verf.f32.pop %v3273
    %v3306 = verf.f32.pop %v3274
    %v3307 = verf.f32.pop %v3275
    %v3308 = verf.f32.pop %v3276
    %v3309 = verf.f32.pop %v3277
    %v3310 = verf.f32.pop %v3278
    %v3311 = verf.f32.pop %v3279
    %v3312 = verf.f32.pop %v3280
    %v3313 = verf.f32.pop %v3281
    %v3314 = verf.f32.pop %v3282
    %v3315 = verf.f32.pop %v3283
    %v3316 = verf.f32.pop %v3284
    %v3317 = verf.f32.pop %v3285
    %v3318 = verf.f32.pop %v3286
    %v3319 = verf.f32.pop %v3287
    %v3320 = verf.f32.pop %v3288
    %v3321 = verf.f32.pop %v3289
    %v3322 = verf.f32.pop %v3290
    %v3323 = verf.f32.pop %v3291
    %v3324 = verf.f32.pop %v3292
    %v3325 = verf.f32.pop %v3293
    %v3326 = verf.f32.pop %v3294
    %v3327 = verf.f32.pop %v3295
    %v3328 = verf.f32.pop %v3296
    %v3329 = verf.f32.pop %v3297
    %v3330 = vadd.f32 %v3298, 1.0
    %v3331 = vadd.f32 %v3299, 1.0
    %v3332 = vadd.f32 %v3300, 1.0
    %v3333 = vadd.f32 %v3301, 1.0
    %v3334 = vadd.f32 %v3302, 1.0
    %v3335 = vadd.f32 %v3303, 1.0
    %v3336 = vadd.f32 %v3304, 1.0
    %v3337 = vadd.f32 %v3305, 1.0
    %v3338 = vadd.f32 %v3306, 1.0
    %v3339 = vadd.f32 %v3307, 1.0
    %v3340 = vadd.f32 %v3308, 1.0
    %v3341 = vadd.f32 %v3309, 1.0
    %v3342 = vadd.f32 %v3310, 1.0
    %v3343 = vadd.f32 %v3311, 1.0
    %v3344 = vadd.f32 %v3312, 1.0
    %v3345 = vadd.f32 %v3313, 1.0
    %v3346 = vadd.f32 %v3314, 1.0
    %v3347 = vadd.f32 %v3315, 1.0
    %v3348 = vadd.f32 %v3316, 1.0
    %v3349 = vadd.f32 %v3317, 1.0
    %v3350 = vadd.f32 %v3318, 1.0
    %v3351 = vadd.f32 %v3319, 1.0
    %v3352 = vadd.f32 %v3320, 1.0
    %v3353 = vadd.f32 %v3321, 1.0
    %v3354 = vadd.f32 %v3322, 1.0
    %v3355 = vadd.f32 %v3323, 1.0
    %v3356 = vadd.f32 %v3324, 1.0
    %v3357 = vadd.f32 %v3325, 1.0
    %v3358 = vadd.f32 %v3326, 1.0
    %v3359 = vadd.f32 %v3327, 1.0
    %v3360 = vadd.f32 %v3328, 1.0
    %v3361 = vadd.f32 %v3329, 1.0
    %v3362 = vmul.f32 %v3234, %v3330
    %v3363 = vmul.f32 %v3235, %v3331
    %v3364 = vmul.f32 %v3236, %v3332
    %v3365 = vmul.f32 %v3237, %v3333
    %v3366 = vmul.f32 %v3238, %v3334
    %v3367 = vmul.f32 %v3239, %v3335
    %v3368 = vmul.f32 %v3240, %v3336
    %v3369 = vmul.f32 %v3241, %v3337
    %v3370 = vmul.f32 %v3242, %v3338
    %v3371 = vmul.f32 %v3243, %v3339
    %v3372 = vmul.f32 %v3244, %v3340
    %v3373 = vmul.f32 %v3245, %v3341
    %v3374 = vmul.f32 %v3246, %v3342
    %v3375 = vmul.f32 %v3247, %v3343
    %v3376 = vmul.f32 %v3248, %v3344
    %v3377 = vmul.f32 %v3249, %v3345
    %v3378 = vmul.f32 %v3250, %v3346
    %v3379 = vmul.f32 %v3251, %v3347
    %v3380 = vmul.f32 %v3252, %v3348
    %v3381 = vmul.f32 %v3253, %v3349
    %v3382 = vmul.f32 %v3254, %v3350
    %v3383 = vmul.f32 %v3255, %v3351
    %v3384 = vmul.f32 %v3256, %v3352
    %v3385 = vmul.f32 %v3257, %v3353
    %v3386 = vmul.f32 %v3258, %v3354
    %v3387 = vmul.f32 %v3259, %v3355
    %v3388 = vmul.f32 %v3260, %v3356
    %v3389 = vmul.f32 %v3261, %v3357
    %v3390 = vmul.f32 %v3262, %v3358
    %v3391 = vmul.f32 %v3263, %v3359
    %v3392 = vmul.f32 %v3264, %v3360
    %v3393 = vmul.f32 %v3265, %v3361
    %v3394 = vpack.c.bf16 %v3366, %v3362
    %v3395 = vpack.c.bf16 %v3367, %v3363
    %v3396 = vpack.c.bf16 %v3368, %v3364
    %v3397 = vpack.c.bf16 %v3369, %v3365
    %v3398 = vpack.c.bf16 %v3374, %v3370
    %v3399 = vpack.c.bf16 %v3375, %v3371
    %v3400 = vpack.c.bf16 %v3376, %v3372
    %v3401 = vpack.c.bf16 %v3377, %v3373
    %v3402 = vpack.c.bf16 %v3382, %v3378
    %v3403 = vpack.c.bf16 %v3383, %v3379
    %v3404 = vpack.c.bf16 %v3384, %v3380
    %v3405 = vpack.c.bf16 %v3385, %v3381
    %v3406 = vpack.c.bf16 %v3390, %v3386
    %v3407 = vpack.c.bf16 %v3391, %v3387
    %v3408 = vpack.c.bf16 %v3392, %v3388
    %v3409 = vpack.c.bf16 %v3393, %v3389
    %v3410 = vld [vmem:[#allocation10] sm:$0xf]
    %v3411 = vld [vmem:[#allocation10 + $0x4] sm:$0xf]
    %v3412 = vld [vmem:[#allocation10 + $0x8] sm:$0xf]
    %v3413 = vld [vmem:[#allocation10 + $0xc] sm:$0xf]
    %v3414 = vld [vmem:[#allocation10 + $0x10] sm:$0xf]
    %v3415 = vld [vmem:[#allocation10 + $0x14] sm:$0xf]
    %v3416 = vld [vmem:[#allocation10 + $0x18] sm:$0xf]
    %v3417 = vld [vmem:[#allocation10 + $0x1c] sm:$0xf]
    %v3418 = vld [vmem:[#allocation10 + $0x20] sm:$0xf]
    %v3419 = vld [vmem:[#allocation10 + $0x24] sm:$0xf]
    %v3420 = vld [vmem:[#allocation10 + $0x28] sm:$0xf]
    %v3421 = vld [vmem:[#allocation10 + $0x2c] sm:$0xf]
    %v3422 = vld [vmem:[#allocation10 + $0x30] sm:$0xf]
    %v3423 = vld [vmem:[#allocation10 + $0x34] sm:$0xf]
    %v3424 = vld [vmem:[#allocation10 + $0x38] sm:$0xf]
    %v3425 = vld [vmem:[#allocation10 + $0x3c] sm:$0xf]
    %v3426 = vld [vmem:[#allocation10 + $0x40] sm:$0xf]
    %v3427 = vld [vmem:[#allocation10 + $0x44] sm:$0xf]
    %v3428 = vld [vmem:[#allocation10 + $0x48] sm:$0xf]
    %v3429 = vld [vmem:[#allocation10 + $0x4c] sm:$0xf]
    %v3430 = vld [vmem:[#allocation10 + $0x50] sm:$0xf]
    %v3431 = vld [vmem:[#allocation10 + $0x54] sm:$0xf]
    %v3432 = vld [vmem:[#allocation10 + $0x58] sm:$0xf]
    %v3433 = vld [vmem:[#allocation10 + $0x5c] sm:$0xf]
    %v3434 = vld [vmem:[#allocation10 + $0x60] sm:$0xf]
    %v3435 = vld [vmem:[#allocation10 + $0x64] sm:$0xf]
    %v3436 = vld [vmem:[#allocation10 + $0x68] sm:$0xf]
    %v3437 = vld [vmem:[#allocation10 + $0x6c] sm:$0xf]
    %v3438 = vld [vmem:[#allocation10 + $0x70] sm:$0xf]
    %v3439 = vld [vmem:[#allocation10 + $0x74] sm:$0xf]
    %v3440 = vld [vmem:[#allocation10 + $0x78] sm:$0xf]
    %v3441 = vld [vmem:[#allocation10 + $0x7c] sm:$0xf]
    %v3442 = vld [vmem:[#allocation10 + $0x80] sm:$0xf]
    %v3443 = vld [vmem:[#allocation10 + $0x84] sm:$0xf]
    %v3444 = vld [vmem:[#allocation10 + $0x88] sm:$0xf]
    %v3445 = vld [vmem:[#allocation10 + $0x8c] sm:$0xf]
    %v3446 = vld [vmem:[#allocation10 + $0x90] sm:$0xf]
    %v3447 = vld [vmem:[#allocation10 + $0x94] sm:$0xf]
    %v3448 = vld [vmem:[#allocation10 + $0x98] sm:$0xf]
    %v3449 = vld [vmem:[#allocation10 + $0x9c] sm:$0xf]
    %v3450 = vld [vmem:[#allocation10 + $0xa0] sm:$0xf]
    %v3451 = vld [vmem:[#allocation10 + $0xa4] sm:$0xf]
    %v3452 = vld [vmem:[#allocation10 + $0xa8] sm:$0xf]
    %v3453 = vld [vmem:[#allocation10 + $0xac] sm:$0xf]
    %v3454 = vld [vmem:[#allocation10 + $0xb0] sm:$0xf]
    %v3455 = vld [vmem:[#allocation10 + $0xb4] sm:$0xf]
    %v3456 = vld [vmem:[#allocation10 + $0xb8] sm:$0xf]
    %v3457 = vld [vmem:[#allocation10 + $0xbc] sm:$0xf]
    %v3458 = vld [vmem:[#allocation10 + $0xc0] sm:$0xf]
    %v3459 = vld [vmem:[#allocation10 + $0xc4] sm:$0xf]
    %v3460 = vld [vmem:[#allocation10 + $0xc8] sm:$0xf]
    %v3461 = vld [vmem:[#allocation10 + $0xcc] sm:$0xf]
    %v3462 = vld [vmem:[#allocation10 + $0xd0] sm:$0xf]
    %v3463 = vld [vmem:[#allocation10 + $0xd4] sm:$0xf]
    %v3464 = vld [vmem:[#allocation10 + $0xd8] sm:$0xf]
    %v3465 = vld [vmem:[#allocation10 + $0xdc] sm:$0xf]
    %v3466 = vld [vmem:[#allocation10 + $0xe0] sm:$0xf]
    %v3467 = vld [vmem:[#allocation10 + $0xe4] sm:$0xf]
    %v3468 = vld [vmem:[#allocation10 + $0xe8] sm:$0xf]
    %v3469 = vld [vmem:[#allocation10 + $0xec] sm:$0xf]
    %v3470 = vld [vmem:[#allocation10 + $0xf0] sm:$0xf]
    %v3471 = vld [vmem:[#allocation10 + $0xf4] sm:$0xf]
    %v3472 = vld [vmem:[#allocation10 + $0xf8] sm:$0xf]
    %v3473 = vld [vmem:[#allocation10 + $0xfc] sm:$0xf]
    %v3474 = vld [vmem:[%s11] sm:$0x1]
    %v3476 = vlaneseq
    %v3477 = vshrl.u32 %v3476, 7
    %v3478 = vsub.s32 0, %v3477
    %v3479 = vrot.slane %v3474, %v3478
    %v3545 = vunpack.c.l.b16 %v3410
    %v3546 = vunpack.c.l.b16 %v3411
    %v3547 = vunpack.c.l.b16 %v3412
    %v3548 = vunpack.c.l.b16 %v3413
    %v3549 = vunpack.c.l.b16 %v3414
    %v3550 = vunpack.c.l.b16 %v3415
    %v3551 = vunpack.c.l.b16 %v3416
    %v3552 = vunpack.c.l.b16 %v3417
    %v3553 = vunpack.c.l.b16 %v3418
    %v3554 = vunpack.c.l.b16 %v3419
    %v3555 = vunpack.c.l.b16 %v3420
    %v3556 = vunpack.c.l.b16 %v3421
    %v3557 = vunpack.c.l.b16 %v3422
    %v3558 = vunpack.c.l.b16 %v3423
    %v3559 = vunpack.c.l.b16 %v3424
    %v3560 = vunpack.c.l.b16 %v3425
    %v3561 = vunpack.c.l.b16 %v3426
    %v3562 = vunpack.c.l.b16 %v3427
    %v3563 = vunpack.c.l.b16 %v3428
    %v3564 = vunpack.c.l.b16 %v3429
    %v3565 = vunpack.c.l.b16 %v3430
    %v3566 = vunpack.c.l.b16 %v3431
    %v3567 = vunpack.c.l.b16 %v3432
    %v3568 = vunpack.c.l.b16 %v3433
    %v3569 = vunpack.c.l.b16 %v3434
    %v3570 = vunpack.c.l.b16 %v3435
    %v3571 = vunpack.c.l.b16 %v3436
    %v3572 = vunpack.c.l.b16 %v3437
    %v3573 = vunpack.c.l.b16 %v3438
    %v3574 = vunpack.c.l.b16 %v3439
    %v3575 = vunpack.c.l.b16 %v3440
    %v3576 = vunpack.c.l.b16 %v3441
    %v3577 = vunpack.c.l.b16 %v3442
    %v3578 = vunpack.c.l.b16 %v3443
    %v3579 = vunpack.c.l.b16 %v3444
    %v3580 = vunpack.c.l.b16 %v3445
    %v3581 = vunpack.c.l.b16 %v3446
    %v3582 = vunpack.c.l.b16 %v3447
    %v3583 = vunpack.c.l.b16 %v3448
    %v3584 = vunpack.c.l.b16 %v3449
    %v3585 = vunpack.c.l.b16 %v3450
    %v3586 = vunpack.c.l.b16 %v3451
    %v3587 = vunpack.c.l.b16 %v3452
    %v3588 = vunpack.c.l.b16 %v3453
    %v3589 = vunpack.c.l.b16 %v3454
    %v3590 = vunpack.c.l.b16 %v3455
    %v3591 = vunpack.c.l.b16 %v3456
    %v3592 = vunpack.c.l.b16 %v3457
    %v3593 = vunpack.c.l.b16 %v3458
    %v3594 = vunpack.c.l.b16 %v3459
    %v3595 = vunpack.c.l.b16 %v3460
    %v3596 = vunpack.c.l.b16 %v3461
    %v3597 = vunpack.c.l.b16 %v3462
    %v3598 = vunpack.c.l.b16 %v3463
    %v3599 = vunpack.c.l.b16 %v3464
    %v3600 = vunpack.c.l.b16 %v3465
    %v3601 = vunpack.c.l.b16 %v3466
    %v3602 = vunpack.c.l.b16 %v3467
    %v3603 = vunpack.c.l.b16 %v3468
    %v3604 = vunpack.c.l.b16 %v3469
    %v3605 = vunpack.c.l.b16 %v3470
    %v3606 = vunpack.c.l.b16 %v3471
    %v3607 = vunpack.c.l.b16 %v3472
    %v3608 = vunpack.c.l.b16 %v3473
    %v3609 = vpack.c.b16 %v3546, %v3545
    %v3610 = vpack.c.b16 %v3548, %v3547
    %v3611 = vpack.c.b16 %v3550, %v3549
    %v3612 = vpack.c.b16 %v3552, %v3551
    %v3613 = vpack.c.b16 %v3554, %v3553
    %v3614 = vpack.c.b16 %v3556, %v3555
    %v3615 = vpack.c.b16 %v3558, %v3557
    %v3616 = vpack.c.b16 %v3560, %v3559
    %v3617 = vpack.c.b16 %v3562, %v3561
    %v3618 = vpack.c.b16 %v3564, %v3563
    %v3619 = vpack.c.b16 %v3566, %v3565
    %v3620 = vpack.c.b16 %v3568, %v3567
    %v3621 = vpack.c.b16 %v3570, %v3569
    %v3622 = vpack.c.b16 %v3572, %v3571
    %v3623 = vpack.c.b16 %v3574, %v3573
    %v3624 = vpack.c.b16 %v3576, %v3575
    %v3625 = vpack.c.b16 %v3578, %v3577
    %v3626 = vpack.c.b16 %v3580, %v3579
    %v3627 = vpack.c.b16 %v3582, %v3581
    %v3628 = vpack.c.b16 %v3584, %v3583
    %v3629 = vpack.c.b16 %v3586, %v3585
    %v3630 = vpack.c.b16 %v3588, %v3587
    %v3631 = vpack.c.b16 %v3590, %v3589
    %v3632 = vpack.c.b16 %v3592, %v3591
    %v3633 = vpack.c.b16 %v3594, %v3593
    %v3634 = vpack.c.b16 %v3596, %v3595
    %v3635 = vpack.c.b16 %v3598, %v3597
    %v3636 = vpack.c.b16 %v3600, %v3599
    %v3637 = vpack.c.b16 %v3602, %v3601
    %v3638 = vpack.c.b16 %v3604, %v3603
    %v3639 = vpack.c.b16 %v3606, %v3605
    %v3640 = vpack.c.b16 %v3608, %v3607
    %3673 = vmatprep.subr.bf16.mxu0 0
    %3674 = vmatpush1.bf16.msra.mxu0 %v3616
    %3675 = vmatprep.subr.bf16.mxu0 0
    %3676 = vmatpush1.bf16.msra.mxu0 %v3615
    %3677 = vmatprep.subr.bf16.mxu0 0
    %3678 = vmatpush1.bf16.msra.mxu0 %v3614
    %3679 = vmatprep.subr.bf16.mxu0 0
    %3680 = vmatpush1.bf16.msra.mxu0 %v3613
    %3681 = vmatprep.subr.bf16.mxu0 0
    %3682 = vmatpush1.bf16.msra.mxu0 %v3612
    %3683 = vmatprep.subr.bf16.mxu0 0
    %3684 = vmatpush1.bf16.msra.mxu0 %v3611
    %3685 = vmatprep.subr.bf16.mxu0 0
    %3686 = vmatpush1.bf16.msra.mxu0 %v3610
    %3687 = vmatprep.subr.bf16.mxu0 0
    %3688 = vmatpush1.bf16.msra.mxu0 %v3609
    %3689 = vmatprep.subr.bf16.mxu0 0
    %3690 = vmatpush2.bf16.msra.mxu0 %v3624
    %3691 = vmatprep.subr.bf16.mxu0 0
    %3692 = vmatpush2.bf16.msra.mxu0 %v3623
    %3693 = vmatprep.subr.bf16.mxu0 0
    %3694 = vmatpush2.bf16.msra.mxu0 %v3622
    %3695 = vmatprep.subr.bf16.mxu0 0
    %3696 = vmatpush2.bf16.msra.mxu0 %v3621
    %3697 = vmatprep.subr.bf16.mxu0 0
    %3698 = vmatpush2.bf16.msra.mxu0 %v3620
    %3699 = vmatprep.subr.bf16.mxu0 0
    %3700 = vmatpush2.bf16.msra.mxu0 %v3619
    %3701 = vmatprep.subr.bf16.mxu0 0
    %3702 = vmatpush2.bf16.msra.mxu0 %v3618
    %3703 = vmatprep.subr.bf16.mxu0 0
    %3704 = vmatpush2.bf16.msra.mxu0 %v3617
    %3705 = vmatprep.mubr.bf16.mxu0 %v3395
    %3706 = vmatmul.mubr.bf16.gmra.mxu0 %v3394
    %v3707 = vpop.f32.mrf.mxu0
    %v3708 = vadd.f32 %v3479, %v3707
    %v3709 = vpop.f32.mrf.mxu0
    %v3710 = vpop.f32.mrf.mxu0
    %v3711 = vadd.f32 %v3479, %v3710
    %v3712 = vpop.f32.mrf.mxu0
    %3713 = vmatprep.mubr.bf16.mxu0 %v3399
    %3714 = vmatmul.mubr.bf16.gmra.mxu0 %v3398
    %v3715 = vpop.f32.mrf.mxu0
    %v3716 = vadd.f32 %v3479, %v3715
    %v3717 = vpop.f32.mrf.mxu0
    %v3718 = vpop.f32.mrf.mxu0
    %v3719 = vadd.f32 %v3479, %v3718
    %v3720 = vpop.f32.mrf.mxu0
    %3721 = vmatprep.mubr.bf16.mxu0 %v3403
    %3722 = vmatmul.mubr.bf16.gmra.mxu0 %v3402
    %v3723 = vpop.f32.mrf.mxu0
    %v3724 = vadd.f32 %v3479, %v3723
    %v3725 = vpop.f32.mrf.mxu0
    %v3726 = vpop.f32.mrf.mxu0
    %v3727 = vadd.f32 %v3479, %v3726
    %v3728 = vpop.f32.mrf.mxu0
    %3729 = vmatprep.mubr.bf16.mxu0 %v3407
    %3730 = vmatmul.mubr.bf16.gmra.mxu0 %v3406
    %v3731 = vpop.f32.mrf.mxu0
    %v3732 = vadd.f32 %v3479, %v3731
    %v3733 = vpop.f32.mrf.mxu0
    %v3734 = vpop.f32.mrf.mxu0
    %v3735 = vadd.f32 %v3479, %v3734
    %v3736 = vpop.f32.mrf.mxu0
    %3737 = vdwg.mxu0
    %3738 = vmatprep.subr.bf16.mxu0 0
    %3739 = vmatpush1.bf16.msra.mxu0 %v3632
    %3740 = vmatprep.subr.bf16.mxu0 0
    %3741 = vmatpush1.bf16.msra.mxu0 %v3631
    %3742 = vmatprep.subr.bf16.mxu0 0
    %3743 = vmatpush1.bf16.msra.mxu0 %v3630
    %3744 = vmatprep.subr.bf16.mxu0 0
    %3745 = vmatpush1.bf16.msra.mxu0 %v3629
    %3746 = vmatprep.subr.bf16.mxu0 0
    %3747 = vmatpush1.bf16.msra.mxu0 %v3628
    %3748 = vmatprep.subr.bf16.mxu0 0
    %3749 = vmatpush1.bf16.msra.mxu0 %v3627
    %3750 = vmatprep.subr.bf16.mxu0 0
    %3751 = vmatpush1.bf16.msra.mxu0 %v3626
    %3752 = vmatprep.subr.bf16.mxu0 0
    %3753 = vmatpush1.bf16.msra.mxu0 %v3625
    %3754 = vmatprep.subr.bf16.mxu0 0
    %3755 = vmatpush2.bf16.msra.mxu0 %v3640
    %3756 = vmatprep.subr.bf16.mxu0 0
    %3757 = vmatpush2.bf16.msra.mxu0 %v3639
    %3758 = vmatprep.subr.bf16.mxu0 0
    %3759 = vmatpush2.bf16.msra.mxu0 %v3638
    %3760 = vmatprep.subr.bf16.mxu0 0
    %3761 = vmatpush2.bf16.msra.mxu0 %v3637
    %3762 = vmatprep.subr.bf16.mxu0 0
    %3763 = vmatpush2.bf16.msra.mxu0 %v3636
    %3764 = vmatprep.subr.bf16.mxu0 0
    %3765 = vmatpush2.bf16.msra.mxu0 %v3635
    %3766 = vmatprep.subr.bf16.mxu0 0
    %3767 = vmatpush2.bf16.msra.mxu0 %v3634
    %3768 = vmatprep.subr.bf16.mxu0 0
    %3769 = vmatpush2.bf16.msra.mxu0 %v3633
    %3770 = vmatprep.mubr.bf16.mxu0 %v3397
    %3771 = vmatmul.mubr.bf16.gmra.mxu0 %v3396
    %v3772 = vpop.f32.mrf.mxu0
    %v3773 = vadd.f32 %v3708, %v3772
    %v3774 = vpop.f32.mrf.mxu0
    %v3775 = vpop.f32.mrf.mxu0
    %v3776 = vadd.f32 %v3711, %v3775
    %v3777 = vpop.f32.mrf.mxu0
    %3778 = vmatprep.mubr.bf16.mxu0 %v3401
    %3779 = vmatmul.mubr.bf16.gmra.mxu0 %v3400
    %v3780 = vpop.f32.mrf.mxu0
    %v3781 = vadd.f32 %v3716, %v3780
    %v3782 = vpop.f32.mrf.mxu0
    %v3783 = vpop.f32.mrf.mxu0
    %v3784 = vadd.f32 %v3719, %v3783
    %v3785 = vpop.f32.mrf.mxu0
    %3786 = vmatprep.mubr.bf16.mxu0 %v3405
    %3787 = vmatmul.mubr.bf16.gmra.mxu0 %v3404
    %v3788 = vpop.f32.mrf.mxu0
    %v3789 = vadd.f32 %v3724, %v3788
    %v3790 = vpop.f32.mrf.mxu0
    %v3791 = vpop.f32.mrf.mxu0
    %v3792 = vadd.f32 %v3727, %v3791
    %v3793 = vpop.f32.mrf.mxu0
    %3794 = vmatprep.mubr.bf16.mxu0 %v3409
    %3795 = vmatmul.mubr.bf16.gmra.mxu0 %v3408
    %v3796 = vpop.f32.mrf.mxu0
    %v3797 = vadd.f32 %v3732, %v3796
    %v3798 = vpop.f32.mrf.mxu0
    %v3799 = vpop.f32.mrf.mxu0
    %v3800 = vadd.f32 %v3735, %v3799
    %v3801 = vpop.f32.mrf.mxu0
    %3802 = vdwg.mxu0
    %v3803 = vadd.f32 %v2744, %v3773
    %v3804 = vadd.f32 %v2745, %v3776
    %v3805 = vadd.f32 %v2746, %v3781
    %v3806 = vadd.f32 %v2747, %v3784
    %v3807 = vadd.f32 %v2748, %v3789
    %v3808 = vadd.f32 %v2749, %v3792
    %v3809 = vadd.f32 %v2750, %v3797
    %v3810 = vadd.f32 %v2751, %v3800
    %3811 = vst [vmem:[#allocation11] sm:$0xff] %v3803
    %3812 = vst [vmem:[#allocation11 + $0x8] sm:$0xff] %v3804
    %3813 = vst [vmem:[#allocation11 + $0x10] sm:$0xff] %v3805
    %3814 = vst [vmem:[#allocation11 + $0x18] sm:$0xff] %v3806
    %3815 = vst [vmem:[#allocation11 + $0x20] sm:$0xff] %v3807
    %3816 = vst [vmem:[#allocation11 + $0x28] sm:$0xff] %v3808
    %3817 = vst [vmem:[#allocation11 + $0x30] sm:$0xff] %v3809
    %3818 = vst [vmem:[#allocation11 + $0x38] sm:$0xff] %v3810
    // Predicated region
    $region70: #{tpu_custom_call.1} parent=1 // pred_check
      _
    $region71: #{tpu_custom_call.1} parent=1 // pred_check_branch
      %3820 = sbr.rel (0) target = $region73
    $region72: #{tpu_custom_call.1} parent=1 // pred_region
      %s3822 = ssub.s32 1024, 1024
      %3823 = vsyncadd [#allocation4], %s3822
      %s3824 = sshll.u32 [#allocation11], 4
      %s3825 = int_to_ptr.vmem [resolvable:$true] %s3824
      %3830 = dma.vmem_to_hbm [thread:$0]  %s3825, 1024, %s12, [#allocation4], 128, 128, 8
    $region73: #{tpu_custom_call.1} parent=1 // pred_fallthru
      _
    // Predicated region
    $region74: #{tpu_custom_call.1} parent=1 // pred_check
      _
    $region75: #{tpu_custom_call.1} parent=1 // pred_check_branch
      %3832 = sbr.rel (0) target = $region77
    $region76: #{tpu_custom_call.1} parent=1 // pred_region
      %3833 = dma.done [#allocation4], 1024
    $region77: #{tpu_custom_call.1} parent=1 // pred_fallthru
      _
    %3834 = vsyncpa [#allocation3], 1
    %3835 = vsyncpa [#allocation6], 1
    %3836 = vsyncpa [#allocation9], 1
    %3837 = vsyncpa [#allocation4], 1

</llo_original>
